<compile_context>
chip_gen: v7x
topology: tpu7x:2x2x1
jax: 0.10.0
libtpu: 0.0.40
codegen_flags: <defaults>
</compile_context>

<pallas_src>
import functools
import math

import jax
import jax.numpy as jnp
from jax.experimental import pallas as pl
from jax.experimental.pallas import tpu as pltpu

NCLASSES = 10              # `nclasses` global in the original file (unspecified)
EMB = 128                  # emb_size
NB_LAYERS = 2
NB_HEADS = 4
HEAD_DIM = EMB // NB_HEADS
MLP_DIM = EMB // 2
IMG = 224                  # Patches() is hard-coded for 224x224 inputs
PATCH = 56
PATCH_GRID = IMG // PATCH
NB_PATCHES = PATCH_GRID * PATCH_GRID      # 16
PATCH_DIM = 3 * PATCH * PATCH             # 9408
LN_EPS = 1e-6                             # Block() passes eps=1e-6 explicitly
CLS_PAD = 128                             # lane-dense classifier output width

_VMEM = pl.BlockSpec(memory_space=pltpu.MemorySpace.VMEM)
_PER_BLOCK_REFS = 12


# --------------------------------------------------------------------------
# In-kernel helpers (pure jnp, traced inside the Pallas kernel body)
# --------------------------------------------------------------------------
def _layernorm(x, g, b):
    mu = jnp.mean(x, axis=-1, keepdims=True)
    var = jnp.mean(jnp.square(x - mu), axis=-1, keepdims=True)
    return (x - mu) * jax.lax.rsqrt(var + LN_EPS) * g + b


def _erf(x):
    # Abramowitz & Stegun 7.1.26 rational approximation (|err| < 1.5e-7),
    # built only from ops with guaranteed Mosaic lowerings (exp/mul/add/where).
    a1, a2, a3, a4, a5 = (0.254829592, -0.284496736, 1.421413741,
                          -1.453152027, 1.061405429)
    p = 0.3275911
    sign = jnp.where(x >= 0.0, 1.0, -1.0)
    ax = jnp.abs(x)
    t = 1.0 / (1.0 + p * ax)
    poly = ((((a5 * t + a4) * t + a3) * t + a2) * t + a1) * t
    return sign * (1.0 - poly * jnp.exp(-ax * ax))


def _gelu_exact(x):
    # nn.GELU() default (erf form).
    return 0.5 * x * (1.0 + _erf(x * (1.0 / math.sqrt(2.0))))


# --------------------------------------------------------------------------
# The single fused kernel: encoder -> 2 transformer blocks -> classifier
# --------------------------------------------------------------------------
def _transfor_birds_kernel(*refs, batch):
    n_blk_refs = _PER_BLOCK_REFS * NB_LAYERS
    patches_ref, pos_ref, encw_ref, encb_ref = refs[:4]
    block_refs = refs[4:4 + n_blk_refs]
    clsw_ref, clsb_ref, out_ref = refs[4 + n_blk_refs:]

    B, S, H, Dh = batch, NB_PATCHES, NB_HEADS, HEAD_DIM
    bf16 = jnp.bfloat16

    # ---- patch encoder + learned positional embedding (rows 1..S) --------
    x = jnp.dot(patches_ref[...], encw_ref[...],
                preferred_element_type=jnp.float32)
    x = x + encb_ref[...] + jnp.concatenate([pos_ref[...]] * B, axis=0)

    # ---- pre-LN transformer blocks ---------------------------------------
    # TODO(synk): the original passes batch_first positionally into the MHA
    # dropout slot (so torch attends over the batch axis); we implement the
    # intended batch-first self-attention over the 16 patch tokens, with
    # eval-mode dropout (identity).
    for l in range(NB_LAYERS):
        (ln1g, ln1b, w_in, b_in, w_out, b_out,
         ln2g, ln2b, w_fc1, b_fc1, w_fc2, b_fc2) = block_refs[
            _PER_BLOCK_REFS * l: _PER_BLOCK_REFS * (l + 1)]

        # --- multi-head self-attention + residual -------------------------
        xn = _layernorm(x, ln1g[...], ln1b[...])
        qkv = jnp.dot(xn.astype(bf16), w_in[...],
                      preferred_element_type=jnp.float32) + b_in[...]
        q = qkv[:, :EMB]                 # 128-aligned lane slices
        k = qkv[:, EMB:2 * EMB]
        v = qkv[:, 2 * EMB:]
        scale = 1.0 / math.sqrt(Dh)

        heads = []
        for h in range(H):               # static unroll over the 4 heads
            qh = q[:, h * Dh:(h + 1) * Dh].reshape(B, S, Dh)
            kh = k[:, h * Dh:(h + 1) * Dh].reshape(B, S, Dh)
            vh = v[:, h * Dh:(h + 1) * Dh].reshape(B, S, Dh)
            s = jnp.einsum("bqd,bkd->bqk", qh.astype(bf16), kh.astype(bf16),
                           preferred_element_type=jnp.float32) * scale
            s = s - jnp.max(s, axis=-1, keepdims=True)
            p = jnp.exp(s)
            p = p / jnp.sum(p, axis=-1, keepdims=True)
            o = jnp.einsum("bqk,bkd->bqd", p.astype(bf16), vh.astype(bf16),
                           preferred_element_type=jnp.float32)
            heads.append(o.reshape(B * S, Dh))
        attn = jnp.concatenate(heads, axis=-1)              # (B*S, EMB)
        x = x + jnp.dot(attn.astype(bf16), w_out[...],
                        preferred_element_type=jnp.float32) + b_out[...]

        # --- MLP (fc1 -> GELU -> fc2) + residual ---------------------------
        xn = _layernorm(x, ln2g[...], ln2b[...])
        h1 = jnp.dot(xn.astype(bf16), w_fc1[...],
                     preferred_element_type=jnp.float32) + b_fc1[...]
        h1 = _gelu_exact(h1)
        x = x + jnp.dot(h1.astype(bf16), w_fc2[...],
                        preferred_element_type=jnp.float32) + b_fc2[...]

    # ---- classifier on all rows, padded to a lane-dense 128-wide output --
    out_ref[...] = jnp.dot(x.astype(bf16), clsw_ref[...],
                           preferred_element_type=jnp.float32) + clsb_ref[...]


# --------------------------------------------------------------------------
# Wrapper
# --------------------------------------------------------------------------
def extract_patches(x_nchw):
    """Patches(): (B,3,224,224) -> (B*16, 3*56*56) in (C, ph, pw) order, bf16."""
    B = x_nchw.shape[0]
    x = x_nchw.astype(jnp.bfloat16)      # one fused XLA transpose+cast pass
    x = x.reshape(B, 3, PATCH_GRID, PATCH, PATCH_GRID, PATCH)
    x = jnp.transpose(x, (0, 2, 4, 1, 3, 5))        # (B, gh, gw, C, ph, pw)
    return x.reshape(B * NB_PATCHES, PATCH_DIM)


def transfor_birds_forward(params, x_nchw):
    B = x_nchw.shape[0]
    patches = extract_patches(x_nchw)                # (B*16, 9408) bf16
    pos = params["pos_emb"][1:NB_PATCHES + 1]        # rows 1..16 (index i+1)

    args = [patches, pos, params["enc_w"], params["enc_b"]]
    for blk in params["blocks"]:
        args += [blk["ln1_g"], blk["ln1_b"], blk["w_in"], blk["b_in"],
                 blk["w_out"], blk["b_out"], blk["ln2_g"], blk["ln2_b"],
                 blk["w_fc1"], blk["b_fc1"], blk["w_fc2"], blk["b_fc2"]]
    args += [params["cls_w"], params["cls_b"]]

    out = pl.pallas_call(
        functools.partial(_transfor_birds_kernel, batch=B),
        out_shape=jax.ShapeDtypeStruct((B * NB_PATCHES, CLS_PAD), jnp.float32),
        in_specs=[_VMEM] * len(args),
        out_specs=_VMEM,
    )(*args)
    # logits of the first patch token; drop the lane padding of the classifier.
    return out.reshape(B, NB_PATCHES, CLS_PAD)[:, 0, :NCLASSES]


# --------------------------------------------------------------------------
# Parameter construction (deterministic, synthetic; weights pre-cast to bf16)
# --------------------------------------------------------------------------
def _xavier(key, fan_in, fan_out, dtype=jnp.bfloat16):
    limit = math.sqrt(6.0 / (fan_in + fan_out))
    w = jax.random.uniform(key, (fan_in, fan_out), jnp.float32, -limit, limit)
    return w.astype(dtype)


def build_params(key):
    keys = iter(jax.random.split(key, 64))
    params = {
        "pos_emb": jax.random.normal(next(keys), (NB_PATCHES + 1, EMB),
                                     jnp.float32),
        # TODO(synk): original LinearPatchEncoder passes `biais=False` (typo)
        # to nn.Linear; we keep the standard biased Linear (intended semantics).
        "enc_w": _xavier(next(keys), PATCH_DIM, EMB),
        "enc_b": jnp.zeros((1, EMB), jnp.float32),
        "blocks": [],
    }
    cls_w = jnp.zeros((EMB, CLS_PAD), jnp.float32)
    cls_w = cls_w.at[:, :NCLASSES].set(
        jax.random.uniform(next(keys), (EMB, NCLASSES), jnp.float32,
                           -1.0 / math.sqrt(EMB), 1.0 / math.sqrt(EMB)))
    params["cls_w"] = cls_w.astype(jnp.bfloat16)
    params["cls_b"] = jnp.zeros((1, CLS_PAD), jnp.float32)

    for _ in range(NB_LAYERS):
        blk = {
            "ln1_g": jnp.ones((1, EMB), jnp.float32),
            "ln1_b": jnp.zeros((1, EMB), jnp.float32),
            "ln2_g": jnp.ones((1, EMB), jnp.float32),
            "ln2_b": jnp.zeros((1, EMB), jnp.float32),
            "w_in": _xavier(next(keys), EMB, 3 * EMB),   # packed qkv in_proj
            "b_in": jnp.zeros((1, 3 * EMB), jnp.float32),
            "w_out": _xavier(next(keys), EMB, EMB),
            "b_out": jnp.zeros((1, EMB), jnp.float32),
            "w_fc1": _xavier(next(keys), EMB, MLP_DIM),
            "b_fc1": jax.random.normal(next(keys), (1, MLP_DIM),
                                       jnp.float32) * 1e-6,
            "w_fc2": _xavier(next(keys), MLP_DIM, EMB),
            "b_fc2": jax.random.normal(next(keys), (1, EMB),
                                       jnp.float32) * 1e-6,
        }
        params["blocks"].append(blk)
    return params


# --------------------------------------------------------------------------
if __name__ == "__main__":
    key = jax.random.PRNGKey(0)
    k_params, k_input = jax.random.split(key)

    params = build_params(k_params)
    # Patches() is hard-coded for 224x224 RGB images; batch=2 keeps it small.
    x = jax.random.normal(k_input, (2, 3, IMG, IMG), jnp.float32)

    forward = jax.jit(transfor_birds_forward)
    logits = jax.block_until_ready(forward(params, x))

    assert logits.shape == (2, NCLASSES), logits.shape
    assert bool(jnp.all(jnp.isfinite(logits)))
    print("KERNEL_OK")
</pallas_src>

<mosaic_0001>
module attributes {stable_mosaic.version = 11 : i64} {
  func.func @_transfor_birds_kernel(%arg0: memref<32x9408xbf16, #tpu.memory_space<vmem>>, %arg1: memref<16x128xf32, #tpu.memory_space<vmem>>, %arg2: memref<9408x128xbf16, #tpu.memory_space<vmem>>, %arg3: memref<1x128xf32, #tpu.memory_space<vmem>>, %arg4: memref<1x128xf32, #tpu.memory_space<vmem>>, %arg5: memref<1x128xf32, #tpu.memory_space<vmem>>, %arg6: memref<128x384xbf16, #tpu.memory_space<vmem>>, %arg7: memref<1x384xf32, #tpu.memory_space<vmem>>, %arg8: memref<128x128xbf16, #tpu.memory_space<vmem>>, %arg9: memref<1x128xf32, #tpu.memory_space<vmem>>, %arg10: memref<1x128xf32, #tpu.memory_space<vmem>>, %arg11: memref<1x128xf32, #tpu.memory_space<vmem>>, %arg12: memref<128x64xbf16, #tpu.memory_space<vmem>>, %arg13: memref<1x64xf32, #tpu.memory_space<vmem>>, %arg14: memref<64x128xbf16, #tpu.memory_space<vmem>>, %arg15: memref<1x128xf32, #tpu.memory_space<vmem>>, %arg16: memref<1x128xf32, #tpu.memory_space<vmem>>, %arg17: memref<1x128xf32, #tpu.memory_space<vmem>>, %arg18: memref<128x384xbf16, #tpu.memory_space<vmem>>, %arg19: memref<1x384xf32, #tpu.memory_space<vmem>>, %arg20: memref<128x128xbf16, #tpu.memory_space<vmem>>, %arg21: memref<1x128xf32, #tpu.memory_space<vmem>>, %arg22: memref<1x128xf32, #tpu.memory_space<vmem>>, %arg23: memref<1x128xf32, #tpu.memory_space<vmem>>, %arg24: memref<128x64xbf16, #tpu.memory_space<vmem>>, %arg25: memref<1x64xf32, #tpu.memory_space<vmem>>, %arg26: memref<64x128xbf16, #tpu.memory_space<vmem>>, %arg27: memref<1x128xf32, #tpu.memory_space<vmem>>, %arg28: memref<128x128xbf16, #tpu.memory_space<vmem>>, %arg29: memref<1x128xf32, #tpu.memory_space<vmem>>, %arg30: memref<32x128xf32, #tpu.memory_space<vmem>>) attributes {dimension_semantics = [], scalar_prefetch = 0 : i64, scratch_operands = 0 : i64, tpu.core_type = #tpu.core_type<tc>} {
    %c0 = arith.constant 0 : index
    %c0_0 = arith.constant 0 : index
    %0 = vector.load %arg0[%c0, %c0_0] : memref<32x9408xbf16, #tpu.memory_space<vmem>>, vector<32x9408xbf16>
    %c0_1 = arith.constant 0 : index
    %c0_2 = arith.constant 0 : index
    %1 = vector.load %arg2[%c0_1, %c0_2] : memref<9408x128xbf16, #tpu.memory_space<vmem>>, vector<9408x128xbf16>
    %cst = arith.constant dense<0.000000e+00> : vector<32x128xf32>
    %2 = tpu.matmul %0, %1, %cst {dimension_numbers = #tpu.dot_dimension_numbers<[1], [0], [0], [1], [0, 0, 1, 1], [], []>} : vector<32x9408xbf16>, vector<9408x128xbf16>, vector<32x128xf32> -> vector<32x128xf32>
    %c0_3 = arith.constant 0 : index
    %c0_4 = arith.constant 0 : index
    %3 = vector.load %arg3[%c0_3, %c0_4] : memref<1x128xf32, #tpu.memory_space<vmem>>, vector<1x128xf32>
    %4 = vector.broadcast %3 : vector<1x128xf32> to vector<32x128xf32>
    %5 = arith.addf %2, %4 : vector<32x128xf32>
    %c0_5 = arith.constant 0 : index
    %c0_6 = arith.constant 0 : index
    %6 = vector.load %arg1[%c0_5, %c0_6] : memref<16x128xf32, #tpu.memory_space<vmem>>, vector<16x128xf32>
    %7 = tpu.concatenate %6, %6 in 0 : vector<16x128xf32>, vector<16x128xf32> -> vector<32x128xf32>
    %8 = arith.addf %5, %7 : vector<32x128xf32>
    %c0_7 = arith.constant 0 : index
    %c0_8 = arith.constant 0 : index
    %9 = vector.load %arg4[%c0_7, %c0_8] : memref<1x128xf32, #tpu.memory_space<vmem>>, vector<1x128xf32>
    %c0_9 = arith.constant 0 : index
    %c0_10 = arith.constant 0 : index
    %10 = vector.load %arg5[%c0_9, %c0_10] : memref<1x128xf32, #tpu.memory_space<vmem>>, vector<1x128xf32>
    %cst_11 = arith.constant dense<0.000000e+00> : vector<32xf32>
    %11 = vector.multi_reduction <add>, %8, %cst_11 [1] : vector<32x128xf32> to vector<32xf32>
    %12 = vector.shape_cast %11 : vector<32xf32> to vector<32x1xf32>
    %cst_12 = arith.constant 1.280000e+02 : f32
    %13 = vector.broadcast %cst_12 : f32 to vector<32x1xf32>
    %14 = arith.divf %12, %13 : vector<32x1xf32>
    %15 = vector.broadcast %14 : vector<32x1xf32> to vector<32x128xf32>
    %16 = arith.subf %8, %15 : vector<32x128xf32>
    %17 = arith.mulf %16, %16 : vector<32x128xf32>
    %cst_13 = arith.constant dense<0.000000e+00> : vector<32xf32>
    %18 = vector.multi_reduction <add>, %17, %cst_13 [1] : vector<32x128xf32> to vector<32xf32>
    %19 = vector.shape_cast %18 : vector<32xf32> to vector<32x1xf32>
    %cst_14 = arith.constant 1.280000e+02 : f32
    %20 = vector.broadcast %cst_14 : f32 to vector<32x1xf32>
    %21 = arith.divf %19, %20 : vector<32x1xf32>
    %22 = vector.broadcast %14 : vector<32x1xf32> to vector<32x128xf32>
    %23 = arith.subf %8, %22 : vector<32x128xf32>
    %cst_15 = arith.constant 9.99999997E-7 : f32
    %24 = vector.broadcast %cst_15 : f32 to vector<32x1xf32>
    %25 = arith.addf %21, %24 : vector<32x1xf32>
    %26 = math.rsqrt %25 : vector<32x1xf32>
    %27 = vector.broadcast %26 : vector<32x1xf32> to vector<32x128xf32>
    %28 = arith.mulf %23, %27 : vector<32x128xf32>
    %29 = vector.broadcast %9 : vector<1x128xf32> to vector<32x128xf32>
    %30 = arith.mulf %28, %29 : vector<32x128xf32>
    %31 = vector.broadcast %10 : vector<1x128xf32> to vector<32x128xf32>
    %32 = arith.addf %30, %31 : vector<32x128xf32>
    %33 = arith.truncf %32 : vector<32x128xf32> to vector<32x128xbf16>
    %c0_16 = arith.constant 0 : index
    %c0_17 = arith.constant 0 : index
    %34 = vector.load %arg6[%c0_16, %c0_17] : memref<128x384xbf16, #tpu.memory_space<vmem>>, vector<128x384xbf16>
    %cst_18 = arith.constant dense<0.000000e+00> : vector<32x384xf32>
    %35 = tpu.matmul %33, %34, %cst_18 {dimension_numbers = #tpu.dot_dimension_numbers<[1], [0], [0], [1], [0, 0, 1, 1], [], []>} : vector<32x128xbf16>, vector<128x384xbf16>, vector<32x384xf32> -> vector<32x384xf32>
    %c0_19 = arith.constant 0 : index
    %c0_20 = arith.constant 0 : index
    %36 = vector.load %arg7[%c0_19, %c0_20] : memref<1x384xf32, #tpu.memory_space<vmem>>, vector<1x384xf32>
    %37 = vector.broadcast %36 : vector<1x384xf32> to vector<32x384xf32>
    %38 = arith.addf %35, %37 : vector<32x384xf32>
    %39 = vector.extract_strided_slice %38 {offsets = [0, 0], sizes = [32, 128], strides = [1, 1]} : vector<32x384xf32> to vector<32x128xf32>
    %40 = vector.extract_strided_slice %38 {offsets = [0, 128], sizes = [32, 128], strides = [1, 1]} : vector<32x384xf32> to vector<32x128xf32>
    %41 = vector.extract_strided_slice %38 {offsets = [0, 256], sizes = [32, 128], strides = [1, 1]} : vector<32x384xf32> to vector<32x128xf32>
    %42 = vector.extract_strided_slice %39 {offsets = [0, 0], sizes = [32, 32], strides = [1, 1]} : vector<32x128xf32> to vector<32x32xf32>
    %43 = vector.shape_cast %42 : vector<32x32xf32> to vector<2x16x32xf32>
    %44 = vector.extract_strided_slice %40 {offsets = [0, 0], sizes = [32, 32], strides = [1, 1]} : vector<32x128xf32> to vector<32x32xf32>
    %45 = vector.shape_cast %44 : vector<32x32xf32> to vector<2x16x32xf32>
    %46 = vector.extract_strided_slice %41 {offsets = [0, 0], sizes = [32, 32], strides = [1, 1]} : vector<32x128xf32> to vector<32x32xf32>
    %47 = vector.shape_cast %46 : vector<32x32xf32> to vector<2x16x32xf32>
    %48 = arith.truncf %43 : vector<2x16x32xf32> to vector<2x16x32xbf16>
    %49 = arith.truncf %45 : vector<2x16x32xf32> to vector<2x16x32xbf16>
    "tpu.trace_start"() <{level = 10 : i32, message = "bqd,bkd->bqk"}> : () -> ()
    %cst_21 = arith.constant dense<0.000000e+00> : vector<2x16x16xf32>
    %50 = tpu.matmul %48, %49, %cst_21 {dimension_numbers = #tpu.dot_dimension_numbers<[2], [2], [1], [1], [0, 0, 0, 1, 1, 1], [0], [0]>} : vector<2x16x32xbf16>, vector<2x16x32xbf16>, vector<2x16x16xf32> -> vector<2x16x16xf32>
    "tpu.trace_stop"() : () -> ()
    %cst_22 = arith.constant 0.176776692 : f32
    %51 = vector.broadcast %cst_22 : f32 to vector<2x16x16xf32>
    %52 = arith.mulf %50, %51 : vector<2x16x16xf32>
    %cst_23 = arith.constant dense<0xFF800000> : vector<2x16xf32>
    %53 = vector.multi_reduction <maximumf>, %52, %cst_23 [2] : vector<2x16x16xf32> to vector<2x16xf32>
    %54 = vector.shape_cast %53 : vector<2x16xf32> to vector<2x16x1xf32>
    %55 = vector.broadcast %54 : vector<2x16x1xf32> to vector<2x16x16xf32>
    %56 = arith.subf %52, %55 : vector<2x16x16xf32>
    %57 = math.exp %56 : vector<2x16x16xf32>
    %cst_24 = arith.constant dense<0.000000e+00> : vector<2x16xf32>
    %58 = vector.multi_reduction <add>, %57, %cst_24 [2] : vector<2x16x16xf32> to vector<2x16xf32>
    %59 = vector.shape_cast %58 : vector<2x16xf32> to vector<2x16x1xf32>
    %60 = vector.broadcast %59 : vector<2x16x1xf32> to vector<2x16x16xf32>
    %61 = arith.divf %57, %60 : vector<2x16x16xf32>
    %62 = arith.truncf %61 : vector<2x16x16xf32> to vector<2x16x16xbf16>
    %63 = arith.truncf %47 : vector<2x16x32xf32> to vector<2x16x32xbf16>
    "tpu.trace_start"() <{level = 10 : i32, message = "bqk,bkd->bqd"}> : () -> ()
    %cst_25 = arith.constant dense<0.000000e+00> : vector<2x16x32xf32>
    %64 = tpu.matmul %62, %63, %cst_25 {dimension_numbers = #tpu.dot_dimension_numbers<[2], [1], [1], [2], [0, 0, 0, 1, 1, 2], [0], [0]>} : vector<2x16x16xbf16>, vector<2x16x32xbf16>, vector<2x16x32xf32> -> vector<2x16x32xf32>
    "tpu.trace_stop"() : () -> ()
    %65 = vector.shape_cast %64 : vector<2x16x32xf32> to vector<32x32xf32>
    %66 = vector.extract_strided_slice %39 {offsets = [0, 32], sizes = [32, 32], strides = [1, 1]} : vector<32x128xf32> to vector<32x32xf32>
    %67 = vector.shape_cast %66 : vector<32x32xf32> to vector<2x16x32xf32>
    %68 = vector.extract_strided_slice %40 {offsets = [0, 32], sizes = [32, 32], strides = [1, 1]} : vector<32x128xf32> to vector<32x32xf32>
    %69 = vector.shape_cast %68 : vector<32x32xf32> to vector<2x16x32xf32>
    %70 = vector.extract_strided_slice %41 {offsets = [0, 32], sizes = [32, 32], strides = [1, 1]} : vector<32x128xf32> to vector<32x32xf32>
    %71 = vector.shape_cast %70 : vector<32x32xf32> to vector<2x16x32xf32>
    %72 = arith.truncf %67 : vector<2x16x32xf32> to vector<2x16x32xbf16>
    %73 = arith.truncf %69 : vector<2x16x32xf32> to vector<2x16x32xbf16>
    "tpu.trace_start"() <{level = 10 : i32, message = "bqd,bkd->bqk"}> : () -> ()
    %cst_26 = arith.constant dense<0.000000e+00> : vector<2x16x16xf32>
    %74 = tpu.matmul %72, %73, %cst_26 {dimension_numbers = #tpu.dot_dimension_numbers<[2], [2], [1], [1], [0, 0, 0, 1, 1, 1], [0], [0]>} : vector<2x16x32xbf16>, vector<2x16x32xbf16>, vector<2x16x16xf32> -> vector<2x16x16xf32>
    "tpu.trace_stop"() : () -> ()
    %cst_27 = arith.constant 0.176776692 : f32
    %75 = vector.broadcast %cst_27 : f32 to vector<2x16x16xf32>
    %76 = arith.mulf %74, %75 : vector<2x16x16xf32>
    %cst_28 = arith.constant dense<0xFF800000> : vector<2x16xf32>
    %77 = vector.multi_reduction <maximumf>, %76, %cst_28 [2] : vector<2x16x16xf32> to vector<2x16xf32>
    %78 = vector.shape_cast %77 : vector<2x16xf32> to vector<2x16x1xf32>
    %79 = vector.broadcast %78 : vector<2x16x1xf32> to vector<2x16x16xf32>
    %80 = arith.subf %76, %79 : vector<2x16x16xf32>
    %81 = math.exp %80 : vector<2x16x16xf32>
    %cst_29 = arith.constant dense<0.000000e+00> : vector<2x16xf32>
    %82 = vector.multi_reduction <add>, %81, %cst_29 [2] : vector<2x16x16xf32> to vector<2x16xf32>
    %83 = vector.shape_cast %82 : vector<2x16xf32> to vector<2x16x1xf32>
    %84 = vector.broadcast %83 : vector<2x16x1xf32> to vector<2x16x16xf32>
    %85 = arith.divf %81, %84 : vector<2x16x16xf32>
    %86 = arith.truncf %85 : vector<2x16x16xf32> to vector<2x16x16xbf16>
    %87 = arith.truncf %71 : vector<2x16x32xf32> to vector<2x16x32xbf16>
    "tpu.trace_start"() <{level = 10 : i32, message = "bqk,bkd->bqd"}> : () -> ()
    %cst_30 = arith.constant dense<0.000000e+00> : vector<2x16x32xf32>
    %88 = tpu.matmul %86, %87, %cst_30 {dimension_numbers = #tpu.dot_dimension_numbers<[2], [1], [1], [2], [0, 0, 0, 1, 1, 2], [0], [0]>} : vector<2x16x16xbf16>, vector<2x16x32xbf16>, vector<2x16x32xf32> -> vector<2x16x32xf32>
    "tpu.trace_stop"() : () -> ()
    %89 = vector.shape_cast %88 : vector<2x16x32xf32> to vector<32x32xf32>
    %90 = vector.extract_strided_slice %39 {offsets = [0, 64], sizes = [32, 32], strides = [1, 1]} : vector<32x128xf32> to vector<32x32xf32>
    %91 = vector.shape_cast %90 : vector<32x32xf32> to vector<2x16x32xf32>
    %92 = vector.extract_strided_slice %40 {offsets = [0, 64], sizes = [32, 32], strides = [1, 1]} : vector<32x128xf32> to vector<32x32xf32>
    %93 = vector.shape_cast %92 : vector<32x32xf32> to vector<2x16x32xf32>
    %94 = vector.extract_strided_slice %41 {offsets = [0, 64], sizes = [32, 32], strides = [1, 1]} : vector<32x128xf32> to vector<32x32xf32>
    %95 = vector.shape_cast %94 : vector<32x32xf32> to vector<2x16x32xf32>
    %96 = arith.truncf %91 : vector<2x16x32xf32> to vector<2x16x32xbf16>
    %97 = arith.truncf %93 : vector<2x16x32xf32> to vector<2x16x32xbf16>
    "tpu.trace_start"() <{level = 10 : i32, message = "bqd,bkd->bqk"}> : () -> ()
    %cst_31 = arith.constant dense<0.000000e+00> : vector<2x16x16xf32>
    %98 = tpu.matmul %96, %97, %cst_31 {dimension_numbers = #tpu.dot_dimension_numbers<[2], [2], [1], [1], [0, 0, 0, 1, 1, 1], [0], [0]>} : vector<2x16x32xbf16>, vector<2x16x32xbf16>, vector<2x16x16xf32> -> vector<2x16x16xf32>
    "tpu.trace_stop"() : () -> ()
    %cst_32 = arith.constant 0.176776692 : f32
    %99 = vector.broadcast %cst_32 : f32 to vector<2x16x16xf32>
    %100 = arith.mulf %98, %99 : vector<2x16x16xf32>
    %cst_33 = arith.constant dense<0xFF800000> : vector<2x16xf32>
    %101 = vector.multi_reduction <maximumf>, %100, %cst_33 [2] : vector<2x16x16xf32> to vector<2x16xf32>
    %102 = vector.shape_cast %101 : vector<2x16xf32> to vector<2x16x1xf32>
    %103 = vector.broadcast %102 : vector<2x16x1xf32> to vector<2x16x16xf32>
    %104 = arith.subf %100, %103 : vector<2x16x16xf32>
    %105 = math.exp %104 : vector<2x16x16xf32>
    %cst_34 = arith.constant dense<0.000000e+00> : vector<2x16xf32>
    %106 = vector.multi_reduction <add>, %105, %cst_34 [2] : vector<2x16x16xf32> to vector<2x16xf32>
    %107 = vector.shape_cast %106 : vector<2x16xf32> to vector<2x16x1xf32>
    %108 = vector.broadcast %107 : vector<2x16x1xf32> to vector<2x16x16xf32>
    %109 = arith.divf %105, %108 : vector<2x16x16xf32>
    %110 = arith.truncf %109 : vector<2x16x16xf32> to vector<2x16x16xbf16>
    %111 = arith.truncf %95 : vector<2x16x32xf32> to vector<2x16x32xbf16>
    "tpu.trace_start"() <{level = 10 : i32, message = "bqk,bkd->bqd"}> : () -> ()
    %cst_35 = arith.constant dense<0.000000e+00> : vector<2x16x32xf32>
    %112 = tpu.matmul %110, %111, %cst_35 {dimension_numbers = #tpu.dot_dimension_numbers<[2], [1], [1], [2], [0, 0, 0, 1, 1, 2], [0], [0]>} : vector<2x16x16xbf16>, vector<2x16x32xbf16>, vector<2x16x32xf32> -> vector<2x16x32xf32>
    "tpu.trace_stop"() : () -> ()
    %113 = vector.shape_cast %112 : vector<2x16x32xf32> to vector<32x32xf32>
    %114 = vector.extract_strided_slice %39 {offsets = [0, 96], sizes = [32, 32], strides = [1, 1]} : vector<32x128xf32> to vector<32x32xf32>
    %115 = vector.shape_cast %114 : vector<32x32xf32> to vector<2x16x32xf32>
    %116 = vector.extract_strided_slice %40 {offsets = [0, 96], sizes = [32, 32], strides = [1, 1]} : vector<32x128xf32> to vector<32x32xf32>
    %117 = vector.shape_cast %116 : vector<32x32xf32> to vector<2x16x32xf32>
    %118 = vector.extract_strided_slice %41 {offsets = [0, 96], sizes = [32, 32], strides = [1, 1]} : vector<32x128xf32> to vector<32x32xf32>
    %119 = vector.shape_cast %118 : vector<32x32xf32> to vector<2x16x32xf32>
    %120 = arith.truncf %115 : vector<2x16x32xf32> to vector<2x16x32xbf16>
    %121 = arith.truncf %117 : vector<2x16x32xf32> to vector<2x16x32xbf16>
    "tpu.trace_start"() <{level = 10 : i32, message = "bqd,bkd->bqk"}> : () -> ()
    %cst_36 = arith.constant dense<0.000000e+00> : vector<2x16x16xf32>
    %122 = tpu.matmul %120, %121, %cst_36 {dimension_numbers = #tpu.dot_dimension_numbers<[2], [2], [1], [1], [0, 0, 0, 1, 1, 1], [0], [0]>} : vector<2x16x32xbf16>, vector<2x16x32xbf16>, vector<2x16x16xf32> -> vector<2x16x16xf32>
    "tpu.trace_stop"() : () -> ()
    %cst_37 = arith.constant 0.176776692 : f32
    %123 = vector.broadcast %cst_37 : f32 to vector<2x16x16xf32>
    %124 = arith.mulf %122, %123 : vector<2x16x16xf32>
    %cst_38 = arith.constant dense<0xFF800000> : vector<2x16xf32>
    %125 = vector.multi_reduction <maximumf>, %124, %cst_38 [2] : vector<2x16x16xf32> to vector<2x16xf32>
    %126 = vector.shape_cast %125 : vector<2x16xf32> to vector<2x16x1xf32>
    %127 = vector.broadcast %126 : vector<2x16x1xf32> to vector<2x16x16xf32>
    %128 = arith.subf %124, %127 : vector<2x16x16xf32>
    %129 = math.exp %128 : vector<2x16x16xf32>
    %cst_39 = arith.constant dense<0.000000e+00> : vector<2x16xf32>
    %130 = vector.multi_reduction <add>, %129, %cst_39 [2] : vector<2x16x16xf32> to vector<2x16xf32>
    %131 = vector.shape_cast %130 : vector<2x16xf32> to vector<2x16x1xf32>
    %132 = vector.broadcast %131 : vector<2x16x1xf32> to vector<2x16x16xf32>
    %133 = arith.divf %129, %132 : vector<2x16x16xf32>
    %134 = arith.truncf %133 : vector<2x16x16xf32> to vector<2x16x16xbf16>
    %135 = arith.truncf %119 : vector<2x16x32xf32> to vector<2x16x32xbf16>
    "tpu.trace_start"() <{level = 10 : i32, message = "bqk,bkd->bqd"}> : () -> ()
    %cst_40 = arith.constant dense<0.000000e+00> : vector<2x16x32xf32>
    %136 = tpu.matmul %134, %135, %cst_40 {dimension_numbers = #tpu.dot_dimension_numbers<[2], [1], [1], [2], [0, 0, 0, 1, 1, 2], [0], [0]>} : vector<2x16x16xbf16>, vector<2x16x32xbf16>, vector<2x16x32xf32> -> vector<2x16x32xf32>
    "tpu.trace_stop"() : () -> ()
    %137 = vector.shape_cast %136 : vector<2x16x32xf32> to vector<32x32xf32>
    %138 = tpu.concatenate %65, %89, %113, %137 in 1 : vector<32x32xf32>, vector<32x32xf32>, vector<32x32xf32>, vector<32x32xf32> -> vector<32x128xf32>
    %139 = arith.truncf %138 : vector<32x128xf32> to vector<32x128xbf16>
    %c0_41 = arith.constant 0 : index
    %c0_42 = arith.constant 0 : index
    %140 = vector.load %arg8[%c0_41, %c0_42] : memref<128x128xbf16, #tpu.memory_space<vmem>>, vector<128x128xbf16>
    %cst_43 = arith.constant dense<0.000000e+00> : vector<32x128xf32>
    %141 = tpu.matmul %139, %140, %cst_43 {dimension_numbers = #tpu.dot_dimension_numbers<[1], [0], [0], [1], [0, 0, 1, 1], [], []>} : vector<32x128xbf16>, vector<128x128xbf16>, vector<32x128xf32> -> vector<32x128xf32>
    %142 = arith.addf %8, %141 : vector<32x128xf32>
    %c0_44 = arith.constant 0 : index
    %c0_45 = arith.constant 0 : index
    %143 = vector.load %arg9[%c0_44, %c0_45] : memref<1x128xf32, #tpu.memory_space<vmem>>, vector<1x128xf32>
    %144 = vector.broadcast %143 : vector<1x128xf32> to vector<32x128xf32>
    %145 = arith.addf %142, %144 : vector<32x128xf32>
    %c0_46 = arith.constant 0 : index
    %c0_47 = arith.constant 0 : index
    %146 = vector.load %arg10[%c0_46, %c0_47] : memref<1x128xf32, #tpu.memory_space<vmem>>, vector<1x128xf32>
    %c0_48 = arith.constant 0 : index
    %c0_49 = arith.constant 0 : index
    %147 = vector.load %arg11[%c0_48, %c0_49] : memref<1x128xf32, #tpu.memory_space<vmem>>, vector<1x128xf32>
    %cst_50 = arith.constant dense<0.000000e+00> : vector<32xf32>
    %148 = vector.multi_reduction <add>, %145, %cst_50 [1] : vector<32x128xf32> to vector<32xf32>
    %149 = vector.shape_cast %148 : vector<32xf32> to vector<32x1xf32>
    %cst_51 = arith.constant 1.280000e+02 : f32
    %150 = vector.broadcast %cst_51 : f32 to vector<32x1xf32>
    %151 = arith.divf %149, %150 : vector<32x1xf32>
    %152 = vector.broadcast %151 : vector<32x1xf32> to vector<32x128xf32>
    %153 = arith.subf %145, %152 : vector<32x128xf32>
    %154 = arith.mulf %153, %153 : vector<32x128xf32>
    %cst_52 = arith.constant dense<0.000000e+00> : vector<32xf32>
    %155 = vector.multi_reduction <add>, %154, %cst_52 [1] : vector<32x128xf32> to vector<32xf32>
    %156 = vector.shape_cast %155 : vector<32xf32> to vector<32x1xf32>
    %cst_53 = arith.constant 1.280000e+02 : f32
    %157 = vector.broadcast %cst_53 : f32 to vector<32x1xf32>
    %158 = arith.divf %156, %157 : vector<32x1xf32>
    %159 = vector.broadcast %151 : vector<32x1xf32> to vector<32x128xf32>
    %160 = arith.subf %145, %159 : vector<32x128xf32>
    %cst_54 = arith.constant 9.99999997E-7 : f32
    %161 = vector.broadcast %cst_54 : f32 to vector<32x1xf32>
    %162 = arith.addf %158, %161 : vector<32x1xf32>
    %163 = math.rsqrt %162 : vector<32x1xf32>
    %164 = vector.broadcast %163 : vector<32x1xf32> to vector<32x128xf32>
    %165 = arith.mulf %160, %164 : vector<32x128xf32>
    %166 = vector.broadcast %146 : vector<1x128xf32> to vector<32x128xf32>
    %167 = arith.mulf %165, %166 : vector<32x128xf32>
    %168 = vector.broadcast %147 : vector<1x128xf32> to vector<32x128xf32>
    %169 = arith.addf %167, %168 : vector<32x128xf32>
    %170 = arith.truncf %169 : vector<32x128xf32> to vector<32x128xbf16>
    %c0_55 = arith.constant 0 : index
    %c0_56 = arith.constant 0 : index
    %171 = vector.load %arg12[%c0_55, %c0_56] : memref<128x64xbf16, #tpu.memory_space<vmem>>, vector<128x64xbf16>
    %cst_57 = arith.constant dense<0.000000e+00> : vector<32x64xf32>
    %172 = tpu.matmul %170, %171, %cst_57 {dimension_numbers = #tpu.dot_dimension_numbers<[1], [0], [0], [1], [0, 0, 1, 1], [], []>} : vector<32x128xbf16>, vector<128x64xbf16>, vector<32x64xf32> -> vector<32x64xf32>
    %c0_58 = arith.constant 0 : index
    %c0_59 = arith.constant 0 : index
    %173 = vector.load %arg13[%c0_58, %c0_59] : memref<1x64xf32, #tpu.memory_space<vmem>>, vector<1x64xf32>
    %174 = vector.broadcast %173 : vector<1x64xf32> to vector<32x64xf32>
    %175 = arith.addf %172, %174 : vector<32x64xf32>
    %cst_60 = arith.constant 5.000000e-01 : f32
    %176 = vector.broadcast %cst_60 : f32 to vector<32x64xf32>
    %177 = arith.mulf %176, %175 : vector<32x64xf32>
    %cst_61 = arith.constant 0.707106769 : f32
    %178 = vector.broadcast %cst_61 : f32 to vector<32x64xf32>
    %179 = arith.mulf %175, %178 : vector<32x64xf32>
    %cst_62 = arith.constant 0.000000e+00 : f32
    %180 = vector.broadcast %cst_62 : f32 to vector<32x64xf32>
    %181 = arith.cmpf oge, %179, %180 : vector<32x64xf32>
    %cst_63 = arith.constant 1.000000e+00 : f32
    %cst_64 = arith.constant -1.000000e+00 : f32
    %182 = vector.broadcast %cst_63 : f32 to vector<32x64xf32>
    %183 = vector.broadcast %cst_64 : f32 to vector<32x64xf32>
    %184 = arith.select %181, %182, %183 : vector<32x64xi1>, vector<32x64xf32>
    %185 = math.absf %179 : vector<32x64xf32>
    %cst_65 = arith.constant 0.327591091 : f32
    %186 = vector.broadcast %cst_65 : f32 to vector<32x64xf32>
    %187 = arith.mulf %186, %185 : vector<32x64xf32>
    %cst_66 = arith.constant 1.000000e+00 : f32
    %188 = vector.broadcast %cst_66 : f32 to vector<32x64xf32>
    %189 = arith.addf %188, %187 : vector<32x64xf32>
    %cst_67 = arith.constant 1.000000e+00 : f32
    %190 = vector.broadcast %cst_67 : f32 to vector<32x64xf32>
    %191 = arith.divf %190, %189 : vector<32x64xf32>
    %cst_68 = arith.constant 1.06140542 : f32
    %192 = vector.broadcast %cst_68 : f32 to vector<32x64xf32>
    %193 = arith.mulf %192, %191 : vector<32x64xf32>
    %cst_69 = arith.constant -1.45315206 : f32
    %194 = vector.broadcast %cst_69 : f32 to vector<32x64xf32>
    %195 = arith.addf %193, %194 : vector<32x64xf32>
    %196 = arith.mulf %195, %191 : vector<32x64xf32>
    %cst_70 = arith.constant 1.42141378 : f32
    %197 = vector.broadcast %cst_70 : f32 to vector<32x64xf32>
    %198 = arith.addf %196, %197 : vector<32x64xf32>
    %199 = arith.mulf %198, %191 : vector<32x64xf32>
    %cst_71 = arith.constant -0.284496725 : f32
    %200 = vector.broadcast %cst_71 : f32 to vector<32x64xf32>
    %201 = arith.addf %199, %200 : vector<32x64xf32>
    %202 = arith.mulf %201, %191 : vector<32x64xf32>
    %cst_72 = arith.constant 0.254829586 : f32
    %203 = vector.broadcast %cst_72 : f32 to vector<32x64xf32>
    %204 = arith.addf %202, %203 : vector<32x64xf32>
    %205 = arith.mulf %204, %191 : vector<32x64xf32>
    %cst_73 = arith.constant 0.000000e+00 : f32
    %206 = vector.broadcast %cst_73 : f32 to vector<32x64xf32>
    %207 = arith.subf %206, %185 : vector<32x64xf32>
    %208 = arith.mulf %207, %185 : vector<32x64xf32>
    %209 = math.exp %208 : vector<32x64xf32>
    %210 = arith.mulf %205, %209 : vector<32x64xf32>
    %cst_74 = arith.constant 1.000000e+00 : f32
    %211 = vector.broadcast %cst_74 : f32 to vector<32x64xf32>
    %212 = arith.subf %211, %210 : vector<32x64xf32>
    %213 = arith.mulf %184, %212 : vector<32x64xf32>
    %cst_75 = arith.constant 1.000000e+00 : f32
    %214 = vector.broadcast %cst_75 : f32 to vector<32x64xf32>
    %215 = arith.addf %214, %213 : vector<32x64xf32>
    %216 = arith.mulf %177, %215 : vector<32x64xf32>
    %217 = arith.truncf %216 : vector<32x64xf32> to vector<32x64xbf16>
    %c0_76 = arith.constant 0 : index
    %c0_77 = arith.constant 0 : index
    %218 = vector.load %arg14[%c0_76, %c0_77] : memref<64x128xbf16, #tpu.memory_space<vmem>>, vector<64x128xbf16>
    %cst_78 = arith.constant dense<0.000000e+00> : vector<32x128xf32>
    %219 = tpu.matmul %217, %218, %cst_78 {dimension_numbers = #tpu.dot_dimension_numbers<[1], [0], [0], [1], [0, 0, 1, 1], [], []>} : vector<32x64xbf16>, vector<64x128xbf16>, vector<32x128xf32> -> vector<32x128xf32>
    %220 = arith.addf %145, %219 : vector<32x128xf32>
    %c0_79 = arith.constant 0 : index
    %c0_80 = arith.constant 0 : index
    %221 = vector.load %arg15[%c0_79, %c0_80] : memref<1x128xf32, #tpu.memory_space<vmem>>, vector<1x128xf32>
    %222 = vector.broadcast %221 : vector<1x128xf32> to vector<32x128xf32>
    %223 = arith.addf %220, %222 : vector<32x128xf32>
    %c0_81 = arith.constant 0 : index
    %c0_82 = arith.constant 0 : index
    %224 = vector.load %arg16[%c0_81, %c0_82] : memref<1x128xf32, #tpu.memory_space<vmem>>, vector<1x128xf32>
    %c0_83 = arith.constant 0 : index
    %c0_84 = arith.constant 0 : index
    %225 = vector.load %arg17[%c0_83, %c0_84] : memref<1x128xf32, #tpu.memory_space<vmem>>, vector<1x128xf32>
    %cst_85 = arith.constant dense<0.000000e+00> : vector<32xf32>
    %226 = vector.multi_reduction <add>, %223, %cst_85 [1] : vector<32x128xf32> to vector<32xf32>
    %227 = vector.shape_cast %226 : vector<32xf32> to vector<32x1xf32>
    %cst_86 = arith.constant 1.280000e+02 : f32
    %228 = vector.broadcast %cst_86 : f32 to vector<32x1xf32>
    %229 = arith.divf %227, %228 : vector<32x1xf32>
    %230 = vector.broadcast %229 : vector<32x1xf32> to vector<32x128xf32>
    %231 = arith.subf %223, %230 : vector<32x128xf32>
    %232 = arith.mulf %231, %231 : vector<32x128xf32>
    %cst_87 = arith.constant dense<0.000000e+00> : vector<32xf32>
    %233 = vector.multi_reduction <add>, %232, %cst_87 [1] : vector<32x128xf32> to vector<32xf32>
    %234 = vector.shape_cast %233 : vector<32xf32> to vector<32x1xf32>
    %cst_88 = arith.constant 1.280000e+02 : f32
    %235 = vector.broadcast %cst_88 : f32 to vector<32x1xf32>
    %236 = arith.divf %234, %235 : vector<32x1xf32>
    %237 = vector.broadcast %229 : vector<32x1xf32> to vector<32x128xf32>
    %238 = arith.subf %223, %237 : vector<32x128xf32>
    %cst_89 = arith.constant 9.99999997E-7 : f32
    %239 = vector.broadcast %cst_89 : f32 to vector<32x1xf32>
    %240 = arith.addf %236, %239 : vector<32x1xf32>
    %241 = math.rsqrt %240 : vector<32x1xf32>
    %242 = vector.broadcast %241 : vector<32x1xf32> to vector<32x128xf32>
    %243 = arith.mulf %238, %242 : vector<32x128xf32>
    %244 = vector.broadcast %224 : vector<1x128xf32> to vector<32x128xf32>
    %245 = arith.mulf %243, %244 : vector<32x128xf32>
    %246 = vector.broadcast %225 : vector<1x128xf32> to vector<32x128xf32>
    %247 = arith.addf %245, %246 : vector<32x128xf32>
    %248 = arith.truncf %247 : vector<32x128xf32> to vector<32x128xbf16>
    %c0_90 = arith.constant 0 : index
    %c0_91 = arith.constant 0 : index
    %249 = vector.load %arg18[%c0_90, %c0_91] : memref<128x384xbf16, #tpu.memory_space<vmem>>, vector<128x384xbf16>
    %cst_92 = arith.constant dense<0.000000e+00> : vector<32x384xf32>
    %250 = tpu.matmul %248, %249, %cst_92 {dimension_numbers = #tpu.dot_dimension_numbers<[1], [0], [0], [1], [0, 0, 1, 1], [], []>} : vector<32x128xbf16>, vector<128x384xbf16>, vector<32x384xf32> -> vector<32x384xf32>
    %c0_93 = arith.constant 0 : index
    %c0_94 = arith.constant 0 : index
    %251 = vector.load %arg19[%c0_93, %c0_94] : memref<1x384xf32, #tpu.memory_space<vmem>>, vector<1x384xf32>
    %252 = vector.broadcast %251 : vector<1x384xf32> to vector<32x384xf32>
    %253 = arith.addf %250, %252 : vector<32x384xf32>
    %254 = vector.extract_strided_slice %253 {offsets = [0, 0], sizes = [32, 128], strides = [1, 1]} : vector<32x384xf32> to vector<32x128xf32>
    %255 = vector.extract_strided_slice %253 {offsets = [0, 128], sizes = [32, 128], strides = [1, 1]} : vector<32x384xf32> to vector<32x128xf32>
    %256 = vector.extract_strided_slice %253 {offsets = [0, 256], sizes = [32, 128], strides = [1, 1]} : vector<32x384xf32> to vector<32x128xf32>
    %257 = vector.extract_strided_slice %254 {offsets = [0, 0], sizes = [32, 32], strides = [1, 1]} : vector<32x128xf32> to vector<32x32xf32>
    %258 = vector.shape_cast %257 : vector<32x32xf32> to vector<2x16x32xf32>
    %259 = vector.extract_strided_slice %255 {offsets = [0, 0], sizes = [32, 32], strides = [1, 1]} : vector<32x128xf32> to vector<32x32xf32>
    %260 = vector.shape_cast %259 : vector<32x32xf32> to vector<2x16x32xf32>
    %261 = vector.extract_strided_slice %256 {offsets = [0, 0], sizes = [32, 32], strides = [1, 1]} : vector<32x128xf32> to vector<32x32xf32>
    %262 = vector.shape_cast %261 : vector<32x32xf32> to vector<2x16x32xf32>
    %263 = arith.truncf %258 : vector<2x16x32xf32> to vector<2x16x32xbf16>
    %264 = arith.truncf %260 : vector<2x16x32xf32> to vector<2x16x32xbf16>
    "tpu.trace_start"() <{level = 10 : i32, message = "bqd,bkd->bqk"}> : () -> ()
    %cst_95 = arith.constant dense<0.000000e+00> : vector<2x16x16xf32>
    %265 = tpu.matmul %263, %264, %cst_95 {dimension_numbers = #tpu.dot_dimension_numbers<[2], [2], [1], [1], [0, 0, 0, 1, 1, 1], [0], [0]>} : vector<2x16x32xbf16>, vector<2x16x32xbf16>, vector<2x16x16xf32> -> vector<2x16x16xf32>
    "tpu.trace_stop"() : () -> ()
    %cst_96 = arith.constant 0.176776692 : f32
    %266 = vector.broadcast %cst_96 : f32 to vector<2x16x16xf32>
    %267 = arith.mulf %265, %266 : vector<2x16x16xf32>
    %cst_97 = arith.constant dense<0xFF800000> : vector<2x16xf32>
    %268 = vector.multi_reduction <maximumf>, %267, %cst_97 [2] : vector<2x16x16xf32> to vector<2x16xf32>
    %269 = vector.shape_cast %268 : vector<2x16xf32> to vector<2x16x1xf32>
    %270 = vector.broadcast %269 : vector<2x16x1xf32> to vector<2x16x16xf32>
    %271 = arith.subf %267, %270 : vector<2x16x16xf32>
    %272 = math.exp %271 : vector<2x16x16xf32>
    %cst_98 = arith.constant dense<0.000000e+00> : vector<2x16xf32>
    %273 = vector.multi_reduction <add>, %272, %cst_98 [2] : vector<2x16x16xf32> to vector<2x16xf32>
    %274 = vector.shape_cast %273 : vector<2x16xf32> to vector<2x16x1xf32>
    %275 = vector.broadcast %274 : vector<2x16x1xf32> to vector<2x16x16xf32>
    %276 = arith.divf %272, %275 : vector<2x16x16xf32>
    %277 = arith.truncf %276 : vector<2x16x16xf32> to vector<2x16x16xbf16>
    %278 = arith.truncf %262 : vector<2x16x32xf32> to vector<2x16x32xbf16>
    "tpu.trace_start"() <{level = 10 : i32, message = "bqk,bkd->bqd"}> : () -> ()
    %cst_99 = arith.constant dense<0.000000e+00> : vector<2x16x32xf32>
    %279 = tpu.matmul %277, %278, %cst_99 {dimension_numbers = #tpu.dot_dimension_numbers<[2], [1], [1], [2], [0, 0, 0, 1, 1, 2], [0], [0]>} : vector<2x16x16xbf16>, vector<2x16x32xbf16>, vector<2x16x32xf32> -> vector<2x16x32xf32>
    "tpu.trace_stop"() : () -> ()
    %280 = vector.shape_cast %279 : vector<2x16x32xf32> to vector<32x32xf32>
    %281 = vector.extract_strided_slice %254 {offsets = [0, 32], sizes = [32, 32], strides = [1, 1]} : vector<32x128xf32> to vector<32x32xf32>
    %282 = vector.shape_cast %281 : vector<32x32xf32> to vector<2x16x32xf32>
    %283 = vector.extract_strided_slice %255 {offsets = [0, 32], sizes = [32, 32], strides = [1, 1]} : vector<32x128xf32> to vector<32x32xf32>
    %284 = vector.shape_cast %283 : vector<32x32xf32> to vector<2x16x32xf32>
    %285 = vector.extract_strided_slice %256 {offsets = [0, 32], sizes = [32, 32], strides = [1, 1]} : vector<32x128xf32> to vector<32x32xf32>
    %286 = vector.shape_cast %285 : vector<32x32xf32> to vector<2x16x32xf32>
    %287 = arith.truncf %282 : vector<2x16x32xf32> to vector<2x16x32xbf16>
    %288 = arith.truncf %284 : vector<2x16x32xf32> to vector<2x16x32xbf16>
    "tpu.trace_start"() <{level = 10 : i32, message = "bqd,bkd->bqk"}> : () -> ()
    %cst_100 = arith.constant dense<0.000000e+00> : vector<2x16x16xf32>
    %289 = tpu.matmul %287, %288, %cst_100 {dimension_numbers = #tpu.dot_dimension_numbers<[2], [2], [1], [1], [0, 0, 0, 1, 1, 1], [0], [0]>} : vector<2x16x32xbf16>, vector<2x16x32xbf16>, vector<2x16x16xf32> -> vector<2x16x16xf32>
    "tpu.trace_stop"() : () -> ()
    %cst_101 = arith.constant 0.176776692 : f32
    %290 = vector.broadcast %cst_101 : f32 to vector<2x16x16xf32>
    %291 = arith.mulf %289, %290 : vector<2x16x16xf32>
    %cst_102 = arith.constant dense<0xFF800000> : vector<2x16xf32>
    %292 = vector.multi_reduction <maximumf>, %291, %cst_102 [2] : vector<2x16x16xf32> to vector<2x16xf32>
    %293 = vector.shape_cast %292 : vector<2x16xf32> to vector<2x16x1xf32>
    %294 = vector.broadcast %293 : vector<2x16x1xf32> to vector<2x16x16xf32>
    %295 = arith.subf %291, %294 : vector<2x16x16xf32>
    %296 = math.exp %295 : vector<2x16x16xf32>
    %cst_103 = arith.constant dense<0.000000e+00> : vector<2x16xf32>
    %297 = vector.multi_reduction <add>, %296, %cst_103 [2] : vector<2x16x16xf32> to vector<2x16xf32>
    %298 = vector.shape_cast %297 : vector<2x16xf32> to vector<2x16x1xf32>
    %299 = vector.broadcast %298 : vector<2x16x1xf32> to vector<2x16x16xf32>
    %300 = arith.divf %296, %299 : vector<2x16x16xf32>
    %301 = arith.truncf %300 : vector<2x16x16xf32> to vector<2x16x16xbf16>
    %302 = arith.truncf %286 : vector<2x16x32xf32> to vector<2x16x32xbf16>
    "tpu.trace_start"() <{level = 10 : i32, message = "bqk,bkd->bqd"}> : () -> ()
    %cst_104 = arith.constant dense<0.000000e+00> : vector<2x16x32xf32>
    %303 = tpu.matmul %301, %302, %cst_104 {dimension_numbers = #tpu.dot_dimension_numbers<[2], [1], [1], [2], [0, 0, 0, 1, 1, 2], [0], [0]>} : vector<2x16x16xbf16>, vector<2x16x32xbf16>, vector<2x16x32xf32> -> vector<2x16x32xf32>
    "tpu.trace_stop"() : () -> ()
    %304 = vector.shape_cast %303 : vector<2x16x32xf32> to vector<32x32xf32>
    %305 = vector.extract_strided_slice %254 {offsets = [0, 64], sizes = [32, 32], strides = [1, 1]} : vector<32x128xf32> to vector<32x32xf32>
    %306 = vector.shape_cast %305 : vector<32x32xf32> to vector<2x16x32xf32>
    %307 = vector.extract_strided_slice %255 {offsets = [0, 64], sizes = [32, 32], strides = [1, 1]} : vector<32x128xf32> to vector<32x32xf32>
    %308 = vector.shape_cast %307 : vector<32x32xf32> to vector<2x16x32xf32>
    %309 = vector.extract_strided_slice %256 {offsets = [0, 64], sizes = [32, 32], strides = [1, 1]} : vector<32x128xf32> to vector<32x32xf32>
    %310 = vector.shape_cast %309 : vector<32x32xf32> to vector<2x16x32xf32>
    %311 = arith.truncf %306 : vector<2x16x32xf32> to vector<2x16x32xbf16>
    %312 = arith.truncf %308 : vector<2x16x32xf32> to vector<2x16x32xbf16>
    "tpu.trace_start"() <{level = 10 : i32, message = "bqd,bkd->bqk"}> : () -> ()
    %cst_105 = arith.constant dense<0.000000e+00> : vector<2x16x16xf32>
    %313 = tpu.matmul %311, %312, %cst_105 {dimension_numbers = #tpu.dot_dimension_numbers<[2], [2], [1], [1], [0, 0, 0, 1, 1, 1], [0], [0]>} : vector<2x16x32xbf16>, vector<2x16x32xbf16>, vector<2x16x16xf32> -> vector<2x16x16xf32>
    "tpu.trace_stop"() : () -> ()
    %cst_106 = arith.constant 0.176776692 : f32
    %314 = vector.broadcast %cst_106 : f32 to vector<2x16x16xf32>
    %315 = arith.mulf %313, %314 : vector<2x16x16xf32>
    %cst_107 = arith.constant dense<0xFF800000> : vector<2x16xf32>
    %316 = vector.multi_reduction <maximumf>, %315, %cst_107 [2] : vector<2x16x16xf32> to vector<2x16xf32>
    %317 = vector.shape_cast %316 : vector<2x16xf32> to vector<2x16x1xf32>
    %318 = vector.broadcast %317 : vector<2x16x1xf32> to vector<2x16x16xf32>
    %319 = arith.subf %315, %318 : vector<2x16x16xf32>
    %320 = math.exp %319 : vector<2x16x16xf32>
    %cst_108 = arith.constant dense<0.000000e+00> : vector<2x16xf32>
    %321 = vector.multi_reduction <add>, %320, %cst_108 [2] : vector<2x16x16xf32> to vector<2x16xf32>
    %322 = vector.shape_cast %321 : vector<2x16xf32> to vector<2x16x1xf32>
    %323 = vector.broadcast %322 : vector<2x16x1xf32> to vector<2x16x16xf32>
    %324 = arith.divf %320, %323 : vector<2x16x16xf32>
    %325 = arith.truncf %324 : vector<2x16x16xf32> to vector<2x16x16xbf16>
    %326 = arith.truncf %310 : vector<2x16x32xf32> to vector<2x16x32xbf16>
    "tpu.trace_start"() <{level = 10 : i32, message = "bqk,bkd->bqd"}> : () -> ()
    %cst_109 = arith.constant dense<0.000000e+00> : vector<2x16x32xf32>
    %327 = tpu.matmul %325, %326, %cst_109 {dimension_numbers = #tpu.dot_dimension_numbers<[2], [1], [1], [2], [0, 0, 0, 1, 1, 2], [0], [0]>} : vector<2x16x16xbf16>, vector<2x16x32xbf16>, vector<2x16x32xf32> -> vector<2x16x32xf32>
    "tpu.trace_stop"() : () -> ()
    %328 = vector.shape_cast %327 : vector<2x16x32xf32> to vector<32x32xf32>
    %329 = vector.extract_strided_slice %254 {offsets = [0, 96], sizes = [32, 32], strides = [1, 1]} : vector<32x128xf32> to vector<32x32xf32>
    %330 = vector.shape_cast %329 : vector<32x32xf32> to vector<2x16x32xf32>
    %331 = vector.extract_strided_slice %255 {offsets = [0, 96], sizes = [32, 32], strides = [1, 1]} : vector<32x128xf32> to vector<32x32xf32>
    %332 = vector.shape_cast %331 : vector<32x32xf32> to vector<2x16x32xf32>
    %333 = vector.extract_strided_slice %256 {offsets = [0, 96], sizes = [32, 32], strides = [1, 1]} : vector<32x128xf32> to vector<32x32xf32>
    %334 = vector.shape_cast %333 : vector<32x32xf32> to vector<2x16x32xf32>
    %335 = arith.truncf %330 : vector<2x16x32xf32> to vector<2x16x32xbf16>
    %336 = arith.truncf %332 : vector<2x16x32xf32> to vector<2x16x32xbf16>
    "tpu.trace_start"() <{level = 10 : i32, message = "bqd,bkd->bqk"}> : () -> ()
    %cst_110 = arith.constant dense<0.000000e+00> : vector<2x16x16xf32>
    %337 = tpu.matmul %335, %336, %cst_110 {dimension_numbers = #tpu.dot_dimension_numbers<[2], [2], [1], [1], [0, 0, 0, 1, 1, 1], [0], [0]>} : vector<2x16x32xbf16>, vector<2x16x32xbf16>, vector<2x16x16xf32> -> vector<2x16x16xf32>
    "tpu.trace_stop"() : () -> ()
    %cst_111 = arith.constant 0.176776692 : f32
    %338 = vector.broadcast %cst_111 : f32 to vector<2x16x16xf32>
    %339 = arith.mulf %337, %338 : vector<2x16x16xf32>
    %cst_112 = arith.constant dense<0xFF800000> : vector<2x16xf32>
    %340 = vector.multi_reduction <maximumf>, %339, %cst_112 [2] : vector<2x16x16xf32> to vector<2x16xf32>
    %341 = vector.shape_cast %340 : vector<2x16xf32> to vector<2x16x1xf32>
    %342 = vector.broadcast %341 : vector<2x16x1xf32> to vector<2x16x16xf32>
    %343 = arith.subf %339, %342 : vector<2x16x16xf32>
    %344 = math.exp %343 : vector<2x16x16xf32>
    %cst_113 = arith.constant dense<0.000000e+00> : vector<2x16xf32>
    %345 = vector.multi_reduction <add>, %344, %cst_113 [2] : vector<2x16x16xf32> to vector<2x16xf32>
    %346 = vector.shape_cast %345 : vector<2x16xf32> to vector<2x16x1xf32>
    %347 = vector.broadcast %346 : vector<2x16x1xf32> to vector<2x16x16xf32>
    %348 = arith.divf %344, %347 : vector<2x16x16xf32>
    %349 = arith.truncf %348 : vector<2x16x16xf32> to vector<2x16x16xbf16>
    %350 = arith.truncf %334 : vector<2x16x32xf32> to vector<2x16x32xbf16>
    "tpu.trace_start"() <{level = 10 : i32, message = "bqk,bkd->bqd"}> : () -> ()
    %cst_114 = arith.constant dense<0.000000e+00> : vector<2x16x32xf32>
    %351 = tpu.matmul %349, %350, %cst_114 {dimension_numbers = #tpu.dot_dimension_numbers<[2], [1], [1], [2], [0, 0, 0, 1, 1, 2], [0], [0]>} : vector<2x16x16xbf16>, vector<2x16x32xbf16>, vector<2x16x32xf32> -> vector<2x16x32xf32>
    "tpu.trace_stop"() : () -> ()
    %352 = vector.shape_cast %351 : vector<2x16x32xf32> to vector<32x32xf32>
    %353 = tpu.concatenate %280, %304, %328, %352 in 1 : vector<32x32xf32>, vector<32x32xf32>, vector<32x32xf32>, vector<32x32xf32> -> vector<32x128xf32>
    %354 = arith.truncf %353 : vector<32x128xf32> to vector<32x128xbf16>
    %c0_115 = arith.constant 0 : index
    %c0_116 = arith.constant 0 : index
    %355 = vector.load %arg20[%c0_115, %c0_116] : memref<128x128xbf16, #tpu.memory_space<vmem>>, vector<128x128xbf16>
    %cst_117 = arith.constant dense<0.000000e+00> : vector<32x128xf32>
    %356 = tpu.matmul %354, %355, %cst_117 {dimension_numbers = #tpu.dot_dimension_numbers<[1], [0], [0], [1], [0, 0, 1, 1], [], []>} : vector<32x128xbf16>, vector<128x128xbf16>, vector<32x128xf32> -> vector<32x128xf32>
    %357 = arith.addf %223, %356 : vector<32x128xf32>
    %c0_118 = arith.constant 0 : index
    %c0_119 = arith.constant 0 : index
    %358 = vector.load %arg21[%c0_118, %c0_119] : memref<1x128xf32, #tpu.memory_space<vmem>>, vector<1x128xf32>
    %359 = vector.broadcast %358 : vector<1x128xf32> to vector<32x128xf32>
    %360 = arith.addf %357, %359 : vector<32x128xf32>
    %c0_120 = arith.constant 0 : index
    %c0_121 = arith.constant 0 : index
    %361 = vector.load %arg22[%c0_120, %c0_121] : memref<1x128xf32, #tpu.memory_space<vmem>>, vector<1x128xf32>
    %c0_122 = arith.constant 0 : index
    %c0_123 = arith.constant 0 : index
    %362 = vector.load %arg23[%c0_122, %c0_123] : memref<1x128xf32, #tpu.memory_space<vmem>>, vector<1x128xf32>
    %cst_124 = arith.constant dense<0.000000e+00> : vector<32xf32>
    %363 = vector.multi_reduction <add>, %360, %cst_124 [1] : vector<32x128xf32> to vector<32xf32>
    %364 = vector.shape_cast %363 : vector<32xf32> to vector<32x1xf32>
    %cst_125 = arith.constant 1.280000e+02 : f32
    %365 = vector.broadcast %cst_125 : f32 to vector<32x1xf32>
    %366 = arith.divf %364, %365 : vector<32x1xf32>
    %367 = vector.broadcast %366 : vector<32x1xf32> to vector<32x128xf32>
    %368 = arith.subf %360, %367 : vector<32x128xf32>
    %369 = arith.mulf %368, %368 : vector<32x128xf32>
    %cst_126 = arith.constant dense<0.000000e+00> : vector<32xf32>
    %370 = vector.multi_reduction <add>, %369, %cst_126 [1] : vector<32x128xf32> to vector<32xf32>
    %371 = vector.shape_cast %370 : vector<32xf32> to vector<32x1xf32>
    %cst_127 = arith.constant 1.280000e+02 : f32
    %372 = vector.broadcast %cst_127 : f32 to vector<32x1xf32>
    %373 = arith.divf %371, %372 : vector<32x1xf32>
    %374 = vector.broadcast %366 : vector<32x1xf32> to vector<32x128xf32>
    %375 = arith.subf %360, %374 : vector<32x128xf32>
    %cst_128 = arith.constant 9.99999997E-7 : f32
    %376 = vector.broadcast %cst_128 : f32 to vector<32x1xf32>
    %377 = arith.addf %373, %376 : vector<32x1xf32>
    %378 = math.rsqrt %377 : vector<32x1xf32>
    %379 = vector.broadcast %378 : vector<32x1xf32> to vector<32x128xf32>
    %380 = arith.mulf %375, %379 : vector<32x128xf32>
    %381 = vector.broadcast %361 : vector<1x128xf32> to vector<32x128xf32>
    %382 = arith.mulf %380, %381 : vector<32x128xf32>
    %383 = vector.broadcast %362 : vector<1x128xf32> to vector<32x128xf32>
    %384 = arith.addf %382, %383 : vector<32x128xf32>
    %385 = arith.truncf %384 : vector<32x128xf32> to vector<32x128xbf16>
    %c0_129 = arith.constant 0 : index
    %c0_130 = arith.constant 0 : index
    %386 = vector.load %arg24[%c0_129, %c0_130] : memref<128x64xbf16, #tpu.memory_space<vmem>>, vector<128x64xbf16>
    %cst_131 = arith.constant dense<0.000000e+00> : vector<32x64xf32>
    %387 = tpu.matmul %385, %386, %cst_131 {dimension_numbers = #tpu.dot_dimension_numbers<[1], [0], [0], [1], [0, 0, 1, 1], [], []>} : vector<32x128xbf16>, vector<128x64xbf16>, vector<32x64xf32> -> vector<32x64xf32>
    %c0_132 = arith.constant 0 : index
    %c0_133 = arith.constant 0 : index
    %388 = vector.load %arg25[%c0_132, %c0_133] : memref<1x64xf32, #tpu.memory_space<vmem>>, vector<1x64xf32>
    %389 = vector.broadcast %388 : vector<1x64xf32> to vector<32x64xf32>
    %390 = arith.addf %387, %389 : vector<32x64xf32>
    %cst_134 = arith.constant 5.000000e-01 : f32
    %391 = vector.broadcast %cst_134 : f32 to vector<32x64xf32>
    %392 = arith.mulf %391, %390 : vector<32x64xf32>
    %cst_135 = arith.constant 0.707106769 : f32
    %393 = vector.broadcast %cst_135 : f32 to vector<32x64xf32>
    %394 = arith.mulf %390, %393 : vector<32x64xf32>
    %cst_136 = arith.constant 0.000000e+00 : f32
    %395 = vector.broadcast %cst_136 : f32 to vector<32x64xf32>
    %396 = arith.cmpf oge, %394, %395 : vector<32x64xf32>
    %cst_137 = arith.constant 1.000000e+00 : f32
    %cst_138 = arith.constant -1.000000e+00 : f32
    %397 = vector.broadcast %cst_137 : f32 to vector<32x64xf32>
    %398 = vector.broadcast %cst_138 : f32 to vector<32x64xf32>
    %399 = arith.select %396, %397, %398 : vector<32x64xi1>, vector<32x64xf32>
    %400 = math.absf %394 : vector<32x64xf32>
    %cst_139 = arith.constant 0.327591091 : f32
    %401 = vector.broadcast %cst_139 : f32 to vector<32x64xf32>
    %402 = arith.mulf %401, %400 : vector<32x64xf32>
    %cst_140 = arith.constant 1.000000e+00 : f32
    %403 = vector.broadcast %cst_140 : f32 to vector<32x64xf32>
    %404 = arith.addf %403, %402 : vector<32x64xf32>
    %cst_141 = arith.constant 1.000000e+00 : f32
    %405 = vector.broadcast %cst_141 : f32 to vector<32x64xf32>
    %406 = arith.divf %405, %404 : vector<32x64xf32>
    %cst_142 = arith.constant 1.06140542 : f32
    %407 = vector.broadcast %cst_142 : f32 to vector<32x64xf32>
    %408 = arith.mulf %407, %406 : vector<32x64xf32>
    %cst_143 = arith.constant -1.45315206 : f32
    %409 = vector.broadcast %cst_143 : f32 to vector<32x64xf32>
    %410 = arith.addf %408, %409 : vector<32x64xf32>
    %411 = arith.mulf %410, %406 : vector<32x64xf32>
    %cst_144 = arith.constant 1.42141378 : f32
    %412 = vector.broadcast %cst_144 : f32 to vector<32x64xf32>
    %413 = arith.addf %411, %412 : vector<32x64xf32>
    %414 = arith.mulf %413, %406 : vector<32x64xf32>
    %cst_145 = arith.constant -0.284496725 : f32
    %415 = vector.broadcast %cst_145 : f32 to vector<32x64xf32>
    %416 = arith.addf %414, %415 : vector<32x64xf32>
    %417 = arith.mulf %416, %406 : vector<32x64xf32>
    %cst_146 = arith.constant 0.254829586 : f32
    %418 = vector.broadcast %cst_146 : f32 to vector<32x64xf32>
    %419 = arith.addf %417, %418 : vector<32x64xf32>
    %420 = arith.mulf %419, %406 : vector<32x64xf32>
    %cst_147 = arith.constant 0.000000e+00 : f32
    %421 = vector.broadcast %cst_147 : f32 to vector<32x64xf32>
    %422 = arith.subf %421, %400 : vector<32x64xf32>
    %423 = arith.mulf %422, %400 : vector<32x64xf32>
    %424 = math.exp %423 : vector<32x64xf32>
    %425 = arith.mulf %420, %424 : vector<32x64xf32>
    %cst_148 = arith.constant 1.000000e+00 : f32
    %426 = vector.broadcast %cst_148 : f32 to vector<32x64xf32>
    %427 = arith.subf %426, %425 : vector<32x64xf32>
    %428 = arith.mulf %399, %427 : vector<32x64xf32>
    %cst_149 = arith.constant 1.000000e+00 : f32
    %429 = vector.broadcast %cst_149 : f32 to vector<32x64xf32>
    %430 = arith.addf %429, %428 : vector<32x64xf32>
    %431 = arith.mulf %392, %430 : vector<32x64xf32>
    %432 = arith.truncf %431 : vector<32x64xf32> to vector<32x64xbf16>
    %c0_150 = arith.constant 0 : index
    %c0_151 = arith.constant 0 : index
    %433 = vector.load %arg26[%c0_150, %c0_151] : memref<64x128xbf16, #tpu.memory_space<vmem>>, vector<64x128xbf16>
    %cst_152 = arith.constant dense<0.000000e+00> : vector<32x128xf32>
    %434 = tpu.matmul %432, %433, %cst_152 {dimension_numbers = #tpu.dot_dimension_numbers<[1], [0], [0], [1], [0, 0, 1, 1], [], []>} : vector<32x64xbf16>, vector<64x128xbf16>, vector<32x128xf32> -> vector<32x128xf32>
    %435 = arith.addf %360, %434 : vector<32x128xf32>
    %c0_153 = arith.constant 0 : index
    %c0_154 = arith.constant 0 : index
    %436 = vector.load %arg27[%c0_153, %c0_154] : memref<1x128xf32, #tpu.memory_space<vmem>>, vector<1x128xf32>
    %437 = vector.broadcast %436 : vector<1x128xf32> to vector<32x128xf32>
    %438 = arith.addf %435, %437 : vector<32x128xf32>
    %439 = arith.truncf %438 : vector<32x128xf32> to vector<32x128xbf16>
    %c0_155 = arith.constant 0 : index
    %c0_156 = arith.constant 0 : index
    %440 = vector.load %arg28[%c0_155, %c0_156] : memref<128x128xbf16, #tpu.memory_space<vmem>>, vector<128x128xbf16>
    %cst_157 = arith.constant dense<0.000000e+00> : vector<32x128xf32>
    %441 = tpu.matmul %439, %440, %cst_157 {dimension_numbers = #tpu.dot_dimension_numbers<[1], [0], [0], [1], [0, 0, 1, 1], [], []>} : vector<32x128xbf16>, vector<128x128xbf16>, vector<32x128xf32> -> vector<32x128xf32>
    %c0_158 = arith.constant 0 : index
    %c0_159 = arith.constant 0 : index
    %442 = vector.load %arg29[%c0_158, %c0_159] : memref<1x128xf32, #tpu.memory_space<vmem>>, vector<1x128xf32>
    %443 = vector.broadcast %442 : vector<1x128xf32> to vector<32x128xf32>
    %444 = arith.addf %441, %443 : vector<32x128xf32>
    %c0_160 = arith.constant 0 : index
    %c0_161 = arith.constant 0 : index
    %445 = vector.load %arg30[%c0_160, %c0_161] : memref<32x128xf32, #tpu.memory_space<vmem>>, vector<32x128xf32>
    tpu.vector_store %arg30[%c0_160, %c0_161], %444 {strides = array<i32>} : memref<32x128xf32, #tpu.memory_space<vmem>>, vector<32x128xf32>,
    return
  }
}

</mosaic_0001>

<llo_original>
// kernel: transfor_birds_forward.1
$region0: #{transfor_birds_forward.1}
  #allocation0 [shape = 'u32[]', space=smem, size = 0x4, offset = 0x4, fixed_abs, tag = 'smem constant byte address 0x4 - core index']
  #allocation1 [shape = 'u32[144,128]{1,0:T(1,128)}', space=vmem, size = 0x12000, scoped, tag = 'internal scratch']
  %s0 = inlined_call_operand.smem [shape: u32[31], index: -1, kind: input, shape index: {}]
  %s1 = sld [smem:[%s0]]
  %s2 = scalar_lea.smem %s0, 1
  %s3 = sld [smem:[%s2]]
  %s4 = scalar_lea.smem %s0, 2
  %s5 = sld [smem:[%s4]]
  %s6 = scalar_lea.smem %s0, 3
  %s7 = sld [smem:[%s6]]
  %s8 = scalar_lea.smem %s0, 4
  %s9 = sld [smem:[%s8]]
  %s10 = scalar_lea.smem %s0, 5
  %s11 = sld [smem:[%s10]]
  %s12 = scalar_lea.smem %s0, 6
  %s13 = sld [smem:[%s12]]
  %s14 = scalar_lea.smem %s0, 7
  %s15 = sld [smem:[%s14]]
  %s16 = scalar_lea.smem %s0, 8
  %s17 = sld [smem:[%s16]]
  %s18 = scalar_lea.smem %s0, 9
  %s19 = sld [smem:[%s18]]
  %s20 = scalar_lea.smem %s0, 10
  %s21 = sld [smem:[%s20]]
  %s22 = scalar_lea.smem %s0, 11
  %s23 = sld [smem:[%s22]]
  %s24 = scalar_lea.smem %s0, 12
  %s25 = sld [smem:[%s24]]
  %s26 = scalar_lea.smem %s0, 13
  %s27 = sld [smem:[%s26]]
  %s28 = scalar_lea.smem %s0, 14
  %s29 = sld [smem:[%s28]]
  %s30 = scalar_lea.smem %s0, 15
  %s31 = sld [smem:[%s30]]
  %s32 = scalar_lea.smem %s0, 16
  %s33 = sld [smem:[%s32]]
  %s34 = scalar_lea.smem %s0, 17
  %s35 = sld [smem:[%s34]]
  %s36 = scalar_lea.smem %s0, 18
  %s37 = sld [smem:[%s36]]
  %s38 = scalar_lea.smem %s0, 19
  %s39 = sld [smem:[%s38]]
  %s40 = scalar_lea.smem %s0, 20
  %s41 = sld [smem:[%s40]]
  %s42 = scalar_lea.smem %s0, 21
  %s43 = sld [smem:[%s42]]
  %s44 = scalar_lea.smem %s0, 22
  %s45 = sld [smem:[%s44]]
  %s46 = scalar_lea.smem %s0, 23
  %s47 = sld [smem:[%s46]]
  %s48 = scalar_lea.smem %s0, 24
  %s49 = sld [smem:[%s48]]
  %s50 = scalar_lea.smem %s0, 25
  %s51 = sld [smem:[%s50]]
  %s52 = scalar_lea.smem %s0, 26
  %s53 = sld [smem:[%s52]]
  %s54 = scalar_lea.smem %s0, 27
  %s55 = sld [smem:[%s54]]
  %s56 = scalar_lea.smem %s0, 28
  %s57 = sld [smem:[%s56]]
  %s58 = scalar_lea.smem %s0, 29
  %s59 = sld [smem:[%s58]]
  %s60 = scalar_lea.smem %s0, 30
  %s61 = sld [smem:[%s60]]
  %s62 = sld [smem:[#allocation0]]
  $region130: #{transfor_birds_forward.1} parent=0
    _
  %s64 = ssub.s32 1, %s62
  %s65 = scalar_select 0, %s64, %s62
  // Predicated region
  $region2: #{transfor_birds_forward.1} parent=0 // pred_check
    _
  $region3: #{transfor_birds_forward.1} parent=0 // pred_check_branch
    %67 = sbr.rel (0) target = $region5
  $region4: #{transfor_birds_forward.1} parent=0 // pred_region
    _
  $region5: #{transfor_birds_forward.1} parent=0 // pred_fallthru
    _
  // Predicated region
  $region6: #{transfor_birds_forward.1} parent=0 // pred_check
    _
  $region7: #{transfor_birds_forward.1} parent=0 // pred_check_branch
    %69 = sbr.rel (0) target = $region9
  $region8: #{transfor_birds_forward.1} parent=0 // pred_region
    _
  $region9: #{transfor_birds_forward.1} parent=0 // pred_fallthru
    _
  // Predicated region
  $region10: #{transfor_birds_forward.1} parent=0 // pred_check
    _
  $region11: #{transfor_birds_forward.1} parent=0 // pred_check_branch
    %71 = sbr.rel (0) target = $region13
  $region12: #{transfor_birds_forward.1} parent=0 // pred_region
    _
  $region13: #{transfor_birds_forward.1} parent=0 // pred_fallthru
    _
  // Predicated region
  $region14: #{transfor_birds_forward.1} parent=0 // pred_check
    _
  $region15: #{transfor_birds_forward.1} parent=0 // pred_check_branch
    %73 = sbr.rel (0) target = $region17
  $region16: #{transfor_birds_forward.1} parent=0 // pred_region
    _
  $region17: #{transfor_birds_forward.1} parent=0 // pred_fallthru
    _
  // Predicated region
  $region18: #{transfor_birds_forward.1} parent=0 // pred_check
    _
  $region19: #{transfor_birds_forward.1} parent=0 // pred_check_branch
    %75 = sbr.rel (0) target = $region21
  $region20: #{transfor_birds_forward.1} parent=0 // pred_region
    _
  $region21: #{transfor_birds_forward.1} parent=0 // pred_fallthru
    _
  // Predicated region
  $region22: #{transfor_birds_forward.1} parent=0 // pred_check
    _
  $region23: #{transfor_birds_forward.1} parent=0 // pred_check_branch
    %77 = sbr.rel (0) target = $region25
  $region24: #{transfor_birds_forward.1} parent=0 // pred_region
    _
  $region25: #{transfor_birds_forward.1} parent=0 // pred_fallthru
    _
  // Predicated region
  $region26: #{transfor_birds_forward.1} parent=0 // pred_check
    _
  $region27: #{transfor_birds_forward.1} parent=0 // pred_check_branch
    %79 = sbr.rel (0) target = $region29
  $region28: #{transfor_birds_forward.1} parent=0 // pred_region
    _
  $region29: #{transfor_birds_forward.1} parent=0 // pred_fallthru
    _
  // Predicated region
  $region30: #{transfor_birds_forward.1} parent=0 // pred_check
    _
  $region31: #{transfor_birds_forward.1} parent=0 // pred_check_branch
    %81 = sbr.rel (0) target = $region33
  $region32: #{transfor_birds_forward.1} parent=0 // pred_region
    _
  $region33: #{transfor_birds_forward.1} parent=0 // pred_fallthru
    _
  // Predicated region
  $region34: #{transfor_birds_forward.1} parent=0 // pred_check
    _
  $region35: #{transfor_birds_forward.1} parent=0 // pred_check_branch
    %83 = sbr.rel (0) target = $region37
  $region36: #{transfor_birds_forward.1} parent=0 // pred_region
    _
  $region37: #{transfor_birds_forward.1} parent=0 // pred_fallthru
    _
  // Predicated region
  $region38: #{transfor_birds_forward.1} parent=0 // pred_check
    _
  $region39: #{transfor_birds_forward.1} parent=0 // pred_check_branch
    %85 = sbr.rel (0) target = $region41
  $region40: #{transfor_birds_forward.1} parent=0 // pred_region
    _
  $region41: #{transfor_birds_forward.1} parent=0 // pred_fallthru
    _
  // Predicated region
  $region42: #{transfor_birds_forward.1} parent=0 // pred_check
    _
  $region43: #{transfor_birds_forward.1} parent=0 // pred_check_branch
    %87 = sbr.rel (0) target = $region45
  $region44: #{transfor_birds_forward.1} parent=0 // pred_region
    _
  $region45: #{transfor_birds_forward.1} parent=0 // pred_fallthru
    _
  // Predicated region
  $region46: #{transfor_birds_forward.1} parent=0 // pred_check
    _
  $region47: #{transfor_birds_forward.1} parent=0 // pred_check_branch
    %89 = sbr.rel (0) target = $region49
  $region48: #{transfor_birds_forward.1} parent=0 // pred_region
    _
  $region49: #{transfor_birds_forward.1} parent=0 // pred_fallthru
    _
  // Predicated region
  $region50: #{transfor_birds_forward.1} parent=0 // pred_check
    _
  $region51: #{transfor_birds_forward.1} parent=0 // pred_check_branch
    %91 = sbr.rel (0) target = $region53
  $region52: #{transfor_birds_forward.1} parent=0 // pred_region
    _
  $region53: #{transfor_birds_forward.1} parent=0 // pred_fallthru
    _
  // Predicated region
  $region54: #{transfor_birds_forward.1} parent=0 // pred_check
    _
  $region55: #{transfor_birds_forward.1} parent=0 // pred_check_branch
    %93 = sbr.rel (0) target = $region57
  $region56: #{transfor_birds_forward.1} parent=0 // pred_region
    _
  $region57: #{transfor_birds_forward.1} parent=0 // pred_fallthru
    _
  // Predicated region
  $region58: #{transfor_birds_forward.1} parent=0 // pred_check
    _
  $region59: #{transfor_birds_forward.1} parent=0 // pred_check_branch
    %95 = sbr.rel (0) target = $region61
  $region60: #{transfor_birds_forward.1} parent=0 // pred_region
    _
  $region61: #{transfor_birds_forward.1} parent=0 // pred_fallthru
    _
  // Predicated region
  $region62: #{transfor_birds_forward.1} parent=0 // pred_check
    _
  $region63: #{transfor_birds_forward.1} parent=0 // pred_check_branch
    %97 = sbr.rel (0) target = $region65
  $region64: #{transfor_birds_forward.1} parent=0 // pred_region
    _
  $region65: #{transfor_birds_forward.1} parent=0 // pred_fallthru
    _
  // Predicated region
  $region66: #{transfor_birds_forward.1} parent=0 // pred_check
    _
  $region67: #{transfor_birds_forward.1} parent=0 // pred_check_branch
    %99 = sbr.rel (0) target = $region69
  $region68: #{transfor_birds_forward.1} parent=0 // pred_region
    _
  $region69: #{transfor_birds_forward.1} parent=0 // pred_fallthru
    _
  // Predicated region
  $region70: #{transfor_birds_forward.1} parent=0 // pred_check
    _
  $region71: #{transfor_birds_forward.1} parent=0 // pred_check_branch
    %101 = sbr.rel (0) target = $region73
  $region72: #{transfor_birds_forward.1} parent=0 // pred_region
    _
  $region73: #{transfor_birds_forward.1} parent=0 // pred_fallthru
    _
  // Predicated region
  $region74: #{transfor_birds_forward.1} parent=0 // pred_check
    _
  $region75: #{transfor_birds_forward.1} parent=0 // pred_check_branch
    %103 = sbr.rel (0) target = $region77
  $region76: #{transfor_birds_forward.1} parent=0 // pred_region
    _
  $region77: #{transfor_birds_forward.1} parent=0 // pred_fallthru
    _
  // Predicated region
  $region78: #{transfor_birds_forward.1} parent=0 // pred_check
    _
  $region79: #{transfor_birds_forward.1} parent=0 // pred_check_branch
    %105 = sbr.rel (0) target = $region81
  $region80: #{transfor_birds_forward.1} parent=0 // pred_region
    _
  $region81: #{transfor_birds_forward.1} parent=0 // pred_fallthru
    _
  // Predicated region
  $region82: #{transfor_birds_forward.1} parent=0 // pred_check
    _
  $region83: #{transfor_birds_forward.1} parent=0 // pred_check_branch
    %107 = sbr.rel (0) target = $region85
  $region84: #{transfor_birds_forward.1} parent=0 // pred_region
    _
  $region85: #{transfor_birds_forward.1} parent=0 // pred_fallthru
    _
  // Predicated region
  $region86: #{transfor_birds_forward.1} parent=0 // pred_check
    _
  $region87: #{transfor_birds_forward.1} parent=0 // pred_check_branch
    %109 = sbr.rel (0) target = $region89
  $region88: #{transfor_birds_forward.1} parent=0 // pred_region
    _
  $region89: #{transfor_birds_forward.1} parent=0 // pred_fallthru
    _
  // Predicated region
  $region90: #{transfor_birds_forward.1} parent=0 // pred_check
    _
  $region91: #{transfor_birds_forward.1} parent=0 // pred_check_branch
    %111 = sbr.rel (0) target = $region93
  $region92: #{transfor_birds_forward.1} parent=0 // pred_region
    _
  $region93: #{transfor_birds_forward.1} parent=0 // pred_fallthru
    _
  // Predicated region
  $region94: #{transfor_birds_forward.1} parent=0 // pred_check
    _
  $region95: #{transfor_birds_forward.1} parent=0 // pred_check_branch
    %113 = sbr.rel (0) target = $region97
  $region96: #{transfor_birds_forward.1} parent=0 // pred_region
    _
  $region97: #{transfor_birds_forward.1} parent=0 // pred_fallthru
    _
  // Predicated region
  $region98: #{transfor_birds_forward.1} parent=0 // pred_check
    _
  $region99: #{transfor_birds_forward.1} parent=0 // pred_check_branch
    %115 = sbr.rel (0) target = $region101
  $region100: #{transfor_birds_forward.1} parent=0 // pred_region
    _
  $region101: #{transfor_birds_forward.1} parent=0 // pred_fallthru
    _
  // Predicated region
  $region102: #{transfor_birds_forward.1} parent=0 // pred_check
    _
  $region103: #{transfor_birds_forward.1} parent=0 // pred_check_branch
    %117 = sbr.rel (0) target = $region105
  $region104: #{transfor_birds_forward.1} parent=0 // pred_region
    _
  $region105: #{transfor_birds_forward.1} parent=0 // pred_fallthru
    _
  // Predicated region
  $region106: #{transfor_birds_forward.1} parent=0 // pred_check
    _
  $region107: #{transfor_birds_forward.1} parent=0 // pred_check_branch
    %119 = sbr.rel (0) target = $region109
  $region108: #{transfor_birds_forward.1} parent=0 // pred_region
    _
  $region109: #{transfor_birds_forward.1} parent=0 // pred_fallthru
    _
  // Predicated region
  $region110: #{transfor_birds_forward.1} parent=0 // pred_check
    _
  $region111: #{transfor_birds_forward.1} parent=0 // pred_check_branch
    %121 = sbr.rel (0) target = $region113
  $region112: #{transfor_birds_forward.1} parent=0 // pred_region
    _
  $region113: #{transfor_birds_forward.1} parent=0 // pred_fallthru
    _
  // Predicated region
  $region114: #{transfor_birds_forward.1} parent=0 // pred_check
    _
  $region115: #{transfor_birds_forward.1} parent=0 // pred_check_branch
    %123 = sbr.rel (0) target = $region117
  $region116: #{transfor_birds_forward.1} parent=0 // pred_region
    _
  $region117: #{transfor_birds_forward.1} parent=0 // pred_fallthru
    _
  // Predicated region
  $region118: #{transfor_birds_forward.1} parent=0 // pred_check
    _
  $region119: #{transfor_birds_forward.1} parent=0 // pred_check_branch
    %125 = sbr.rel (0) target = $region121
  $region120: #{transfor_birds_forward.1} parent=0 // pred_region
    _
  $region121: #{transfor_birds_forward.1} parent=0 // pred_fallthru
    _
  %v127 = vld [vmem:[%s1] sm:$0xff]
  %v128 = vld [vmem:[%s1 + $0x8] sm:$0xff]
  %v129 = vld [vmem:[%s1 + $0x10] sm:$0xff]
  %v130 = vld [vmem:[%s1 + $0x18] sm:$0xff]
  %v131 = vld [vmem:[%s1 + $0x20] sm:$0xff]
  %v132 = vld [vmem:[%s1 + $0x28] sm:$0xff]
  %v133 = vld [vmem:[%s1 + $0x30] sm:$0xff]
  %v134 = vld [vmem:[%s1 + $0x38] sm:$0xff]
  %v135 = vld [vmem:[%s1 + $0x40] sm:$0xff]
  %v136 = vld [vmem:[%s1 + $0x48] sm:$0xff]
  %v137 = vld [vmem:[%s1 + $0x50] sm:$0xff]
  %v138 = vld [vmem:[%s1 + $0x58] sm:$0xff]
  %v139 = vld [vmem:[%s1 + $0x60] sm:$0xff]
  %v140 = vld [vmem:[%s1 + $0x68] sm:$0xff]
  %v141 = vld [vmem:[%s1 + $0x70] sm:$0xff]
  %v142 = vld [vmem:[%s1 + $0x78] sm:$0xff]
  %v143 = vld [vmem:[%s1 + $0x80] sm:$0xff]
  %v144 = vld [vmem:[%s1 + $0x88] sm:$0xff]
  %v145 = vld [vmem:[%s1 + $0x90] sm:$0xff]
  %v146 = vld [vmem:[%s1 + $0x98] sm:$0xff]
  %v147 = vld [vmem:[%s1 + $0xa0] sm:$0xff]
  %v148 = vld [vmem:[%s1 + $0xa8] sm:$0xff]
  %v149 = vld [vmem:[%s1 + $0xb0] sm:$0xff]
  %v150 = vld [vmem:[%s1 + $0xb8] sm:$0xff]
  %v151 = vld [vmem:[%s1 + $0xc0] sm:$0xff]
  %v152 = vld [vmem:[%s1 + $0xc8] sm:$0xff]
  %v153 = vld [vmem:[%s1 + $0xd0] sm:$0xff]
  %v154 = vld [vmem:[%s1 + $0xd8] sm:$0xff]
  %v155 = vld [vmem:[%s1 + $0xe0] sm:$0xff]
  %v156 = vld [vmem:[%s1 + $0xe8] sm:$0xff]
  %v157 = vld [vmem:[%s1 + $0xf0] sm:$0xff]
  %v158 = vld [vmem:[%s1 + $0xf8] sm:$0xff]
  %v159 = vld [vmem:[%s1 + $0x100] sm:$0xff]
  %v160 = vld [vmem:[%s1 + $0x108] sm:$0xff]
  %v161 = vld [vmem:[%s1 + $0x110] sm:$0xff]
  %v162 = vld [vmem:[%s1 + $0x118] sm:$0xff]
  %v163 = vld [vmem:[%s1 + $0x120] sm:$0xff]
  %v164 = vld [vmem:[%s1 + $0x128] sm:$0xff]
  %v165 = vld [vmem:[%s1 + $0x130] sm:$0xff]
  %v166 = vld [vmem:[%s1 + $0x138] sm:$0xff]
  %v167 = vld [vmem:[%s1 + $0x140] sm:$0xff]
  %v168 = vld [vmem:[%s1 + $0x148] sm:$0xff]
  %v169 = vld [vmem:[%s1 + $0x150] sm:$0xff]
  %v170 = vld [vmem:[%s1 + $0x158] sm:$0xff]
  %v171 = vld [vmem:[%s1 + $0x160] sm:$0xff]
  %v172 = vld [vmem:[%s1 + $0x168] sm:$0xff]
  %v173 = vld [vmem:[%s1 + $0x170] sm:$0xff]
  %v174 = vld [vmem:[%s1 + $0x178] sm:$0xff]
  %v175 = vld [vmem:[%s1 + $0x180] sm:$0xff]
  %v176 = vld [vmem:[%s1 + $0x188] sm:$0xff]
  %v177 = vld [vmem:[%s1 + $0x190] sm:$0xff]
  %v178 = vld [vmem:[%s1 + $0x198] sm:$0xff]
  %v179 = vld [vmem:[%s1 + $0x1a0] sm:$0xff]
  %v180 = vld [vmem:[%s1 + $0x1a8] sm:$0xff]
  %v181 = vld [vmem:[%s1 + $0x1b0] sm:$0xff]
  %v182 = vld [vmem:[%s1 + $0x1b8] sm:$0xff]
  %v183 = vld [vmem:[%s1 + $0x1c0] sm:$0xff]
  %v184 = vld [vmem:[%s1 + $0x1c8] sm:$0xff]
  %v185 = vld [vmem:[%s1 + $0x1d0] sm:$0xff]
  %v186 = vld [vmem:[%s1 + $0x1d8] sm:$0xff]
  %v187 = vld [vmem:[%s1 + $0x1e0] sm:$0xff]
  %v188 = vld [vmem:[%s1 + $0x1e8] sm:$0xff]
  %v189 = vld [vmem:[%s1 + $0x1f0] sm:$0xff]
  %v190 = vld [vmem:[%s1 + $0x1f8] sm:$0xff]
  %v191 = vld [vmem:[%s1 + $0x200] sm:$0xff]
  %v192 = vld [vmem:[%s1 + $0x208] sm:$0xff]
  %v193 = vld [vmem:[%s1 + $0x210] sm:$0xff]
  %v194 = vld [vmem:[%s1 + $0x218] sm:$0xff]
  %v195 = vld [vmem:[%s1 + $0x220] sm:$0xff]
  %v196 = vld [vmem:[%s1 + $0x228] sm:$0xff]
  %v197 = vld [vmem:[%s1 + $0x230] sm:$0xff]
  %v198 = vld [vmem:[%s1 + $0x238] sm:$0xff]
  %v199 = vld [vmem:[%s1 + $0x240] sm:$0xff]
  %v200 = vld [vmem:[%s1 + $0x248] sm:$0xff]
  %v201 = vld [vmem:[%s1 + $0x250] sm:$0xff]
  %v202 = vld [vmem:[%s1 + $0x258] sm:$0xff]
  %v203 = vld [vmem:[%s1 + $0x260] sm:$0xff]
  %v204 = vld [vmem:[%s1 + $0x268] sm:$0xff]
  %v205 = vld [vmem:[%s1 + $0x270] sm:$0xff]
  %v206 = vld [vmem:[%s1 + $0x278] sm:$0xff]
  %v207 = vld [vmem:[%s1 + $0x280] sm:$0xff]
  %v208 = vld [vmem:[%s1 + $0x288] sm:$0xff]
  %v209 = vld [vmem:[%s1 + $0x290] sm:$0xff]
  %v210 = vld [vmem:[%s1 + $0x298] sm:$0xff]
  %v211 = vld [vmem:[%s1 + $0x2a0] sm:$0xff]
  %v212 = vld [vmem:[%s1 + $0x2a8] sm:$0xff]
  %v213 = vld [vmem:[%s1 + $0x2b0] sm:$0xff]
  %v214 = vld [vmem:[%s1 + $0x2b8] sm:$0xff]
  %v215 = vld [vmem:[%s1 + $0x2c0] sm:$0xff]
  %v216 = vld [vmem:[%s1 + $0x2c8] sm:$0xff]
  %v217 = vld [vmem:[%s1 + $0x2d0] sm:$0xff]
  %v218 = vld [vmem:[%s1 + $0x2d8] sm:$0xff]
  %v219 = vld [vmem:[%s1 + $0x2e0] sm:$0xff]
  %v220 = vld [vmem:[%s1 + $0x2e8] sm:$0xff]
  %v221 = vld [vmem:[%s1 + $0x2f0] sm:$0xff]
  %v222 = vld [vmem:[%s1 + $0x2f8] sm:$0xff]
  %v223 = vld [vmem:[%s1 + $0x300] sm:$0xff]
  %v224 = vld [vmem:[%s1 + $0x308] sm:$0xff]
  %v225 = vld [vmem:[%s1 + $0x310] sm:$0xff]
  %v226 = vld [vmem:[%s1 + $0x318] sm:$0xff]
  %v227 = vld [vmem:[%s1 + $0x320] sm:$0xff]
  %v228 = vld [vmem:[%s1 + $0x328] sm:$0xff]
  %v229 = vld [vmem:[%s1 + $0x330] sm:$0xff]
  %v230 = vld [vmem:[%s1 + $0x338] sm:$0xff]
  %v231 = vld [vmem:[%s1 + $0x340] sm:$0xff]
  %v232 = vld [vmem:[%s1 + $0x348] sm:$0xff]
  %v233 = vld [vmem:[%s1 + $0x350] sm:$0xff]
  %v234 = vld [vmem:[%s1 + $0x358] sm:$0xff]
  %v235 = vld [vmem:[%s1 + $0x360] sm:$0xff]
  %v236 = vld [vmem:[%s1 + $0x368] sm:$0xff]
  %v237 = vld [vmem:[%s1 + $0x370] sm:$0xff]
  %v238 = vld [vmem:[%s1 + $0x378] sm:$0xff]
  %v239 = vld [vmem:[%s1 + $0x380] sm:$0xff]
  %v240 = vld [vmem:[%s1 + $0x388] sm:$0xff]
  %v241 = vld [vmem:[%s1 + $0x390] sm:$0xff]
  %v242 = vld [vmem:[%s1 + $0x398] sm:$0xff]
  %v243 = vld [vmem:[%s1 + $0x3a0] sm:$0xff]
  %v244 = vld [vmem:[%s1 + $0x3a8] sm:$0xff]
  %v245 = vld [vmem:[%s1 + $0x3b0] sm:$0xff]
  %v246 = vld [vmem:[%s1 + $0x3b8] sm:$0xff]
  %v247 = vld [vmem:[%s1 + $0x3c0] sm:$0xff]
  %v248 = vld [vmem:[%s1 + $0x3c8] sm:$0xff]
  %v249 = vld [vmem:[%s1 + $0x3d0] sm:$0xff]
  %v250 = vld [vmem:[%s1 + $0x3d8] sm:$0xff]
  %v251 = vld [vmem:[%s1 + $0x3e0] sm:$0xff]
  %v252 = vld [vmem:[%s1 + $0x3e8] sm:$0xff]
  %v253 = vld [vmem:[%s1 + $0x3f0] sm:$0xff]
  %v254 = vld [vmem:[%s1 + $0x3f8] sm:$0xff]
  %v255 = vld [vmem:[%s1 + $0x400] sm:$0xff]
  %v256 = vld [vmem:[%s1 + $0x408] sm:$0xff]
  %v257 = vld [vmem:[%s1 + $0x410] sm:$0xff]
  %v258 = vld [vmem:[%s1 + $0x418] sm:$0xff]
  %v259 = vld [vmem:[%s1 + $0x420] sm:$0xff]
  %v260 = vld [vmem:[%s1 + $0x428] sm:$0xff]
  %v261 = vld [vmem:[%s1 + $0x430] sm:$0xff]
  %v262 = vld [vmem:[%s1 + $0x438] sm:$0xff]
  %v263 = vld [vmem:[%s1 + $0x440] sm:$0xff]
  %v264 = vld [vmem:[%s1 + $0x448] sm:$0xff]
  %v265 = vld [vmem:[%s1 + $0x450] sm:$0xff]
  %v266 = vld [vmem:[%s1 + $0x458] sm:$0xff]
  %v267 = vld [vmem:[%s1 + $0x460] sm:$0xff]
  %v268 = vld [vmem:[%s1 + $0x468] sm:$0xff]
  %v269 = vld [vmem:[%s1 + $0x470] sm:$0xff]
  %v270 = vld [vmem:[%s1 + $0x478] sm:$0xff]
  %v271 = vld [vmem:[%s1 + $0x480] sm:$0xff]
  %v272 = vld [vmem:[%s1 + $0x488] sm:$0xff]
  %v273 = vld [vmem:[%s1 + $0x490] sm:$0xff]
  %v274 = vld [vmem:[%s1 + $0x498] sm:$0xff]
  %v275 = vld [vmem:[%s5] sm:$0xf]
  %v276 = vld [vmem:[%s5 + $0x4] sm:$0xf]
  %v277 = vld [vmem:[%s5 + $0x8] sm:$0xf]
  %v278 = vld [vmem:[%s5 + $0xc] sm:$0xf]
  %v279 = vld [vmem:[%s5 + $0x10] sm:$0xf]
  %v280 = vld [vmem:[%s5 + $0x14] sm:$0xf]
  %v281 = vld [vmem:[%s5 + $0x18] sm:$0xf]
  %v282 = vld [vmem:[%s5 + $0x1c] sm:$0xf]
  %v283 = vld [vmem:[%s5 + $0x20] sm:$0xf]
  %v284 = vld [vmem:[%s5 + $0x24] sm:$0xf]
  %v285 = vld [vmem:[%s5 + $0x28] sm:$0xf]
  %v286 = vld [vmem:[%s5 + $0x2c] sm:$0xf]
  %v287 = vld [vmem:[%s5 + $0x30] sm:$0xf]
  %v288 = vld [vmem:[%s5 + $0x34] sm:$0xf]
  %v289 = vld [vmem:[%s5 + $0x38] sm:$0xf]
  %v290 = vld [vmem:[%s5 + $0x3c] sm:$0xf]
  %v291 = vld [vmem:[%s5 + $0x40] sm:$0xf]
  %v292 = vld [vmem:[%s5 + $0x44] sm:$0xf]
  %v293 = vld [vmem:[%s5 + $0x48] sm:$0xf]
  %v294 = vld [vmem:[%s5 + $0x4c] sm:$0xf]
  %v295 = vld [vmem:[%s5 + $0x50] sm:$0xf]
  %v296 = vld [vmem:[%s5 + $0x54] sm:$0xf]
  %v297 = vld [vmem:[%s5 + $0x58] sm:$0xf]
  %v298 = vld [vmem:[%s5 + $0x5c] sm:$0xf]
  %v299 = vld [vmem:[%s5 + $0x60] sm:$0xf]
  %v300 = vld [vmem:[%s5 + $0x64] sm:$0xf]
  %v301 = vld [vmem:[%s5 + $0x68] sm:$0xf]
  %v302 = vld [vmem:[%s5 + $0x6c] sm:$0xf]
  %v303 = vld [vmem:[%s5 + $0x70] sm:$0xf]
  %v304 = vld [vmem:[%s5 + $0x74] sm:$0xf]
  %v305 = vld [vmem:[%s5 + $0x78] sm:$0xf]
  %v306 = vld [vmem:[%s5 + $0x7c] sm:$0xf]
  %v307 = vld [vmem:[%s5 + $0x80] sm:$0xf]
  %v308 = vld [vmem:[%s5 + $0x84] sm:$0xf]
  %v309 = vld [vmem:[%s5 + $0x88] sm:$0xf]
  %v310 = vld [vmem:[%s5 + $0x8c] sm:$0xf]
  %v311 = vld [vmem:[%s5 + $0x90] sm:$0xf]
  %v312 = vld [vmem:[%s5 + $0x94] sm:$0xf]
  %v313 = vld [vmem:[%s5 + $0x98] sm:$0xf]
  %v314 = vld [vmem:[%s5 + $0x9c] sm:$0xf]
  %v315 = vld [vmem:[%s5 + $0xa0] sm:$0xf]
  %v316 = vld [vmem:[%s5 + $0xa4] sm:$0xf]
  %v317 = vld [vmem:[%s5 + $0xa8] sm:$0xf]
  %v318 = vld [vmem:[%s5 + $0xac] sm:$0xf]
  %v319 = vld [vmem:[%s5 + $0xb0] sm:$0xf]
  %v320 = vld [vmem:[%s5 + $0xb4] sm:$0xf]
  %v321 = vld [vmem:[%s5 + $0xb8] sm:$0xf]
  %v322 = vld [vmem:[%s5 + $0xbc] sm:$0xf]
  %v323 = vld [vmem:[%s5 + $0xc0] sm:$0xf]
  %v324 = vld [vmem:[%s5 + $0xc4] sm:$0xf]
  %v325 = vld [vmem:[%s5 + $0xc8] sm:$0xf]
  %v326 = vld [vmem:[%s5 + $0xcc] sm:$0xf]
  %v327 = vld [vmem:[%s5 + $0xd0] sm:$0xf]
  %v328 = vld [vmem:[%s5 + $0xd4] sm:$0xf]
  %v329 = vld [vmem:[%s5 + $0xd8] sm:$0xf]
  %v330 = vld [vmem:[%s5 + $0xdc] sm:$0xf]
  %v331 = vld [vmem:[%s5 + $0xe0] sm:$0xf]
  %v332 = vld [vmem:[%s5 + $0xe4] sm:$0xf]
  %v333 = vld [vmem:[%s5 + $0xe8] sm:$0xf]
  %v334 = vld [vmem:[%s5 + $0xec] sm:$0xf]
  %v335 = vld [vmem:[%s5 + $0xf0] sm:$0xf]
  %v336 = vld [vmem:[%s5 + $0xf4] sm:$0xf]
  %v337 = vld [vmem:[%s5 + $0xf8] sm:$0xf]
  %v338 = vld [vmem:[%s5 + $0xfc] sm:$0xf]
  %v339 = vld [vmem:[%s5 + $0x100] sm:$0xf]
  %v340 = vld [vmem:[%s5 + $0x104] sm:$0xf]
  %v341 = vld [vmem:[%s5 + $0x108] sm:$0xf]
  %v342 = vld [vmem:[%s5 + $0x10c] sm:$0xf]
  %v343 = vld [vmem:[%s5 + $0x110] sm:$0xf]
  %v344 = vld [vmem:[%s5 + $0x114] sm:$0xf]
  %v345 = vld [vmem:[%s5 + $0x118] sm:$0xf]
  %v346 = vld [vmem:[%s5 + $0x11c] sm:$0xf]
  %v347 = vld [vmem:[%s5 + $0x120] sm:$0xf]
  %v348 = vld [vmem:[%s5 + $0x124] sm:$0xf]
  %v349 = vld [vmem:[%s5 + $0x128] sm:$0xf]
  %v350 = vld [vmem:[%s5 + $0x12c] sm:$0xf]
  %v351 = vld [vmem:[%s5 + $0x130] sm:$0xf]
  %v352 = vld [vmem:[%s5 + $0x134] sm:$0xf]
  %v353 = vld [vmem:[%s5 + $0x138] sm:$0xf]
  %v354 = vld [vmem:[%s5 + $0x13c] sm:$0xf]
  %v355 = vld [vmem:[%s5 + $0x140] sm:$0xf]
  %v356 = vld [vmem:[%s5 + $0x144] sm:$0xf]
  %v357 = vld [vmem:[%s5 + $0x148] sm:$0xf]
  %v358 = vld [vmem:[%s5 + $0x14c] sm:$0xf]
  %v359 = vld [vmem:[%s5 + $0x150] sm:$0xf]
  %v360 = vld [vmem:[%s5 + $0x154] sm:$0xf]
  %v361 = vld [vmem:[%s5 + $0x158] sm:$0xf]
  %v362 = vld [vmem:[%s5 + $0x15c] sm:$0xf]
  %v363 = vld [vmem:[%s5 + $0x160] sm:$0xf]
  %v364 = vld [vmem:[%s5 + $0x164] sm:$0xf]
  %v365 = vld [vmem:[%s5 + $0x168] sm:$0xf]
  %v366 = vld [vmem:[%s5 + $0x16c] sm:$0xf]
  %v367 = vld [vmem:[%s5 + $0x170] sm:$0xf]
  %v368 = vld [vmem:[%s5 + $0x174] sm:$0xf]
  %v369 = vld [vmem:[%s5 + $0x178] sm:$0xf]
  %v370 = vld [vmem:[%s5 + $0x17c] sm:$0xf]
  %v371 = vld [vmem:[%s5 + $0x180] sm:$0xf]
  %v372 = vld [vmem:[%s5 + $0x184] sm:$0xf]
  %v373 = vld [vmem:[%s5 + $0x188] sm:$0xf]
  %v374 = vld [vmem:[%s5 + $0x18c] sm:$0xf]
  %v375 = vld [vmem:[%s5 + $0x190] sm:$0xf]
  %v376 = vld [vmem:[%s5 + $0x194] sm:$0xf]
  %v377 = vld [vmem:[%s5 + $0x198] sm:$0xf]
  %v378 = vld [vmem:[%s5 + $0x19c] sm:$0xf]
  %v379 = vld [vmem:[%s5 + $0x1a0] sm:$0xf]
  %v380 = vld [vmem:[%s5 + $0x1a4] sm:$0xf]
  %v381 = vld [vmem:[%s5 + $0x1a8] sm:$0xf]
  %v382 = vld [vmem:[%s5 + $0x1ac] sm:$0xf]
  %v383 = vld [vmem:[%s5 + $0x1b0] sm:$0xf]
  %v384 = vld [vmem:[%s5 + $0x1b4] sm:$0xf]
  %v385 = vld [vmem:[%s5 + $0x1b8] sm:$0xf]
  %v386 = vld [vmem:[%s5 + $0x1bc] sm:$0xf]
  %v387 = vld [vmem:[%s5 + $0x1c0] sm:$0xf]
  %v388 = vld [vmem:[%s5 + $0x1c4] sm:$0xf]
  %v389 = vld [vmem:[%s5 + $0x1c8] sm:$0xf]
  %v390 = vld [vmem:[%s5 + $0x1cc] sm:$0xf]
  %v391 = vld [vmem:[%s5 + $0x1d0] sm:$0xf]
  %v392 = vld [vmem:[%s5 + $0x1d4] sm:$0xf]
  %v393 = vld [vmem:[%s5 + $0x1d8] sm:$0xf]
  %v394 = vld [vmem:[%s5 + $0x1dc] sm:$0xf]
  %v395 = vld [vmem:[%s5 + $0x1e0] sm:$0xf]
  %v396 = vld [vmem:[%s5 + $0x1e4] sm:$0xf]
  %v397 = vld [vmem:[%s5 + $0x1e8] sm:$0xf]
  %v398 = vld [vmem:[%s5 + $0x1ec] sm:$0xf]
  %v399 = vld [vmem:[%s5 + $0x1f0] sm:$0xf]
  %v400 = vld [vmem:[%s5 + $0x1f4] sm:$0xf]
  %v401 = vld [vmem:[%s5 + $0x1f8] sm:$0xf]
  %v402 = vld [vmem:[%s5 + $0x1fc] sm:$0xf]
  %v403 = vld [vmem:[%s5 + $0x200] sm:$0xf]
  %v404 = vld [vmem:[%s5 + $0x204] sm:$0xf]
  %v405 = vld [vmem:[%s5 + $0x208] sm:$0xf]
  %v406 = vld [vmem:[%s5 + $0x20c] sm:$0xf]
  %v407 = vld [vmem:[%s5 + $0x210] sm:$0xf]
  %v408 = vld [vmem:[%s5 + $0x214] sm:$0xf]
  %v409 = vld [vmem:[%s5 + $0x218] sm:$0xf]
  %v410 = vld [vmem:[%s5 + $0x21c] sm:$0xf]
  %v411 = vld [vmem:[%s5 + $0x220] sm:$0xf]
  %v412 = vld [vmem:[%s5 + $0x224] sm:$0xf]
  %v413 = vld [vmem:[%s5 + $0x228] sm:$0xf]
  %v414 = vld [vmem:[%s5 + $0x22c] sm:$0xf]
  %v415 = vld [vmem:[%s5 + $0x230] sm:$0xf]
  %v416 = vld [vmem:[%s5 + $0x234] sm:$0xf]
  %v417 = vld [vmem:[%s5 + $0x238] sm:$0xf]
  %v418 = vld [vmem:[%s5 + $0x23c] sm:$0xf]
  %v419 = vld [vmem:[%s5 + $0x240] sm:$0xf]
  %v420 = vld [vmem:[%s5 + $0x244] sm:$0xf]
  %v421 = vld [vmem:[%s5 + $0x248] sm:$0xf]
  %v422 = vld [vmem:[%s5 + $0x24c] sm:$0xf]
  %v423 = vld [vmem:[%s5 + $0x250] sm:$0xf]
  %v424 = vld [vmem:[%s5 + $0x254] sm:$0xf]
  %v425 = vld [vmem:[%s5 + $0x258] sm:$0xf]
  %v426 = vld [vmem:[%s5 + $0x25c] sm:$0xf]
  %v427 = vld [vmem:[%s5 + $0x260] sm:$0xf]
  %v428 = vld [vmem:[%s5 + $0x264] sm:$0xf]
  %v429 = vld [vmem:[%s5 + $0x268] sm:$0xf]
  %v430 = vld [vmem:[%s5 + $0x26c] sm:$0xf]
  %v431 = vld [vmem:[%s5 + $0x270] sm:$0xf]
  %v432 = vld [vmem:[%s5 + $0x274] sm:$0xf]
  %v433 = vld [vmem:[%s5 + $0x278] sm:$0xf]
  %v434 = vld [vmem:[%s5 + $0x27c] sm:$0xf]
  %v435 = vld [vmem:[%s5 + $0x280] sm:$0xf]
  %v436 = vld [vmem:[%s5 + $0x284] sm:$0xf]
  %v437 = vld [vmem:[%s5 + $0x288] sm:$0xf]
  %v438 = vld [vmem:[%s5 + $0x28c] sm:$0xf]
  %v439 = vld [vmem:[%s5 + $0x290] sm:$0xf]
  %v440 = vld [vmem:[%s5 + $0x294] sm:$0xf]
  %v441 = vld [vmem:[%s5 + $0x298] sm:$0xf]
  %v442 = vld [vmem:[%s5 + $0x29c] sm:$0xf]
  %v443 = vld [vmem:[%s5 + $0x2a0] sm:$0xf]
  %v444 = vld [vmem:[%s5 + $0x2a4] sm:$0xf]
  %v445 = vld [vmem:[%s5 + $0x2a8] sm:$0xf]
  %v446 = vld [vmem:[%s5 + $0x2ac] sm:$0xf]
  %v447 = vld [vmem:[%s5 + $0x2b0] sm:$0xf]
  %v448 = vld [vmem:[%s5 + $0x2b4] sm:$0xf]
  %v449 = vld [vmem:[%s5 + $0x2b8] sm:$0xf]
  %v450 = vld [vmem:[%s5 + $0x2bc] sm:$0xf]
  %v451 = vld [vmem:[%s5 + $0x2c0] sm:$0xf]
  %v452 = vld [vmem:[%s5 + $0x2c4] sm:$0xf]
  %v453 = vld [vmem:[%s5 + $0x2c8] sm:$0xf]
  %v454 = vld [vmem:[%s5 + $0x2cc] sm:$0xf]
  %v455 = vld [vmem:[%s5 + $0x2d0] sm:$0xf]
  %v456 = vld [vmem:[%s5 + $0x2d4] sm:$0xf]
  %v457 = vld [vmem:[%s5 + $0x2d8] sm:$0xf]
  %v458 = vld [vmem:[%s5 + $0x2dc] sm:$0xf]
  %v459 = vld [vmem:[%s5 + $0x2e0] sm:$0xf]
  %v460 = vld [vmem:[%s5 + $0x2e4] sm:$0xf]
  %v461 = vld [vmem:[%s5 + $0x2e8] sm:$0xf]
  %v462 = vld [vmem:[%s5 + $0x2ec] sm:$0xf]
  %v463 = vld [vmem:[%s5 + $0x2f0] sm:$0xf]
  %v464 = vld [vmem:[%s5 + $0x2f4] sm:$0xf]
  %v465 = vld [vmem:[%s5 + $0x2f8] sm:$0xf]
  %v466 = vld [vmem:[%s5 + $0x2fc] sm:$0xf]
  %v467 = vld [vmem:[%s5 + $0x300] sm:$0xf]
  %v468 = vld [vmem:[%s5 + $0x304] sm:$0xf]
  %v469 = vld [vmem:[%s5 + $0x308] sm:$0xf]
  %v470 = vld [vmem:[%s5 + $0x30c] sm:$0xf]
  %v471 = vld [vmem:[%s5 + $0x310] sm:$0xf]
  %v472 = vld [vmem:[%s5 + $0x314] sm:$0xf]
  %v473 = vld [vmem:[%s5 + $0x318] sm:$0xf]
  %v474 = vld [vmem:[%s5 + $0x31c] sm:$0xf]
  %v475 = vld [vmem:[%s5 + $0x320] sm:$0xf]
  %v476 = vld [vmem:[%s5 + $0x324] sm:$0xf]
  %v477 = vld [vmem:[%s5 + $0x328] sm:$0xf]
  %v478 = vld [vmem:[%s5 + $0x32c] sm:$0xf]
  %v479 = vld [vmem:[%s5 + $0x330] sm:$0xf]
  %v480 = vld [vmem:[%s5 + $0x334] sm:$0xf]
  %v481 = vld [vmem:[%s5 + $0x338] sm:$0xf]
  %v482 = vld [vmem:[%s5 + $0x33c] sm:$0xf]
  %v483 = vld [vmem:[%s5 + $0x340] sm:$0xf]
  %v484 = vld [vmem:[%s5 + $0x344] sm:$0xf]
  %v485 = vld [vmem:[%s5 + $0x348] sm:$0xf]
  %v486 = vld [vmem:[%s5 + $0x34c] sm:$0xf]
  %v487 = vld [vmem:[%s5 + $0x350] sm:$0xf]
  %v488 = vld [vmem:[%s5 + $0x354] sm:$0xf]
  %v489 = vld [vmem:[%s5 + $0x358] sm:$0xf]
  %v490 = vld [vmem:[%s5 + $0x35c] sm:$0xf]
  %v491 = vld [vmem:[%s5 + $0x360] sm:$0xf]
  %v492 = vld [vmem:[%s5 + $0x364] sm:$0xf]
  %v493 = vld [vmem:[%s5 + $0x368] sm:$0xf]
  %v494 = vld [vmem:[%s5 + $0x36c] sm:$0xf]
  %v495 = vld [vmem:[%s5 + $0x370] sm:$0xf]
  %v496 = vld [vmem:[%s5 + $0x374] sm:$0xf]
  %v497 = vld [vmem:[%s5 + $0x378] sm:$0xf]
  %v498 = vld [vmem:[%s5 + $0x37c] sm:$0xf]
  %v499 = vld [vmem:[%s5 + $0x380] sm:$0xf]
  %v500 = vld [vmem:[%s5 + $0x384] sm:$0xf]
  %v501 = vld [vmem:[%s5 + $0x388] sm:$0xf]
  %v502 = vld [vmem:[%s5 + $0x38c] sm:$0xf]
  %v503 = vld [vmem:[%s5 + $0x390] sm:$0xf]
  %v504 = vld [vmem:[%s5 + $0x394] sm:$0xf]
  %v505 = vld [vmem:[%s5 + $0x398] sm:$0xf]
  %v506 = vld [vmem:[%s5 + $0x39c] sm:$0xf]
  %v507 = vld [vmem:[%s5 + $0x3a0] sm:$0xf]
  %v508 = vld [vmem:[%s5 + $0x3a4] sm:$0xf]
  %v509 = vld [vmem:[%s5 + $0x3a8] sm:$0xf]
  %v510 = vld [vmem:[%s5 + $0x3ac] sm:$0xf]
  %v511 = vld [vmem:[%s5 + $0x3b0] sm:$0xf]
  %v512 = vld [vmem:[%s5 + $0x3b4] sm:$0xf]
  %v513 = vld [vmem:[%s5 + $0x3b8] sm:$0xf]
  %v514 = vld [vmem:[%s5 + $0x3bc] sm:$0xf]
  %v515 = vld [vmem:[%s5 + $0x3c0] sm:$0xf]
  %v516 = vld [vmem:[%s5 + $0x3c4] sm:$0xf]
  %v517 = vld [vmem:[%s5 + $0x3c8] sm:$0xf]
  %v518 = vld [vmem:[%s5 + $0x3cc] sm:$0xf]
  %v519 = vld [vmem:[%s5 + $0x3d0] sm:$0xf]
  %v520 = vld [vmem:[%s5 + $0x3d4] sm:$0xf]
  %v521 = vld [vmem:[%s5 + $0x3d8] sm:$0xf]
  %v522 = vld [vmem:[%s5 + $0x3dc] sm:$0xf]
  %v523 = vld [vmem:[%s5 + $0x3e0] sm:$0xf]
  %v524 = vld [vmem:[%s5 + $0x3e4] sm:$0xf]
  %v525 = vld [vmem:[%s5 + $0x3e8] sm:$0xf]
  %v526 = vld [vmem:[%s5 + $0x3ec] sm:$0xf]
  %v527 = vld [vmem:[%s5 + $0x3f0] sm:$0xf]
  %v528 = vld [vmem:[%s5 + $0x3f4] sm:$0xf]
  %v529 = vld [vmem:[%s5 + $0x3f8] sm:$0xf]
  %v530 = vld [vmem:[%s5 + $0x3fc] sm:$0xf]
  %v531 = vld [vmem:[%s5 + $0x400] sm:$0xf]
  %v532 = vld [vmem:[%s5 + $0x404] sm:$0xf]
  %v533 = vld [vmem:[%s5 + $0x408] sm:$0xf]
  %v534 = vld [vmem:[%s5 + $0x40c] sm:$0xf]
  %v535 = vld [vmem:[%s5 + $0x410] sm:$0xf]
  %v536 = vld [vmem:[%s5 + $0x414] sm:$0xf]
  %v537 = vld [vmem:[%s5 + $0x418] sm:$0xf]
  %v538 = vld [vmem:[%s5 + $0x41c] sm:$0xf]
  %v539 = vld [vmem:[%s5 + $0x420] sm:$0xf]
  %v540 = vld [vmem:[%s5 + $0x424] sm:$0xf]
  %v541 = vld [vmem:[%s5 + $0x428] sm:$0xf]
  %v542 = vld [vmem:[%s5 + $0x42c] sm:$0xf]
  %v543 = vld [vmem:[%s5 + $0x430] sm:$0xf]
  %v544 = vld [vmem:[%s5 + $0x434] sm:$0xf]
  %v545 = vld [vmem:[%s5 + $0x438] sm:$0xf]
  %v546 = vld [vmem:[%s5 + $0x43c] sm:$0xf]
  %v547 = vld [vmem:[%s5 + $0x440] sm:$0xf]
  %v548 = vld [vmem:[%s5 + $0x444] sm:$0xf]
  %v549 = vld [vmem:[%s5 + $0x448] sm:$0xf]
  %v550 = vld [vmem:[%s5 + $0x44c] sm:$0xf]
  %v551 = vld [vmem:[%s5 + $0x450] sm:$0xf]
  %v552 = vld [vmem:[%s5 + $0x454] sm:$0xf]
  %v553 = vld [vmem:[%s5 + $0x458] sm:$0xf]
  %v554 = vld [vmem:[%s5 + $0x45c] sm:$0xf]
  %v555 = vld [vmem:[%s5 + $0x460] sm:$0xf]
  %v556 = vld [vmem:[%s5 + $0x464] sm:$0xf]
  %v557 = vld [vmem:[%s5 + $0x468] sm:$0xf]
  %v558 = vld [vmem:[%s5 + $0x46c] sm:$0xf]
  %v559 = vld [vmem:[%s5 + $0x470] sm:$0xf]
  %v560 = vld [vmem:[%s5 + $0x474] sm:$0xf]
  %v561 = vld [vmem:[%s5 + $0x478] sm:$0xf]
  %v562 = vld [vmem:[%s5 + $0x47c] sm:$0xf]
  %v563 = vld [vmem:[%s5 + $0x480] sm:$0xf]
  %v564 = vld [vmem:[%s5 + $0x484] sm:$0xf]
  %v565 = vld [vmem:[%s5 + $0x488] sm:$0xf]
  %v566 = vld [vmem:[%s5 + $0x48c] sm:$0xf]
  %v567 = vld [vmem:[%s5 + $0x490] sm:$0xf]
  %v568 = vld [vmem:[%s5 + $0x494] sm:$0xf]
  %v569 = vld [vmem:[%s5 + $0x498] sm:$0xf]
  %v570 = vld [vmem:[%s5 + $0x49c] sm:$0xf]
  %v571 = vld [vmem:[%s5 + $0x4a0] sm:$0xf]
  %v572 = vld [vmem:[%s5 + $0x4a4] sm:$0xf]
  %v573 = vld [vmem:[%s5 + $0x4a8] sm:$0xf]
  %v574 = vld [vmem:[%s5 + $0x4ac] sm:$0xf]
  %v575 = vld [vmem:[%s5 + $0x4b0] sm:$0xf]
  %v576 = vld [vmem:[%s5 + $0x4b4] sm:$0xf]
  %v577 = vld [vmem:[%s5 + $0x4b8] sm:$0xf]
  %v578 = vld [vmem:[%s5 + $0x4bc] sm:$0xf]
  %v579 = vld [vmem:[%s5 + $0x4c0] sm:$0xf]
  %v580 = vld [vmem:[%s5 + $0x4c4] sm:$0xf]
  %v581 = vld [vmem:[%s5 + $0x4c8] sm:$0xf]
  %v582 = vld [vmem:[%s5 + $0x4cc] sm:$0xf]
  %v583 = vld [vmem:[%s5 + $0x4d0] sm:$0xf]
  %v584 = vld [vmem:[%s5 + $0x4d4] sm:$0xf]
  %v585 = vld [vmem:[%s5 + $0x4d8] sm:$0xf]
  %v586 = vld [vmem:[%s5 + $0x4dc] sm:$0xf]
  %v587 = vld [vmem:[%s5 + $0x4e0] sm:$0xf]
  %v588 = vld [vmem:[%s5 + $0x4e4] sm:$0xf]
  %v589 = vld [vmem:[%s5 + $0x4e8] sm:$0xf]
  %v590 = vld [vmem:[%s5 + $0x4ec] sm:$0xf]
  %v591 = vld [vmem:[%s5 + $0x4f0] sm:$0xf]
  %v592 = vld [vmem:[%s5 + $0x4f4] sm:$0xf]
  %v593 = vld [vmem:[%s5 + $0x4f8] sm:$0xf]
  %v594 = vld [vmem:[%s5 + $0x4fc] sm:$0xf]
  %v595 = vld [vmem:[%s5 + $0x500] sm:$0xf]
  %v596 = vld [vmem:[%s5 + $0x504] sm:$0xf]
  %v597 = vld [vmem:[%s5 + $0x508] sm:$0xf]
  %v598 = vld [vmem:[%s5 + $0x50c] sm:$0xf]
  %v599 = vld [vmem:[%s5 + $0x510] sm:$0xf]
  %v600 = vld [vmem:[%s5 + $0x514] sm:$0xf]
  %v601 = vld [vmem:[%s5 + $0x518] sm:$0xf]
  %v602 = vld [vmem:[%s5 + $0x51c] sm:$0xf]
  %v603 = vld [vmem:[%s5 + $0x520] sm:$0xf]
  %v604 = vld [vmem:[%s5 + $0x524] sm:$0xf]
  %v605 = vld [vmem:[%s5 + $0x528] sm:$0xf]
  %v606 = vld [vmem:[%s5 + $0x52c] sm:$0xf]
  %v607 = vld [vmem:[%s5 + $0x530] sm:$0xf]
  %v608 = vld [vmem:[%s5 + $0x534] sm:$0xf]
  %v609 = vld [vmem:[%s5 + $0x538] sm:$0xf]
  %v610 = vld [vmem:[%s5 + $0x53c] sm:$0xf]
  %v611 = vld [vmem:[%s5 + $0x540] sm:$0xf]
  %v612 = vld [vmem:[%s5 + $0x544] sm:$0xf]
  %v613 = vld [vmem:[%s5 + $0x548] sm:$0xf]
  %v614 = vld [vmem:[%s5 + $0x54c] sm:$0xf]
  %v615 = vld [vmem:[%s5 + $0x550] sm:$0xf]
  %v616 = vld [vmem:[%s5 + $0x554] sm:$0xf]
  %v617 = vld [vmem:[%s5 + $0x558] sm:$0xf]
  %v618 = vld [vmem:[%s5 + $0x55c] sm:$0xf]
  %v619 = vld [vmem:[%s5 + $0x560] sm:$0xf]
  %v620 = vld [vmem:[%s5 + $0x564] sm:$0xf]
  %v621 = vld [vmem:[%s5 + $0x568] sm:$0xf]
  %v622 = vld [vmem:[%s5 + $0x56c] sm:$0xf]
  %v623 = vld [vmem:[%s5 + $0x570] sm:$0xf]
  %v624 = vld [vmem:[%s5 + $0x574] sm:$0xf]
  %v625 = vld [vmem:[%s5 + $0x578] sm:$0xf]
  %v626 = vld [vmem:[%s5 + $0x57c] sm:$0xf]
  %v627 = vld [vmem:[%s5 + $0x580] sm:$0xf]
  %v628 = vld [vmem:[%s5 + $0x584] sm:$0xf]
  %v629 = vld [vmem:[%s5 + $0x588] sm:$0xf]
  %v630 = vld [vmem:[%s5 + $0x58c] sm:$0xf]
  %v631 = vld [vmem:[%s5 + $0x590] sm:$0xf]
  %v632 = vld [vmem:[%s5 + $0x594] sm:$0xf]
  %v633 = vld [vmem:[%s5 + $0x598] sm:$0xf]
  %v634 = vld [vmem:[%s5 + $0x59c] sm:$0xf]
  %v635 = vld [vmem:[%s5 + $0x5a0] sm:$0xf]
  %v636 = vld [vmem:[%s5 + $0x5a4] sm:$0xf]
  %v637 = vld [vmem:[%s5 + $0x5a8] sm:$0xf]
  %v638 = vld [vmem:[%s5 + $0x5ac] sm:$0xf]
  %v639 = vld [vmem:[%s5 + $0x5b0] sm:$0xf]
  %v640 = vld [vmem:[%s5 + $0x5b4] sm:$0xf]
  %v641 = vld [vmem:[%s5 + $0x5b8] sm:$0xf]
  %v642 = vld [vmem:[%s5 + $0x5bc] sm:$0xf]
  %v643 = vld [vmem:[%s5 + $0x5c0] sm:$0xf]
  %v644 = vld [vmem:[%s5 + $0x5c4] sm:$0xf]
  %v645 = vld [vmem:[%s5 + $0x5c8] sm:$0xf]
  %v646 = vld [vmem:[%s5 + $0x5cc] sm:$0xf]
  %v647 = vld [vmem:[%s5 + $0x5d0] sm:$0xf]
  %v648 = vld [vmem:[%s5 + $0x5d4] sm:$0xf]
  %v649 = vld [vmem:[%s5 + $0x5d8] sm:$0xf]
  %v650 = vld [vmem:[%s5 + $0x5dc] sm:$0xf]
  %v651 = vld [vmem:[%s5 + $0x5e0] sm:$0xf]
  %v652 = vld [vmem:[%s5 + $0x5e4] sm:$0xf]
  %v653 = vld [vmem:[%s5 + $0x5e8] sm:$0xf]
  %v654 = vld [vmem:[%s5 + $0x5ec] sm:$0xf]
  %v655 = vld [vmem:[%s5 + $0x5f0] sm:$0xf]
  %v656 = vld [vmem:[%s5 + $0x5f4] sm:$0xf]
  %v657 = vld [vmem:[%s5 + $0x5f8] sm:$0xf]
  %v658 = vld [vmem:[%s5 + $0x5fc] sm:$0xf]
  %v659 = vld [vmem:[%s5 + $0x600] sm:$0xf]
  %v660 = vld [vmem:[%s5 + $0x604] sm:$0xf]
  %v661 = vld [vmem:[%s5 + $0x608] sm:$0xf]
  %v662 = vld [vmem:[%s5 + $0x60c] sm:$0xf]
  %v663 = vld [vmem:[%s5 + $0x610] sm:$0xf]
  %v664 = vld [vmem:[%s5 + $0x614] sm:$0xf]
  %v665 = vld [vmem:[%s5 + $0x618] sm:$0xf]
  %v666 = vld [vmem:[%s5 + $0x61c] sm:$0xf]
  %v667 = vld [vmem:[%s5 + $0x620] sm:$0xf]
  %v668 = vld [vmem:[%s5 + $0x624] sm:$0xf]
  %v669 = vld [vmem:[%s5 + $0x628] sm:$0xf]
  %v670 = vld [vmem:[%s5 + $0x62c] sm:$0xf]
  %v671 = vld [vmem:[%s5 + $0x630] sm:$0xf]
  %v672 = vld [vmem:[%s5 + $0x634] sm:$0xf]
  %v673 = vld [vmem:[%s5 + $0x638] sm:$0xf]
  %v674 = vld [vmem:[%s5 + $0x63c] sm:$0xf]
  %v675 = vld [vmem:[%s5 + $0x640] sm:$0xf]
  %v676 = vld [vmem:[%s5 + $0x644] sm:$0xf]
  %v677 = vld [vmem:[%s5 + $0x648] sm:$0xf]
  %v678 = vld [vmem:[%s5 + $0x64c] sm:$0xf]
  %v679 = vld [vmem:[%s5 + $0x650] sm:$0xf]
  %v680 = vld [vmem:[%s5 + $0x654] sm:$0xf]
  %v681 = vld [vmem:[%s5 + $0x658] sm:$0xf]
  %v682 = vld [vmem:[%s5 + $0x65c] sm:$0xf]
  %v683 = vld [vmem:[%s5 + $0x660] sm:$0xf]
  %v684 = vld [vmem:[%s5 + $0x664] sm:$0xf]
  %v685 = vld [vmem:[%s5 + $0x668] sm:$0xf]
  %v686 = vld [vmem:[%s5 + $0x66c] sm:$0xf]
  %v687 = vld [vmem:[%s5 + $0x670] sm:$0xf]
  %v688 = vld [vmem:[%s5 + $0x674] sm:$0xf]
  %v689 = vld [vmem:[%s5 + $0x678] sm:$0xf]
  %v690 = vld [vmem:[%s5 + $0x67c] sm:$0xf]
  %v691 = vld [vmem:[%s5 + $0x680] sm:$0xf]
  %v692 = vld [vmem:[%s5 + $0x684] sm:$0xf]
  %v693 = vld [vmem:[%s5 + $0x688] sm:$0xf]
  %v694 = vld [vmem:[%s5 + $0x68c] sm:$0xf]
  %v695 = vld [vmem:[%s5 + $0x690] sm:$0xf]
  %v696 = vld [vmem:[%s5 + $0x694] sm:$0xf]
  %v697 = vld [vmem:[%s5 + $0x698] sm:$0xf]
  %v698 = vld [vmem:[%s5 + $0x69c] sm:$0xf]
  %v699 = vld [vmem:[%s5 + $0x6a0] sm:$0xf]
  %v700 = vld [vmem:[%s5 + $0x6a4] sm:$0xf]
  %v701 = vld [vmem:[%s5 + $0x6a8] sm:$0xf]
  %v702 = vld [vmem:[%s5 + $0x6ac] sm:$0xf]
  %v703 = vld [vmem:[%s5 + $0x6b0] sm:$0xf]
  %v704 = vld [vmem:[%s5 + $0x6b4] sm:$0xf]
  %v705 = vld [vmem:[%s5 + $0x6b8] sm:$0xf]
  %v706 = vld [vmem:[%s5 + $0x6bc] sm:$0xf]
  %v707 = vld [vmem:[%s5 + $0x6c0] sm:$0xf]
  %v708 = vld [vmem:[%s5 + $0x6c4] sm:$0xf]
  %v709 = vld [vmem:[%s5 + $0x6c8] sm:$0xf]
  %v710 = vld [vmem:[%s5 + $0x6cc] sm:$0xf]
  %v711 = vld [vmem:[%s5 + $0x6d0] sm:$0xf]
  %v712 = vld [vmem:[%s5 + $0x6d4] sm:$0xf]
  %v713 = vld [vmem:[%s5 + $0x6d8] sm:$0xf]
  %v714 = vld [vmem:[%s5 + $0x6dc] sm:$0xf]
  %v715 = vld [vmem:[%s5 + $0x6e0] sm:$0xf]
  %v716 = vld [vmem:[%s5 + $0x6e4] sm:$0xf]
  %v717 = vld [vmem:[%s5 + $0x6e8] sm:$0xf]
  %v718 = vld [vmem:[%s5 + $0x6ec] sm:$0xf]
  %v719 = vld [vmem:[%s5 + $0x6f0] sm:$0xf]
  %v720 = vld [vmem:[%s5 + $0x6f4] sm:$0xf]
  %v721 = vld [vmem:[%s5 + $0x6f8] sm:$0xf]
  %v722 = vld [vmem:[%s5 + $0x6fc] sm:$0xf]
  %v723 = vld [vmem:[%s5 + $0x700] sm:$0xf]
  %v724 = vld [vmem:[%s5 + $0x704] sm:$0xf]
  %v725 = vld [vmem:[%s5 + $0x708] sm:$0xf]
  %v726 = vld [vmem:[%s5 + $0x70c] sm:$0xf]
  %v727 = vld [vmem:[%s5 + $0x710] sm:$0xf]
  %v728 = vld [vmem:[%s5 + $0x714] sm:$0xf]
  %v729 = vld [vmem:[%s5 + $0x718] sm:$0xf]
  %v730 = vld [vmem:[%s5 + $0x71c] sm:$0xf]
  %v731 = vld [vmem:[%s5 + $0x720] sm:$0xf]
  %v732 = vld [vmem:[%s5 + $0x724] sm:$0xf]
  %v733 = vld [vmem:[%s5 + $0x728] sm:$0xf]
  %v734 = vld [vmem:[%s5 + $0x72c] sm:$0xf]
  %v735 = vld [vmem:[%s5 + $0x730] sm:$0xf]
  %v736 = vld [vmem:[%s5 + $0x734] sm:$0xf]
  %v737 = vld [vmem:[%s5 + $0x738] sm:$0xf]
  %v738 = vld [vmem:[%s5 + $0x73c] sm:$0xf]
  %v739 = vld [vmem:[%s5 + $0x740] sm:$0xf]
  %v740 = vld [vmem:[%s5 + $0x744] sm:$0xf]
  %v741 = vld [vmem:[%s5 + $0x748] sm:$0xf]
  %v742 = vld [vmem:[%s5 + $0x74c] sm:$0xf]
  %v743 = vld [vmem:[%s5 + $0x750] sm:$0xf]
  %v744 = vld [vmem:[%s5 + $0x754] sm:$0xf]
  %v745 = vld [vmem:[%s5 + $0x758] sm:$0xf]
  %v746 = vld [vmem:[%s5 + $0x75c] sm:$0xf]
  %v747 = vld [vmem:[%s5 + $0x760] sm:$0xf]
  %v748 = vld [vmem:[%s5 + $0x764] sm:$0xf]
  %v749 = vld [vmem:[%s5 + $0x768] sm:$0xf]
  %v750 = vld [vmem:[%s5 + $0x76c] sm:$0xf]
  %v751 = vld [vmem:[%s5 + $0x770] sm:$0xf]
  %v752 = vld [vmem:[%s5 + $0x774] sm:$0xf]
  %v753 = vld [vmem:[%s5 + $0x778] sm:$0xf]
  %v754 = vld [vmem:[%s5 + $0x77c] sm:$0xf]
  %v755 = vld [vmem:[%s5 + $0x780] sm:$0xf]
  %v756 = vld [vmem:[%s5 + $0x784] sm:$0xf]
  %v757 = vld [vmem:[%s5 + $0x788] sm:$0xf]
  %v758 = vld [vmem:[%s5 + $0x78c] sm:$0xf]
  %v759 = vld [vmem:[%s5 + $0x790] sm:$0xf]
  %v760 = vld [vmem:[%s5 + $0x794] sm:$0xf]
  %v761 = vld [vmem:[%s5 + $0x798] sm:$0xf]
  %v762 = vld [vmem:[%s5 + $0x79c] sm:$0xf]
  %v763 = vld [vmem:[%s5 + $0x7a0] sm:$0xf]
  %v764 = vld [vmem:[%s5 + $0x7a4] sm:$0xf]
  %v765 = vld [vmem:[%s5 + $0x7a8] sm:$0xf]
  %v766 = vld [vmem:[%s5 + $0x7ac] sm:$0xf]
  %v767 = vld [vmem:[%s5 + $0x7b0] sm:$0xf]
  %v768 = vld [vmem:[%s5 + $0x7b4] sm:$0xf]
  %v769 = vld [vmem:[%s5 + $0x7b8] sm:$0xf]
  %v770 = vld [vmem:[%s5 + $0x7bc] sm:$0xf]
  %v771 = vld [vmem:[%s5 + $0x7c0] sm:$0xf]
  %v772 = vld [vmem:[%s5 + $0x7c4] sm:$0xf]
  %v773 = vld [vmem:[%s5 + $0x7c8] sm:$0xf]
  %v774 = vld [vmem:[%s5 + $0x7cc] sm:$0xf]
  %v775 = vld [vmem:[%s5 + $0x7d0] sm:$0xf]
  %v776 = vld [vmem:[%s5 + $0x7d4] sm:$0xf]
  %v777 = vld [vmem:[%s5 + $0x7d8] sm:$0xf]
  %v778 = vld [vmem:[%s5 + $0x7dc] sm:$0xf]
  %v779 = vld [vmem:[%s5 + $0x7e0] sm:$0xf]
  %v780 = vld [vmem:[%s5 + $0x7e4] sm:$0xf]
  %v781 = vld [vmem:[%s5 + $0x7e8] sm:$0xf]
  %v782 = vld [vmem:[%s5 + $0x7ec] sm:$0xf]
  %v783 = vld [vmem:[%s5 + $0x7f0] sm:$0xf]
  %v784 = vld [vmem:[%s5 + $0x7f4] sm:$0xf]
  %v785 = vld [vmem:[%s5 + $0x7f8] sm:$0xf]
  %v786 = vld [vmem:[%s5 + $0x7fc] sm:$0xf]
  %v787 = vld [vmem:[%s5 + $0x800] sm:$0xf]
  %v788 = vld [vmem:[%s5 + $0x804] sm:$0xf]
  %v789 = vld [vmem:[%s5 + $0x808] sm:$0xf]
  %v790 = vld [vmem:[%s5 + $0x80c] sm:$0xf]
  %v791 = vld [vmem:[%s5 + $0x810] sm:$0xf]
  %v792 = vld [vmem:[%s5 + $0x814] sm:$0xf]
  %v793 = vld [vmem:[%s5 + $0x818] sm:$0xf]
  %v794 = vld [vmem:[%s5 + $0x81c] sm:$0xf]
  %v795 = vld [vmem:[%s5 + $0x820] sm:$0xf]
  %v796 = vld [vmem:[%s5 + $0x824] sm:$0xf]
  %v797 = vld [vmem:[%s5 + $0x828] sm:$0xf]
  %v798 = vld [vmem:[%s5 + $0x82c] sm:$0xf]
  %v799 = vld [vmem:[%s5 + $0x830] sm:$0xf]
  %v800 = vld [vmem:[%s5 + $0x834] sm:$0xf]
  %v801 = vld [vmem:[%s5 + $0x838] sm:$0xf]
  %v802 = vld [vmem:[%s5 + $0x83c] sm:$0xf]
  %v803 = vld [vmem:[%s5 + $0x840] sm:$0xf]
  %v804 = vld [vmem:[%s5 + $0x844] sm:$0xf]
  %v805 = vld [vmem:[%s5 + $0x848] sm:$0xf]
  %v806 = vld [vmem:[%s5 + $0x84c] sm:$0xf]
  %v807 = vld [vmem:[%s5 + $0x850] sm:$0xf]
  %v808 = vld [vmem:[%s5 + $0x854] sm:$0xf]
  %v809 = vld [vmem:[%s5 + $0x858] sm:$0xf]
  %v810 = vld [vmem:[%s5 + $0x85c] sm:$0xf]
  %v811 = vld [vmem:[%s5 + $0x860] sm:$0xf]
  %v812 = vld [vmem:[%s5 + $0x864] sm:$0xf]
  %v813 = vld [vmem:[%s5 + $0x868] sm:$0xf]
  %v814 = vld [vmem:[%s5 + $0x86c] sm:$0xf]
  %v815 = vld [vmem:[%s5 + $0x870] sm:$0xf]
  %v816 = vld [vmem:[%s5 + $0x874] sm:$0xf]
  %v817 = vld [vmem:[%s5 + $0x878] sm:$0xf]
  %v818 = vld [vmem:[%s5 + $0x87c] sm:$0xf]
  %v819 = vld [vmem:[%s5 + $0x880] sm:$0xf]
  %v820 = vld [vmem:[%s5 + $0x884] sm:$0xf]
  %v821 = vld [vmem:[%s5 + $0x888] sm:$0xf]
  %v822 = vld [vmem:[%s5 + $0x88c] sm:$0xf]
  %v823 = vld [vmem:[%s5 + $0x890] sm:$0xf]
  %v824 = vld [vmem:[%s5 + $0x894] sm:$0xf]
  %v825 = vld [vmem:[%s5 + $0x898] sm:$0xf]
  %v826 = vld [vmem:[%s5 + $0x89c] sm:$0xf]
  %v827 = vld [vmem:[%s5 + $0x8a0] sm:$0xf]
  %v828 = vld [vmem:[%s5 + $0x8a4] sm:$0xf]
  %v829 = vld [vmem:[%s5 + $0x8a8] sm:$0xf]
  %v830 = vld [vmem:[%s5 + $0x8ac] sm:$0xf]
  %v831 = vld [vmem:[%s5 + $0x8b0] sm:$0xf]
  %v832 = vld [vmem:[%s5 + $0x8b4] sm:$0xf]
  %v833 = vld [vmem:[%s5 + $0x8b8] sm:$0xf]
  %v834 = vld [vmem:[%s5 + $0x8bc] sm:$0xf]
  %v835 = vld [vmem:[%s5 + $0x8c0] sm:$0xf]
  %v836 = vld [vmem:[%s5 + $0x8c4] sm:$0xf]
  %v837 = vld [vmem:[%s5 + $0x8c8] sm:$0xf]
  %v838 = vld [vmem:[%s5 + $0x8cc] sm:$0xf]
  %v839 = vld [vmem:[%s5 + $0x8d0] sm:$0xf]
  %v840 = vld [vmem:[%s5 + $0x8d4] sm:$0xf]
  %v841 = vld [vmem:[%s5 + $0x8d8] sm:$0xf]
  %v842 = vld [vmem:[%s5 + $0x8dc] sm:$0xf]
  %v843 = vld [vmem:[%s5 + $0x8e0] sm:$0xf]
  %v844 = vld [vmem:[%s5 + $0x8e4] sm:$0xf]
  %v845 = vld [vmem:[%s5 + $0x8e8] sm:$0xf]
  %v846 = vld [vmem:[%s5 + $0x8ec] sm:$0xf]
  %v847 = vld [vmem:[%s5 + $0x8f0] sm:$0xf]
  %v848 = vld [vmem:[%s5 + $0x8f4] sm:$0xf]
  %v849 = vld [vmem:[%s5 + $0x8f8] sm:$0xf]
  %v850 = vld [vmem:[%s5 + $0x8fc] sm:$0xf]
  %v851 = vld [vmem:[%s5 + $0x900] sm:$0xf]
  %v852 = vld [vmem:[%s5 + $0x904] sm:$0xf]
  %v853 = vld [vmem:[%s5 + $0x908] sm:$0xf]
  %v854 = vld [vmem:[%s5 + $0x90c] sm:$0xf]
  %v855 = vld [vmem:[%s5 + $0x910] sm:$0xf]
  %v856 = vld [vmem:[%s5 + $0x914] sm:$0xf]
  %v857 = vld [vmem:[%s5 + $0x918] sm:$0xf]
  %v858 = vld [vmem:[%s5 + $0x91c] sm:$0xf]
  %v859 = vld [vmem:[%s5 + $0x920] sm:$0xf]
  %v860 = vld [vmem:[%s5 + $0x924] sm:$0xf]
  %v861 = vld [vmem:[%s5 + $0x928] sm:$0xf]
  %v862 = vld [vmem:[%s5 + $0x92c] sm:$0xf]
  %v863 = vld [vmem:[%s5 + $0x930] sm:$0xf]
  %v864 = vld [vmem:[%s5 + $0x934] sm:$0xf]
  %v865 = vld [vmem:[%s5 + $0x938] sm:$0xf]
  %v866 = vld [vmem:[%s5 + $0x93c] sm:$0xf]
  %v867 = vld [vmem:[%s5 + $0x940] sm:$0xf]
  %v868 = vld [vmem:[%s5 + $0x944] sm:$0xf]
  %v869 = vld [vmem:[%s5 + $0x948] sm:$0xf]
  %v870 = vld [vmem:[%s5 + $0x94c] sm:$0xf]
  %v871 = vld [vmem:[%s5 + $0x950] sm:$0xf]
  %v872 = vld [vmem:[%s5 + $0x954] sm:$0xf]
  %v873 = vld [vmem:[%s5 + $0x958] sm:$0xf]
  %v874 = vld [vmem:[%s5 + $0x95c] sm:$0xf]
  %v875 = vld [vmem:[%s5 + $0x960] sm:$0xf]
  %v876 = vld [vmem:[%s5 + $0x964] sm:$0xf]
  %v877 = vld [vmem:[%s5 + $0x968] sm:$0xf]
  %v878 = vld [vmem:[%s5 + $0x96c] sm:$0xf]
  %v879 = vld [vmem:[%s5 + $0x970] sm:$0xf]
  %v880 = vld [vmem:[%s5 + $0x974] sm:$0xf]
  %v881 = vld [vmem:[%s5 + $0x978] sm:$0xf]
  %v882 = vld [vmem:[%s5 + $0x97c] sm:$0xf]
  %v883 = vld [vmem:[%s5 + $0x980] sm:$0xf]
  %v884 = vld [vmem:[%s5 + $0x984] sm:$0xf]
  %v885 = vld [vmem:[%s5 + $0x988] sm:$0xf]
  %v886 = vld [vmem:[%s5 + $0x98c] sm:$0xf]
  %v887 = vld [vmem:[%s5 + $0x990] sm:$0xf]
  %v888 = vld [vmem:[%s5 + $0x994] sm:$0xf]
  %v889 = vld [vmem:[%s5 + $0x998] sm:$0xf]
  %v890 = vld [vmem:[%s5 + $0x99c] sm:$0xf]
  %v891 = vld [vmem:[%s5 + $0x9a0] sm:$0xf]
  %v892 = vld [vmem:[%s5 + $0x9a4] sm:$0xf]
  %v893 = vld [vmem:[%s5 + $0x9a8] sm:$0xf]
  %v894 = vld [vmem:[%s5 + $0x9ac] sm:$0xf]
  %v895 = vld [vmem:[%s5 + $0x9b0] sm:$0xf]
  %v896 = vld [vmem:[%s5 + $0x9b4] sm:$0xf]
  %v897 = vld [vmem:[%s5 + $0x9b8] sm:$0xf]
  %v898 = vld [vmem:[%s5 + $0x9bc] sm:$0xf]
  %v899 = vld [vmem:[%s5 + $0x9c0] sm:$0xf]
  %v900 = vld [vmem:[%s5 + $0x9c4] sm:$0xf]
  %v901 = vld [vmem:[%s5 + $0x9c8] sm:$0xf]
  %v902 = vld [vmem:[%s5 + $0x9cc] sm:$0xf]
  %v903 = vld [vmem:[%s5 + $0x9d0] sm:$0xf]
  %v904 = vld [vmem:[%s5 + $0x9d4] sm:$0xf]
  %v905 = vld [vmem:[%s5 + $0x9d8] sm:$0xf]
  %v906 = vld [vmem:[%s5 + $0x9dc] sm:$0xf]
  %v907 = vld [vmem:[%s5 + $0x9e0] sm:$0xf]
  %v908 = vld [vmem:[%s5 + $0x9e4] sm:$0xf]
  %v909 = vld [vmem:[%s5 + $0x9e8] sm:$0xf]
  %v910 = vld [vmem:[%s5 + $0x9ec] sm:$0xf]
  %v911 = vld [vmem:[%s5 + $0x9f0] sm:$0xf]
  %v912 = vld [vmem:[%s5 + $0x9f4] sm:$0xf]
  %v913 = vld [vmem:[%s5 + $0x9f8] sm:$0xf]
  %v914 = vld [vmem:[%s5 + $0x9fc] sm:$0xf]
  %v915 = vld [vmem:[%s5 + $0xa00] sm:$0xf]
  %v916 = vld [vmem:[%s5 + $0xa04] sm:$0xf]
  %v917 = vld [vmem:[%s5 + $0xa08] sm:$0xf]
  %v918 = vld [vmem:[%s5 + $0xa0c] sm:$0xf]
  %v919 = vld [vmem:[%s5 + $0xa10] sm:$0xf]
  %v920 = vld [vmem:[%s5 + $0xa14] sm:$0xf]
  %v921 = vld [vmem:[%s5 + $0xa18] sm:$0xf]
  %v922 = vld [vmem:[%s5 + $0xa1c] sm:$0xf]
  %v923 = vld [vmem:[%s5 + $0xa20] sm:$0xf]
  %v924 = vld [vmem:[%s5 + $0xa24] sm:$0xf]
  %v925 = vld [vmem:[%s5 + $0xa28] sm:$0xf]
  %v926 = vld [vmem:[%s5 + $0xa2c] sm:$0xf]
  %v927 = vld [vmem:[%s5 + $0xa30] sm:$0xf]
  %v928 = vld [vmem:[%s5 + $0xa34] sm:$0xf]
  %v929 = vld [vmem:[%s5 + $0xa38] sm:$0xf]
  %v930 = vld [vmem:[%s5 + $0xa3c] sm:$0xf]
  %v931 = vld [vmem:[%s5 + $0xa40] sm:$0xf]
  %v932 = vld [vmem:[%s5 + $0xa44] sm:$0xf]
  %v933 = vld [vmem:[%s5 + $0xa48] sm:$0xf]
  %v934 = vld [vmem:[%s5 + $0xa4c] sm:$0xf]
  %v935 = vld [vmem:[%s5 + $0xa50] sm:$0xf]
  %v936 = vld [vmem:[%s5 + $0xa54] sm:$0xf]
  %v937 = vld [vmem:[%s5 + $0xa58] sm:$0xf]
  %v938 = vld [vmem:[%s5 + $0xa5c] sm:$0xf]
  %v939 = vld [vmem:[%s5 + $0xa60] sm:$0xf]
  %v940 = vld [vmem:[%s5 + $0xa64] sm:$0xf]
  %v941 = vld [vmem:[%s5 + $0xa68] sm:$0xf]
  %v942 = vld [vmem:[%s5 + $0xa6c] sm:$0xf]
  %v943 = vld [vmem:[%s5 + $0xa70] sm:$0xf]
  %v944 = vld [vmem:[%s5 + $0xa74] sm:$0xf]
  %v945 = vld [vmem:[%s5 + $0xa78] sm:$0xf]
  %v946 = vld [vmem:[%s5 + $0xa7c] sm:$0xf]
  %v947 = vld [vmem:[%s5 + $0xa80] sm:$0xf]
  %v948 = vld [vmem:[%s5 + $0xa84] sm:$0xf]
  %v949 = vld [vmem:[%s5 + $0xa88] sm:$0xf]
  %v950 = vld [vmem:[%s5 + $0xa8c] sm:$0xf]
  %v951 = vld [vmem:[%s5 + $0xa90] sm:$0xf]
  %v952 = vld [vmem:[%s5 + $0xa94] sm:$0xf]
  %v953 = vld [vmem:[%s5 + $0xa98] sm:$0xf]
  %v954 = vld [vmem:[%s5 + $0xa9c] sm:$0xf]
  %v955 = vld [vmem:[%s5 + $0xaa0] sm:$0xf]
  %v956 = vld [vmem:[%s5 + $0xaa4] sm:$0xf]
  %v957 = vld [vmem:[%s5 + $0xaa8] sm:$0xf]
  %v958 = vld [vmem:[%s5 + $0xaac] sm:$0xf]
  %v959 = vld [vmem:[%s5 + $0xab0] sm:$0xf]
  %v960 = vld [vmem:[%s5 + $0xab4] sm:$0xf]
  %v961 = vld [vmem:[%s5 + $0xab8] sm:$0xf]
  %v962 = vld [vmem:[%s5 + $0xabc] sm:$0xf]
  %v963 = vld [vmem:[%s5 + $0xac0] sm:$0xf]
  %v964 = vld [vmem:[%s5 + $0xac4] sm:$0xf]
  %v965 = vld [vmem:[%s5 + $0xac8] sm:$0xf]
  %v966 = vld [vmem:[%s5 + $0xacc] sm:$0xf]
  %v967 = vld [vmem:[%s5 + $0xad0] sm:$0xf]
  %v968 = vld [vmem:[%s5 + $0xad4] sm:$0xf]
  %v969 = vld [vmem:[%s5 + $0xad8] sm:$0xf]
  %v970 = vld [vmem:[%s5 + $0xadc] sm:$0xf]
  %v971 = vld [vmem:[%s5 + $0xae0] sm:$0xf]
  %v972 = vld [vmem:[%s5 + $0xae4] sm:$0xf]
  %v973 = vld [vmem:[%s5 + $0xae8] sm:$0xf]
  %v974 = vld [vmem:[%s5 + $0xaec] sm:$0xf]
  %v975 = vld [vmem:[%s5 + $0xaf0] sm:$0xf]
  %v976 = vld [vmem:[%s5 + $0xaf4] sm:$0xf]
  %v977 = vld [vmem:[%s5 + $0xaf8] sm:$0xf]
  %v978 = vld [vmem:[%s5 + $0xafc] sm:$0xf]
  %v979 = vld [vmem:[%s5 + $0xb00] sm:$0xf]
  %v980 = vld [vmem:[%s5 + $0xb04] sm:$0xf]
  %v981 = vld [vmem:[%s5 + $0xb08] sm:$0xf]
  %v982 = vld [vmem:[%s5 + $0xb0c] sm:$0xf]
  %v983 = vld [vmem:[%s5 + $0xb10] sm:$0xf]
  %v984 = vld [vmem:[%s5 + $0xb14] sm:$0xf]
  %v985 = vld [vmem:[%s5 + $0xb18] sm:$0xf]
  %v986 = vld [vmem:[%s5 + $0xb1c] sm:$0xf]
  %v987 = vld [vmem:[%s5 + $0xb20] sm:$0xf]
  %v988 = vld [vmem:[%s5 + $0xb24] sm:$0xf]
  %v989 = vld [vmem:[%s5 + $0xb28] sm:$0xf]
  %v990 = vld [vmem:[%s5 + $0xb2c] sm:$0xf]
  %v991 = vld [vmem:[%s5 + $0xb30] sm:$0xf]
  %v992 = vld [vmem:[%s5 + $0xb34] sm:$0xf]
  %v993 = vld [vmem:[%s5 + $0xb38] sm:$0xf]
  %v994 = vld [vmem:[%s5 + $0xb3c] sm:$0xf]
  %v995 = vld [vmem:[%s5 + $0xb40] sm:$0xf]
  %v996 = vld [vmem:[%s5 + $0xb44] sm:$0xf]
  %v997 = vld [vmem:[%s5 + $0xb48] sm:$0xf]
  %v998 = vld [vmem:[%s5 + $0xb4c] sm:$0xf]
  %v999 = vld [vmem:[%s5 + $0xb50] sm:$0xf]
  %v1000 = vld [vmem:[%s5 + $0xb54] sm:$0xf]
  %v1001 = vld [vmem:[%s5 + $0xb58] sm:$0xf]
  %v1002 = vld [vmem:[%s5 + $0xb5c] sm:$0xf]
  %v1003 = vld [vmem:[%s5 + $0xb60] sm:$0xf]
  %v1004 = vld [vmem:[%s5 + $0xb64] sm:$0xf]
  %v1005 = vld [vmem:[%s5 + $0xb68] sm:$0xf]
  %v1006 = vld [vmem:[%s5 + $0xb6c] sm:$0xf]
  %v1007 = vld [vmem:[%s5 + $0xb70] sm:$0xf]
  %v1008 = vld [vmem:[%s5 + $0xb74] sm:$0xf]
  %v1009 = vld [vmem:[%s5 + $0xb78] sm:$0xf]
  %v1010 = vld [vmem:[%s5 + $0xb7c] sm:$0xf]
  %v1011 = vld [vmem:[%s5 + $0xb80] sm:$0xf]
  %v1012 = vld [vmem:[%s5 + $0xb84] sm:$0xf]
  %v1013 = vld [vmem:[%s5 + $0xb88] sm:$0xf]
  %v1014 = vld [vmem:[%s5 + $0xb8c] sm:$0xf]
  %v1015 = vld [vmem:[%s5 + $0xb90] sm:$0xf]
  %v1016 = vld [vmem:[%s5 + $0xb94] sm:$0xf]
  %v1017 = vld [vmem:[%s5 + $0xb98] sm:$0xf]
  %v1018 = vld [vmem:[%s5 + $0xb9c] sm:$0xf]
  %v1019 = vld [vmem:[%s5 + $0xba0] sm:$0xf]
  %v1020 = vld [vmem:[%s5 + $0xba4] sm:$0xf]
  %v1021 = vld [vmem:[%s5 + $0xba8] sm:$0xf]
  %v1022 = vld [vmem:[%s5 + $0xbac] sm:$0xf]
  %v1023 = vld [vmem:[%s5 + $0xbb0] sm:$0xf]
  %v1024 = vld [vmem:[%s5 + $0xbb4] sm:$0xf]
  %v1025 = vld [vmem:[%s5 + $0xbb8] sm:$0xf]
  %v1026 = vld [vmem:[%s5 + $0xbbc] sm:$0xf]
  %v1027 = vld [vmem:[%s5 + $0xbc0] sm:$0xf]
  %v1028 = vld [vmem:[%s5 + $0xbc4] sm:$0xf]
  %v1029 = vld [vmem:[%s5 + $0xbc8] sm:$0xf]
  %v1030 = vld [vmem:[%s5 + $0xbcc] sm:$0xf]
  %v1031 = vld [vmem:[%s5 + $0xbd0] sm:$0xf]
  %v1032 = vld [vmem:[%s5 + $0xbd4] sm:$0xf]
  %v1033 = vld [vmem:[%s5 + $0xbd8] sm:$0xf]
  %v1034 = vld [vmem:[%s5 + $0xbdc] sm:$0xf]
  %v1035 = vld [vmem:[%s5 + $0xbe0] sm:$0xf]
  %v1036 = vld [vmem:[%s5 + $0xbe4] sm:$0xf]
  %v1037 = vld [vmem:[%s5 + $0xbe8] sm:$0xf]
  %v1038 = vld [vmem:[%s5 + $0xbec] sm:$0xf]
  %v1039 = vld [vmem:[%s5 + $0xbf0] sm:$0xf]
  %v1040 = vld [vmem:[%s5 + $0xbf4] sm:$0xf]
  %v1041 = vld [vmem:[%s5 + $0xbf8] sm:$0xf]
  %v1042 = vld [vmem:[%s5 + $0xbfc] sm:$0xf]
  %v1043 = vld [vmem:[%s5 + $0xc00] sm:$0xf]
  %v1044 = vld [vmem:[%s5 + $0xc04] sm:$0xf]
  %v1045 = vld [vmem:[%s5 + $0xc08] sm:$0xf]
  %v1046 = vld [vmem:[%s5 + $0xc0c] sm:$0xf]
  %v1047 = vld [vmem:[%s5 + $0xc10] sm:$0xf]
  %v1048 = vld [vmem:[%s5 + $0xc14] sm:$0xf]
  %v1049 = vld [vmem:[%s5 + $0xc18] sm:$0xf]
  %v1050 = vld [vmem:[%s5 + $0xc1c] sm:$0xf]
  %v1051 = vld [vmem:[%s5 + $0xc20] sm:$0xf]
  %v1052 = vld [vmem:[%s5 + $0xc24] sm:$0xf]
  %v1053 = vld [vmem:[%s5 + $0xc28] sm:$0xf]
  %v1054 = vld [vmem:[%s5 + $0xc2c] sm:$0xf]
  %v1055 = vld [vmem:[%s5 + $0xc30] sm:$0xf]
  %v1056 = vld [vmem:[%s5 + $0xc34] sm:$0xf]
  %v1057 = vld [vmem:[%s5 + $0xc38] sm:$0xf]
  %v1058 = vld [vmem:[%s5 + $0xc3c] sm:$0xf]
  %v1059 = vld [vmem:[%s5 + $0xc40] sm:$0xf]
  %v1060 = vld [vmem:[%s5 + $0xc44] sm:$0xf]
  %v1061 = vld [vmem:[%s5 + $0xc48] sm:$0xf]
  %v1062 = vld [vmem:[%s5 + $0xc4c] sm:$0xf]
  %v1063 = vld [vmem:[%s5 + $0xc50] sm:$0xf]
  %v1064 = vld [vmem:[%s5 + $0xc54] sm:$0xf]
  %v1065 = vld [vmem:[%s5 + $0xc58] sm:$0xf]
  %v1066 = vld [vmem:[%s5 + $0xc5c] sm:$0xf]
  %v1067 = vld [vmem:[%s5 + $0xc60] sm:$0xf]
  %v1068 = vld [vmem:[%s5 + $0xc64] sm:$0xf]
  %v1069 = vld [vmem:[%s5 + $0xc68] sm:$0xf]
  %v1070 = vld [vmem:[%s5 + $0xc6c] sm:$0xf]
  %v1071 = vld [vmem:[%s5 + $0xc70] sm:$0xf]
  %v1072 = vld [vmem:[%s5 + $0xc74] sm:$0xf]
  %v1073 = vld [vmem:[%s5 + $0xc78] sm:$0xf]
  %v1074 = vld [vmem:[%s5 + $0xc7c] sm:$0xf]
  %v1075 = vld [vmem:[%s5 + $0xc80] sm:$0xf]
  %v1076 = vld [vmem:[%s5 + $0xc84] sm:$0xf]
  %v1077 = vld [vmem:[%s5 + $0xc88] sm:$0xf]
  %v1078 = vld [vmem:[%s5 + $0xc8c] sm:$0xf]
  %v1079 = vld [vmem:[%s5 + $0xc90] sm:$0xf]
  %v1080 = vld [vmem:[%s5 + $0xc94] sm:$0xf]
  %v1081 = vld [vmem:[%s5 + $0xc98] sm:$0xf]
  %v1082 = vld [vmem:[%s5 + $0xc9c] sm:$0xf]
  %v1083 = vld [vmem:[%s5 + $0xca0] sm:$0xf]
  %v1084 = vld [vmem:[%s5 + $0xca4] sm:$0xf]
  %v1085 = vld [vmem:[%s5 + $0xca8] sm:$0xf]
  %v1086 = vld [vmem:[%s5 + $0xcac] sm:$0xf]
  %v1087 = vld [vmem:[%s5 + $0xcb0] sm:$0xf]
  %v1088 = vld [vmem:[%s5 + $0xcb4] sm:$0xf]
  %v1089 = vld [vmem:[%s5 + $0xcb8] sm:$0xf]
  %v1090 = vld [vmem:[%s5 + $0xcbc] sm:$0xf]
  %v1091 = vld [vmem:[%s5 + $0xcc0] sm:$0xf]
  %v1092 = vld [vmem:[%s5 + $0xcc4] sm:$0xf]
  %v1093 = vld [vmem:[%s5 + $0xcc8] sm:$0xf]
  %v1094 = vld [vmem:[%s5 + $0xccc] sm:$0xf]
  %v1095 = vld [vmem:[%s5 + $0xcd0] sm:$0xf]
  %v1096 = vld [vmem:[%s5 + $0xcd4] sm:$0xf]
  %v1097 = vld [vmem:[%s5 + $0xcd8] sm:$0xf]
  %v1098 = vld [vmem:[%s5 + $0xcdc] sm:$0xf]
  %v1099 = vld [vmem:[%s5 + $0xce0] sm:$0xf]
  %v1100 = vld [vmem:[%s5 + $0xce4] sm:$0xf]
  %v1101 = vld [vmem:[%s5 + $0xce8] sm:$0xf]
  %v1102 = vld [vmem:[%s5 + $0xcec] sm:$0xf]
  %v1103 = vld [vmem:[%s5 + $0xcf0] sm:$0xf]
  %v1104 = vld [vmem:[%s5 + $0xcf4] sm:$0xf]
  %v1105 = vld [vmem:[%s5 + $0xcf8] sm:$0xf]
  %v1106 = vld [vmem:[%s5 + $0xcfc] sm:$0xf]
  %v1107 = vld [vmem:[%s5 + $0xd00] sm:$0xf]
  %v1108 = vld [vmem:[%s5 + $0xd04] sm:$0xf]
  %v1109 = vld [vmem:[%s5 + $0xd08] sm:$0xf]
  %v1110 = vld [vmem:[%s5 + $0xd0c] sm:$0xf]
  %v1111 = vld [vmem:[%s5 + $0xd10] sm:$0xf]
  %v1112 = vld [vmem:[%s5 + $0xd14] sm:$0xf]
  %v1113 = vld [vmem:[%s5 + $0xd18] sm:$0xf]
  %v1114 = vld [vmem:[%s5 + $0xd1c] sm:$0xf]
  %v1115 = vld [vmem:[%s5 + $0xd20] sm:$0xf]
  %v1116 = vld [vmem:[%s5 + $0xd24] sm:$0xf]
  %v1117 = vld [vmem:[%s5 + $0xd28] sm:$0xf]
  %v1118 = vld [vmem:[%s5 + $0xd2c] sm:$0xf]
  %v1119 = vld [vmem:[%s5 + $0xd30] sm:$0xf]
  %v1120 = vld [vmem:[%s5 + $0xd34] sm:$0xf]
  %v1121 = vld [vmem:[%s5 + $0xd38] sm:$0xf]
  %v1122 = vld [vmem:[%s5 + $0xd3c] sm:$0xf]
  %v1123 = vld [vmem:[%s5 + $0xd40] sm:$0xf]
  %v1124 = vld [vmem:[%s5 + $0xd44] sm:$0xf]
  %v1125 = vld [vmem:[%s5 + $0xd48] sm:$0xf]
  %v1126 = vld [vmem:[%s5 + $0xd4c] sm:$0xf]
  %v1127 = vld [vmem:[%s5 + $0xd50] sm:$0xf]
  %v1128 = vld [vmem:[%s5 + $0xd54] sm:$0xf]
  %v1129 = vld [vmem:[%s5 + $0xd58] sm:$0xf]
  %v1130 = vld [vmem:[%s5 + $0xd5c] sm:$0xf]
  %v1131 = vld [vmem:[%s5 + $0xd60] sm:$0xf]
  %v1132 = vld [vmem:[%s5 + $0xd64] sm:$0xf]
  %v1133 = vld [vmem:[%s5 + $0xd68] sm:$0xf]
  %v1134 = vld [vmem:[%s5 + $0xd6c] sm:$0xf]
  %v1135 = vld [vmem:[%s5 + $0xd70] sm:$0xf]
  %v1136 = vld [vmem:[%s5 + $0xd74] sm:$0xf]
  %v1137 = vld [vmem:[%s5 + $0xd78] sm:$0xf]
  %v1138 = vld [vmem:[%s5 + $0xd7c] sm:$0xf]
  %v1139 = vld [vmem:[%s5 + $0xd80] sm:$0xf]
  %v1140 = vld [vmem:[%s5 + $0xd84] sm:$0xf]
  %v1141 = vld [vmem:[%s5 + $0xd88] sm:$0xf]
  %v1142 = vld [vmem:[%s5 + $0xd8c] sm:$0xf]
  %v1143 = vld [vmem:[%s5 + $0xd90] sm:$0xf]
  %v1144 = vld [vmem:[%s5 + $0xd94] sm:$0xf]
  %v1145 = vld [vmem:[%s5 + $0xd98] sm:$0xf]
  %v1146 = vld [vmem:[%s5 + $0xd9c] sm:$0xf]
  %v1147 = vld [vmem:[%s5 + $0xda0] sm:$0xf]
  %v1148 = vld [vmem:[%s5 + $0xda4] sm:$0xf]
  %v1149 = vld [vmem:[%s5 + $0xda8] sm:$0xf]
  %v1150 = vld [vmem:[%s5 + $0xdac] sm:$0xf]
  %v1151 = vld [vmem:[%s5 + $0xdb0] sm:$0xf]
  %v1152 = vld [vmem:[%s5 + $0xdb4] sm:$0xf]
  %v1153 = vld [vmem:[%s5 + $0xdb8] sm:$0xf]
  %v1154 = vld [vmem:[%s5 + $0xdbc] sm:$0xf]
  %v1155 = vld [vmem:[%s5 + $0xdc0] sm:$0xf]
  %v1156 = vld [vmem:[%s5 + $0xdc4] sm:$0xf]
  %v1157 = vld [vmem:[%s5 + $0xdc8] sm:$0xf]
  %v1158 = vld [vmem:[%s5 + $0xdcc] sm:$0xf]
  %v1159 = vld [vmem:[%s5 + $0xdd0] sm:$0xf]
  %v1160 = vld [vmem:[%s5 + $0xdd4] sm:$0xf]
  %v1161 = vld [vmem:[%s5 + $0xdd8] sm:$0xf]
  %v1162 = vld [vmem:[%s5 + $0xddc] sm:$0xf]
  %v1163 = vld [vmem:[%s5 + $0xde0] sm:$0xf]
  %v1164 = vld [vmem:[%s5 + $0xde4] sm:$0xf]
  %v1165 = vld [vmem:[%s5 + $0xde8] sm:$0xf]
  %v1166 = vld [vmem:[%s5 + $0xdec] sm:$0xf]
  %v1167 = vld [vmem:[%s5 + $0xdf0] sm:$0xf]
  %v1168 = vld [vmem:[%s5 + $0xdf4] sm:$0xf]
  %v1169 = vld [vmem:[%s5 + $0xdf8] sm:$0xf]
  %v1170 = vld [vmem:[%s5 + $0xdfc] sm:$0xf]
  %v1171 = vld [vmem:[%s5 + $0xe00] sm:$0xf]
  %v1172 = vld [vmem:[%s5 + $0xe04] sm:$0xf]
  %v1173 = vld [vmem:[%s5 + $0xe08] sm:$0xf]
  %v1174 = vld [vmem:[%s5 + $0xe0c] sm:$0xf]
  %v1175 = vld [vmem:[%s5 + $0xe10] sm:$0xf]
  %v1176 = vld [vmem:[%s5 + $0xe14] sm:$0xf]
  %v1177 = vld [vmem:[%s5 + $0xe18] sm:$0xf]
  %v1178 = vld [vmem:[%s5 + $0xe1c] sm:$0xf]
  %v1179 = vld [vmem:[%s5 + $0xe20] sm:$0xf]
  %v1180 = vld [vmem:[%s5 + $0xe24] sm:$0xf]
  %v1181 = vld [vmem:[%s5 + $0xe28] sm:$0xf]
  %v1182 = vld [vmem:[%s5 + $0xe2c] sm:$0xf]
  %v1183 = vld [vmem:[%s5 + $0xe30] sm:$0xf]
  %v1184 = vld [vmem:[%s5 + $0xe34] sm:$0xf]
  %v1185 = vld [vmem:[%s5 + $0xe38] sm:$0xf]
  %v1186 = vld [vmem:[%s5 + $0xe3c] sm:$0xf]
  %v1187 = vld [vmem:[%s5 + $0xe40] sm:$0xf]
  %v1188 = vld [vmem:[%s5 + $0xe44] sm:$0xf]
  %v1189 = vld [vmem:[%s5 + $0xe48] sm:$0xf]
  %v1190 = vld [vmem:[%s5 + $0xe4c] sm:$0xf]
  %v1191 = vld [vmem:[%s5 + $0xe50] sm:$0xf]
  %v1192 = vld [vmem:[%s5 + $0xe54] sm:$0xf]
  %v1193 = vld [vmem:[%s5 + $0xe58] sm:$0xf]
  %v1194 = vld [vmem:[%s5 + $0xe5c] sm:$0xf]
  %v1195 = vld [vmem:[%s5 + $0xe60] sm:$0xf]
  %v1196 = vld [vmem:[%s5 + $0xe64] sm:$0xf]
  %v1197 = vld [vmem:[%s5 + $0xe68] sm:$0xf]
  %v1198 = vld [vmem:[%s5 + $0xe6c] sm:$0xf]
  %v1199 = vld [vmem:[%s5 + $0xe70] sm:$0xf]
  %v1200 = vld [vmem:[%s5 + $0xe74] sm:$0xf]
  %v1201 = vld [vmem:[%s5 + $0xe78] sm:$0xf]
  %v1202 = vld [vmem:[%s5 + $0xe7c] sm:$0xf]
  %v1203 = vld [vmem:[%s5 + $0xe80] sm:$0xf]
  %v1204 = vld [vmem:[%s5 + $0xe84] sm:$0xf]
  %v1205 = vld [vmem:[%s5 + $0xe88] sm:$0xf]
  %v1206 = vld [vmem:[%s5 + $0xe8c] sm:$0xf]
  %v1207 = vld [vmem:[%s5 + $0xe90] sm:$0xf]
  %v1208 = vld [vmem:[%s5 + $0xe94] sm:$0xf]
  %v1209 = vld [vmem:[%s5 + $0xe98] sm:$0xf]
  %v1210 = vld [vmem:[%s5 + $0xe9c] sm:$0xf]
  %v1211 = vld [vmem:[%s5 + $0xea0] sm:$0xf]
  %v1212 = vld [vmem:[%s5 + $0xea4] sm:$0xf]
  %v1213 = vld [vmem:[%s5 + $0xea8] sm:$0xf]
  %v1214 = vld [vmem:[%s5 + $0xeac] sm:$0xf]
  %v1215 = vld [vmem:[%s5 + $0xeb0] sm:$0xf]
  %v1216 = vld [vmem:[%s5 + $0xeb4] sm:$0xf]
  %v1217 = vld [vmem:[%s5 + $0xeb8] sm:$0xf]
  %v1218 = vld [vmem:[%s5 + $0xebc] sm:$0xf]
  %v1219 = vld [vmem:[%s5 + $0xec0] sm:$0xf]
  %v1220 = vld [vmem:[%s5 + $0xec4] sm:$0xf]
  %v1221 = vld [vmem:[%s5 + $0xec8] sm:$0xf]
  %v1222 = vld [vmem:[%s5 + $0xecc] sm:$0xf]
  %v1223 = vld [vmem:[%s5 + $0xed0] sm:$0xf]
  %v1224 = vld [vmem:[%s5 + $0xed4] sm:$0xf]
  %v1225 = vld [vmem:[%s5 + $0xed8] sm:$0xf]
  %v1226 = vld [vmem:[%s5 + $0xedc] sm:$0xf]
  %v1227 = vld [vmem:[%s5 + $0xee0] sm:$0xf]
  %v1228 = vld [vmem:[%s5 + $0xee4] sm:$0xf]
  %v1229 = vld [vmem:[%s5 + $0xee8] sm:$0xf]
  %v1230 = vld [vmem:[%s5 + $0xeec] sm:$0xf]
  %v1231 = vld [vmem:[%s5 + $0xef0] sm:$0xf]
  %v1232 = vld [vmem:[%s5 + $0xef4] sm:$0xf]
  %v1233 = vld [vmem:[%s5 + $0xef8] sm:$0xf]
  %v1234 = vld [vmem:[%s5 + $0xefc] sm:$0xf]
  %v1235 = vld [vmem:[%s5 + $0xf00] sm:$0xf]
  %v1236 = vld [vmem:[%s5 + $0xf04] sm:$0xf]
  %v1237 = vld [vmem:[%s5 + $0xf08] sm:$0xf]
  %v1238 = vld [vmem:[%s5 + $0xf0c] sm:$0xf]
  %v1239 = vld [vmem:[%s5 + $0xf10] sm:$0xf]
  %v1240 = vld [vmem:[%s5 + $0xf14] sm:$0xf]
  %v1241 = vld [vmem:[%s5 + $0xf18] sm:$0xf]
  %v1242 = vld [vmem:[%s5 + $0xf1c] sm:$0xf]
  %v1243 = vld [vmem:[%s5 + $0xf20] sm:$0xf]
  %v1244 = vld [vmem:[%s5 + $0xf24] sm:$0xf]
  %v1245 = vld [vmem:[%s5 + $0xf28] sm:$0xf]
  %v1246 = vld [vmem:[%s5 + $0xf2c] sm:$0xf]
  %v1247 = vld [vmem:[%s5 + $0xf30] sm:$0xf]
  %v1248 = vld [vmem:[%s5 + $0xf34] sm:$0xf]
  %v1249 = vld [vmem:[%s5 + $0xf38] sm:$0xf]
  %v1250 = vld [vmem:[%s5 + $0xf3c] sm:$0xf]
  %v1251 = vld [vmem:[%s5 + $0xf40] sm:$0xf]
  %v1252 = vld [vmem:[%s5 + $0xf44] sm:$0xf]
  %v1253 = vld [vmem:[%s5 + $0xf48] sm:$0xf]
  %v1254 = vld [vmem:[%s5 + $0xf4c] sm:$0xf]
  %v1255 = vld [vmem:[%s5 + $0xf50] sm:$0xf]
  %v1256 = vld [vmem:[%s5 + $0xf54] sm:$0xf]
  %v1257 = vld [vmem:[%s5 + $0xf58] sm:$0xf]
  %v1258 = vld [vmem:[%s5 + $0xf5c] sm:$0xf]
  %v1259 = vld [vmem:[%s5 + $0xf60] sm:$0xf]
  %v1260 = vld [vmem:[%s5 + $0xf64] sm:$0xf]
  %v1261 = vld [vmem:[%s5 + $0xf68] sm:$0xf]
  %v1262 = vld [vmem:[%s5 + $0xf6c] sm:$0xf]
  %v1263 = vld [vmem:[%s5 + $0xf70] sm:$0xf]
  %v1264 = vld [vmem:[%s5 + $0xf74] sm:$0xf]
  %v1265 = vld [vmem:[%s5 + $0xf78] sm:$0xf]
  %v1266 = vld [vmem:[%s5 + $0xf7c] sm:$0xf]
  %v1267 = vld [vmem:[%s5 + $0xf80] sm:$0xf]
  %v1268 = vld [vmem:[%s5 + $0xf84] sm:$0xf]
  %v1269 = vld [vmem:[%s5 + $0xf88] sm:$0xf]
  %v1270 = vld [vmem:[%s5 + $0xf8c] sm:$0xf]
  %v1271 = vld [vmem:[%s5 + $0xf90] sm:$0xf]
  %v1272 = vld [vmem:[%s5 + $0xf94] sm:$0xf]
  %v1273 = vld [vmem:[%s5 + $0xf98] sm:$0xf]
  %v1274 = vld [vmem:[%s5 + $0xf9c] sm:$0xf]
  %v1275 = vld [vmem:[%s5 + $0xfa0] sm:$0xf]
  %v1276 = vld [vmem:[%s5 + $0xfa4] sm:$0xf]
  %v1277 = vld [vmem:[%s5 + $0xfa8] sm:$0xf]
  %v1278 = vld [vmem:[%s5 + $0xfac] sm:$0xf]
  %v1279 = vld [vmem:[%s5 + $0xfb0] sm:$0xf]
  %v1280 = vld [vmem:[%s5 + $0xfb4] sm:$0xf]
  %v1281 = vld [vmem:[%s5 + $0xfb8] sm:$0xf]
  %v1282 = vld [vmem:[%s5 + $0xfbc] sm:$0xf]
  %v1283 = vld [vmem:[%s5 + $0xfc0] sm:$0xf]
  %v1284 = vld [vmem:[%s5 + $0xfc4] sm:$0xf]
  %v1285 = vld [vmem:[%s5 + $0xfc8] sm:$0xf]
  %v1286 = vld [vmem:[%s5 + $0xfcc] sm:$0xf]
  %v1287 = vld [vmem:[%s5 + $0xfd0] sm:$0xf]
  %v1288 = vld [vmem:[%s5 + $0xfd4] sm:$0xf]
  %v1289 = vld [vmem:[%s5 + $0xfd8] sm:$0xf]
  %v1290 = vld [vmem:[%s5 + $0xfdc] sm:$0xf]
  %v1291 = vld [vmem:[%s5 + $0xfe0] sm:$0xf]
  %v1292 = vld [vmem:[%s5 + $0xfe4] sm:$0xf]
  %v1293 = vld [vmem:[%s5 + $0xfe8] sm:$0xf]
  %v1294 = vld [vmem:[%s5 + $0xfec] sm:$0xf]
  %v1295 = vld [vmem:[%s5 + $0xff0] sm:$0xf]
  %v1296 = vld [vmem:[%s5 + $0xff4] sm:$0xf]
  %v1297 = vld [vmem:[%s5 + $0xff8] sm:$0xf]
  %v1298 = vld [vmem:[%s5 + $0xffc] sm:$0xf]
  %v1299 = vld [vmem:[%s5 + $0x1000] sm:$0xf]
  %v1300 = vld [vmem:[%s5 + $0x1004] sm:$0xf]
  %v1301 = vld [vmem:[%s5 + $0x1008] sm:$0xf]
  %v1302 = vld [vmem:[%s5 + $0x100c] sm:$0xf]
  %v1303 = vld [vmem:[%s5 + $0x1010] sm:$0xf]
  %v1304 = vld [vmem:[%s5 + $0x1014] sm:$0xf]
  %v1305 = vld [vmem:[%s5 + $0x1018] sm:$0xf]
  %v1306 = vld [vmem:[%s5 + $0x101c] sm:$0xf]
  %v1307 = vld [vmem:[%s5 + $0x1020] sm:$0xf]
  %v1308 = vld [vmem:[%s5 + $0x1024] sm:$0xf]
  %v1309 = vld [vmem:[%s5 + $0x1028] sm:$0xf]
  %v1310 = vld [vmem:[%s5 + $0x102c] sm:$0xf]
  %v1311 = vld [vmem:[%s5 + $0x1030] sm:$0xf]
  %v1312 = vld [vmem:[%s5 + $0x1034] sm:$0xf]
  %v1313 = vld [vmem:[%s5 + $0x1038] sm:$0xf]
  %v1314 = vld [vmem:[%s5 + $0x103c] sm:$0xf]
  %v1315 = vld [vmem:[%s5 + $0x1040] sm:$0xf]
  %v1316 = vld [vmem:[%s5 + $0x1044] sm:$0xf]
  %v1317 = vld [vmem:[%s5 + $0x1048] sm:$0xf]
  %v1318 = vld [vmem:[%s5 + $0x104c] sm:$0xf]
  %v1319 = vld [vmem:[%s5 + $0x1050] sm:$0xf]
  %v1320 = vld [vmem:[%s5 + $0x1054] sm:$0xf]
  %v1321 = vld [vmem:[%s5 + $0x1058] sm:$0xf]
  %v1322 = vld [vmem:[%s5 + $0x105c] sm:$0xf]
  %v1323 = vld [vmem:[%s5 + $0x1060] sm:$0xf]
  %v1324 = vld [vmem:[%s5 + $0x1064] sm:$0xf]
  %v1325 = vld [vmem:[%s5 + $0x1068] sm:$0xf]
  %v1326 = vld [vmem:[%s5 + $0x106c] sm:$0xf]
  %v1327 = vld [vmem:[%s5 + $0x1070] sm:$0xf]
  %v1328 = vld [vmem:[%s5 + $0x1074] sm:$0xf]
  %v1329 = vld [vmem:[%s5 + $0x1078] sm:$0xf]
  %v1330 = vld [vmem:[%s5 + $0x107c] sm:$0xf]
  %v1331 = vld [vmem:[%s5 + $0x1080] sm:$0xf]
  %v1332 = vld [vmem:[%s5 + $0x1084] sm:$0xf]
  %v1333 = vld [vmem:[%s5 + $0x1088] sm:$0xf]
  %v1334 = vld [vmem:[%s5 + $0x108c] sm:$0xf]
  %v1335 = vld [vmem:[%s5 + $0x1090] sm:$0xf]
  %v1336 = vld [vmem:[%s5 + $0x1094] sm:$0xf]
  %v1337 = vld [vmem:[%s5 + $0x1098] sm:$0xf]
  %v1338 = vld [vmem:[%s5 + $0x109c] sm:$0xf]
  %v1339 = vld [vmem:[%s5 + $0x10a0] sm:$0xf]
  %v1340 = vld [vmem:[%s5 + $0x10a4] sm:$0xf]
  %v1341 = vld [vmem:[%s5 + $0x10a8] sm:$0xf]
  %v1342 = vld [vmem:[%s5 + $0x10ac] sm:$0xf]
  %v1343 = vld [vmem:[%s5 + $0x10b0] sm:$0xf]
  %v1344 = vld [vmem:[%s5 + $0x10b4] sm:$0xf]
  %v1345 = vld [vmem:[%s5 + $0x10b8] sm:$0xf]
  %v1346 = vld [vmem:[%s5 + $0x10bc] sm:$0xf]
  %v1347 = vld [vmem:[%s5 + $0x10c0] sm:$0xf]
  %v1348 = vld [vmem:[%s5 + $0x10c4] sm:$0xf]
  %v1349 = vld [vmem:[%s5 + $0x10c8] sm:$0xf]
  %v1350 = vld [vmem:[%s5 + $0x10cc] sm:$0xf]
  %v1351 = vld [vmem:[%s5 + $0x10d0] sm:$0xf]
  %v1352 = vld [vmem:[%s5 + $0x10d4] sm:$0xf]
  %v1353 = vld [vmem:[%s5 + $0x10d8] sm:$0xf]
  %v1354 = vld [vmem:[%s5 + $0x10dc] sm:$0xf]
  %v1355 = vld [vmem:[%s5 + $0x10e0] sm:$0xf]
  %v1356 = vld [vmem:[%s5 + $0x10e4] sm:$0xf]
  %v1357 = vld [vmem:[%s5 + $0x10e8] sm:$0xf]
  %v1358 = vld [vmem:[%s5 + $0x10ec] sm:$0xf]
  %v1359 = vld [vmem:[%s5 + $0x10f0] sm:$0xf]
  %v1360 = vld [vmem:[%s5 + $0x10f4] sm:$0xf]
  %v1361 = vld [vmem:[%s5 + $0x10f8] sm:$0xf]
  %v1362 = vld [vmem:[%s5 + $0x10fc] sm:$0xf]
  %v1363 = vld [vmem:[%s5 + $0x1100] sm:$0xf]
  %v1364 = vld [vmem:[%s5 + $0x1104] sm:$0xf]
  %v1365 = vld [vmem:[%s5 + $0x1108] sm:$0xf]
  %v1366 = vld [vmem:[%s5 + $0x110c] sm:$0xf]
  %v1367 = vld [vmem:[%s5 + $0x1110] sm:$0xf]
  %v1368 = vld [vmem:[%s5 + $0x1114] sm:$0xf]
  %v1369 = vld [vmem:[%s5 + $0x1118] sm:$0xf]
  %v1370 = vld [vmem:[%s5 + $0x111c] sm:$0xf]
  %v1371 = vld [vmem:[%s5 + $0x1120] sm:$0xf]
  %v1372 = vld [vmem:[%s5 + $0x1124] sm:$0xf]
  %v1373 = vld [vmem:[%s5 + $0x1128] sm:$0xf]
  %v1374 = vld [vmem:[%s5 + $0x112c] sm:$0xf]
  %v1375 = vld [vmem:[%s5 + $0x1130] sm:$0xf]
  %v1376 = vld [vmem:[%s5 + $0x1134] sm:$0xf]
  %v1377 = vld [vmem:[%s5 + $0x1138] sm:$0xf]
  %v1378 = vld [vmem:[%s5 + $0x113c] sm:$0xf]
  %v1379 = vld [vmem:[%s5 + $0x1140] sm:$0xf]
  %v1380 = vld [vmem:[%s5 + $0x1144] sm:$0xf]
  %v1381 = vld [vmem:[%s5 + $0x1148] sm:$0xf]
  %v1382 = vld [vmem:[%s5 + $0x114c] sm:$0xf]
  %v1383 = vld [vmem:[%s5 + $0x1150] sm:$0xf]
  %v1384 = vld [vmem:[%s5 + $0x1154] sm:$0xf]
  %v1385 = vld [vmem:[%s5 + $0x1158] sm:$0xf]
  %v1386 = vld [vmem:[%s5 + $0x115c] sm:$0xf]
  %v1387 = vld [vmem:[%s5 + $0x1160] sm:$0xf]
  %v1388 = vld [vmem:[%s5 + $0x1164] sm:$0xf]
  %v1389 = vld [vmem:[%s5 + $0x1168] sm:$0xf]
  %v1390 = vld [vmem:[%s5 + $0x116c] sm:$0xf]
  %v1391 = vld [vmem:[%s5 + $0x1170] sm:$0xf]
  %v1392 = vld [vmem:[%s5 + $0x1174] sm:$0xf]
  %v1393 = vld [vmem:[%s5 + $0x1178] sm:$0xf]
  %v1394 = vld [vmem:[%s5 + $0x117c] sm:$0xf]
  %v1395 = vld [vmem:[%s5 + $0x1180] sm:$0xf]
  %v1396 = vld [vmem:[%s5 + $0x1184] sm:$0xf]
  %v1397 = vld [vmem:[%s5 + $0x1188] sm:$0xf]
  %v1398 = vld [vmem:[%s5 + $0x118c] sm:$0xf]
  %v1399 = vld [vmem:[%s5 + $0x1190] sm:$0xf]
  %v1400 = vld [vmem:[%s5 + $0x1194] sm:$0xf]
  %v1401 = vld [vmem:[%s5 + $0x1198] sm:$0xf]
  %v1402 = vld [vmem:[%s5 + $0x119c] sm:$0xf]
  %v1403 = vld [vmem:[%s5 + $0x11a0] sm:$0xf]
  %v1404 = vld [vmem:[%s5 + $0x11a4] sm:$0xf]
  %v1405 = vld [vmem:[%s5 + $0x11a8] sm:$0xf]
  %v1406 = vld [vmem:[%s5 + $0x11ac] sm:$0xf]
  %v1407 = vld [vmem:[%s5 + $0x11b0] sm:$0xf]
  %v1408 = vld [vmem:[%s5 + $0x11b4] sm:$0xf]
  %v1409 = vld [vmem:[%s5 + $0x11b8] sm:$0xf]
  %v1410 = vld [vmem:[%s5 + $0x11bc] sm:$0xf]
  %v1411 = vld [vmem:[%s5 + $0x11c0] sm:$0xf]
  %v1412 = vld [vmem:[%s5 + $0x11c4] sm:$0xf]
  %v1413 = vld [vmem:[%s5 + $0x11c8] sm:$0xf]
  %v1414 = vld [vmem:[%s5 + $0x11cc] sm:$0xf]
  %v1415 = vld [vmem:[%s5 + $0x11d0] sm:$0xf]
  %v1416 = vld [vmem:[%s5 + $0x11d4] sm:$0xf]
  %v1417 = vld [vmem:[%s5 + $0x11d8] sm:$0xf]
  %v1418 = vld [vmem:[%s5 + $0x11dc] sm:$0xf]
  %v1419 = vld [vmem:[%s5 + $0x11e0] sm:$0xf]
  %v1420 = vld [vmem:[%s5 + $0x11e4] sm:$0xf]
  %v1421 = vld [vmem:[%s5 + $0x11e8] sm:$0xf]
  %v1422 = vld [vmem:[%s5 + $0x11ec] sm:$0xf]
  %v1423 = vld [vmem:[%s5 + $0x11f0] sm:$0xf]
  %v1424 = vld [vmem:[%s5 + $0x11f4] sm:$0xf]
  %v1425 = vld [vmem:[%s5 + $0x11f8] sm:$0xf]
  %v1426 = vld [vmem:[%s5 + $0x11fc] sm:$0xf]
  %v1427 = vld [vmem:[%s5 + $0x1200] sm:$0xf]
  %v1428 = vld [vmem:[%s5 + $0x1204] sm:$0xf]
  %v1429 = vld [vmem:[%s5 + $0x1208] sm:$0xf]
  %v1430 = vld [vmem:[%s5 + $0x120c] sm:$0xf]
  %v1431 = vld [vmem:[%s5 + $0x1210] sm:$0xf]
  %v1432 = vld [vmem:[%s5 + $0x1214] sm:$0xf]
  %v1433 = vld [vmem:[%s5 + $0x1218] sm:$0xf]
  %v1434 = vld [vmem:[%s5 + $0x121c] sm:$0xf]
  %v1435 = vld [vmem:[%s5 + $0x1220] sm:$0xf]
  %v1436 = vld [vmem:[%s5 + $0x1224] sm:$0xf]
  %v1437 = vld [vmem:[%s5 + $0x1228] sm:$0xf]
  %v1438 = vld [vmem:[%s5 + $0x122c] sm:$0xf]
  %v1439 = vld [vmem:[%s5 + $0x1230] sm:$0xf]
  %v1440 = vld [vmem:[%s5 + $0x1234] sm:$0xf]
  %v1441 = vld [vmem:[%s5 + $0x1238] sm:$0xf]
  %v1442 = vld [vmem:[%s5 + $0x123c] sm:$0xf]
  %v1443 = vld [vmem:[%s5 + $0x1240] sm:$0xf]
  %v1444 = vld [vmem:[%s5 + $0x1244] sm:$0xf]
  %v1445 = vld [vmem:[%s5 + $0x1248] sm:$0xf]
  %v1446 = vld [vmem:[%s5 + $0x124c] sm:$0xf]
  %v1447 = vld [vmem:[%s5 + $0x1250] sm:$0xf]
  %v1448 = vld [vmem:[%s5 + $0x1254] sm:$0xf]
  %v1449 = vld [vmem:[%s5 + $0x1258] sm:$0xf]
  %v1450 = vld [vmem:[%s5 + $0x125c] sm:$0xf]
  %v1451 = vld [vmem:[%s7] sm:$0x1]
  %v1453 = vlaneseq
  %v1454 = vshrl.u32 %v1453, 7
  %v1455 = vsub.s32 0, %v1454
  %v1456 = vrot.slane %v1451, %v1455
  %v1606 = vunpack.c.l.b16 %v127
  %v1607 = vunpack.c.h.b16 %v127
  %v1608 = vunpack.c.l.b16 %v128
  %v1609 = vunpack.c.h.b16 %v128
  %v1610 = vunpack.c.l.b16 %v129
  %v1611 = vunpack.c.h.b16 %v129
  %v1612 = vunpack.c.l.b16 %v130
  %v1613 = vunpack.c.h.b16 %v130
  %v1614 = vunpack.c.l.b16 %v131
  %v1615 = vunpack.c.h.b16 %v131
  %v1616 = vunpack.c.l.b16 %v132
  %v1617 = vunpack.c.h.b16 %v132
  %v1618 = vunpack.c.l.b16 %v133
  %v1619 = vunpack.c.h.b16 %v133
  %v1620 = vunpack.c.l.b16 %v134
  %v1621 = vunpack.c.h.b16 %v134
  %v1622 = vunpack.c.l.b16 %v135
  %v1623 = vunpack.c.h.b16 %v135
  %v1624 = vunpack.c.l.b16 %v136
  %v1625 = vunpack.c.h.b16 %v136
  %v1626 = vunpack.c.l.b16 %v137
  %v1627 = vunpack.c.h.b16 %v137
  %v1628 = vunpack.c.l.b16 %v138
  %v1629 = vunpack.c.h.b16 %v138
  %v1630 = vunpack.c.l.b16 %v139
  %v1631 = vunpack.c.h.b16 %v139
  %v1632 = vunpack.c.l.b16 %v140
  %v1633 = vunpack.c.h.b16 %v140
  %v1634 = vunpack.c.l.b16 %v141
  %v1635 = vunpack.c.h.b16 %v141
  %v1636 = vunpack.c.l.b16 %v142
  %v1637 = vunpack.c.h.b16 %v142
  %v1638 = vunpack.c.l.b16 %v143
  %v1639 = vunpack.c.h.b16 %v143
  %v1640 = vunpack.c.l.b16 %v144
  %v1641 = vunpack.c.h.b16 %v144
  %v1642 = vunpack.c.l.b16 %v145
  %v1643 = vunpack.c.h.b16 %v145
  %v1644 = vunpack.c.l.b16 %v146
  %v1645 = vunpack.c.h.b16 %v146
  %v1646 = vunpack.c.l.b16 %v147
  %v1647 = vunpack.c.h.b16 %v147
  %v1648 = vunpack.c.l.b16 %v148
  %v1649 = vunpack.c.h.b16 %v148
  %v1650 = vunpack.c.l.b16 %v149
  %v1651 = vunpack.c.h.b16 %v149
  %v1652 = vunpack.c.l.b16 %v150
  %v1653 = vunpack.c.h.b16 %v150
  %v1654 = vunpack.c.l.b16 %v151
  %v1655 = vunpack.c.h.b16 %v151
  %v1656 = vunpack.c.l.b16 %v152
  %v1657 = vunpack.c.h.b16 %v152
  %v1658 = vunpack.c.l.b16 %v153
  %v1659 = vunpack.c.h.b16 %v153
  %v1660 = vunpack.c.l.b16 %v154
  %v1661 = vunpack.c.h.b16 %v154
  %v1662 = vunpack.c.l.b16 %v155
  %v1663 = vunpack.c.h.b16 %v155
  %v1664 = vunpack.c.l.b16 %v156
  %v1665 = vunpack.c.h.b16 %v156
  %v1666 = vunpack.c.l.b16 %v157
  %v1667 = vunpack.c.h.b16 %v157
  %v1668 = vunpack.c.l.b16 %v158
  %v1669 = vunpack.c.h.b16 %v158
  %v1670 = vunpack.c.l.b16 %v159
  %v1671 = vunpack.c.h.b16 %v159
  %v1672 = vunpack.c.l.b16 %v160
  %v1673 = vunpack.c.h.b16 %v160
  %v1674 = vunpack.c.l.b16 %v161
  %v1675 = vunpack.c.h.b16 %v161
  %v1676 = vunpack.c.l.b16 %v162
  %v1677 = vunpack.c.h.b16 %v162
  %v1678 = vunpack.c.l.b16 %v163
  %v1679 = vunpack.c.h.b16 %v163
  %v1680 = vunpack.c.l.b16 %v164
  %v1681 = vunpack.c.h.b16 %v164
  %v1682 = vunpack.c.l.b16 %v165
  %v1683 = vunpack.c.h.b16 %v165
  %v1684 = vunpack.c.l.b16 %v166
  %v1685 = vunpack.c.h.b16 %v166
  %v1686 = vunpack.c.l.b16 %v167
  %v1687 = vunpack.c.h.b16 %v167
  %v1688 = vunpack.c.l.b16 %v168
  %v1689 = vunpack.c.h.b16 %v168
  %v1690 = vunpack.c.l.b16 %v169
  %v1691 = vunpack.c.h.b16 %v169
  %v1692 = vunpack.c.l.b16 %v170
  %v1693 = vunpack.c.h.b16 %v170
  %v1694 = vunpack.c.l.b16 %v171
  %v1695 = vunpack.c.h.b16 %v171
  %v1696 = vunpack.c.l.b16 %v172
  %v1697 = vunpack.c.h.b16 %v172
  %v1698 = vunpack.c.l.b16 %v173
  %v1699 = vunpack.c.h.b16 %v173
  %v1700 = vunpack.c.l.b16 %v174
  %v1701 = vunpack.c.h.b16 %v174
  %v1702 = vunpack.c.l.b16 %v175
  %v1703 = vunpack.c.h.b16 %v175
  %v1704 = vunpack.c.l.b16 %v176
  %v1705 = vunpack.c.h.b16 %v176
  %v1706 = vunpack.c.l.b16 %v177
  %v1707 = vunpack.c.h.b16 %v177
  %v1708 = vunpack.c.l.b16 %v178
  %v1709 = vunpack.c.h.b16 %v178
  %v1710 = vunpack.c.l.b16 %v179
  %v1711 = vunpack.c.h.b16 %v179
  %v1712 = vunpack.c.l.b16 %v180
  %v1713 = vunpack.c.h.b16 %v180
  %v1714 = vunpack.c.l.b16 %v181
  %v1715 = vunpack.c.h.b16 %v181
  %v1716 = vunpack.c.l.b16 %v182
  %v1717 = vunpack.c.h.b16 %v182
  %v1718 = vunpack.c.l.b16 %v183
  %v1719 = vunpack.c.h.b16 %v183
  %v1720 = vunpack.c.l.b16 %v184
  %v1721 = vunpack.c.h.b16 %v184
  %v1722 = vunpack.c.l.b16 %v185
  %v1723 = vunpack.c.h.b16 %v185
  %v1724 = vunpack.c.l.b16 %v186
  %v1725 = vunpack.c.h.b16 %v186
  %v1726 = vunpack.c.l.b16 %v187
  %v1727 = vunpack.c.h.b16 %v187
  %v1728 = vunpack.c.l.b16 %v188
  %v1729 = vunpack.c.h.b16 %v188
  %v1730 = vunpack.c.l.b16 %v189
  %v1731 = vunpack.c.h.b16 %v189
  %v1732 = vunpack.c.l.b16 %v190
  %v1733 = vunpack.c.h.b16 %v190
  %v1734 = vunpack.c.l.b16 %v191
  %v1735 = vunpack.c.h.b16 %v191
  %v1736 = vunpack.c.l.b16 %v192
  %v1737 = vunpack.c.h.b16 %v192
  %v1738 = vunpack.c.l.b16 %v193
  %v1739 = vunpack.c.h.b16 %v193
  %v1740 = vunpack.c.l.b16 %v194
  %v1741 = vunpack.c.h.b16 %v194
  %v1742 = vunpack.c.l.b16 %v195
  %v1743 = vunpack.c.h.b16 %v195
  %v1744 = vunpack.c.l.b16 %v196
  %v1745 = vunpack.c.h.b16 %v196
  %v1746 = vunpack.c.l.b16 %v197
  %v1747 = vunpack.c.h.b16 %v197
  %v1748 = vunpack.c.l.b16 %v198
  %v1749 = vunpack.c.h.b16 %v198
  %v1750 = vunpack.c.l.b16 %v199
  %v1751 = vunpack.c.h.b16 %v199
  %v1752 = vunpack.c.l.b16 %v200
  %v1753 = vunpack.c.h.b16 %v200
  %v1754 = vunpack.c.l.b16 %v201
  %v1755 = vunpack.c.h.b16 %v201
  %v1756 = vunpack.c.l.b16 %v202
  %v1757 = vunpack.c.h.b16 %v202
  %v1758 = vunpack.c.l.b16 %v203
  %v1759 = vunpack.c.h.b16 %v203
  %v1760 = vunpack.c.l.b16 %v204
  %v1761 = vunpack.c.h.b16 %v204
  %v1762 = vunpack.c.l.b16 %v205
  %v1763 = vunpack.c.h.b16 %v205
  %v1764 = vunpack.c.l.b16 %v206
  %v1765 = vunpack.c.h.b16 %v206
  %v1766 = vunpack.c.l.b16 %v207
  %v1767 = vunpack.c.h.b16 %v207
  %v1768 = vunpack.c.l.b16 %v208
  %v1769 = vunpack.c.h.b16 %v208
  %v1770 = vunpack.c.l.b16 %v209
  %v1771 = vunpack.c.h.b16 %v209
  %v1772 = vunpack.c.l.b16 %v210
  %v1773 = vunpack.c.h.b16 %v210
  %v1774 = vunpack.c.l.b16 %v211
  %v1775 = vunpack.c.h.b16 %v211
  %v1776 = vunpack.c.l.b16 %v212
  %v1777 = vunpack.c.h.b16 %v212
  %v1778 = vunpack.c.l.b16 %v213
  %v1779 = vunpack.c.h.b16 %v213
  %v1780 = vunpack.c.l.b16 %v214
  %v1781 = vunpack.c.h.b16 %v214
  %v1782 = vunpack.c.l.b16 %v215
  %v1783 = vunpack.c.h.b16 %v215
  %v1784 = vunpack.c.l.b16 %v216
  %v1785 = vunpack.c.h.b16 %v216
  %v1786 = vunpack.c.l.b16 %v217
  %v1787 = vunpack.c.h.b16 %v217
  %v1788 = vunpack.c.l.b16 %v218
  %v1789 = vunpack.c.h.b16 %v218
  %v1790 = vunpack.c.l.b16 %v219
  %v1791 = vunpack.c.h.b16 %v219
  %v1792 = vunpack.c.l.b16 %v220
  %v1793 = vunpack.c.h.b16 %v220
  %v1794 = vunpack.c.l.b16 %v221
  %v1795 = vunpack.c.h.b16 %v221
  %v1796 = vunpack.c.l.b16 %v222
  %v1797 = vunpack.c.h.b16 %v222
  %v1798 = vunpack.c.l.b16 %v223
  %v1799 = vunpack.c.h.b16 %v223
  %v1800 = vunpack.c.l.b16 %v224
  %v1801 = vunpack.c.h.b16 %v224
  %v1802 = vunpack.c.l.b16 %v225
  %v1803 = vunpack.c.h.b16 %v225
  %v1804 = vunpack.c.l.b16 %v226
  %v1805 = vunpack.c.h.b16 %v226
  %v1806 = vunpack.c.l.b16 %v227
  %v1807 = vunpack.c.h.b16 %v227
  %v1808 = vunpack.c.l.b16 %v228
  %v1809 = vunpack.c.h.b16 %v228
  %v1810 = vunpack.c.l.b16 %v229
  %v1811 = vunpack.c.h.b16 %v229
  %v1812 = vunpack.c.l.b16 %v230
  %v1813 = vunpack.c.h.b16 %v230
  %v1814 = vunpack.c.l.b16 %v231
  %v1815 = vunpack.c.h.b16 %v231
  %v1816 = vunpack.c.l.b16 %v232
  %v1817 = vunpack.c.h.b16 %v232
  %v1818 = vunpack.c.l.b16 %v233
  %v1819 = vunpack.c.h.b16 %v233
  %v1820 = vunpack.c.l.b16 %v234
  %v1821 = vunpack.c.h.b16 %v234
  %v1822 = vunpack.c.l.b16 %v235
  %v1823 = vunpack.c.h.b16 %v235
  %v1824 = vunpack.c.l.b16 %v236
  %v1825 = vunpack.c.h.b16 %v236
  %v1826 = vunpack.c.l.b16 %v237
  %v1827 = vunpack.c.h.b16 %v237
  %v1828 = vunpack.c.l.b16 %v238
  %v1829 = vunpack.c.h.b16 %v238
  %v1830 = vunpack.c.l.b16 %v239
  %v1831 = vunpack.c.h.b16 %v239
  %v1832 = vunpack.c.l.b16 %v240
  %v1833 = vunpack.c.h.b16 %v240
  %v1834 = vunpack.c.l.b16 %v241
  %v1835 = vunpack.c.h.b16 %v241
  %v1836 = vunpack.c.l.b16 %v242
  %v1837 = vunpack.c.h.b16 %v242
  %v1838 = vunpack.c.l.b16 %v243
  %v1839 = vunpack.c.h.b16 %v243
  %v1840 = vunpack.c.l.b16 %v244
  %v1841 = vunpack.c.h.b16 %v244
  %v1842 = vunpack.c.l.b16 %v245
  %v1843 = vunpack.c.h.b16 %v245
  %v1844 = vunpack.c.l.b16 %v246
  %v1845 = vunpack.c.h.b16 %v246
  %v1846 = vunpack.c.l.b16 %v247
  %v1847 = vunpack.c.h.b16 %v247
  %v1848 = vunpack.c.l.b16 %v248
  %v1849 = vunpack.c.h.b16 %v248
  %v1850 = vunpack.c.l.b16 %v249
  %v1851 = vunpack.c.h.b16 %v249
  %v1852 = vunpack.c.l.b16 %v250
  %v1853 = vunpack.c.h.b16 %v250
  %v1854 = vunpack.c.l.b16 %v251
  %v1855 = vunpack.c.h.b16 %v251
  %v1856 = vunpack.c.l.b16 %v252
  %v1857 = vunpack.c.h.b16 %v252
  %v1858 = vunpack.c.l.b16 %v253
  %v1859 = vunpack.c.h.b16 %v253
  %v1860 = vunpack.c.l.b16 %v254
  %v1861 = vunpack.c.h.b16 %v254
  %v1862 = vunpack.c.l.b16 %v255
  %v1863 = vunpack.c.h.b16 %v255
  %v1864 = vunpack.c.l.b16 %v256
  %v1865 = vunpack.c.h.b16 %v256
  %v1866 = vunpack.c.l.b16 %v257
  %v1867 = vunpack.c.h.b16 %v257
  %v1868 = vunpack.c.l.b16 %v258
  %v1869 = vunpack.c.h.b16 %v258
  %v1870 = vunpack.c.l.b16 %v259
  %v1871 = vunpack.c.h.b16 %v259
  %v1872 = vunpack.c.l.b16 %v260
  %v1873 = vunpack.c.h.b16 %v260
  %v1874 = vunpack.c.l.b16 %v261
  %v1875 = vunpack.c.h.b16 %v261
  %v1876 = vunpack.c.l.b16 %v262
  %v1877 = vunpack.c.h.b16 %v262
  %v1878 = vunpack.c.l.b16 %v263
  %v1879 = vunpack.c.h.b16 %v263
  %v1880 = vunpack.c.l.b16 %v264
  %v1881 = vunpack.c.h.b16 %v264
  %v1882 = vunpack.c.l.b16 %v265
  %v1883 = vunpack.c.h.b16 %v265
  %v1884 = vunpack.c.l.b16 %v266
  %v1885 = vunpack.c.h.b16 %v266
  %v1886 = vunpack.c.l.b16 %v267
  %v1887 = vunpack.c.h.b16 %v267
  %v1888 = vunpack.c.l.b16 %v268
  %v1889 = vunpack.c.h.b16 %v268
  %v1890 = vunpack.c.l.b16 %v269
  %v1891 = vunpack.c.h.b16 %v269
  %v1892 = vunpack.c.l.b16 %v270
  %v1893 = vunpack.c.h.b16 %v270
  %v1894 = vunpack.c.l.b16 %v271
  %v1895 = vunpack.c.h.b16 %v271
  %v1896 = vunpack.c.l.b16 %v272
  %v1897 = vunpack.c.h.b16 %v272
  %v1898 = vunpack.c.l.b16 %v273
  %v1899 = vunpack.c.h.b16 %v273
  %v1900 = vunpack.c.l.b16 %v274
  %v1901 = vunpack.c.h.b16 %v274
  %v1902 = vpack.c.b16 %v1680, %v1606
  %v1903 = vpack.c.b16 %v1681, %v1607
  %v1904 = vpack.c.b16 %v1682, %v1608
  %v1905 = vpack.c.b16 %v1683, %v1609
  %v1906 = vpack.c.b16 %v1684, %v1610
  %v1907 = vpack.c.b16 %v1685, %v1611
  %v1908 = vpack.c.b16 %v1686, %v1612
  %v1909 = vpack.c.b16 %v1687, %v1613
  %v1910 = vpack.c.b16 %v1688, %v1614
  %v1911 = vpack.c.b16 %v1689, %v1615
  %v1912 = vpack.c.b16 %v1690, %v1616
  %v1913 = vpack.c.b16 %v1691, %v1617
  %v1914 = vpack.c.b16 %v1692, %v1618
  %v1915 = vpack.c.b16 %v1693, %v1619
  %v1916 = vpack.c.b16 %v1694, %v1620
  %v1917 = vpack.c.b16 %v1695, %v1621
  %v1918 = vpack.c.b16 %v1696, %v1622
  %v1919 = vpack.c.b16 %v1697, %v1623
  %v1920 = vpack.c.b16 %v1698, %v1624
  %v1921 = vpack.c.b16 %v1699, %v1625
  %v1922 = vpack.c.b16 %v1700, %v1626
  %v1923 = vpack.c.b16 %v1701, %v1627
  %v1924 = vpack.c.b16 %v1702, %v1628
  %v1925 = vpack.c.b16 %v1703, %v1629
  %v1926 = vpack.c.b16 %v1704, %v1630
  %v1927 = vpack.c.b16 %v1705, %v1631
  %v1928 = vpack.c.b16 %v1706, %v1632
  %v1929 = vpack.c.b16 %v1707, %v1633
  %v1930 = vpack.c.b16 %v1708, %v1634
  %v1931 = vpack.c.b16 %v1709, %v1635
  %v1932 = vpack.c.b16 %v1710, %v1636
  %v1933 = vpack.c.b16 %v1711, %v1637
  %v1934 = vpack.c.b16 %v1712, %v1638
  %v1935 = vpack.c.b16 %v1713, %v1639
  %v1936 = vpack.c.b16 %v1714, %v1640
  %v1937 = vpack.c.b16 %v1715, %v1641
  %v1938 = vpack.c.b16 %v1716, %v1642
  %v1939 = vpack.c.b16 %v1717, %v1643
  %v1940 = vpack.c.b16 %v1718, %v1644
  %v1941 = vpack.c.b16 %v1719, %v1645
  %v1942 = vpack.c.b16 %v1720, %v1646
  %v1943 = vpack.c.b16 %v1721, %v1647
  %v1944 = vpack.c.b16 %v1722, %v1648
  %v1945 = vpack.c.b16 %v1723, %v1649
  %v1946 = vpack.c.b16 %v1724, %v1650
  %v1947 = vpack.c.b16 %v1725, %v1651
  %v1948 = vpack.c.b16 %v1726, %v1652
  %v1949 = vpack.c.b16 %v1727, %v1653
  %v1950 = vpack.c.b16 %v1728, %v1654
  %v1951 = vpack.c.b16 %v1729, %v1655
  %v1952 = vpack.c.b16 %v1730, %v1656
  %v1953 = vpack.c.b16 %v1731, %v1657
  %v1954 = vpack.c.b16 %v1732, %v1658
  %v1955 = vpack.c.b16 %v1733, %v1659
  %v1956 = vpack.c.b16 %v1734, %v1660
  %v1957 = vpack.c.b16 %v1735, %v1661
  %v1958 = vpack.c.b16 %v1736, %v1662
  %v1959 = vpack.c.b16 %v1737, %v1663
  %v1960 = vpack.c.b16 %v1738, %v1664
  %v1961 = vpack.c.b16 %v1739, %v1665
  %v1962 = vpack.c.b16 %v1740, %v1666
  %v1963 = vpack.c.b16 %v1741, %v1667
  %v1964 = vpack.c.b16 %v1742, %v1668
  %v1965 = vpack.c.b16 %v1743, %v1669
  %v1966 = vpack.c.b16 %v1744, %v1670
  %v1967 = vpack.c.b16 %v1745, %v1671
  %v1968 = vpack.c.b16 %v1746, %v1672
  %v1969 = vpack.c.b16 %v1747, %v1673
  %v1970 = vpack.c.b16 %v1748, %v1674
  %v1971 = vpack.c.b16 %v1749, %v1675
  %v1972 = vpack.c.b16 %v1750, %v1676
  %v1973 = vpack.c.b16 %v1751, %v1677
  %v1974 = vpack.c.b16 %v1752, %v1678
  %v1975 = vpack.c.b16 %v1753, %v1679
  %v1976 = vpack.c.b16 %v1828, %v1754
  %v1977 = vpack.c.b16 %v1829, %v1755
  %v1978 = vpack.c.b16 %v1830, %v1756
  %v1979 = vpack.c.b16 %v1831, %v1757
  %v1980 = vpack.c.b16 %v1832, %v1758
  %v1981 = vpack.c.b16 %v1833, %v1759
  %v1982 = vpack.c.b16 %v1834, %v1760
  %v1983 = vpack.c.b16 %v1835, %v1761
  %v1984 = vpack.c.b16 %v1836, %v1762
  %v1985 = vpack.c.b16 %v1837, %v1763
  %v1986 = vpack.c.b16 %v1838, %v1764
  %v1987 = vpack.c.b16 %v1839, %v1765
  %v1988 = vpack.c.b16 %v1840, %v1766
  %v1989 = vpack.c.b16 %v1841, %v1767
  %v1990 = vpack.c.b16 %v1842, %v1768
  %v1991 = vpack.c.b16 %v1843, %v1769
  %v1992 = vpack.c.b16 %v1844, %v1770
  %v1993 = vpack.c.b16 %v1845, %v1771
  %v1994 = vpack.c.b16 %v1846, %v1772
  %v1995 = vpack.c.b16 %v1847, %v1773
  %v1996 = vpack.c.b16 %v1848, %v1774
  %v1997 = vpack.c.b16 %v1849, %v1775
  %v1998 = vpack.c.b16 %v1850, %v1776
  %v1999 = vpack.c.b16 %v1851, %v1777
  %v2000 = vpack.c.b16 %v1852, %v1778
  %v2001 = vpack.c.b16 %v1853, %v1779
  %v2002 = vpack.c.b16 %v1854, %v1780
  %v2003 = vpack.c.b16 %v1855, %v1781
  %v2004 = vpack.c.b16 %v1856, %v1782
  %v2005 = vpack.c.b16 %v1857, %v1783
  %v2006 = vpack.c.b16 %v1858, %v1784
  %v2007 = vpack.c.b16 %v1859, %v1785
  %v2008 = vpack.c.b16 %v1860, %v1786
  %v2009 = vpack.c.b16 %v1861, %v1787
  %v2010 = vpack.c.b16 %v1862, %v1788
  %v2011 = vpack.c.b16 %v1863, %v1789
  %v2012 = vpack.c.b16 %v1864, %v1790
  %v2013 = vpack.c.b16 %v1865, %v1791
  %v2014 = vpack.c.b16 %v1866, %v1792
  %v2015 = vpack.c.b16 %v1867, %v1793
  %v2016 = vpack.c.b16 %v1868, %v1794
  %v2017 = vpack.c.b16 %v1869, %v1795
  %v2018 = vpack.c.b16 %v1870, %v1796
  %v2019 = vpack.c.b16 %v1871, %v1797
  %v2020 = vpack.c.b16 %v1872, %v1798
  %v2021 = vpack.c.b16 %v1873, %v1799
  %v2022 = vpack.c.b16 %v1874, %v1800
  %v2023 = vpack.c.b16 %v1875, %v1801
  %v2024 = vpack.c.b16 %v1876, %v1802
  %v2025 = vpack.c.b16 %v1877, %v1803
  %v2026 = vpack.c.b16 %v1878, %v1804
  %v2027 = vpack.c.b16 %v1879, %v1805
  %v2028 = vpack.c.b16 %v1880, %v1806
  %v2029 = vpack.c.b16 %v1881, %v1807
  %v2030 = vpack.c.b16 %v1882, %v1808
  %v2031 = vpack.c.b16 %v1883, %v1809
  %v2032 = vpack.c.b16 %v1884, %v1810
  %v2033 = vpack.c.b16 %v1885, %v1811
  %v2034 = vpack.c.b16 %v1886, %v1812
  %v2035 = vpack.c.b16 %v1887, %v1813
  %v2036 = vpack.c.b16 %v1888, %v1814
  %v2037 = vpack.c.b16 %v1889, %v1815
  %v2038 = vpack.c.b16 %v1890, %v1816
  %v2039 = vpack.c.b16 %v1891, %v1817
  %v2040 = vpack.c.b16 %v1892, %v1818
  %v2041 = vpack.c.b16 %v1893, %v1819
  %v2042 = vpack.c.b16 %v1894, %v1820
  %v2043 = vpack.c.b16 %v1895, %v1821
  %v2044 = vpack.c.b16 %v1896, %v1822
  %v2045 = vpack.c.b16 %v1897, %v1823
  %v2046 = vpack.c.b16 %v1898, %v1824
  %v2047 = vpack.c.b16 %v1899, %v1825
  %v2048 = vpack.c.b16 %v1900, %v1826
  %v2049 = vpack.c.b16 %v1901, %v1827
  %v3372 = vunpack.c.l.b16 %v275
  %v3373 = vunpack.c.l.b16 %v276
  %v3374 = vunpack.c.l.b16 %v277
  %v3375 = vunpack.c.l.b16 %v278
  %v3376 = vunpack.c.l.b16 %v279
  %v3377 = vunpack.c.l.b16 %v280
  %v3378 = vunpack.c.l.b16 %v281
  %v3379 = vunpack.c.l.b16 %v282
  %v3380 = vunpack.c.l.b16 %v283
  %v3381 = vunpack.c.l.b16 %v284
  %v3382 = vunpack.c.l.b16 %v285
  %v3383 = vunpack.c.l.b16 %v286
  %v3384 = vunpack.c.l.b16 %v287
  %v3385 = vunpack.c.l.b16 %v288
  %v3386 = vunpack.c.l.b16 %v289
  %v3387 = vunpack.c.l.b16 %v290
  %v3388 = vunpack.c.l.b16 %v291
  %v3389 = vunpack.c.l.b16 %v292
  %v3390 = vunpack.c.l.b16 %v293
  %v3391 = vunpack.c.l.b16 %v294
  %v3392 = vunpack.c.l.b16 %v295
  %v3393 = vunpack.c.l.b16 %v296
  %v3394 = vunpack.c.l.b16 %v297
  %v3395 = vunpack.c.l.b16 %v298
  %v3396 = vunpack.c.l.b16 %v299
  %v3397 = vunpack.c.l.b16 %v300
  %v3398 = vunpack.c.l.b16 %v301
  %v3399 = vunpack.c.l.b16 %v302
  %v3400 = vunpack.c.l.b16 %v303
  %v3401 = vunpack.c.l.b16 %v304
  %v3402 = vunpack.c.l.b16 %v305
  %v3403 = vunpack.c.l.b16 %v306
  %v3404 = vunpack.c.l.b16 %v307
  %v3405 = vunpack.c.l.b16 %v308
  %v3406 = vunpack.c.l.b16 %v309
  %v3407 = vunpack.c.l.b16 %v310
  %v3408 = vunpack.c.l.b16 %v311
  %v3409 = vunpack.c.l.b16 %v312
  %v3410 = vunpack.c.l.b16 %v313
  %v3411 = vunpack.c.l.b16 %v314
  %v3412 = vunpack.c.l.b16 %v315
  %v3413 = vunpack.c.l.b16 %v316
  %v3414 = vunpack.c.l.b16 %v317
  %v3415 = vunpack.c.l.b16 %v318
  %v3416 = vunpack.c.l.b16 %v319
  %v3417 = vunpack.c.l.b16 %v320
  %v3418 = vunpack.c.l.b16 %v321
  %v3419 = vunpack.c.l.b16 %v322
  %v3420 = vunpack.c.l.b16 %v323
  %v3421 = vunpack.c.l.b16 %v324
  %v3422 = vunpack.c.l.b16 %v325
  %v3423 = vunpack.c.l.b16 %v326
  %v3424 = vunpack.c.l.b16 %v327
  %v3425 = vunpack.c.l.b16 %v328
  %v3426 = vunpack.c.l.b16 %v329
  %v3427 = vunpack.c.l.b16 %v330
  %v3428 = vunpack.c.l.b16 %v331
  %v3429 = vunpack.c.l.b16 %v332
  %v3430 = vunpack.c.l.b16 %v333
  %v3431 = vunpack.c.l.b16 %v334
  %v3432 = vunpack.c.l.b16 %v335
  %v3433 = vunpack.c.l.b16 %v336
  %v3434 = vunpack.c.l.b16 %v337
  %v3435 = vunpack.c.l.b16 %v338
  %v3436 = vunpack.c.l.b16 %v339
  %v3437 = vunpack.c.l.b16 %v340
  %v3438 = vunpack.c.l.b16 %v341
  %v3439 = vunpack.c.l.b16 %v342
  %v3440 = vunpack.c.l.b16 %v343
  %v3441 = vunpack.c.l.b16 %v344
  %v3442 = vunpack.c.l.b16 %v345
  %v3443 = vunpack.c.l.b16 %v346
  %v3444 = vunpack.c.l.b16 %v347
  %v3445 = vunpack.c.l.b16 %v348
  %v3446 = vunpack.c.l.b16 %v349
  %v3447 = vunpack.c.l.b16 %v350
  %v3448 = vunpack.c.l.b16 %v351
  %v3449 = vunpack.c.l.b16 %v352
  %v3450 = vunpack.c.l.b16 %v353
  %v3451 = vunpack.c.l.b16 %v354
  %v3452 = vunpack.c.l.b16 %v355
  %v3453 = vunpack.c.l.b16 %v356
  %v3454 = vunpack.c.l.b16 %v357
  %v3455 = vunpack.c.l.b16 %v358
  %v3456 = vunpack.c.l.b16 %v359
  %v3457 = vunpack.c.l.b16 %v360
  %v3458 = vunpack.c.l.b16 %v361
  %v3459 = vunpack.c.l.b16 %v362
  %v3460 = vunpack.c.l.b16 %v363
  %v3461 = vunpack.c.l.b16 %v364
  %v3462 = vunpack.c.l.b16 %v365
  %v3463 = vunpack.c.l.b16 %v366
  %v3464 = vunpack.c.l.b16 %v367
  %v3465 = vunpack.c.l.b16 %v368
  %v3466 = vunpack.c.l.b16 %v369
  %v3467 = vunpack.c.l.b16 %v370
  %v3468 = vunpack.c.l.b16 %v371
  %v3469 = vunpack.c.l.b16 %v372
  %v3470 = vunpack.c.l.b16 %v373
  %v3471 = vunpack.c.l.b16 %v374
  %v3472 = vunpack.c.l.b16 %v375
  %v3473 = vunpack.c.l.b16 %v376
  %v3474 = vunpack.c.l.b16 %v377
  %v3475 = vunpack.c.l.b16 %v378
  %v3476 = vunpack.c.l.b16 %v379
  %v3477 = vunpack.c.l.b16 %v380
  %v3478 = vunpack.c.l.b16 %v381
  %v3479 = vunpack.c.l.b16 %v382
  %v3480 = vunpack.c.l.b16 %v383
  %v3481 = vunpack.c.l.b16 %v384
  %v3482 = vunpack.c.l.b16 %v385
  %v3483 = vunpack.c.l.b16 %v386
  %v3484 = vunpack.c.l.b16 %v387
  %v3485 = vunpack.c.l.b16 %v388
  %v3486 = vunpack.c.l.b16 %v389
  %v3487 = vunpack.c.l.b16 %v390
  %v3488 = vunpack.c.l.b16 %v391
  %v3489 = vunpack.c.l.b16 %v392
  %v3490 = vunpack.c.l.b16 %v393
  %v3491 = vunpack.c.l.b16 %v394
  %v3492 = vunpack.c.l.b16 %v395
  %v3493 = vunpack.c.l.b16 %v396
  %v3494 = vunpack.c.l.b16 %v397
  %v3495 = vunpack.c.l.b16 %v398
  %v3496 = vunpack.c.l.b16 %v399
  %v3497 = vunpack.c.l.b16 %v400
  %v3498 = vunpack.c.l.b16 %v401
  %v3499 = vunpack.c.l.b16 %v402
  %v3500 = vunpack.c.l.b16 %v403
  %v3501 = vunpack.c.l.b16 %v404
  %v3502 = vunpack.c.l.b16 %v405
  %v3503 = vunpack.c.l.b16 %v406
  %v3504 = vunpack.c.l.b16 %v407
  %v3505 = vunpack.c.l.b16 %v408
  %v3506 = vunpack.c.l.b16 %v409
  %v3507 = vunpack.c.l.b16 %v410
  %v3508 = vunpack.c.l.b16 %v411
  %v3509 = vunpack.c.l.b16 %v412
  %v3510 = vunpack.c.l.b16 %v413
  %v3511 = vunpack.c.l.b16 %v414
  %v3512 = vunpack.c.l.b16 %v415
  %v3513 = vunpack.c.l.b16 %v416
  %v3514 = vunpack.c.l.b16 %v417
  %v3515 = vunpack.c.l.b16 %v418
  %v3516 = vunpack.c.l.b16 %v419
  %v3517 = vunpack.c.l.b16 %v420
  %v3518 = vunpack.c.l.b16 %v421
  %v3519 = vunpack.c.l.b16 %v422
  %v3520 = vunpack.c.l.b16 %v423
  %v3521 = vunpack.c.l.b16 %v424
  %v3522 = vunpack.c.l.b16 %v425
  %v3523 = vunpack.c.l.b16 %v426
  %v3524 = vunpack.c.l.b16 %v427
  %v3525 = vunpack.c.l.b16 %v428
  %v3526 = vunpack.c.l.b16 %v429
  %v3527 = vunpack.c.l.b16 %v430
  %v3528 = vunpack.c.l.b16 %v431
  %v3529 = vunpack.c.l.b16 %v432
  %v3530 = vunpack.c.l.b16 %v433
  %v3531 = vunpack.c.l.b16 %v434
  %v3532 = vunpack.c.l.b16 %v435
  %v3533 = vunpack.c.l.b16 %v436
  %v3534 = vunpack.c.l.b16 %v437
  %v3535 = vunpack.c.l.b16 %v438
  %v3536 = vunpack.c.l.b16 %v439
  %v3537 = vunpack.c.l.b16 %v440
  %v3538 = vunpack.c.l.b16 %v441
  %v3539 = vunpack.c.l.b16 %v442
  %v3540 = vunpack.c.l.b16 %v443
  %v3541 = vunpack.c.l.b16 %v444
  %v3542 = vunpack.c.l.b16 %v445
  %v3543 = vunpack.c.l.b16 %v446
  %v3544 = vunpack.c.l.b16 %v447
  %v3545 = vunpack.c.l.b16 %v448
  %v3546 = vunpack.c.l.b16 %v449
  %v3547 = vunpack.c.l.b16 %v450
  %v3548 = vunpack.c.l.b16 %v451
  %v3549 = vunpack.c.l.b16 %v452
  %v3550 = vunpack.c.l.b16 %v453
  %v3551 = vunpack.c.l.b16 %v454
  %v3552 = vunpack.c.l.b16 %v455
  %v3553 = vunpack.c.l.b16 %v456
  %v3554 = vunpack.c.l.b16 %v457
  %v3555 = vunpack.c.l.b16 %v458
  %v3556 = vunpack.c.l.b16 %v459
  %v3557 = vunpack.c.l.b16 %v460
  %v3558 = vunpack.c.l.b16 %v461
  %v3559 = vunpack.c.l.b16 %v462
  %v3560 = vunpack.c.l.b16 %v463
  %v3561 = vunpack.c.l.b16 %v464
  %v3562 = vunpack.c.l.b16 %v465
  %v3563 = vunpack.c.l.b16 %v466
  %v3564 = vunpack.c.l.b16 %v467
  %v3565 = vunpack.c.l.b16 %v468
  %v3566 = vunpack.c.l.b16 %v469
  %v3567 = vunpack.c.l.b16 %v470
  %v3568 = vunpack.c.l.b16 %v471
  %v3569 = vunpack.c.l.b16 %v472
  %v3570 = vunpack.c.l.b16 %v473
  %v3571 = vunpack.c.l.b16 %v474
  %v3572 = vunpack.c.l.b16 %v475
  %v3573 = vunpack.c.l.b16 %v476
  %v3574 = vunpack.c.l.b16 %v477
  %v3575 = vunpack.c.l.b16 %v478
  %v3576 = vunpack.c.l.b16 %v479
  %v3577 = vunpack.c.l.b16 %v480
  %v3578 = vunpack.c.l.b16 %v481
  %v3579 = vunpack.c.l.b16 %v482
  %v3580 = vunpack.c.l.b16 %v483
  %v3581 = vunpack.c.l.b16 %v484
  %v3582 = vunpack.c.l.b16 %v485
  %v3583 = vunpack.c.l.b16 %v486
  %v3584 = vunpack.c.l.b16 %v487
  %v3585 = vunpack.c.l.b16 %v488
  %v3586 = vunpack.c.l.b16 %v489
  %v3587 = vunpack.c.l.b16 %v490
  %v3588 = vunpack.c.l.b16 %v491
  %v3589 = vunpack.c.l.b16 %v492
  %v3590 = vunpack.c.l.b16 %v493
  %v3591 = vunpack.c.l.b16 %v494
  %v3592 = vunpack.c.l.b16 %v495
  %v3593 = vunpack.c.l.b16 %v496
  %v3594 = vunpack.c.l.b16 %v497
  %v3595 = vunpack.c.l.b16 %v498
  %v3596 = vunpack.c.l.b16 %v499
  %v3597 = vunpack.c.l.b16 %v500
  %v3598 = vunpack.c.l.b16 %v501
  %v3599 = vunpack.c.l.b16 %v502
  %v3600 = vunpack.c.l.b16 %v503
  %v3601 = vunpack.c.l.b16 %v504
  %v3602 = vunpack.c.l.b16 %v505
  %v3603 = vunpack.c.l.b16 %v506
  %v3604 = vunpack.c.l.b16 %v507
  %v3605 = vunpack.c.l.b16 %v508
  %v3606 = vunpack.c.l.b16 %v509
  %v3607 = vunpack.c.l.b16 %v510
  %v3608 = vunpack.c.l.b16 %v511
  %v3609 = vunpack.c.l.b16 %v512
  %v3610 = vunpack.c.l.b16 %v513
  %v3611 = vunpack.c.l.b16 %v514
  %v3612 = vunpack.c.l.b16 %v515
  %v3613 = vunpack.c.l.b16 %v516
  %v3614 = vunpack.c.l.b16 %v517
  %v3615 = vunpack.c.l.b16 %v518
  %v3616 = vunpack.c.l.b16 %v519
  %v3617 = vunpack.c.l.b16 %v520
  %v3618 = vunpack.c.l.b16 %v521
  %v3619 = vunpack.c.l.b16 %v522
  %v3620 = vunpack.c.l.b16 %v523
  %v3621 = vunpack.c.l.b16 %v524
  %v3622 = vunpack.c.l.b16 %v525
  %v3623 = vunpack.c.l.b16 %v526
  %v3624 = vunpack.c.l.b16 %v527
  %v3625 = vunpack.c.l.b16 %v528
  %v3626 = vunpack.c.l.b16 %v529
  %v3627 = vunpack.c.l.b16 %v530
  %v3628 = vunpack.c.l.b16 %v531
  %v3629 = vunpack.c.l.b16 %v532
  %v3630 = vunpack.c.l.b16 %v533
  %v3631 = vunpack.c.l.b16 %v534
  %v3632 = vunpack.c.l.b16 %v535
  %v3633 = vunpack.c.l.b16 %v536
  %v3634 = vunpack.c.l.b16 %v537
  %v3635 = vunpack.c.l.b16 %v538
  %v3636 = vunpack.c.l.b16 %v539
  %v3637 = vunpack.c.l.b16 %v540
  %v3638 = vunpack.c.l.b16 %v541
  %v3639 = vunpack.c.l.b16 %v542
  %v3640 = vunpack.c.l.b16 %v543
  %v3641 = vunpack.c.l.b16 %v544
  %v3642 = vunpack.c.l.b16 %v545
  %v3643 = vunpack.c.l.b16 %v546
  %v3644 = vunpack.c.l.b16 %v547
  %v3645 = vunpack.c.l.b16 %v548
  %v3646 = vunpack.c.l.b16 %v549
  %v3647 = vunpack.c.l.b16 %v550
  %v3648 = vunpack.c.l.b16 %v551
  %v3649 = vunpack.c.l.b16 %v552
  %v3650 = vunpack.c.l.b16 %v553
  %v3651 = vunpack.c.l.b16 %v554
  %v3652 = vunpack.c.l.b16 %v555
  %v3653 = vunpack.c.l.b16 %v556
  %v3654 = vunpack.c.l.b16 %v557
  %v3655 = vunpack.c.l.b16 %v558
  %v3656 = vunpack.c.l.b16 %v559
  %v3657 = vunpack.c.l.b16 %v560
  %v3658 = vunpack.c.l.b16 %v561
  %v3659 = vunpack.c.l.b16 %v562
  %v3660 = vunpack.c.l.b16 %v563
  %v3661 = vunpack.c.l.b16 %v564
  %v3662 = vunpack.c.l.b16 %v565
  %v3663 = vunpack.c.l.b16 %v566
  %v3664 = vunpack.c.l.b16 %v567
  %v3665 = vunpack.c.l.b16 %v568
  %v3666 = vunpack.c.l.b16 %v569
  %v3667 = vunpack.c.l.b16 %v570
  %v3668 = vunpack.c.l.b16 %v571
  %v3669 = vunpack.c.l.b16 %v572
  %v3670 = vunpack.c.l.b16 %v573
  %v3671 = vunpack.c.l.b16 %v574
  %v3672 = vunpack.c.l.b16 %v575
  %v3673 = vunpack.c.l.b16 %v576
  %v3674 = vunpack.c.l.b16 %v577
  %v3675 = vunpack.c.l.b16 %v578
  %v3676 = vunpack.c.l.b16 %v579
  %v3677 = vunpack.c.l.b16 %v580
  %v3678 = vunpack.c.l.b16 %v581
  %v3679 = vunpack.c.l.b16 %v582
  %v3680 = vunpack.c.l.b16 %v583
  %v3681 = vunpack.c.l.b16 %v584
  %v3682 = vunpack.c.l.b16 %v585
  %v3683 = vunpack.c.l.b16 %v586
  %v3684 = vunpack.c.l.b16 %v587
  %v3685 = vunpack.c.l.b16 %v588
  %v3686 = vunpack.c.l.b16 %v589
  %v3687 = vunpack.c.l.b16 %v590
  %v3688 = vunpack.c.l.b16 %v591
  %v3689 = vunpack.c.l.b16 %v592
  %v3690 = vunpack.c.l.b16 %v593
  %v3691 = vunpack.c.l.b16 %v594
  %v3692 = vunpack.c.l.b16 %v595
  %v3693 = vunpack.c.l.b16 %v596
  %v3694 = vunpack.c.l.b16 %v597
  %v3695 = vunpack.c.l.b16 %v598
  %v3696 = vunpack.c.l.b16 %v599
  %v3697 = vunpack.c.l.b16 %v600
  %v3698 = vunpack.c.l.b16 %v601
  %v3699 = vunpack.c.l.b16 %v602
  %v3700 = vunpack.c.l.b16 %v603
  %v3701 = vunpack.c.l.b16 %v604
  %v3702 = vunpack.c.l.b16 %v605
  %v3703 = vunpack.c.l.b16 %v606
  %v3704 = vunpack.c.l.b16 %v607
  %v3705 = vunpack.c.l.b16 %v608
  %v3706 = vunpack.c.l.b16 %v609
  %v3707 = vunpack.c.l.b16 %v610
  %v3708 = vunpack.c.l.b16 %v611
  %v3709 = vunpack.c.l.b16 %v612
  %v3710 = vunpack.c.l.b16 %v613
  %v3711 = vunpack.c.l.b16 %v614
  %v3712 = vunpack.c.l.b16 %v615
  %v3713 = vunpack.c.l.b16 %v616
  %v3714 = vunpack.c.l.b16 %v617
  %v3715 = vunpack.c.l.b16 %v618
  %v3716 = vunpack.c.l.b16 %v619
  %v3717 = vunpack.c.l.b16 %v620
  %v3718 = vunpack.c.l.b16 %v621
  %v3719 = vunpack.c.l.b16 %v622
  %v3720 = vunpack.c.l.b16 %v623
  %v3721 = vunpack.c.l.b16 %v624
  %v3722 = vunpack.c.l.b16 %v625
  %v3723 = vunpack.c.l.b16 %v626
  %v3724 = vunpack.c.l.b16 %v627
  %v3725 = vunpack.c.l.b16 %v628
  %v3726 = vunpack.c.l.b16 %v629
  %v3727 = vunpack.c.l.b16 %v630
  %v3728 = vunpack.c.l.b16 %v631
  %v3729 = vunpack.c.l.b16 %v632
  %v3730 = vunpack.c.l.b16 %v633
  %v3731 = vunpack.c.l.b16 %v634
  %v3732 = vunpack.c.l.b16 %v635
  %v3733 = vunpack.c.l.b16 %v636
  %v3734 = vunpack.c.l.b16 %v637
  %v3735 = vunpack.c.l.b16 %v638
  %v3736 = vunpack.c.l.b16 %v639
  %v3737 = vunpack.c.l.b16 %v640
  %v3738 = vunpack.c.l.b16 %v641
  %v3739 = vunpack.c.l.b16 %v642
  %v3740 = vunpack.c.l.b16 %v643
  %v3741 = vunpack.c.l.b16 %v644
  %v3742 = vunpack.c.l.b16 %v645
  %v3743 = vunpack.c.l.b16 %v646
  %v3744 = vunpack.c.l.b16 %v647
  %v3745 = vunpack.c.l.b16 %v648
  %v3746 = vunpack.c.l.b16 %v649
  %v3747 = vunpack.c.l.b16 %v650
  %v3748 = vunpack.c.l.b16 %v651
  %v3749 = vunpack.c.l.b16 %v652
  %v3750 = vunpack.c.l.b16 %v653
  %v3751 = vunpack.c.l.b16 %v654
  %v3752 = vunpack.c.l.b16 %v655
  %v3753 = vunpack.c.l.b16 %v656
  %v3754 = vunpack.c.l.b16 %v657
  %v3755 = vunpack.c.l.b16 %v658
  %v3756 = vunpack.c.l.b16 %v659
  %v3757 = vunpack.c.l.b16 %v660
  %v3758 = vunpack.c.l.b16 %v661
  %v3759 = vunpack.c.l.b16 %v662
  %v3760 = vunpack.c.l.b16 %v663
  %v3761 = vunpack.c.l.b16 %v664
  %v3762 = vunpack.c.l.b16 %v665
  %v3763 = vunpack.c.l.b16 %v666
  %v3764 = vunpack.c.l.b16 %v667
  %v3765 = vunpack.c.l.b16 %v668
  %v3766 = vunpack.c.l.b16 %v669
  %v3767 = vunpack.c.l.b16 %v670
  %v3768 = vunpack.c.l.b16 %v671
  %v3769 = vunpack.c.l.b16 %v672
  %v3770 = vunpack.c.l.b16 %v673
  %v3771 = vunpack.c.l.b16 %v674
  %v3772 = vunpack.c.l.b16 %v675
  %v3773 = vunpack.c.l.b16 %v676
  %v3774 = vunpack.c.l.b16 %v677
  %v3775 = vunpack.c.l.b16 %v678
  %v3776 = vunpack.c.l.b16 %v679
  %v3777 = vunpack.c.l.b16 %v680
  %v3778 = vunpack.c.l.b16 %v681
  %v3779 = vunpack.c.l.b16 %v682
  %v3780 = vunpack.c.l.b16 %v683
  %v3781 = vunpack.c.l.b16 %v684
  %v3782 = vunpack.c.l.b16 %v685
  %v3783 = vunpack.c.l.b16 %v686
  %v3784 = vunpack.c.l.b16 %v687
  %v3785 = vunpack.c.l.b16 %v688
  %v3786 = vunpack.c.l.b16 %v689
  %v3787 = vunpack.c.l.b16 %v690
  %v3788 = vunpack.c.l.b16 %v691
  %v3789 = vunpack.c.l.b16 %v692
  %v3790 = vunpack.c.l.b16 %v693
  %v3791 = vunpack.c.l.b16 %v694
  %v3792 = vunpack.c.l.b16 %v695
  %v3793 = vunpack.c.l.b16 %v696
  %v3794 = vunpack.c.l.b16 %v697
  %v3795 = vunpack.c.l.b16 %v698
  %v3796 = vunpack.c.l.b16 %v699
  %v3797 = vunpack.c.l.b16 %v700
  %v3798 = vunpack.c.l.b16 %v701
  %v3799 = vunpack.c.l.b16 %v702
  %v3800 = vunpack.c.l.b16 %v703
  %v3801 = vunpack.c.l.b16 %v704
  %v3802 = vunpack.c.l.b16 %v705
  %v3803 = vunpack.c.l.b16 %v706
  %v3804 = vunpack.c.l.b16 %v707
  %v3805 = vunpack.c.l.b16 %v708
  %v3806 = vunpack.c.l.b16 %v709
  %v3807 = vunpack.c.l.b16 %v710
  %v3808 = vunpack.c.l.b16 %v711
  %v3809 = vunpack.c.l.b16 %v712
  %v3810 = vunpack.c.l.b16 %v713
  %v3811 = vunpack.c.l.b16 %v714
  %v3812 = vunpack.c.l.b16 %v715
  %v3813 = vunpack.c.l.b16 %v716
  %v3814 = vunpack.c.l.b16 %v717
  %v3815 = vunpack.c.l.b16 %v718
  %v3816 = vunpack.c.l.b16 %v719
  %v3817 = vunpack.c.l.b16 %v720
  %v3818 = vunpack.c.l.b16 %v721
  %v3819 = vunpack.c.l.b16 %v722
  %v3820 = vunpack.c.l.b16 %v723
  %v3821 = vunpack.c.l.b16 %v724
  %v3822 = vunpack.c.l.b16 %v725
  %v3823 = vunpack.c.l.b16 %v726
  %v3824 = vunpack.c.l.b16 %v727
  %v3825 = vunpack.c.l.b16 %v728
  %v3826 = vunpack.c.l.b16 %v729
  %v3827 = vunpack.c.l.b16 %v730
  %v3828 = vunpack.c.l.b16 %v731
  %v3829 = vunpack.c.l.b16 %v732
  %v3830 = vunpack.c.l.b16 %v733
  %v3831 = vunpack.c.l.b16 %v734
  %v3832 = vunpack.c.l.b16 %v735
  %v3833 = vunpack.c.l.b16 %v736
  %v3834 = vunpack.c.l.b16 %v737
  %v3835 = vunpack.c.l.b16 %v738
  %v3836 = vunpack.c.l.b16 %v739
  %v3837 = vunpack.c.l.b16 %v740
  %v3838 = vunpack.c.l.b16 %v741
  %v3839 = vunpack.c.l.b16 %v742
  %v3840 = vunpack.c.l.b16 %v743
  %v3841 = vunpack.c.l.b16 %v744
  %v3842 = vunpack.c.l.b16 %v745
  %v3843 = vunpack.c.l.b16 %v746
  %v3844 = vunpack.c.l.b16 %v747
  %v3845 = vunpack.c.l.b16 %v748
  %v3846 = vunpack.c.l.b16 %v749
  %v3847 = vunpack.c.l.b16 %v750
  %v3848 = vunpack.c.l.b16 %v751
  %v3849 = vunpack.c.l.b16 %v752
  %v3850 = vunpack.c.l.b16 %v753
  %v3851 = vunpack.c.l.b16 %v754
  %v3852 = vunpack.c.l.b16 %v755
  %v3853 = vunpack.c.l.b16 %v756
  %v3854 = vunpack.c.l.b16 %v757
  %v3855 = vunpack.c.l.b16 %v758
  %v3856 = vunpack.c.l.b16 %v759
  %v3857 = vunpack.c.l.b16 %v760
  %v3858 = vunpack.c.l.b16 %v761
  %v3859 = vunpack.c.l.b16 %v762
  %v3860 = vunpack.c.l.b16 %v763
  %v3861 = vunpack.c.l.b16 %v764
  %v3862 = vunpack.c.l.b16 %v765
  %v3863 = vunpack.c.l.b16 %v766
  %v3864 = vunpack.c.l.b16 %v767
  %v3865 = vunpack.c.l.b16 %v768
  %v3866 = vunpack.c.l.b16 %v769
  %v3867 = vunpack.c.l.b16 %v770
  %v3868 = vunpack.c.l.b16 %v771
  %v3869 = vunpack.c.l.b16 %v772
  %v3870 = vunpack.c.l.b16 %v773
  %v3871 = vunpack.c.l.b16 %v774
  %v3872 = vunpack.c.l.b16 %v775
  %v3873 = vunpack.c.l.b16 %v776
  %v3874 = vunpack.c.l.b16 %v777
  %v3875 = vunpack.c.l.b16 %v778
  %v3876 = vunpack.c.l.b16 %v779
  %v3877 = vunpack.c.l.b16 %v780
  %v3878 = vunpack.c.l.b16 %v781
  %v3879 = vunpack.c.l.b16 %v782
  %v3880 = vunpack.c.l.b16 %v783
  %v3881 = vunpack.c.l.b16 %v784
  %v3882 = vunpack.c.l.b16 %v785
  %v3883 = vunpack.c.l.b16 %v786
  %v3884 = vunpack.c.l.b16 %v787
  %v3885 = vunpack.c.l.b16 %v788
  %v3886 = vunpack.c.l.b16 %v789
  %v3887 = vunpack.c.l.b16 %v790
  %v3888 = vunpack.c.l.b16 %v791
  %v3889 = vunpack.c.l.b16 %v792
  %v3890 = vunpack.c.l.b16 %v793
  %v3891 = vunpack.c.l.b16 %v794
  %v3892 = vunpack.c.l.b16 %v795
  %v3893 = vunpack.c.l.b16 %v796
  %v3894 = vunpack.c.l.b16 %v797
  %v3895 = vunpack.c.l.b16 %v798
  %v3896 = vunpack.c.l.b16 %v799
  %v3897 = vunpack.c.l.b16 %v800
  %v3898 = vunpack.c.l.b16 %v801
  %v3899 = vunpack.c.l.b16 %v802
  %v3900 = vunpack.c.l.b16 %v803
  %v3901 = vunpack.c.l.b16 %v804
  %v3902 = vunpack.c.l.b16 %v805
  %v3903 = vunpack.c.l.b16 %v806
  %v3904 = vunpack.c.l.b16 %v807
  %v3905 = vunpack.c.l.b16 %v808
  %v3906 = vunpack.c.l.b16 %v809
  %v3907 = vunpack.c.l.b16 %v810
  %v3908 = vunpack.c.l.b16 %v811
  %v3909 = vunpack.c.l.b16 %v812
  %v3910 = vunpack.c.l.b16 %v813
  %v3911 = vunpack.c.l.b16 %v814
  %v3912 = vunpack.c.l.b16 %v815
  %v3913 = vunpack.c.l.b16 %v816
  %v3914 = vunpack.c.l.b16 %v817
  %v3915 = vunpack.c.l.b16 %v818
  %v3916 = vunpack.c.l.b16 %v819
  %v3917 = vunpack.c.l.b16 %v820
  %v3918 = vunpack.c.l.b16 %v821
  %v3919 = vunpack.c.l.b16 %v822
  %v3920 = vunpack.c.l.b16 %v823
  %v3921 = vunpack.c.l.b16 %v824
  %v3922 = vunpack.c.l.b16 %v825
  %v3923 = vunpack.c.l.b16 %v826
  %v3924 = vunpack.c.l.b16 %v827
  %v3925 = vunpack.c.l.b16 %v828
  %v3926 = vunpack.c.l.b16 %v829
  %v3927 = vunpack.c.l.b16 %v830
  %v3928 = vunpack.c.l.b16 %v831
  %v3929 = vunpack.c.l.b16 %v832
  %v3930 = vunpack.c.l.b16 %v833
  %v3931 = vunpack.c.l.b16 %v834
  %v3932 = vunpack.c.l.b16 %v835
  %v3933 = vunpack.c.l.b16 %v836
  %v3934 = vunpack.c.l.b16 %v837
  %v3935 = vunpack.c.l.b16 %v838
  %v3936 = vunpack.c.l.b16 %v839
  %v3937 = vunpack.c.l.b16 %v840
  %v3938 = vunpack.c.l.b16 %v841
  %v3939 = vunpack.c.l.b16 %v842
  %v3940 = vunpack.c.l.b16 %v843
  %v3941 = vunpack.c.l.b16 %v844
  %v3942 = vunpack.c.l.b16 %v845
  %v3943 = vunpack.c.l.b16 %v846
  %v3944 = vunpack.c.l.b16 %v847
  %v3945 = vunpack.c.l.b16 %v848
  %v3946 = vunpack.c.l.b16 %v849
  %v3947 = vunpack.c.l.b16 %v850
  %v3948 = vunpack.c.l.b16 %v851
  %v3949 = vunpack.c.l.b16 %v852
  %v3950 = vunpack.c.l.b16 %v853
  %v3951 = vunpack.c.l.b16 %v854
  %v3952 = vunpack.c.l.b16 %v855
  %v3953 = vunpack.c.l.b16 %v856
  %v3954 = vunpack.c.l.b16 %v857
  %v3955 = vunpack.c.l.b16 %v858
  %v3956 = vunpack.c.l.b16 %v859
  %v3957 = vunpack.c.l.b16 %v860
  %v3958 = vunpack.c.l.b16 %v861
  %v3959 = vunpack.c.l.b16 %v862
  %v3960 = vunpack.c.l.b16 %v863
  %v3961 = vunpack.c.l.b16 %v864
  %v3962 = vunpack.c.l.b16 %v865
  %v3963 = vunpack.c.l.b16 %v866
  %v3964 = vunpack.c.l.b16 %v867
  %v3965 = vunpack.c.l.b16 %v868
  %v3966 = vunpack.c.l.b16 %v869
  %v3967 = vunpack.c.l.b16 %v870
  %v3968 = vunpack.c.l.b16 %v871
  %v3969 = vunpack.c.l.b16 %v872
  %v3970 = vunpack.c.l.b16 %v873
  %v3971 = vunpack.c.l.b16 %v874
  %v3972 = vunpack.c.l.b16 %v875
  %v3973 = vunpack.c.l.b16 %v876
  %v3974 = vunpack.c.l.b16 %v877
  %v3975 = vunpack.c.l.b16 %v878
  %v3976 = vunpack.c.l.b16 %v879
  %v3977 = vunpack.c.l.b16 %v880
  %v3978 = vunpack.c.l.b16 %v881
  %v3979 = vunpack.c.l.b16 %v882
  %v3980 = vunpack.c.l.b16 %v883
  %v3981 = vunpack.c.l.b16 %v884
  %v3982 = vunpack.c.l.b16 %v885
  %v3983 = vunpack.c.l.b16 %v886
  %v3984 = vunpack.c.l.b16 %v887
  %v3985 = vunpack.c.l.b16 %v888
  %v3986 = vunpack.c.l.b16 %v889
  %v3987 = vunpack.c.l.b16 %v890
  %v3988 = vunpack.c.l.b16 %v891
  %v3989 = vunpack.c.l.b16 %v892
  %v3990 = vunpack.c.l.b16 %v893
  %v3991 = vunpack.c.l.b16 %v894
  %v3992 = vunpack.c.l.b16 %v895
  %v3993 = vunpack.c.l.b16 %v896
  %v3994 = vunpack.c.l.b16 %v897
  %v3995 = vunpack.c.l.b16 %v898
  %v3996 = vunpack.c.l.b16 %v899
  %v3997 = vunpack.c.l.b16 %v900
  %v3998 = vunpack.c.l.b16 %v901
  %v3999 = vunpack.c.l.b16 %v902
  %v4000 = vunpack.c.l.b16 %v903
  %v4001 = vunpack.c.l.b16 %v904
  %v4002 = vunpack.c.l.b16 %v905
  %v4003 = vunpack.c.l.b16 %v906
  %v4004 = vunpack.c.l.b16 %v907
  %v4005 = vunpack.c.l.b16 %v908
  %v4006 = vunpack.c.l.b16 %v909
  %v4007 = vunpack.c.l.b16 %v910
  %v4008 = vunpack.c.l.b16 %v911
  %v4009 = vunpack.c.l.b16 %v912
  %v4010 = vunpack.c.l.b16 %v913
  %v4011 = vunpack.c.l.b16 %v914
  %v4012 = vunpack.c.l.b16 %v915
  %v4013 = vunpack.c.l.b16 %v916
  %v4014 = vunpack.c.l.b16 %v917
  %v4015 = vunpack.c.l.b16 %v918
  %v4016 = vunpack.c.l.b16 %v919
  %v4017 = vunpack.c.l.b16 %v920
  %v4018 = vunpack.c.l.b16 %v921
  %v4019 = vunpack.c.l.b16 %v922
  %v4020 = vunpack.c.l.b16 %v923
  %v4021 = vunpack.c.l.b16 %v924
  %v4022 = vunpack.c.l.b16 %v925
  %v4023 = vunpack.c.l.b16 %v926
  %v4024 = vunpack.c.l.b16 %v927
  %v4025 = vunpack.c.l.b16 %v928
  %v4026 = vunpack.c.l.b16 %v929
  %v4027 = vunpack.c.l.b16 %v930
  %v4028 = vunpack.c.l.b16 %v931
  %v4029 = vunpack.c.l.b16 %v932
  %v4030 = vunpack.c.l.b16 %v933
  %v4031 = vunpack.c.l.b16 %v934
  %v4032 = vunpack.c.l.b16 %v935
  %v4033 = vunpack.c.l.b16 %v936
  %v4034 = vunpack.c.l.b16 %v937
  %v4035 = vunpack.c.l.b16 %v938
  %v4036 = vunpack.c.l.b16 %v939
  %v4037 = vunpack.c.l.b16 %v940
  %v4038 = vunpack.c.l.b16 %v941
  %v4039 = vunpack.c.l.b16 %v942
  %v4040 = vunpack.c.l.b16 %v943
  %v4041 = vunpack.c.l.b16 %v944
  %v4042 = vunpack.c.l.b16 %v945
  %v4043 = vunpack.c.l.b16 %v946
  %v4044 = vunpack.c.l.b16 %v947
  %v4045 = vunpack.c.l.b16 %v948
  %v4046 = vunpack.c.l.b16 %v949
  %v4047 = vunpack.c.l.b16 %v950
  %v4048 = vunpack.c.l.b16 %v951
  %v4049 = vunpack.c.l.b16 %v952
  %v4050 = vunpack.c.l.b16 %v953
  %v4051 = vunpack.c.l.b16 %v954
  %v4052 = vunpack.c.l.b16 %v955
  %v4053 = vunpack.c.l.b16 %v956
  %v4054 = vunpack.c.l.b16 %v957
  %v4055 = vunpack.c.l.b16 %v958
  %v4056 = vunpack.c.l.b16 %v959
  %v4057 = vunpack.c.l.b16 %v960
  %v4058 = vunpack.c.l.b16 %v961
  %v4059 = vunpack.c.l.b16 %v962
  %v4060 = vunpack.c.l.b16 %v963
  %v4061 = vunpack.c.l.b16 %v964
  %v4062 = vunpack.c.l.b16 %v965
  %v4063 = vunpack.c.l.b16 %v966
  %v4064 = vunpack.c.l.b16 %v967
  %v4065 = vunpack.c.l.b16 %v968
  %v4066 = vunpack.c.l.b16 %v969
  %v4067 = vunpack.c.l.b16 %v970
  %v4068 = vunpack.c.l.b16 %v971
  %v4069 = vunpack.c.l.b16 %v972
  %v4070 = vunpack.c.l.b16 %v973
  %v4071 = vunpack.c.l.b16 %v974
  %v4072 = vunpack.c.l.b16 %v975
  %v4073 = vunpack.c.l.b16 %v976
  %v4074 = vunpack.c.l.b16 %v977
  %v4075 = vunpack.c.l.b16 %v978
  %v4076 = vunpack.c.l.b16 %v979
  %v4077 = vunpack.c.l.b16 %v980
  %v4078 = vunpack.c.l.b16 %v981
  %v4079 = vunpack.c.l.b16 %v982
  %v4080 = vunpack.c.l.b16 %v983
  %v4081 = vunpack.c.l.b16 %v984
  %v4082 = vunpack.c.l.b16 %v985
  %v4083 = vunpack.c.l.b16 %v986
  %v4084 = vunpack.c.l.b16 %v987
  %v4085 = vunpack.c.l.b16 %v988
  %v4086 = vunpack.c.l.b16 %v989
  %v4087 = vunpack.c.l.b16 %v990
  %v4088 = vunpack.c.l.b16 %v991
  %v4089 = vunpack.c.l.b16 %v992
  %v4090 = vunpack.c.l.b16 %v993
  %v4091 = vunpack.c.l.b16 %v994
  %v4092 = vunpack.c.l.b16 %v995
  %v4093 = vunpack.c.l.b16 %v996
  %v4094 = vunpack.c.l.b16 %v997
  %v4095 = vunpack.c.l.b16 %v998
  %v4096 = vunpack.c.l.b16 %v999
  %v4097 = vunpack.c.l.b16 %v1000
  %v4098 = vunpack.c.l.b16 %v1001
  %v4099 = vunpack.c.l.b16 %v1002
  %v4100 = vunpack.c.l.b16 %v1003
  %v4101 = vunpack.c.l.b16 %v1004
  %v4102 = vunpack.c.l.b16 %v1005
  %v4103 = vunpack.c.l.b16 %v1006
  %v4104 = vunpack.c.l.b16 %v1007
  %v4105 = vunpack.c.l.b16 %v1008
  %v4106 = vunpack.c.l.b16 %v1009
  %v4107 = vunpack.c.l.b16 %v1010
  %v4108 = vunpack.c.l.b16 %v1011
  %v4109 = vunpack.c.l.b16 %v1012
  %v4110 = vunpack.c.l.b16 %v1013
  %v4111 = vunpack.c.l.b16 %v1014
  %v4112 = vunpack.c.l.b16 %v1015
  %v4113 = vunpack.c.l.b16 %v1016
  %v4114 = vunpack.c.l.b16 %v1017
  %v4115 = vunpack.c.l.b16 %v1018
  %v4116 = vunpack.c.l.b16 %v1019
  %v4117 = vunpack.c.l.b16 %v1020
  %v4118 = vunpack.c.l.b16 %v1021
  %v4119 = vunpack.c.l.b16 %v1022
  %v4120 = vunpack.c.l.b16 %v1023
  %v4121 = vunpack.c.l.b16 %v1024
  %v4122 = vunpack.c.l.b16 %v1025
  %v4123 = vunpack.c.l.b16 %v1026
  %v4124 = vunpack.c.l.b16 %v1027
  %v4125 = vunpack.c.l.b16 %v1028
  %v4126 = vunpack.c.l.b16 %v1029
  %v4127 = vunpack.c.l.b16 %v1030
  %v4128 = vunpack.c.l.b16 %v1031
  %v4129 = vunpack.c.l.b16 %v1032
  %v4130 = vunpack.c.l.b16 %v1033
  %v4131 = vunpack.c.l.b16 %v1034
  %v4132 = vunpack.c.l.b16 %v1035
  %v4133 = vunpack.c.l.b16 %v1036
  %v4134 = vunpack.c.l.b16 %v1037
  %v4135 = vunpack.c.l.b16 %v1038
  %v4136 = vunpack.c.l.b16 %v1039
  %v4137 = vunpack.c.l.b16 %v1040
  %v4138 = vunpack.c.l.b16 %v1041
  %v4139 = vunpack.c.l.b16 %v1042
  %v4140 = vunpack.c.l.b16 %v1043
  %v4141 = vunpack.c.l.b16 %v1044
  %v4142 = vunpack.c.l.b16 %v1045
  %v4143 = vunpack.c.l.b16 %v1046
  %v4144 = vunpack.c.l.b16 %v1047
  %v4145 = vunpack.c.l.b16 %v1048
  %v4146 = vunpack.c.l.b16 %v1049
  %v4147 = vunpack.c.l.b16 %v1050
  %v4148 = vunpack.c.l.b16 %v1051
  %v4149 = vunpack.c.l.b16 %v1052
  %v4150 = vunpack.c.l.b16 %v1053
  %v4151 = vunpack.c.l.b16 %v1054
  %v4152 = vunpack.c.l.b16 %v1055
  %v4153 = vunpack.c.l.b16 %v1056
  %v4154 = vunpack.c.l.b16 %v1057
  %v4155 = vunpack.c.l.b16 %v1058
  %v4156 = vunpack.c.l.b16 %v1059
  %v4157 = vunpack.c.l.b16 %v1060
  %v4158 = vunpack.c.l.b16 %v1061
  %v4159 = vunpack.c.l.b16 %v1062
  %v4160 = vunpack.c.l.b16 %v1063
  %v4161 = vunpack.c.l.b16 %v1064
  %v4162 = vunpack.c.l.b16 %v1065
  %v4163 = vunpack.c.l.b16 %v1066
  %v4164 = vunpack.c.l.b16 %v1067
  %v4165 = vunpack.c.l.b16 %v1068
  %v4166 = vunpack.c.l.b16 %v1069
  %v4167 = vunpack.c.l.b16 %v1070
  %v4168 = vunpack.c.l.b16 %v1071
  %v4169 = vunpack.c.l.b16 %v1072
  %v4170 = vunpack.c.l.b16 %v1073
  %v4171 = vunpack.c.l.b16 %v1074
  %v4172 = vunpack.c.l.b16 %v1075
  %v4173 = vunpack.c.l.b16 %v1076
  %v4174 = vunpack.c.l.b16 %v1077
  %v4175 = vunpack.c.l.b16 %v1078
  %v4176 = vunpack.c.l.b16 %v1079
  %v4177 = vunpack.c.l.b16 %v1080
  %v4178 = vunpack.c.l.b16 %v1081
  %v4179 = vunpack.c.l.b16 %v1082
  %v4180 = vunpack.c.l.b16 %v1083
  %v4181 = vunpack.c.l.b16 %v1084
  %v4182 = vunpack.c.l.b16 %v1085
  %v4183 = vunpack.c.l.b16 %v1086
  %v4184 = vunpack.c.l.b16 %v1087
  %v4185 = vunpack.c.l.b16 %v1088
  %v4186 = vunpack.c.l.b16 %v1089
  %v4187 = vunpack.c.l.b16 %v1090
  %v4188 = vunpack.c.l.b16 %v1091
  %v4189 = vunpack.c.l.b16 %v1092
  %v4190 = vunpack.c.l.b16 %v1093
  %v4191 = vunpack.c.l.b16 %v1094
  %v4192 = vunpack.c.l.b16 %v1095
  %v4193 = vunpack.c.l.b16 %v1096
  %v4194 = vunpack.c.l.b16 %v1097
  %v4195 = vunpack.c.l.b16 %v1098
  %v4196 = vunpack.c.l.b16 %v1099
  %v4197 = vunpack.c.l.b16 %v1100
  %v4198 = vunpack.c.l.b16 %v1101
  %v4199 = vunpack.c.l.b16 %v1102
  %v4200 = vunpack.c.l.b16 %v1103
  %v4201 = vunpack.c.l.b16 %v1104
  %v4202 = vunpack.c.l.b16 %v1105
  %v4203 = vunpack.c.l.b16 %v1106
  %v4204 = vunpack.c.l.b16 %v1107
  %v4205 = vunpack.c.l.b16 %v1108
  %v4206 = vunpack.c.l.b16 %v1109
  %v4207 = vunpack.c.l.b16 %v1110
  %v4208 = vunpack.c.l.b16 %v1111
  %v4209 = vunpack.c.l.b16 %v1112
  %v4210 = vunpack.c.l.b16 %v1113
  %v4211 = vunpack.c.l.b16 %v1114
  %v4212 = vunpack.c.l.b16 %v1115
  %v4213 = vunpack.c.l.b16 %v1116
  %v4214 = vunpack.c.l.b16 %v1117
  %v4215 = vunpack.c.l.b16 %v1118
  %v4216 = vunpack.c.l.b16 %v1119
  %v4217 = vunpack.c.l.b16 %v1120
  %v4218 = vunpack.c.l.b16 %v1121
  %v4219 = vunpack.c.l.b16 %v1122
  %v4220 = vunpack.c.l.b16 %v1123
  %v4221 = vunpack.c.l.b16 %v1124
  %v4222 = vunpack.c.l.b16 %v1125
  %v4223 = vunpack.c.l.b16 %v1126
  %v4224 = vunpack.c.l.b16 %v1127
  %v4225 = vunpack.c.l.b16 %v1128
  %v4226 = vunpack.c.l.b16 %v1129
  %v4227 = vunpack.c.l.b16 %v1130
  %v4228 = vunpack.c.l.b16 %v1131
  %v4229 = vunpack.c.l.b16 %v1132
  %v4230 = vunpack.c.l.b16 %v1133
  %v4231 = vunpack.c.l.b16 %v1134
  %v4232 = vunpack.c.l.b16 %v1135
  %v4233 = vunpack.c.l.b16 %v1136
  %v4234 = vunpack.c.l.b16 %v1137
  %v4235 = vunpack.c.l.b16 %v1138
  %v4236 = vunpack.c.l.b16 %v1139
  %v4237 = vunpack.c.l.b16 %v1140
  %v4238 = vunpack.c.l.b16 %v1141
  %v4239 = vunpack.c.l.b16 %v1142
  %v4240 = vunpack.c.l.b16 %v1143
  %v4241 = vunpack.c.l.b16 %v1144
  %v4242 = vunpack.c.l.b16 %v1145
  %v4243 = vunpack.c.l.b16 %v1146
  %v4244 = vunpack.c.l.b16 %v1147
  %v4245 = vunpack.c.l.b16 %v1148
  %v4246 = vunpack.c.l.b16 %v1149
  %v4247 = vunpack.c.l.b16 %v1150
  %v4248 = vunpack.c.l.b16 %v1151
  %v4249 = vunpack.c.l.b16 %v1152
  %v4250 = vunpack.c.l.b16 %v1153
  %v4251 = vunpack.c.l.b16 %v1154
  %v4252 = vunpack.c.l.b16 %v1155
  %v4253 = vunpack.c.l.b16 %v1156
  %v4254 = vunpack.c.l.b16 %v1157
  %v4255 = vunpack.c.l.b16 %v1158
  %v4256 = vunpack.c.l.b16 %v1159
  %v4257 = vunpack.c.l.b16 %v1160
  %v4258 = vunpack.c.l.b16 %v1161
  %v4259 = vunpack.c.l.b16 %v1162
  %v4260 = vunpack.c.l.b16 %v1163
  %v4261 = vunpack.c.l.b16 %v1164
  %v4262 = vunpack.c.l.b16 %v1165
  %v4263 = vunpack.c.l.b16 %v1166
  %v4264 = vunpack.c.l.b16 %v1167
  %v4265 = vunpack.c.l.b16 %v1168
  %v4266 = vunpack.c.l.b16 %v1169
  %v4267 = vunpack.c.l.b16 %v1170
  %v4268 = vunpack.c.l.b16 %v1171
  %v4269 = vunpack.c.l.b16 %v1172
  %v4270 = vunpack.c.l.b16 %v1173
  %v4271 = vunpack.c.l.b16 %v1174
  %v4272 = vunpack.c.l.b16 %v1175
  %v4273 = vunpack.c.l.b16 %v1176
  %v4274 = vunpack.c.l.b16 %v1177
  %v4275 = vunpack.c.l.b16 %v1178
  %v4276 = vunpack.c.l.b16 %v1179
  %v4277 = vunpack.c.l.b16 %v1180
  %v4278 = vunpack.c.l.b16 %v1181
  %v4279 = vunpack.c.l.b16 %v1182
  %v4280 = vunpack.c.l.b16 %v1183
  %v4281 = vunpack.c.l.b16 %v1184
  %v4282 = vunpack.c.l.b16 %v1185
  %v4283 = vunpack.c.l.b16 %v1186
  %v4284 = vunpack.c.l.b16 %v1187
  %v4285 = vunpack.c.l.b16 %v1188
  %v4286 = vunpack.c.l.b16 %v1189
  %v4287 = vunpack.c.l.b16 %v1190
  %v4288 = vunpack.c.l.b16 %v1191
  %v4289 = vunpack.c.l.b16 %v1192
  %v4290 = vunpack.c.l.b16 %v1193
  %v4291 = vunpack.c.l.b16 %v1194
  %v4292 = vunpack.c.l.b16 %v1195
  %v4293 = vunpack.c.l.b16 %v1196
  %v4294 = vunpack.c.l.b16 %v1197
  %v4295 = vunpack.c.l.b16 %v1198
  %v4296 = vunpack.c.l.b16 %v1199
  %v4297 = vunpack.c.l.b16 %v1200
  %v4298 = vunpack.c.l.b16 %v1201
  %v4299 = vunpack.c.l.b16 %v1202
  %v4300 = vunpack.c.l.b16 %v1203
  %v4301 = vunpack.c.l.b16 %v1204
  %v4302 = vunpack.c.l.b16 %v1205
  %v4303 = vunpack.c.l.b16 %v1206
  %v4304 = vunpack.c.l.b16 %v1207
  %v4305 = vunpack.c.l.b16 %v1208
  %v4306 = vunpack.c.l.b16 %v1209
  %v4307 = vunpack.c.l.b16 %v1210
  %v4308 = vunpack.c.l.b16 %v1211
  %v4309 = vunpack.c.l.b16 %v1212
  %v4310 = vunpack.c.l.b16 %v1213
  %v4311 = vunpack.c.l.b16 %v1214
  %v4312 = vunpack.c.l.b16 %v1215
  %v4313 = vunpack.c.l.b16 %v1216
  %v4314 = vunpack.c.l.b16 %v1217
  %v4315 = vunpack.c.l.b16 %v1218
  %v4316 = vunpack.c.l.b16 %v1219
  %v4317 = vunpack.c.l.b16 %v1220
  %v4318 = vunpack.c.l.b16 %v1221
  %v4319 = vunpack.c.l.b16 %v1222
  %v4320 = vunpack.c.l.b16 %v1223
  %v4321 = vunpack.c.l.b16 %v1224
  %v4322 = vunpack.c.l.b16 %v1225
  %v4323 = vunpack.c.l.b16 %v1226
  %v4324 = vunpack.c.l.b16 %v1227
  %v4325 = vunpack.c.l.b16 %v1228
  %v4326 = vunpack.c.l.b16 %v1229
  %v4327 = vunpack.c.l.b16 %v1230
  %v4328 = vunpack.c.l.b16 %v1231
  %v4329 = vunpack.c.l.b16 %v1232
  %v4330 = vunpack.c.l.b16 %v1233
  %v4331 = vunpack.c.l.b16 %v1234
  %v4332 = vunpack.c.l.b16 %v1235
  %v4333 = vunpack.c.l.b16 %v1236
  %v4334 = vunpack.c.l.b16 %v1237
  %v4335 = vunpack.c.l.b16 %v1238
  %v4336 = vunpack.c.l.b16 %v1239
  %v4337 = vunpack.c.l.b16 %v1240
  %v4338 = vunpack.c.l.b16 %v1241
  %v4339 = vunpack.c.l.b16 %v1242
  %v4340 = vunpack.c.l.b16 %v1243
  %v4341 = vunpack.c.l.b16 %v1244
  %v4342 = vunpack.c.l.b16 %v1245
  %v4343 = vunpack.c.l.b16 %v1246
  %v4344 = vunpack.c.l.b16 %v1247
  %v4345 = vunpack.c.l.b16 %v1248
  %v4346 = vunpack.c.l.b16 %v1249
  %v4347 = vunpack.c.l.b16 %v1250
  %v4348 = vunpack.c.l.b16 %v1251
  %v4349 = vunpack.c.l.b16 %v1252
  %v4350 = vunpack.c.l.b16 %v1253
  %v4351 = vunpack.c.l.b16 %v1254
  %v4352 = vunpack.c.l.b16 %v1255
  %v4353 = vunpack.c.l.b16 %v1256
  %v4354 = vunpack.c.l.b16 %v1257
  %v4355 = vunpack.c.l.b16 %v1258
  %v4356 = vunpack.c.l.b16 %v1259
  %v4357 = vunpack.c.l.b16 %v1260
  %v4358 = vunpack.c.l.b16 %v1261
  %v4359 = vunpack.c.l.b16 %v1262
  %v4360 = vunpack.c.l.b16 %v1263
  %v4361 = vunpack.c.l.b16 %v1264
  %v4362 = vunpack.c.l.b16 %v1265
  %v4363 = vunpack.c.l.b16 %v1266
  %v4364 = vunpack.c.l.b16 %v1267
  %v4365 = vunpack.c.l.b16 %v1268
  %v4366 = vunpack.c.l.b16 %v1269
  %v4367 = vunpack.c.l.b16 %v1270
  %v4368 = vunpack.c.l.b16 %v1271
  %v4369 = vunpack.c.l.b16 %v1272
  %v4370 = vunpack.c.l.b16 %v1273
  %v4371 = vunpack.c.l.b16 %v1274
  %v4372 = vunpack.c.l.b16 %v1275
  %v4373 = vunpack.c.l.b16 %v1276
  %v4374 = vunpack.c.l.b16 %v1277
  %v4375 = vunpack.c.l.b16 %v1278
  %v4376 = vunpack.c.l.b16 %v1279
  %v4377 = vunpack.c.l.b16 %v1280
  %v4378 = vunpack.c.l.b16 %v1281
  %v4379 = vunpack.c.l.b16 %v1282
  %v4380 = vunpack.c.l.b16 %v1283
  %v4381 = vunpack.c.l.b16 %v1284
  %v4382 = vunpack.c.l.b16 %v1285
  %v4383 = vunpack.c.l.b16 %v1286
  %v4384 = vunpack.c.l.b16 %v1287
  %v4385 = vunpack.c.l.b16 %v1288
  %v4386 = vunpack.c.l.b16 %v1289
  %v4387 = vunpack.c.l.b16 %v1290
  %v4388 = vunpack.c.l.b16 %v1291
  %v4389 = vunpack.c.l.b16 %v1292
  %v4390 = vunpack.c.l.b16 %v1293
  %v4391 = vunpack.c.l.b16 %v1294
  %v4392 = vunpack.c.l.b16 %v1295
  %v4393 = vunpack.c.l.b16 %v1296
  %v4394 = vunpack.c.l.b16 %v1297
  %v4395 = vunpack.c.l.b16 %v1298
  %v4396 = vunpack.c.l.b16 %v1299
  %v4397 = vunpack.c.l.b16 %v1300
  %v4398 = vunpack.c.l.b16 %v1301
  %v4399 = vunpack.c.l.b16 %v1302
  %v4400 = vunpack.c.l.b16 %v1303
  %v4401 = vunpack.c.l.b16 %v1304
  %v4402 = vunpack.c.l.b16 %v1305
  %v4403 = vunpack.c.l.b16 %v1306
  %v4404 = vunpack.c.l.b16 %v1307
  %v4405 = vunpack.c.l.b16 %v1308
  %v4406 = vunpack.c.l.b16 %v1309
  %v4407 = vunpack.c.l.b16 %v1310
  %v4408 = vunpack.c.l.b16 %v1311
  %v4409 = vunpack.c.l.b16 %v1312
  %v4410 = vunpack.c.l.b16 %v1313
  %v4411 = vunpack.c.l.b16 %v1314
  %v4412 = vunpack.c.l.b16 %v1315
  %v4413 = vunpack.c.l.b16 %v1316
  %v4414 = vunpack.c.l.b16 %v1317
  %v4415 = vunpack.c.l.b16 %v1318
  %v4416 = vunpack.c.l.b16 %v1319
  %v4417 = vunpack.c.l.b16 %v1320
  %v4418 = vunpack.c.l.b16 %v1321
  %v4419 = vunpack.c.l.b16 %v1322
  %v4420 = vunpack.c.l.b16 %v1323
  %v4421 = vunpack.c.l.b16 %v1324
  %v4422 = vunpack.c.l.b16 %v1325
  %v4423 = vunpack.c.l.b16 %v1326
  %v4424 = vunpack.c.l.b16 %v1327
  %v4425 = vunpack.c.l.b16 %v1328
  %v4426 = vunpack.c.l.b16 %v1329
  %v4427 = vunpack.c.l.b16 %v1330
  %v4428 = vunpack.c.l.b16 %v1331
  %v4429 = vunpack.c.l.b16 %v1332
  %v4430 = vunpack.c.l.b16 %v1333
  %v4431 = vunpack.c.l.b16 %v1334
  %v4432 = vunpack.c.l.b16 %v1335
  %v4433 = vunpack.c.l.b16 %v1336
  %v4434 = vunpack.c.l.b16 %v1337
  %v4435 = vunpack.c.l.b16 %v1338
  %v4436 = vunpack.c.l.b16 %v1339
  %v4437 = vunpack.c.l.b16 %v1340
  %v4438 = vunpack.c.l.b16 %v1341
  %v4439 = vunpack.c.l.b16 %v1342
  %v4440 = vunpack.c.l.b16 %v1343
  %v4441 = vunpack.c.l.b16 %v1344
  %v4442 = vunpack.c.l.b16 %v1345
  %v4443 = vunpack.c.l.b16 %v1346
  %v4444 = vunpack.c.l.b16 %v1347
  %v4445 = vunpack.c.l.b16 %v1348
  %v4446 = vunpack.c.l.b16 %v1349
  %v4447 = vunpack.c.l.b16 %v1350
  %v4448 = vunpack.c.l.b16 %v1351
  %v4449 = vunpack.c.l.b16 %v1352
  %v4450 = vunpack.c.l.b16 %v1353
  %v4451 = vunpack.c.l.b16 %v1354
  %v4452 = vunpack.c.l.b16 %v1355
  %v4453 = vunpack.c.l.b16 %v1356
  %v4454 = vunpack.c.l.b16 %v1357
  %v4455 = vunpack.c.l.b16 %v1358
  %v4456 = vunpack.c.l.b16 %v1359
  %v4457 = vunpack.c.l.b16 %v1360
  %v4458 = vunpack.c.l.b16 %v1361
  %v4459 = vunpack.c.l.b16 %v1362
  %v4460 = vunpack.c.l.b16 %v1363
  %v4461 = vunpack.c.l.b16 %v1364
  %v4462 = vunpack.c.l.b16 %v1365
  %v4463 = vunpack.c.l.b16 %v1366
  %v4464 = vunpack.c.l.b16 %v1367
  %v4465 = vunpack.c.l.b16 %v1368
  %v4466 = vunpack.c.l.b16 %v1369
  %v4467 = vunpack.c.l.b16 %v1370
  %v4468 = vunpack.c.l.b16 %v1371
  %v4469 = vunpack.c.l.b16 %v1372
  %v4470 = vunpack.c.l.b16 %v1373
  %v4471 = vunpack.c.l.b16 %v1374
  %v4472 = vunpack.c.l.b16 %v1375
  %v4473 = vunpack.c.l.b16 %v1376
  %v4474 = vunpack.c.l.b16 %v1377
  %v4475 = vunpack.c.l.b16 %v1378
  %v4476 = vunpack.c.l.b16 %v1379
  %v4477 = vunpack.c.l.b16 %v1380
  %v4478 = vunpack.c.l.b16 %v1381
  %v4479 = vunpack.c.l.b16 %v1382
  %v4480 = vunpack.c.l.b16 %v1383
  %v4481 = vunpack.c.l.b16 %v1384
  %v4482 = vunpack.c.l.b16 %v1385
  %v4483 = vunpack.c.l.b16 %v1386
  %v4484 = vunpack.c.l.b16 %v1387
  %v4485 = vunpack.c.l.b16 %v1388
  %v4486 = vunpack.c.l.b16 %v1389
  %v4487 = vunpack.c.l.b16 %v1390
  %v4488 = vunpack.c.l.b16 %v1391
  %v4489 = vunpack.c.l.b16 %v1392
  %v4490 = vunpack.c.l.b16 %v1393
  %v4491 = vunpack.c.l.b16 %v1394
  %v4492 = vunpack.c.l.b16 %v1395
  %v4493 = vunpack.c.l.b16 %v1396
  %v4494 = vunpack.c.l.b16 %v1397
  %v4495 = vunpack.c.l.b16 %v1398
  %v4496 = vunpack.c.l.b16 %v1399
  %v4497 = vunpack.c.l.b16 %v1400
  %v4498 = vunpack.c.l.b16 %v1401
  %v4499 = vunpack.c.l.b16 %v1402
  %v4500 = vunpack.c.l.b16 %v1403
  %v4501 = vunpack.c.l.b16 %v1404
  %v4502 = vunpack.c.l.b16 %v1405
  %v4503 = vunpack.c.l.b16 %v1406
  %v4504 = vunpack.c.l.b16 %v1407
  %v4505 = vunpack.c.l.b16 %v1408
  %v4506 = vunpack.c.l.b16 %v1409
  %v4507 = vunpack.c.l.b16 %v1410
  %v4508 = vunpack.c.l.b16 %v1411
  %v4509 = vunpack.c.l.b16 %v1412
  %v4510 = vunpack.c.l.b16 %v1413
  %v4511 = vunpack.c.l.b16 %v1414
  %v4512 = vunpack.c.l.b16 %v1415
  %v4513 = vunpack.c.l.b16 %v1416
  %v4514 = vunpack.c.l.b16 %v1417
  %v4515 = vunpack.c.l.b16 %v1418
  %v4516 = vunpack.c.l.b16 %v1419
  %v4517 = vunpack.c.l.b16 %v1420
  %v4518 = vunpack.c.l.b16 %v1421
  %v4519 = vunpack.c.l.b16 %v1422
  %v4520 = vunpack.c.l.b16 %v1423
  %v4521 = vunpack.c.l.b16 %v1424
  %v4522 = vunpack.c.l.b16 %v1425
  %v4523 = vunpack.c.l.b16 %v1426
  %v4524 = vunpack.c.l.b16 %v1427
  %v4525 = vunpack.c.l.b16 %v1428
  %v4526 = vunpack.c.l.b16 %v1429
  %v4527 = vunpack.c.l.b16 %v1430
  %v4528 = vunpack.c.l.b16 %v1431
  %v4529 = vunpack.c.l.b16 %v1432
  %v4530 = vunpack.c.l.b16 %v1433
  %v4531 = vunpack.c.l.b16 %v1434
  %v4532 = vunpack.c.l.b16 %v1435
  %v4533 = vunpack.c.l.b16 %v1436
  %v4534 = vunpack.c.l.b16 %v1437
  %v4535 = vunpack.c.l.b16 %v1438
  %v4536 = vunpack.c.l.b16 %v1439
  %v4537 = vunpack.c.l.b16 %v1440
  %v4538 = vunpack.c.l.b16 %v1441
  %v4539 = vunpack.c.l.b16 %v1442
  %v4540 = vunpack.c.l.b16 %v1443
  %v4541 = vunpack.c.l.b16 %v1444
  %v4542 = vunpack.c.l.b16 %v1445
  %v4543 = vunpack.c.l.b16 %v1446
  %v4544 = vunpack.c.l.b16 %v1447
  %v4545 = vunpack.c.l.b16 %v1448
  %v4546 = vunpack.c.l.b16 %v1449
  %v4547 = vunpack.c.l.b16 %v1450
  %v4548 = vpack.c.b16 %v3373, %v3372
  %v4549 = vpack.c.b16 %v3375, %v3374
  %v4550 = vpack.c.b16 %v3377, %v3376
  %v4551 = vpack.c.b16 %v3379, %v3378
  %v4552 = vpack.c.b16 %v3381, %v3380
  %v4553 = vpack.c.b16 %v3383, %v3382
  %v4554 = vpack.c.b16 %v3385, %v3384
  %v4555 = vpack.c.b16 %v3387, %v3386
  %v4556 = vpack.c.b16 %v3389, %v3388
  %v4557 = vpack.c.b16 %v3391, %v3390
  %v4558 = vpack.c.b16 %v3393, %v3392
  %v4559 = vpack.c.b16 %v3395, %v3394
  %v4560 = vpack.c.b16 %v3397, %v3396
  %v4561 = vpack.c.b16 %v3399, %v3398
  %v4562 = vpack.c.b16 %v3401, %v3400
  %v4563 = vpack.c.b16 %v3403, %v3402
  %v4564 = vpack.c.b16 %v3405, %v3404
  %v4565 = vpack.c.b16 %v3407, %v3406
  %v4566 = vpack.c.b16 %v3409, %v3408
  %v4567 = vpack.c.b16 %v3411, %v3410
  %v4568 = vpack.c.b16 %v3413, %v3412
  %v4569 = vpack.c.b16 %v3415, %v3414
  %v4570 = vpack.c.b16 %v3417, %v3416
  %v4571 = vpack.c.b16 %v3419, %v3418
  %v4572 = vpack.c.b16 %v3421, %v3420
  %v4573 = vpack.c.b16 %v3423, %v3422
  %v4574 = vpack.c.b16 %v3425, %v3424
  %v4575 = vpack.c.b16 %v3427, %v3426
  %v4576 = vpack.c.b16 %v3429, %v3428
  %v4577 = vpack.c.b16 %v3431, %v3430
  %v4578 = vpack.c.b16 %v3433, %v3432
  %v4579 = vpack.c.b16 %v3435, %v3434
  %v4580 = vpack.c.b16 %v3437, %v3436
  %v4581 = vpack.c.b16 %v3439, %v3438
  %v4582 = vpack.c.b16 %v3441, %v3440
  %v4583 = vpack.c.b16 %v3443, %v3442
  %v4584 = vpack.c.b16 %v3445, %v3444
  %v4585 = vpack.c.b16 %v3447, %v3446
  %v4586 = vpack.c.b16 %v3449, %v3448
  %v4587 = vpack.c.b16 %v3451, %v3450
  %v4588 = vpack.c.b16 %v3453, %v3452
  %v4589 = vpack.c.b16 %v3455, %v3454
  %v4590 = vpack.c.b16 %v3457, %v3456
  %v4591 = vpack.c.b16 %v3459, %v3458
  %v4592 = vpack.c.b16 %v3461, %v3460
  %v4593 = vpack.c.b16 %v3463, %v3462
  %v4594 = vpack.c.b16 %v3465, %v3464
  %v4595 = vpack.c.b16 %v3467, %v3466
  %v4596 = vpack.c.b16 %v3469, %v3468
  %v4597 = vpack.c.b16 %v3471, %v3470
  %v4598 = vpack.c.b16 %v3473, %v3472
  %v4599 = vpack.c.b16 %v3475, %v3474
  %v4600 = vpack.c.b16 %v3477, %v3476
  %v4601 = vpack.c.b16 %v3479, %v3478
  %v4602 = vpack.c.b16 %v3481, %v3480
  %v4603 = vpack.c.b16 %v3483, %v3482
  %v4604 = vpack.c.b16 %v3485, %v3484
  %v4605 = vpack.c.b16 %v3487, %v3486
  %v4606 = vpack.c.b16 %v3489, %v3488
  %v4607 = vpack.c.b16 %v3491, %v3490
  %v4608 = vpack.c.b16 %v3493, %v3492
  %v4609 = vpack.c.b16 %v3495, %v3494
  %v4610 = vpack.c.b16 %v3497, %v3496
  %v4611 = vpack.c.b16 %v3499, %v3498
  %v4612 = vpack.c.b16 %v3501, %v3500
  %v4613 = vpack.c.b16 %v3503, %v3502
  %v4614 = vpack.c.b16 %v3505, %v3504
  %v4615 = vpack.c.b16 %v3507, %v3506
  %v4616 = vpack.c.b16 %v3509, %v3508
  %v4617 = vpack.c.b16 %v3511, %v3510
  %v4618 = vpack.c.b16 %v3513, %v3512
  %v4619 = vpack.c.b16 %v3515, %v3514
  %v4620 = vpack.c.b16 %v3517, %v3516
  %v4621 = vpack.c.b16 %v3519, %v3518
  %v4622 = vpack.c.b16 %v3521, %v3520
  %v4623 = vpack.c.b16 %v3523, %v3522
  %v4624 = vpack.c.b16 %v3525, %v3524
  %v4625 = vpack.c.b16 %v3527, %v3526
  %v4626 = vpack.c.b16 %v3529, %v3528
  %v4627 = vpack.c.b16 %v3531, %v3530
  %v4628 = vpack.c.b16 %v3533, %v3532
  %v4629 = vpack.c.b16 %v3535, %v3534
  %v4630 = vpack.c.b16 %v3537, %v3536
  %v4631 = vpack.c.b16 %v3539, %v3538
  %v4632 = vpack.c.b16 %v3541, %v3540
  %v4633 = vpack.c.b16 %v3543, %v3542
  %v4634 = vpack.c.b16 %v3545, %v3544
  %v4635 = vpack.c.b16 %v3547, %v3546
  %v4636 = vpack.c.b16 %v3549, %v3548
  %v4637 = vpack.c.b16 %v3551, %v3550
  %v4638 = vpack.c.b16 %v3553, %v3552
  %v4639 = vpack.c.b16 %v3555, %v3554
  %v4640 = vpack.c.b16 %v3557, %v3556
  %v4641 = vpack.c.b16 %v3559, %v3558
  %v4642 = vpack.c.b16 %v3561, %v3560
  %v4643 = vpack.c.b16 %v3563, %v3562
  %v4644 = vpack.c.b16 %v3565, %v3564
  %v4645 = vpack.c.b16 %v3567, %v3566
  %v4646 = vpack.c.b16 %v3569, %v3568
  %v4647 = vpack.c.b16 %v3571, %v3570
  %v4648 = vpack.c.b16 %v3573, %v3572
  %v4649 = vpack.c.b16 %v3575, %v3574
  %v4650 = vpack.c.b16 %v3577, %v3576
  %v4651 = vpack.c.b16 %v3579, %v3578
  %v4652 = vpack.c.b16 %v3581, %v3580
  %v4653 = vpack.c.b16 %v3583, %v3582
  %v4654 = vpack.c.b16 %v3585, %v3584
  %v4655 = vpack.c.b16 %v3587, %v3586
  %v4656 = vpack.c.b16 %v3589, %v3588
  %v4657 = vpack.c.b16 %v3591, %v3590
  %v4658 = vpack.c.b16 %v3593, %v3592
  %v4659 = vpack.c.b16 %v3595, %v3594
  %v4660 = vpack.c.b16 %v3597, %v3596
  %v4661 = vpack.c.b16 %v3599, %v3598
  %v4662 = vpack.c.b16 %v3601, %v3600
  %v4663 = vpack.c.b16 %v3603, %v3602
  %v4664 = vpack.c.b16 %v3605, %v3604
  %v4665 = vpack.c.b16 %v3607, %v3606
  %v4666 = vpack.c.b16 %v3609, %v3608
  %v4667 = vpack.c.b16 %v3611, %v3610
  %v4668 = vpack.c.b16 %v3613, %v3612
  %v4669 = vpack.c.b16 %v3615, %v3614
  %v4670 = vpack.c.b16 %v3617, %v3616
  %v4671 = vpack.c.b16 %v3619, %v3618
  %v4672 = vpack.c.b16 %v3621, %v3620
  %v4673 = vpack.c.b16 %v3623, %v3622
  %v4674 = vpack.c.b16 %v3625, %v3624
  %v4675 = vpack.c.b16 %v3627, %v3626
  %v4676 = vpack.c.b16 %v3629, %v3628
  %v4677 = vpack.c.b16 %v3631, %v3630
  %v4678 = vpack.c.b16 %v3633, %v3632
  %v4679 = vpack.c.b16 %v3635, %v3634
  %v4680 = vpack.c.b16 %v3637, %v3636
  %v4681 = vpack.c.b16 %v3639, %v3638
  %v4682 = vpack.c.b16 %v3641, %v3640
  %v4683 = vpack.c.b16 %v3643, %v3642
  %v4684 = vpack.c.b16 %v3645, %v3644
  %v4685 = vpack.c.b16 %v3647, %v3646
  %v4686 = vpack.c.b16 %v3649, %v3648
  %v4687 = vpack.c.b16 %v3651, %v3650
  %v4688 = vpack.c.b16 %v3653, %v3652
  %v4689 = vpack.c.b16 %v3655, %v3654
  %v4690 = vpack.c.b16 %v3657, %v3656
  %v4691 = vpack.c.b16 %v3659, %v3658
  %v4692 = vpack.c.b16 %v3661, %v3660
  %v4693 = vpack.c.b16 %v3663, %v3662
  %v4694 = vpack.c.b16 %v3665, %v3664
  %v4695 = vpack.c.b16 %v3667, %v3666
  %v4696 = vpack.c.b16 %v3669, %v3668
  %v4697 = vpack.c.b16 %v3671, %v3670
  %v4698 = vpack.c.b16 %v3673, %v3672
  %v4699 = vpack.c.b16 %v3675, %v3674
  %v4700 = vpack.c.b16 %v3677, %v3676
  %v4701 = vpack.c.b16 %v3679, %v3678
  %v4702 = vpack.c.b16 %v3681, %v3680
  %v4703 = vpack.c.b16 %v3683, %v3682
  %v4704 = vpack.c.b16 %v3685, %v3684
  %v4705 = vpack.c.b16 %v3687, %v3686
  %v4706 = vpack.c.b16 %v3689, %v3688
  %v4707 = vpack.c.b16 %v3691, %v3690
  %v4708 = vpack.c.b16 %v3693, %v3692
  %v4709 = vpack.c.b16 %v3695, %v3694
  %v4710 = vpack.c.b16 %v3697, %v3696
  %v4711 = vpack.c.b16 %v3699, %v3698
  %v4712 = vpack.c.b16 %v3701, %v3700
  %v4713 = vpack.c.b16 %v3703, %v3702
  %v4714 = vpack.c.b16 %v3705, %v3704
  %v4715 = vpack.c.b16 %v3707, %v3706
  %v4716 = vpack.c.b16 %v3709, %v3708
  %v4717 = vpack.c.b16 %v3711, %v3710
  %v4718 = vpack.c.b16 %v3713, %v3712
  %v4719 = vpack.c.b16 %v3715, %v3714
  %v4720 = vpack.c.b16 %v3717, %v3716
  %v4721 = vpack.c.b16 %v3719, %v3718
  %v4722 = vpack.c.b16 %v3721, %v3720
  %v4723 = vpack.c.b16 %v3723, %v3722
  %v4724 = vpack.c.b16 %v3725, %v3724
  %v4725 = vpack.c.b16 %v3727, %v3726
  %v4726 = vpack.c.b16 %v3729, %v3728
  %v4727 = vpack.c.b16 %v3731, %v3730
  %v4728 = vpack.c.b16 %v3733, %v3732
  %v4729 = vpack.c.b16 %v3735, %v3734
  %v4730 = vpack.c.b16 %v3737, %v3736
  %v4731 = vpack.c.b16 %v3739, %v3738
  %v4732 = vpack.c.b16 %v3741, %v3740
  %v4733 = vpack.c.b16 %v3743, %v3742
  %v4734 = vpack.c.b16 %v3745, %v3744
  %v4735 = vpack.c.b16 %v3747, %v3746
  %v4736 = vpack.c.b16 %v3749, %v3748
  %v4737 = vpack.c.b16 %v3751, %v3750
  %v4738 = vpack.c.b16 %v3753, %v3752
  %v4739 = vpack.c.b16 %v3755, %v3754
  %v4740 = vpack.c.b16 %v3757, %v3756
  %v4741 = vpack.c.b16 %v3759, %v3758
  %v4742 = vpack.c.b16 %v3761, %v3760
  %v4743 = vpack.c.b16 %v3763, %v3762
  %v4744 = vpack.c.b16 %v3765, %v3764
  %v4745 = vpack.c.b16 %v3767, %v3766
  %v4746 = vpack.c.b16 %v3769, %v3768
  %v4747 = vpack.c.b16 %v3771, %v3770
  %v4748 = vpack.c.b16 %v3773, %v3772
  %v4749 = vpack.c.b16 %v3775, %v3774
  %v4750 = vpack.c.b16 %v3777, %v3776
  %v4751 = vpack.c.b16 %v3779, %v3778
  %v4752 = vpack.c.b16 %v3781, %v3780
  %v4753 = vpack.c.b16 %v3783, %v3782
  %v4754 = vpack.c.b16 %v3785, %v3784
  %v4755 = vpack.c.b16 %v3787, %v3786
  %v4756 = vpack.c.b16 %v3789, %v3788
  %v4757 = vpack.c.b16 %v3791, %v3790
  %v4758 = vpack.c.b16 %v3793, %v3792
  %v4759 = vpack.c.b16 %v3795, %v3794
  %v4760 = vpack.c.b16 %v3797, %v3796
  %v4761 = vpack.c.b16 %v3799, %v3798
  %v4762 = vpack.c.b16 %v3801, %v3800
  %v4763 = vpack.c.b16 %v3803, %v3802
  %v4764 = vpack.c.b16 %v3805, %v3804
  %v4765 = vpack.c.b16 %v3807, %v3806
  %v4766 = vpack.c.b16 %v3809, %v3808
  %v4767 = vpack.c.b16 %v3811, %v3810
  %v4768 = vpack.c.b16 %v3813, %v3812
  %v4769 = vpack.c.b16 %v3815, %v3814
  %v4770 = vpack.c.b16 %v3817, %v3816
  %v4771 = vpack.c.b16 %v3819, %v3818
  %v4772 = vpack.c.b16 %v3821, %v3820
  %v4773 = vpack.c.b16 %v3823, %v3822
  %v4774 = vpack.c.b16 %v3825, %v3824
  %v4775 = vpack.c.b16 %v3827, %v3826
  %v4776 = vpack.c.b16 %v3829, %v3828
  %v4777 = vpack.c.b16 %v3831, %v3830
  %v4778 = vpack.c.b16 %v3833, %v3832
  %v4779 = vpack.c.b16 %v3835, %v3834
  %v4780 = vpack.c.b16 %v3837, %v3836
  %v4781 = vpack.c.b16 %v3839, %v3838
  %v4782 = vpack.c.b16 %v3841, %v3840
  %v4783 = vpack.c.b16 %v3843, %v3842
  %v4784 = vpack.c.b16 %v3845, %v3844
  %v4785 = vpack.c.b16 %v3847, %v3846
  %v4786 = vpack.c.b16 %v3849, %v3848
  %v4787 = vpack.c.b16 %v3851, %v3850
  %v4788 = vpack.c.b16 %v3853, %v3852
  %v4789 = vpack.c.b16 %v3855, %v3854
  %v4790 = vpack.c.b16 %v3857, %v3856
  %v4791 = vpack.c.b16 %v3859, %v3858
  %v4792 = vpack.c.b16 %v3861, %v3860
  %v4793 = vpack.c.b16 %v3863, %v3862
  %v4794 = vpack.c.b16 %v3865, %v3864
  %v4795 = vpack.c.b16 %v3867, %v3866
  %v4796 = vpack.c.b16 %v3869, %v3868
  %v4797 = vpack.c.b16 %v3871, %v3870
  %v4798 = vpack.c.b16 %v3873, %v3872
  %v4799 = vpack.c.b16 %v3875, %v3874
  %v4800 = vpack.c.b16 %v3877, %v3876
  %v4801 = vpack.c.b16 %v3879, %v3878
  %v4802 = vpack.c.b16 %v3881, %v3880
  %v4803 = vpack.c.b16 %v3883, %v3882
  %v4804 = vpack.c.b16 %v3885, %v3884
  %v4805 = vpack.c.b16 %v3887, %v3886
  %v4806 = vpack.c.b16 %v3889, %v3888
  %v4807 = vpack.c.b16 %v3891, %v3890
  %v4808 = vpack.c.b16 %v3893, %v3892
  %v4809 = vpack.c.b16 %v3895, %v3894
  %v4810 = vpack.c.b16 %v3897, %v3896
  %v4811 = vpack.c.b16 %v3899, %v3898
  %v4812 = vpack.c.b16 %v3901, %v3900
  %v4813 = vpack.c.b16 %v3903, %v3902
  %v4814 = vpack.c.b16 %v3905, %v3904
  %v4815 = vpack.c.b16 %v3907, %v3906
  %v4816 = vpack.c.b16 %v3909, %v3908
  %v4817 = vpack.c.b16 %v3911, %v3910
  %v4818 = vpack.c.b16 %v3913, %v3912
  %v4819 = vpack.c.b16 %v3915, %v3914
  %v4820 = vpack.c.b16 %v3917, %v3916
  %v4821 = vpack.c.b16 %v3919, %v3918
  %v4822 = vpack.c.b16 %v3921, %v3920
  %v4823 = vpack.c.b16 %v3923, %v3922
  %v4824 = vpack.c.b16 %v3925, %v3924
  %v4825 = vpack.c.b16 %v3927, %v3926
  %v4826 = vpack.c.b16 %v3929, %v3928
  %v4827 = vpack.c.b16 %v3931, %v3930
  %v4828 = vpack.c.b16 %v3933, %v3932
  %v4829 = vpack.c.b16 %v3935, %v3934
  %v4830 = vpack.c.b16 %v3937, %v3936
  %v4831 = vpack.c.b16 %v3939, %v3938
  %v4832 = vpack.c.b16 %v3941, %v3940
  %v4833 = vpack.c.b16 %v3943, %v3942
  %v4834 = vpack.c.b16 %v3945, %v3944
  %v4835 = vpack.c.b16 %v3947, %v3946
  %v4836 = vpack.c.b16 %v3949, %v3948
  %v4837 = vpack.c.b16 %v3951, %v3950
  %v4838 = vpack.c.b16 %v3953, %v3952
  %v4839 = vpack.c.b16 %v3955, %v3954
  %v4840 = vpack.c.b16 %v3957, %v3956
  %v4841 = vpack.c.b16 %v3959, %v3958
  %v4842 = vpack.c.b16 %v3961, %v3960
  %v4843 = vpack.c.b16 %v3963, %v3962
  %v4844 = vpack.c.b16 %v3965, %v3964
  %v4845 = vpack.c.b16 %v3967, %v3966
  %v4846 = vpack.c.b16 %v3969, %v3968
  %v4847 = vpack.c.b16 %v3971, %v3970
  %v4848 = vpack.c.b16 %v3973, %v3972
  %v4849 = vpack.c.b16 %v3975, %v3974
  %v4850 = vpack.c.b16 %v3977, %v3976
  %v4851 = vpack.c.b16 %v3979, %v3978
  %v4852 = vpack.c.b16 %v3981, %v3980
  %v4853 = vpack.c.b16 %v3983, %v3982
  %v4854 = vpack.c.b16 %v3985, %v3984
  %v4855 = vpack.c.b16 %v3987, %v3986
  %v4856 = vpack.c.b16 %v3989, %v3988
  %v4857 = vpack.c.b16 %v3991, %v3990
  %v4858 = vpack.c.b16 %v3993, %v3992
  %v4859 = vpack.c.b16 %v3995, %v3994
  %v4860 = vpack.c.b16 %v3997, %v3996
  %v4861 = vpack.c.b16 %v3999, %v3998
  %v4862 = vpack.c.b16 %v4001, %v4000
  %v4863 = vpack.c.b16 %v4003, %v4002
  %v4864 = vpack.c.b16 %v4005, %v4004
  %v4865 = vpack.c.b16 %v4007, %v4006
  %v4866 = vpack.c.b16 %v4009, %v4008
  %v4867 = vpack.c.b16 %v4011, %v4010
  %v4868 = vpack.c.b16 %v4013, %v4012
  %v4869 = vpack.c.b16 %v4015, %v4014
  %v4870 = vpack.c.b16 %v4017, %v4016
  %v4871 = vpack.c.b16 %v4019, %v4018
  %v4872 = vpack.c.b16 %v4021, %v4020
  %v4873 = vpack.c.b16 %v4023, %v4022
  %v4874 = vpack.c.b16 %v4025, %v4024
  %v4875 = vpack.c.b16 %v4027, %v4026
  %v4876 = vpack.c.b16 %v4029, %v4028
  %v4877 = vpack.c.b16 %v4031, %v4030
  %v4878 = vpack.c.b16 %v4033, %v4032
  %v4879 = vpack.c.b16 %v4035, %v4034
  %v4880 = vpack.c.b16 %v4037, %v4036
  %v4881 = vpack.c.b16 %v4039, %v4038
  %v4882 = vpack.c.b16 %v4041, %v4040
  %v4883 = vpack.c.b16 %v4043, %v4042
  %v4884 = vpack.c.b16 %v4045, %v4044
  %v4885 = vpack.c.b16 %v4047, %v4046
  %v4886 = vpack.c.b16 %v4049, %v4048
  %v4887 = vpack.c.b16 %v4051, %v4050
  %v4888 = vpack.c.b16 %v4053, %v4052
  %v4889 = vpack.c.b16 %v4055, %v4054
  %v4890 = vpack.c.b16 %v4057, %v4056
  %v4891 = vpack.c.b16 %v4059, %v4058
  %v4892 = vpack.c.b16 %v4061, %v4060
  %v4893 = vpack.c.b16 %v4063, %v4062
  %v4894 = vpack.c.b16 %v4065, %v4064
  %v4895 = vpack.c.b16 %v4067, %v4066
  %v4896 = vpack.c.b16 %v4069, %v4068
  %v4897 = vpack.c.b16 %v4071, %v4070
  %v4898 = vpack.c.b16 %v4073, %v4072
  %v4899 = vpack.c.b16 %v4075, %v4074
  %v4900 = vpack.c.b16 %v4077, %v4076
  %v4901 = vpack.c.b16 %v4079, %v4078
  %v4902 = vpack.c.b16 %v4081, %v4080
  %v4903 = vpack.c.b16 %v4083, %v4082
  %v4904 = vpack.c.b16 %v4085, %v4084
  %v4905 = vpack.c.b16 %v4087, %v4086
  %v4906 = vpack.c.b16 %v4089, %v4088
  %v4907 = vpack.c.b16 %v4091, %v4090
  %v4908 = vpack.c.b16 %v4093, %v4092
  %v4909 = vpack.c.b16 %v4095, %v4094
  %v4910 = vpack.c.b16 %v4097, %v4096
  %v4911 = vpack.c.b16 %v4099, %v4098
  %v4912 = vpack.c.b16 %v4101, %v4100
  %v4913 = vpack.c.b16 %v4103, %v4102
  %v4914 = vpack.c.b16 %v4105, %v4104
  %v4915 = vpack.c.b16 %v4107, %v4106
  %v4916 = vpack.c.b16 %v4109, %v4108
  %v4917 = vpack.c.b16 %v4111, %v4110
  %v4918 = vpack.c.b16 %v4113, %v4112
  %v4919 = vpack.c.b16 %v4115, %v4114
  %v4920 = vpack.c.b16 %v4117, %v4116
  %v4921 = vpack.c.b16 %v4119, %v4118
  %v4922 = vpack.c.b16 %v4121, %v4120
  %v4923 = vpack.c.b16 %v4123, %v4122
  %v4924 = vpack.c.b16 %v4125, %v4124
  %v4925 = vpack.c.b16 %v4127, %v4126
  %v4926 = vpack.c.b16 %v4129, %v4128
  %v4927 = vpack.c.b16 %v4131, %v4130
  %v4928 = vpack.c.b16 %v4133, %v4132
  %v4929 = vpack.c.b16 %v4135, %v4134
  %v4930 = vpack.c.b16 %v4137, %v4136
  %v4931 = vpack.c.b16 %v4139, %v4138
  %v4932 = vpack.c.b16 %v4141, %v4140
  %v4933 = vpack.c.b16 %v4143, %v4142
  %v4934 = vpack.c.b16 %v4145, %v4144
  %v4935 = vpack.c.b16 %v4147, %v4146
  %v4936 = vpack.c.b16 %v4149, %v4148
  %v4937 = vpack.c.b16 %v4151, %v4150
  %v4938 = vpack.c.b16 %v4153, %v4152
  %v4939 = vpack.c.b16 %v4155, %v4154
  %v4940 = vpack.c.b16 %v4157, %v4156
  %v4941 = vpack.c.b16 %v4159, %v4158
  %v4942 = vpack.c.b16 %v4161, %v4160
  %v4943 = vpack.c.b16 %v4163, %v4162
  %v4944 = vpack.c.b16 %v4165, %v4164
  %v4945 = vpack.c.b16 %v4167, %v4166
  %v4946 = vpack.c.b16 %v4169, %v4168
  %v4947 = vpack.c.b16 %v4171, %v4170
  %v4948 = vpack.c.b16 %v4173, %v4172
  %v4949 = vpack.c.b16 %v4175, %v4174
  %v4950 = vpack.c.b16 %v4177, %v4176
  %v4951 = vpack.c.b16 %v4179, %v4178
  %v4952 = vpack.c.b16 %v4181, %v4180
  %v4953 = vpack.c.b16 %v4183, %v4182
  %v4954 = vpack.c.b16 %v4185, %v4184
  %v4955 = vpack.c.b16 %v4187, %v4186
  %v4956 = vpack.c.b16 %v4189, %v4188
  %v4957 = vpack.c.b16 %v4191, %v4190
  %v4958 = vpack.c.b16 %v4193, %v4192
  %v4959 = vpack.c.b16 %v4195, %v4194
  %v4960 = vpack.c.b16 %v4197, %v4196
  %v4961 = vpack.c.b16 %v4199, %v4198
  %v4962 = vpack.c.b16 %v4201, %v4200
  %v4963 = vpack.c.b16 %v4203, %v4202
  %v4964 = vpack.c.b16 %v4205, %v4204
  %v4965 = vpack.c.b16 %v4207, %v4206
  %v4966 = vpack.c.b16 %v4209, %v4208
  %v4967 = vpack.c.b16 %v4211, %v4210
  %v4968 = vpack.c.b16 %v4213, %v4212
  %v4969 = vpack.c.b16 %v4215, %v4214
  %v4970 = vpack.c.b16 %v4217, %v4216
  %v4971 = vpack.c.b16 %v4219, %v4218
  %v4972 = vpack.c.b16 %v4221, %v4220
  %v4973 = vpack.c.b16 %v4223, %v4222
  %v4974 = vpack.c.b16 %v4225, %v4224
  %v4975 = vpack.c.b16 %v4227, %v4226
  %v4976 = vpack.c.b16 %v4229, %v4228
  %v4977 = vpack.c.b16 %v4231, %v4230
  %v4978 = vpack.c.b16 %v4233, %v4232
  %v4979 = vpack.c.b16 %v4235, %v4234
  %v4980 = vpack.c.b16 %v4237, %v4236
  %v4981 = vpack.c.b16 %v4239, %v4238
  %v4982 = vpack.c.b16 %v4241, %v4240
  %v4983 = vpack.c.b16 %v4243, %v4242
  %v4984 = vpack.c.b16 %v4245, %v4244
  %v4985 = vpack.c.b16 %v4247, %v4246
  %v4986 = vpack.c.b16 %v4249, %v4248
  %v4987 = vpack.c.b16 %v4251, %v4250
  %v4988 = vpack.c.b16 %v4253, %v4252
  %v4989 = vpack.c.b16 %v4255, %v4254
  %v4990 = vpack.c.b16 %v4257, %v4256
  %v4991 = vpack.c.b16 %v4259, %v4258
  %v4992 = vpack.c.b16 %v4261, %v4260
  %v4993 = vpack.c.b16 %v4263, %v4262
  %v4994 = vpack.c.b16 %v4265, %v4264
  %v4995 = vpack.c.b16 %v4267, %v4266
  %v4996 = vpack.c.b16 %v4269, %v4268
  %v4997 = vpack.c.b16 %v4271, %v4270
  %v4998 = vpack.c.b16 %v4273, %v4272
  %v4999 = vpack.c.b16 %v4275, %v4274
  %v5000 = vpack.c.b16 %v4277, %v4276
  %v5001 = vpack.c.b16 %v4279, %v4278
  %v5002 = vpack.c.b16 %v4281, %v4280
  %v5003 = vpack.c.b16 %v4283, %v4282
  %v5004 = vpack.c.b16 %v4285, %v4284
  %v5005 = vpack.c.b16 %v4287, %v4286
  %v5006 = vpack.c.b16 %v4289, %v4288
  %v5007 = vpack.c.b16 %v4291, %v4290
  %v5008 = vpack.c.b16 %v4293, %v4292
  %v5009 = vpack.c.b16 %v4295, %v4294
  %v5010 = vpack.c.b16 %v4297, %v4296
  %v5011 = vpack.c.b16 %v4299, %v4298
  %v5012 = vpack.c.b16 %v4301, %v4300
  %v5013 = vpack.c.b16 %v4303, %v4302
  %v5014 = vpack.c.b16 %v4305, %v4304
  %v5015 = vpack.c.b16 %v4307, %v4306
  %v5016 = vpack.c.b16 %v4309, %v4308
  %v5017 = vpack.c.b16 %v4311, %v4310
  %v5018 = vpack.c.b16 %v4313, %v4312
  %v5019 = vpack.c.b16 %v4315, %v4314
  %v5020 = vpack.c.b16 %v4317, %v4316
  %v5021 = vpack.c.b16 %v4319, %v4318
  %v5022 = vpack.c.b16 %v4321, %v4320
  %v5023 = vpack.c.b16 %v4323, %v4322
  %v5024 = vpack.c.b16 %v4325, %v4324
  %v5025 = vpack.c.b16 %v4327, %v4326
  %v5026 = vpack.c.b16 %v4329, %v4328
  %v5027 = vpack.c.b16 %v4331, %v4330
  %v5028 = vpack.c.b16 %v4333, %v4332
  %v5029 = vpack.c.b16 %v4335, %v4334
  %v5030 = vpack.c.b16 %v4337, %v4336
  %v5031 = vpack.c.b16 %v4339, %v4338
  %v5032 = vpack.c.b16 %v4341, %v4340
  %v5033 = vpack.c.b16 %v4343, %v4342
  %v5034 = vpack.c.b16 %v4345, %v4344
  %v5035 = vpack.c.b16 %v4347, %v4346
  %v5036 = vpack.c.b16 %v4349, %v4348
  %v5037 = vpack.c.b16 %v4351, %v4350
  %v5038 = vpack.c.b16 %v4353, %v4352
  %v5039 = vpack.c.b16 %v4355, %v4354
  %v5040 = vpack.c.b16 %v4357, %v4356
  %v5041 = vpack.c.b16 %v4359, %v4358
  %v5042 = vpack.c.b16 %v4361, %v4360
  %v5043 = vpack.c.b16 %v4363, %v4362
  %v5044 = vpack.c.b16 %v4365, %v4364
  %v5045 = vpack.c.b16 %v4367, %v4366
  %v5046 = vpack.c.b16 %v4369, %v4368
  %v5047 = vpack.c.b16 %v4371, %v4370
  %v5048 = vpack.c.b16 %v4373, %v4372
  %v5049 = vpack.c.b16 %v4375, %v4374
  %v5050 = vpack.c.b16 %v4377, %v4376
  %v5051 = vpack.c.b16 %v4379, %v4378
  %v5052 = vpack.c.b16 %v4381, %v4380
  %v5053 = vpack.c.b16 %v4383, %v4382
  %v5054 = vpack.c.b16 %v4385, %v4384
  %v5055 = vpack.c.b16 %v4387, %v4386
  %v5056 = vpack.c.b16 %v4389, %v4388
  %v5057 = vpack.c.b16 %v4391, %v4390
  %v5058 = vpack.c.b16 %v4393, %v4392
  %v5059 = vpack.c.b16 %v4395, %v4394
  %v5060 = vpack.c.b16 %v4397, %v4396
  %v5061 = vpack.c.b16 %v4399, %v4398
  %v5062 = vpack.c.b16 %v4401, %v4400
  %v5063 = vpack.c.b16 %v4403, %v4402
  %v5064 = vpack.c.b16 %v4405, %v4404
  %v5065 = vpack.c.b16 %v4407, %v4406
  %v5066 = vpack.c.b16 %v4409, %v4408
  %v5067 = vpack.c.b16 %v4411, %v4410
  %v5068 = vpack.c.b16 %v4413, %v4412
  %v5069 = vpack.c.b16 %v4415, %v4414
  %v5070 = vpack.c.b16 %v4417, %v4416
  %v5071 = vpack.c.b16 %v4419, %v4418
  %v5072 = vpack.c.b16 %v4421, %v4420
  %v5073 = vpack.c.b16 %v4423, %v4422
  %v5074 = vpack.c.b16 %v4425, %v4424
  %v5075 = vpack.c.b16 %v4427, %v4426
  %v5076 = vpack.c.b16 %v4429, %v4428
  %v5077 = vpack.c.b16 %v4431, %v4430
  %v5078 = vpack.c.b16 %v4433, %v4432
  %v5079 = vpack.c.b16 %v4435, %v4434
  %v5080 = vpack.c.b16 %v4437, %v4436
  %v5081 = vpack.c.b16 %v4439, %v4438
  %v5082 = vpack.c.b16 %v4441, %v4440
  %v5083 = vpack.c.b16 %v4443, %v4442
  %v5084 = vpack.c.b16 %v4445, %v4444
  %v5085 = vpack.c.b16 %v4447, %v4446
  %v5086 = vpack.c.b16 %v4449, %v4448
  %v5087 = vpack.c.b16 %v4451, %v4450
  %v5088 = vpack.c.b16 %v4453, %v4452
  %v5089 = vpack.c.b16 %v4455, %v4454
  %v5090 = vpack.c.b16 %v4457, %v4456
  %v5091 = vpack.c.b16 %v4459, %v4458
  %v5092 = vpack.c.b16 %v4461, %v4460
  %v5093 = vpack.c.b16 %v4463, %v4462
  %v5094 = vpack.c.b16 %v4465, %v4464
  %v5095 = vpack.c.b16 %v4467, %v4466
  %v5096 = vpack.c.b16 %v4469, %v4468
  %v5097 = vpack.c.b16 %v4471, %v4470
  %v5098 = vpack.c.b16 %v4473, %v4472
  %v5099 = vpack.c.b16 %v4475, %v4474
  %v5100 = vpack.c.b16 %v4477, %v4476
  %v5101 = vpack.c.b16 %v4479, %v4478
  %v5102 = vpack.c.b16 %v4481, %v4480
  %v5103 = vpack.c.b16 %v4483, %v4482
  %v5104 = vpack.c.b16 %v4485, %v4484
  %v5105 = vpack.c.b16 %v4487, %v4486
  %v5106 = vpack.c.b16 %v4489, %v4488
  %v5107 = vpack.c.b16 %v4491, %v4490
  %v5108 = vpack.c.b16 %v4493, %v4492
  %v5109 = vpack.c.b16 %v4495, %v4494
  %v5110 = vpack.c.b16 %v4497, %v4496
  %v5111 = vpack.c.b16 %v4499, %v4498
  %v5112 = vpack.c.b16 %v4501, %v4500
  %v5113 = vpack.c.b16 %v4503, %v4502
  %v5114 = vpack.c.b16 %v4505, %v4504
  %v5115 = vpack.c.b16 %v4507, %v4506
  %v5116 = vpack.c.b16 %v4509, %v4508
  %v5117 = vpack.c.b16 %v4511, %v4510
  %v5118 = vpack.c.b16 %v4513, %v4512
  %v5119 = vpack.c.b16 %v4515, %v4514
  %v5120 = vpack.c.b16 %v4517, %v4516
  %v5121 = vpack.c.b16 %v4519, %v4518
  %v5122 = vpack.c.b16 %v4521, %v4520
  %v5123 = vpack.c.b16 %v4523, %v4522
  %v5124 = vpack.c.b16 %v4525, %v4524
  %v5125 = vpack.c.b16 %v4527, %v4526
  %v5126 = vpack.c.b16 %v4529, %v4528
  %v5127 = vpack.c.b16 %v4531, %v4530
  %v5128 = vpack.c.b16 %v4533, %v4532
  %v5129 = vpack.c.b16 %v4535, %v4534
  %v5130 = vpack.c.b16 %v4537, %v4536
  %v5131 = vpack.c.b16 %v4539, %v4538
  %v5132 = vpack.c.b16 %v4541, %v4540
  %v5133 = vpack.c.b16 %v4543, %v4542
  %v5134 = vpack.c.b16 %v4545, %v4544
  %v5135 = vpack.c.b16 %v4547, %v4546
  %vm5724 = vcmask 523264
  %v5726 = vsel %vm5724, %v1975, 0
  %v5729 = vsel %vm5724, %v2049, 0
  %5731 = vmatprep.subr.bf16.mxu0 0
  %5732 = vmatpush1.bf16.msra.mxu0 %v4548
  %5733 = vmatprep.subr.bf16.mxu0 0
  %5734 = vmatpush1.bf16.msra.mxu0 %v4549
  %5735 = vmatprep.subr.bf16.mxu0 0
  %5736 = vmatpush1.bf16.msra.mxu0 %v4550
  %5737 = vmatprep.subr.bf16.mxu0 0
  %5738 = vmatpush1.bf16.msra.mxu0 %v4551
  %5739 = vmatprep.subr.bf16.mxu0 0
  %5740 = vmatpush1.bf16.msra.mxu0 %v4552
  %5741 = vmatprep.subr.bf16.mxu0 0
  %5742 = vmatpush1.bf16.msra.mxu0 %v4553
  %5743 = vmatprep.subr.bf16.mxu0 0
  %5744 = vmatpush1.bf16.msra.mxu0 %v4554
  %5745 = vmatprep.subr.bf16.mxu0 0
  %5746 = vmatpush1.bf16.msra.mxu0 %v4555
  %5747 = vmatprep.subr.bf16.mxu0 0
  %5748 = vmatpush1.bf16.msra.mxu0 %v4556
  %5749 = vmatprep.subr.bf16.mxu0 0
  %5750 = vmatpush1.bf16.msra.mxu0 %v4557
  %5751 = vmatprep.subr.bf16.mxu0 0
  %5752 = vmatpush1.bf16.msra.mxu0 %v4558
  %5753 = vmatprep.subr.bf16.mxu0 0
  %5754 = vmatpush1.bf16.msra.mxu0 %v4559
  %5755 = vmatprep.subr.bf16.mxu0 0
  %5756 = vmatpush1.bf16.msra.mxu0 %v4560
  %5757 = vmatprep.subr.bf16.mxu0 0
  %5758 = vmatpush1.bf16.msra.mxu0 %v4561
  %5759 = vmatprep.subr.bf16.mxu0 0
  %5760 = vmatpush1.bf16.msra.mxu0 %v4562
  %5761 = vmatprep.subr.bf16.mxu0 0
  %5762 = vmatpush1.bf16.msra.mxu0 %v4563
  %5763 = vmatprep.mubr.bf16.mxu0 %v1903
  %5764 = vmatmul.mubr.bf16.gmra.mrb[0].mxu0 %v1902
  %v5765 = vpop.f32.mrb[0].mxu0
  %v5766 = vadd.f32 %v1456, %v5765
  %v5767 = vpop.f32.mrb[0].mxu0
  %v5768 = vpop.f32.mrb[0].mxu0
  %v5769 = vadd.f32 %v1456, %v5768
  %v5770 = vpop.f32.mrb[0].mxu0
  %5771 = vmatprep.mubr.bf16.mxu0 %v1977
  %5772 = vmatmul.mubr.bf16.gmra.mrb[0].mxu0 %v1976
  %v5773 = vpop.f32.mrb[0].mxu0
  %v5774 = vadd.f32 %v1456, %v5773
  %v5775 = vpop.f32.mrb[0].mxu0
  %v5776 = vpop.f32.mrb[0].mxu0
  %v5777 = vadd.f32 %v1456, %v5776
  %v5778 = vpop.f32.mrb[0].mxu0
  %5779 = vdwg.mxu0
  %5780 = vmatprep.subr.bf16.mxu0 0
  %5781 = vmatpush1.bf16.msra.mxu0 %v4564
  %5782 = vmatprep.subr.bf16.mxu0 0
  %5783 = vmatpush1.bf16.msra.mxu0 %v4565
  %5784 = vmatprep.subr.bf16.mxu0 0
  %5785 = vmatpush1.bf16.msra.mxu0 %v4566
  %5786 = vmatprep.subr.bf16.mxu0 0
  %5787 = vmatpush1.bf16.msra.mxu0 %v4567
  %5788 = vmatprep.subr.bf16.mxu0 0
  %5789 = vmatpush1.bf16.msra.mxu0 %v4568
  %5790 = vmatprep.subr.bf16.mxu0 0
  %5791 = vmatpush1.bf16.msra.mxu0 %v4569
  %5792 = vmatprep.subr.bf16.mxu0 0
  %5793 = vmatpush1.bf16.msra.mxu0 %v4570
  %5794 = vmatprep.subr.bf16.mxu0 0
  %5795 = vmatpush1.bf16.msra.mxu0 %v4571
  %5796 = vmatprep.subr.bf16.mxu0 0
  %5797 = vmatpush1.bf16.msra.mxu0 %v4572
  %5798 = vmatprep.subr.bf16.mxu0 0
  %5799 = vmatpush1.bf16.msra.mxu0 %v4573
  %5800 = vmatprep.subr.bf16.mxu0 0
  %5801 = vmatpush1.bf16.msra.mxu0 %v4574
  %5802 = vmatprep.subr.bf16.mxu0 0
  %5803 = vmatpush1.bf16.msra.mxu0 %v4575
  %5804 = vmatprep.subr.bf16.mxu0 0
  %5805 = vmatpush1.bf16.msra.mxu0 %v4576
  %5806 = vmatprep.subr.bf16.mxu0 0
  %5807 = vmatpush1.bf16.msra.mxu0 %v4577
  %5808 = vmatprep.subr.bf16.mxu0 0
  %5809 = vmatpush1.bf16.msra.mxu0 %v4578
  %5810 = vmatprep.subr.bf16.mxu0 0
  %5811 = vmatpush1.bf16.msra.mxu0 %v4579
  %5812 = vmatprep.mubr.bf16.mxu0 %v1905
  %5813 = vmatmul.mubr.bf16.gmra.mrb[0].mxu0 %v1904
  %v5814 = vpop.f32.mrb[0].mxu0
  %v5815 = vadd.f32 %v5766, %v5814
  %v5816 = vpop.f32.mrb[0].mxu0
  %v5817 = vpop.f32.mrb[0].mxu0
  %v5818 = vadd.f32 %v5769, %v5817
  %v5819 = vpop.f32.mrb[0].mxu0
  %5820 = vmatprep.mubr.bf16.mxu0 %v1979
  %5821 = vmatmul.mubr.bf16.gmra.mrb[0].mxu0 %v1978
  %v5822 = vpop.f32.mrb[0].mxu0
  %v5823 = vadd.f32 %v5774, %v5822
  %v5824 = vpop.f32.mrb[0].mxu0
  %v5825 = vpop.f32.mrb[0].mxu0
  %v5826 = vadd.f32 %v5777, %v5825
  %v5827 = vpop.f32.mrb[0].mxu0
  %5828 = vdwg.mxu0
  %5829 = vmatprep.subr.bf16.mxu0 0
  %5830 = vmatpush1.bf16.msra.mxu0 %v4580
  %5831 = vmatprep.subr.bf16.mxu0 0
  %5832 = vmatpush1.bf16.msra.mxu0 %v4581
  %5833 = vmatprep.subr.bf16.mxu0 0
  %5834 = vmatpush1.bf16.msra.mxu0 %v4582
  %5835 = vmatprep.subr.bf16.mxu0 0
  %5836 = vmatpush1.bf16.msra.mxu0 %v4583
  %5837 = vmatprep.subr.bf16.mxu0 0
  %5838 = vmatpush1.bf16.msra.mxu0 %v4584
  %5839 = vmatprep.subr.bf16.mxu0 0
  %5840 = vmatpush1.bf16.msra.mxu0 %v4585
  %5841 = vmatprep.subr.bf16.mxu0 0
  %5842 = vmatpush1.bf16.msra.mxu0 %v4586
  %5843 = vmatprep.subr.bf16.mxu0 0
  %5844 = vmatpush1.bf16.msra.mxu0 %v4587
  %5845 = vmatprep.subr.bf16.mxu0 0
  %5846 = vmatpush1.bf16.msra.mxu0 %v4588
  %5847 = vmatprep.subr.bf16.mxu0 0
  %5848 = vmatpush1.bf16.msra.mxu0 %v4589
  %5849 = vmatprep.subr.bf16.mxu0 0
  %5850 = vmatpush1.bf16.msra.mxu0 %v4590
  %5851 = vmatprep.subr.bf16.mxu0 0
  %5852 = vmatpush1.bf16.msra.mxu0 %v4591
  %5853 = vmatprep.subr.bf16.mxu0 0
  %5854 = vmatpush1.bf16.msra.mxu0 %v4592
  %5855 = vmatprep.subr.bf16.mxu0 0
  %5856 = vmatpush1.bf16.msra.mxu0 %v4593
  %5857 = vmatprep.subr.bf16.mxu0 0
  %5858 = vmatpush1.bf16.msra.mxu0 %v4594
  %5859 = vmatprep.subr.bf16.mxu0 0
  %5860 = vmatpush1.bf16.msra.mxu0 %v4595
  %5861 = vmatprep.mubr.bf16.mxu0 %v1907
  %5862 = vmatmul.mubr.bf16.gmra.mrb[0].mxu0 %v1906
  %v5863 = vpop.f32.mrb[0].mxu0
  %v5864 = vadd.f32 %v5815, %v5863
  %v5865 = vpop.f32.mrb[0].mxu0
  %v5866 = vpop.f32.mrb[0].mxu0
  %v5867 = vadd.f32 %v5818, %v5866
  %v5868 = vpop.f32.mrb[0].mxu0
  %5869 = vmatprep.mubr.bf16.mxu0 %v1981
  %5870 = vmatmul.mubr.bf16.gmra.mrb[0].mxu0 %v1980
  %v5871 = vpop.f32.mrb[0].mxu0
  %v5872 = vadd.f32 %v5823, %v5871
  %v5873 = vpop.f32.mrb[0].mxu0
  %v5874 = vpop.f32.mrb[0].mxu0
  %v5875 = vadd.f32 %v5826, %v5874
  %v5876 = vpop.f32.mrb[0].mxu0
  %5877 = vdwg.mxu0
  %5878 = vmatprep.subr.bf16.mxu0 0
  %5879 = vmatpush1.bf16.msra.mxu0 %v4596
  %5880 = vmatprep.subr.bf16.mxu0 0
  %5881 = vmatpush1.bf16.msra.mxu0 %v4597
  %5882 = vmatprep.subr.bf16.mxu0 0
  %5883 = vmatpush1.bf16.msra.mxu0 %v4598
  %5884 = vmatprep.subr.bf16.mxu0 0
  %5885 = vmatpush1.bf16.msra.mxu0 %v4599
  %5886 = vmatprep.subr.bf16.mxu0 0
  %5887 = vmatpush1.bf16.msra.mxu0 %v4600
  %5888 = vmatprep.subr.bf16.mxu0 0
  %5889 = vmatpush1.bf16.msra.mxu0 %v4601
  %5890 = vmatprep.subr.bf16.mxu0 0
  %5891 = vmatpush1.bf16.msra.mxu0 %v4602
  %5892 = vmatprep.subr.bf16.mxu0 0
  %5893 = vmatpush1.bf16.msra.mxu0 %v4603
  %5894 = vmatprep.subr.bf16.mxu0 0
  %5895 = vmatpush1.bf16.msra.mxu0 %v4604
  %5896 = vmatprep.subr.bf16.mxu0 0
  %5897 = vmatpush1.bf16.msra.mxu0 %v4605
  %5898 = vmatprep.subr.bf16.mxu0 0
  %5899 = vmatpush1.bf16.msra.mxu0 %v4606
  %5900 = vmatprep.subr.bf16.mxu0 0
  %5901 = vmatpush1.bf16.msra.mxu0 %v4607
  %5902 = vmatprep.subr.bf16.mxu0 0
  %5903 = vmatpush1.bf16.msra.mxu0 %v4608
  %5904 = vmatprep.subr.bf16.mxu0 0
  %5905 = vmatpush1.bf16.msra.mxu0 %v4609
  %5906 = vmatprep.subr.bf16.mxu0 0
  %5907 = vmatpush1.bf16.msra.mxu0 %v4610
  %5908 = vmatprep.subr.bf16.mxu0 0
  %5909 = vmatpush1.bf16.msra.mxu0 %v4611
  %5910 = vmatprep.mubr.bf16.mxu0 %v1909
  %5911 = vmatmul.mubr.bf16.gmra.mrb[0].mxu0 %v1908
  %v5912 = vpop.f32.mrb[0].mxu0
  %v5913 = vadd.f32 %v5864, %v5912
  %v5914 = vpop.f32.mrb[0].mxu0
  %v5915 = vpop.f32.mrb[0].mxu0
  %v5916 = vadd.f32 %v5867, %v5915
  %v5917 = vpop.f32.mrb[0].mxu0
  %5918 = vmatprep.mubr.bf16.mxu0 %v1983
  %5919 = vmatmul.mubr.bf16.gmra.mrb[0].mxu0 %v1982
  %v5920 = vpop.f32.mrb[0].mxu0
  %v5921 = vadd.f32 %v5872, %v5920
  %v5922 = vpop.f32.mrb[0].mxu0
  %v5923 = vpop.f32.mrb[0].mxu0
  %v5924 = vadd.f32 %v5875, %v5923
  %v5925 = vpop.f32.mrb[0].mxu0
  %5926 = vdwg.mxu0
  %5927 = vmatprep.subr.bf16.mxu0 0
  %5928 = vmatpush1.bf16.msra.mxu0 %v4612
  %5929 = vmatprep.subr.bf16.mxu0 0
  %5930 = vmatpush1.bf16.msra.mxu0 %v4613
  %5931 = vmatprep.subr.bf16.mxu0 0
  %5932 = vmatpush1.bf16.msra.mxu0 %v4614
  %5933 = vmatprep.subr.bf16.mxu0 0
  %5934 = vmatpush1.bf16.msra.mxu0 %v4615
  %5935 = vmatprep.subr.bf16.mxu0 0
  %5936 = vmatpush1.bf16.msra.mxu0 %v4616
  %5937 = vmatprep.subr.bf16.mxu0 0
  %5938 = vmatpush1.bf16.msra.mxu0 %v4617
  %5939 = vmatprep.subr.bf16.mxu0 0
  %5940 = vmatpush1.bf16.msra.mxu0 %v4618
  %5941 = vmatprep.subr.bf16.mxu0 0
  %5942 = vmatpush1.bf16.msra.mxu0 %v4619
  %5943 = vmatprep.subr.bf16.mxu0 0
  %5944 = vmatpush1.bf16.msra.mxu0 %v4620
  %5945 = vmatprep.subr.bf16.mxu0 0
  %5946 = vmatpush1.bf16.msra.mxu0 %v4621
  %5947 = vmatprep.subr.bf16.mxu0 0
  %5948 = vmatpush1.bf16.msra.mxu0 %v4622
  %5949 = vmatprep.subr.bf16.mxu0 0
  %5950 = vmatpush1.bf16.msra.mxu0 %v4623
  %5951 = vmatprep.subr.bf16.mxu0 0
  %5952 = vmatpush1.bf16.msra.mxu0 %v4624
  %5953 = vmatprep.subr.bf16.mxu0 0
  %5954 = vmatpush1.bf16.msra.mxu0 %v4625
  %5955 = vmatprep.subr.bf16.mxu0 0
  %5956 = vmatpush1.bf16.msra.mxu0 %v4626
  %5957 = vmatprep.subr.bf16.mxu0 0
  %5958 = vmatpush1.bf16.msra.mxu0 %v4627
  %5959 = vmatprep.mubr.bf16.mxu0 %v1911
  %5960 = vmatmul.mubr.bf16.gmra.mrb[0].mxu0 %v1910
  %v5961 = vpop.f32.mrb[0].mxu0
  %v5962 = vadd.f32 %v5913, %v5961
  %v5963 = vpop.f32.mrb[0].mxu0
  %v5964 = vpop.f32.mrb[0].mxu0
  %v5965 = vadd.f32 %v5916, %v5964
  %v5966 = vpop.f32.mrb[0].mxu0
  %5967 = vmatprep.mubr.bf16.mxu0 %v1985
  %5968 = vmatmul.mubr.bf16.gmra.mrb[0].mxu0 %v1984
  %v5969 = vpop.f32.mrb[0].mxu0
  %v5970 = vadd.f32 %v5921, %v5969
  %v5971 = vpop.f32.mrb[0].mxu0
  %v5972 = vpop.f32.mrb[0].mxu0
  %v5973 = vadd.f32 %v5924, %v5972
  %v5974 = vpop.f32.mrb[0].mxu0
  %5975 = vdwg.mxu0
  %5976 = vmatprep.subr.bf16.mxu0 0
  %5977 = vmatpush1.bf16.msra.mxu0 %v4628
  %5978 = vmatprep.subr.bf16.mxu0 0
  %5979 = vmatpush1.bf16.msra.mxu0 %v4629
  %5980 = vmatprep.subr.bf16.mxu0 0
  %5981 = vmatpush1.bf16.msra.mxu0 %v4630
  %5982 = vmatprep.subr.bf16.mxu0 0
  %5983 = vmatpush1.bf16.msra.mxu0 %v4631
  %5984 = vmatprep.subr.bf16.mxu0 0
  %5985 = vmatpush1.bf16.msra.mxu0 %v4632
  %5986 = vmatprep.subr.bf16.mxu0 0
  %5987 = vmatpush1.bf16.msra.mxu0 %v4633
  %5988 = vmatprep.subr.bf16.mxu0 0
  %5989 = vmatpush1.bf16.msra.mxu0 %v4634
  %5990 = vmatprep.subr.bf16.mxu0 0
  %5991 = vmatpush1.bf16.msra.mxu0 %v4635
  %5992 = vmatprep.subr.bf16.mxu0 0
  %5993 = vmatpush1.bf16.msra.mxu0 %v4636
  %5994 = vmatprep.subr.bf16.mxu0 0
  %5995 = vmatpush1.bf16.msra.mxu0 %v4637
  %5996 = vmatprep.subr.bf16.mxu0 0
  %5997 = vmatpush1.bf16.msra.mxu0 %v4638
  %5998 = vmatprep.subr.bf16.mxu0 0
  %5999 = vmatpush1.bf16.msra.mxu0 %v4639
  %6000 = vmatprep.subr.bf16.mxu0 0
  %6001 = vmatpush1.bf16.msra.mxu0 %v4640
  %6002 = vmatprep.subr.bf16.mxu0 0
  %6003 = vmatpush1.bf16.msra.mxu0 %v4641
  %6004 = vmatprep.subr.bf16.mxu0 0
  %6005 = vmatpush1.bf16.msra.mxu0 %v4642
  %6006 = vmatprep.subr.bf16.mxu0 0
  %6007 = vmatpush1.bf16.msra.mxu0 %v4643
  %6008 = vmatprep.mubr.bf16.mxu0 %v1913
  %6009 = vmatmul.mubr.bf16.gmra.mrb[0].mxu0 %v1912
  %v6010 = vpop.f32.mrb[0].mxu0
  %v6011 = vadd.f32 %v5962, %v6010
  %v6012 = vpop.f32.mrb[0].mxu0
  %v6013 = vpop.f32.mrb[0].mxu0
  %v6014 = vadd.f32 %v5965, %v6013
  %v6015 = vpop.f32.mrb[0].mxu0
  %6016 = vmatprep.mubr.bf16.mxu0 %v1987
  %6017 = vmatmul.mubr.bf16.gmra.mrb[0].mxu0 %v1986
  %v6018 = vpop.f32.mrb[0].mxu0
  %v6019 = vadd.f32 %v5970, %v6018
  %v6020 = vpop.f32.mrb[0].mxu0
  %v6021 = vpop.f32.mrb[0].mxu0
  %v6022 = vadd.f32 %v5973, %v6021
  %v6023 = vpop.f32.mrb[0].mxu0
  %6024 = vdwg.mxu0
  %6025 = vmatprep.subr.bf16.mxu0 0
  %6026 = vmatpush1.bf16.msra.mxu0 %v4644
  %6027 = vmatprep.subr.bf16.mxu0 0
  %6028 = vmatpush1.bf16.msra.mxu0 %v4645
  %6029 = vmatprep.subr.bf16.mxu0 0
  %6030 = vmatpush1.bf16.msra.mxu0 %v4646
  %6031 = vmatprep.subr.bf16.mxu0 0
  %6032 = vmatpush1.bf16.msra.mxu0 %v4647
  %6033 = vmatprep.subr.bf16.mxu0 0
  %6034 = vmatpush1.bf16.msra.mxu0 %v4648
  %6035 = vmatprep.subr.bf16.mxu0 0
  %6036 = vmatpush1.bf16.msra.mxu0 %v4649
  %6037 = vmatprep.subr.bf16.mxu0 0
  %6038 = vmatpush1.bf16.msra.mxu0 %v4650
  %6039 = vmatprep.subr.bf16.mxu0 0
  %6040 = vmatpush1.bf16.msra.mxu0 %v4651
  %6041 = vmatprep.subr.bf16.mxu0 0
  %6042 = vmatpush1.bf16.msra.mxu0 %v4652
  %6043 = vmatprep.subr.bf16.mxu0 0
  %6044 = vmatpush1.bf16.msra.mxu0 %v4653
  %6045 = vmatprep.subr.bf16.mxu0 0
  %6046 = vmatpush1.bf16.msra.mxu0 %v4654
  %6047 = vmatprep.subr.bf16.mxu0 0
  %6048 = vmatpush1.bf16.msra.mxu0 %v4655
  %6049 = vmatprep.subr.bf16.mxu0 0
  %6050 = vmatpush1.bf16.msra.mxu0 %v4656
  %6051 = vmatprep.subr.bf16.mxu0 0
  %6052 = vmatpush1.bf16.msra.mxu0 %v4657
  %6053 = vmatprep.subr.bf16.mxu0 0
  %6054 = vmatpush1.bf16.msra.mxu0 %v4658
  %6055 = vmatprep.subr.bf16.mxu0 0
  %6056 = vmatpush1.bf16.msra.mxu0 %v4659
  %6057 = vmatprep.mubr.bf16.mxu0 %v1915
  %6058 = vmatmul.mubr.bf16.gmra.mrb[0].mxu0 %v1914
  %v6059 = vpop.f32.mrb[0].mxu0
  %v6060 = vadd.f32 %v6011, %v6059
  %v6061 = vpop.f32.mrb[0].mxu0
  %v6062 = vpop.f32.mrb[0].mxu0
  %v6063 = vadd.f32 %v6014, %v6062
  %v6064 = vpop.f32.mrb[0].mxu0
  %6065 = vmatprep.mubr.bf16.mxu0 %v1989
  %6066 = vmatmul.mubr.bf16.gmra.mrb[0].mxu0 %v1988
  %v6067 = vpop.f32.mrb[0].mxu0
  %v6068 = vadd.f32 %v6019, %v6067
  %v6069 = vpop.f32.mrb[0].mxu0
  %v6070 = vpop.f32.mrb[0].mxu0
  %v6071 = vadd.f32 %v6022, %v6070
  %v6072 = vpop.f32.mrb[0].mxu0
  %6073 = vdwg.mxu0
  %6074 = vmatprep.subr.bf16.mxu0 0
  %6075 = vmatpush1.bf16.msra.mxu0 %v4660
  %6076 = vmatprep.subr.bf16.mxu0 0
  %6077 = vmatpush1.bf16.msra.mxu0 %v4661
  %6078 = vmatprep.subr.bf16.mxu0 0
  %6079 = vmatpush1.bf16.msra.mxu0 %v4662
  %6080 = vmatprep.subr.bf16.mxu0 0
  %6081 = vmatpush1.bf16.msra.mxu0 %v4663
  %6082 = vmatprep.subr.bf16.mxu0 0
  %6083 = vmatpush1.bf16.msra.mxu0 %v4664
  %6084 = vmatprep.subr.bf16.mxu0 0
  %6085 = vmatpush1.bf16.msra.mxu0 %v4665
  %6086 = vmatprep.subr.bf16.mxu0 0
  %6087 = vmatpush1.bf16.msra.mxu0 %v4666
  %6088 = vmatprep.subr.bf16.mxu0 0
  %6089 = vmatpush1.bf16.msra.mxu0 %v4667
  %6090 = vmatprep.subr.bf16.mxu0 0
  %6091 = vmatpush1.bf16.msra.mxu0 %v4668
  %6092 = vmatprep.subr.bf16.mxu0 0
  %6093 = vmatpush1.bf16.msra.mxu0 %v4669
  %6094 = vmatprep.subr.bf16.mxu0 0
  %6095 = vmatpush1.bf16.msra.mxu0 %v4670
  %6096 = vmatprep.subr.bf16.mxu0 0
  %6097 = vmatpush1.bf16.msra.mxu0 %v4671
  %6098 = vmatprep.subr.bf16.mxu0 0
  %6099 = vmatpush1.bf16.msra.mxu0 %v4672
  %6100 = vmatprep.subr.bf16.mxu0 0
  %6101 = vmatpush1.bf16.msra.mxu0 %v4673
  %6102 = vmatprep.subr.bf16.mxu0 0
  %6103 = vmatpush1.bf16.msra.mxu0 %v4674
  %6104 = vmatprep.subr.bf16.mxu0 0
  %6105 = vmatpush1.bf16.msra.mxu0 %v4675
  %6106 = vmatprep.mubr.bf16.mxu0 %v1917
  %6107 = vmatmul.mubr.bf16.gmra.mrb[0].mxu0 %v1916
  %v6108 = vpop.f32.mrb[0].mxu0
  %v6109 = vadd.f32 %v6060, %v6108
  %v6110 = vpop.f32.mrb[0].mxu0
  %v6111 = vpop.f32.mrb[0].mxu0
  %v6112 = vadd.f32 %v6063, %v6111
  %v6113 = vpop.f32.mrb[0].mxu0
  %6114 = vmatprep.mubr.bf16.mxu0 %v1991
  %6115 = vmatmul.mubr.bf16.gmra.mrb[0].mxu0 %v1990
  %v6116 = vpop.f32.mrb[0].mxu0
  %v6117 = vadd.f32 %v6068, %v6116
  %v6118 = vpop.f32.mrb[0].mxu0
  %v6119 = vpop.f32.mrb[0].mxu0
  %v6120 = vadd.f32 %v6071, %v6119
  %v6121 = vpop.f32.mrb[0].mxu0
  %6122 = vdwg.mxu0
  %6123 = vmatprep.subr.bf16.mxu0 0
  %6124 = vmatpush1.bf16.msra.mxu0 %v4676
  %6125 = vmatprep.subr.bf16.mxu0 0
  %6126 = vmatpush1.bf16.msra.mxu0 %v4677
  %6127 = vmatprep.subr.bf16.mxu0 0
  %6128 = vmatpush1.bf16.msra.mxu0 %v4678
  %6129 = vmatprep.subr.bf16.mxu0 0
  %6130 = vmatpush1.bf16.msra.mxu0 %v4679
  %6131 = vmatprep.subr.bf16.mxu0 0
  %6132 = vmatpush1.bf16.msra.mxu0 %v4680
  %6133 = vmatprep.subr.bf16.mxu0 0
  %6134 = vmatpush1.bf16.msra.mxu0 %v4681
  %6135 = vmatprep.subr.bf16.mxu0 0
  %6136 = vmatpush1.bf16.msra.mxu0 %v4682
  %6137 = vmatprep.subr.bf16.mxu0 0
  %6138 = vmatpush1.bf16.msra.mxu0 %v4683
  %6139 = vmatprep.subr.bf16.mxu0 0
  %6140 = vmatpush1.bf16.msra.mxu0 %v4684
  %6141 = vmatprep.subr.bf16.mxu0 0
  %6142 = vmatpush1.bf16.msra.mxu0 %v4685
  %6143 = vmatprep.subr.bf16.mxu0 0
  %6144 = vmatpush1.bf16.msra.mxu0 %v4686
  %6145 = vmatprep.subr.bf16.mxu0 0
  %6146 = vmatpush1.bf16.msra.mxu0 %v4687
  %6147 = vmatprep.subr.bf16.mxu0 0
  %6148 = vmatpush1.bf16.msra.mxu0 %v4688
  %6149 = vmatprep.subr.bf16.mxu0 0
  %6150 = vmatpush1.bf16.msra.mxu0 %v4689
  %6151 = vmatprep.subr.bf16.mxu0 0
  %6152 = vmatpush1.bf16.msra.mxu0 %v4690
  %6153 = vmatprep.subr.bf16.mxu0 0
  %6154 = vmatpush1.bf16.msra.mxu0 %v4691
  %6155 = vmatprep.mubr.bf16.mxu0 %v1919
  %6156 = vmatmul.mubr.bf16.gmra.mrb[0].mxu0 %v1918
  %v6157 = vpop.f32.mrb[0].mxu0
  %v6158 = vadd.f32 %v6109, %v6157
  %v6159 = vpop.f32.mrb[0].mxu0
  %v6160 = vpop.f32.mrb[0].mxu0
  %v6161 = vadd.f32 %v6112, %v6160
  %v6162 = vpop.f32.mrb[0].mxu0
  %6163 = vmatprep.mubr.bf16.mxu0 %v1993
  %6164 = vmatmul.mubr.bf16.gmra.mrb[0].mxu0 %v1992
  %v6165 = vpop.f32.mrb[0].mxu0
  %v6166 = vadd.f32 %v6117, %v6165
  %v6167 = vpop.f32.mrb[0].mxu0
  %v6168 = vpop.f32.mrb[0].mxu0
  %v6169 = vadd.f32 %v6120, %v6168
  %v6170 = vpop.f32.mrb[0].mxu0
  %6171 = vdwg.mxu0
  %6172 = vmatprep.subr.bf16.mxu0 0
  %6173 = vmatpush1.bf16.msra.mxu0 %v4692
  %6174 = vmatprep.subr.bf16.mxu0 0
  %6175 = vmatpush1.bf16.msra.mxu0 %v4693
  %6176 = vmatprep.subr.bf16.mxu0 0
  %6177 = vmatpush1.bf16.msra.mxu0 %v4694
  %6178 = vmatprep.subr.bf16.mxu0 0
  %6179 = vmatpush1.bf16.msra.mxu0 %v4695
  %6180 = vmatprep.subr.bf16.mxu0 0
  %6181 = vmatpush1.bf16.msra.mxu0 %v4696
  %6182 = vmatprep.subr.bf16.mxu0 0
  %6183 = vmatpush1.bf16.msra.mxu0 %v4697
  %6184 = vmatprep.subr.bf16.mxu0 0
  %6185 = vmatpush1.bf16.msra.mxu0 %v4698
  %6186 = vmatprep.subr.bf16.mxu0 0
  %6187 = vmatpush1.bf16.msra.mxu0 %v4699
  %6188 = vmatprep.subr.bf16.mxu0 0
  %6189 = vmatpush1.bf16.msra.mxu0 %v4700
  %6190 = vmatprep.subr.bf16.mxu0 0
  %6191 = vmatpush1.bf16.msra.mxu0 %v4701
  %6192 = vmatprep.subr.bf16.mxu0 0
  %6193 = vmatpush1.bf16.msra.mxu0 %v4702
  %6194 = vmatprep.subr.bf16.mxu0 0
  %6195 = vmatpush1.bf16.msra.mxu0 %v4703
  %6196 = vmatprep.subr.bf16.mxu0 0
  %6197 = vmatpush1.bf16.msra.mxu0 %v4704
  %6198 = vmatprep.subr.bf16.mxu0 0
  %6199 = vmatpush1.bf16.msra.mxu0 %v4705
  %6200 = vmatprep.subr.bf16.mxu0 0
  %6201 = vmatpush1.bf16.msra.mxu0 %v4706
  %6202 = vmatprep.subr.bf16.mxu0 0
  %6203 = vmatpush1.bf16.msra.mxu0 %v4707
  %6204 = vmatprep.mubr.bf16.mxu0 %v1921
  %6205 = vmatmul.mubr.bf16.gmra.mrb[0].mxu0 %v1920
  %v6206 = vpop.f32.mrb[0].mxu0
  %v6207 = vadd.f32 %v6158, %v6206
  %v6208 = vpop.f32.mrb[0].mxu0
  %v6209 = vpop.f32.mrb[0].mxu0
  %v6210 = vadd.f32 %v6161, %v6209
  %v6211 = vpop.f32.mrb[0].mxu0
  %6212 = vmatprep.mubr.bf16.mxu0 %v1995
  %6213 = vmatmul.mubr.bf16.gmra.mrb[0].mxu0 %v1994
  %v6214 = vpop.f32.mrb[0].mxu0
  %v6215 = vadd.f32 %v6166, %v6214
  %v6216 = vpop.f32.mrb[0].mxu0
  %v6217 = vpop.f32.mrb[0].mxu0
  %v6218 = vadd.f32 %v6169, %v6217
  %v6219 = vpop.f32.mrb[0].mxu0
  %6220 = vdwg.mxu0
  %6221 = vmatprep.subr.bf16.mxu0 0
  %6222 = vmatpush1.bf16.msra.mxu0 %v4708
  %6223 = vmatprep.subr.bf16.mxu0 0
  %6224 = vmatpush1.bf16.msra.mxu0 %v4709
  %6225 = vmatprep.subr.bf16.mxu0 0
  %6226 = vmatpush1.bf16.msra.mxu0 %v4710
  %6227 = vmatprep.subr.bf16.mxu0 0
  %6228 = vmatpush1.bf16.msra.mxu0 %v4711
  %6229 = vmatprep.subr.bf16.mxu0 0
  %6230 = vmatpush1.bf16.msra.mxu0 %v4712
  %6231 = vmatprep.subr.bf16.mxu0 0
  %6232 = vmatpush1.bf16.msra.mxu0 %v4713
  %6233 = vmatprep.subr.bf16.mxu0 0
  %6234 = vmatpush1.bf16.msra.mxu0 %v4714
  %6235 = vmatprep.subr.bf16.mxu0 0
  %6236 = vmatpush1.bf16.msra.mxu0 %v4715
  %6237 = vmatprep.subr.bf16.mxu0 0
  %6238 = vmatpush1.bf16.msra.mxu0 %v4716
  %6239 = vmatprep.subr.bf16.mxu0 0
  %6240 = vmatpush1.bf16.msra.mxu0 %v4717
  %6241 = vmatprep.subr.bf16.mxu0 0
  %6242 = vmatpush1.bf16.msra.mxu0 %v4718
  %6243 = vmatprep.subr.bf16.mxu0 0
  %6244 = vmatpush1.bf16.msra.mxu0 %v4719
  %6245 = vmatprep.subr.bf16.mxu0 0
  %6246 = vmatpush1.bf16.msra.mxu0 %v4720
  %6247 = vmatprep.subr.bf16.mxu0 0
  %6248 = vmatpush1.bf16.msra.mxu0 %v4721
  %6249 = vmatprep.subr.bf16.mxu0 0
  %6250 = vmatpush1.bf16.msra.mxu0 %v4722
  %6251 = vmatprep.subr.bf16.mxu0 0
  %6252 = vmatpush1.bf16.msra.mxu0 %v4723
  %6253 = vmatprep.mubr.bf16.mxu0 %v1923
  %6254 = vmatmul.mubr.bf16.gmra.mrb[0].mxu0 %v1922
  %v6255 = vpop.f32.mrb[0].mxu0
  %v6256 = vadd.f32 %v6207, %v6255
  %v6257 = vpop.f32.mrb[0].mxu0
  %v6258 = vpop.f32.mrb[0].mxu0
  %v6259 = vadd.f32 %v6210, %v6258
  %v6260 = vpop.f32.mrb[0].mxu0
  %6261 = vmatprep.mubr.bf16.mxu0 %v1997
  %6262 = vmatmul.mubr.bf16.gmra.mrb[0].mxu0 %v1996
  %v6263 = vpop.f32.mrb[0].mxu0
  %v6264 = vadd.f32 %v6215, %v6263
  %v6265 = vpop.f32.mrb[0].mxu0
  %v6266 = vpop.f32.mrb[0].mxu0
  %v6267 = vadd.f32 %v6218, %v6266
  %v6268 = vpop.f32.mrb[0].mxu0
  %6269 = vdwg.mxu0
  %6270 = vmatprep.subr.bf16.mxu0 0
  %6271 = vmatpush1.bf16.msra.mxu0 %v4724
  %6272 = vmatprep.subr.bf16.mxu0 0
  %6273 = vmatpush1.bf16.msra.mxu0 %v4725
  %6274 = vmatprep.subr.bf16.mxu0 0
  %6275 = vmatpush1.bf16.msra.mxu0 %v4726
  %6276 = vmatprep.subr.bf16.mxu0 0
  %6277 = vmatpush1.bf16.msra.mxu0 %v4727
  %6278 = vmatprep.subr.bf16.mxu0 0
  %6279 = vmatpush1.bf16.msra.mxu0 %v4728
  %6280 = vmatprep.subr.bf16.mxu0 0
  %6281 = vmatpush1.bf16.msra.mxu0 %v4729
  %6282 = vmatprep.subr.bf16.mxu0 0
  %6283 = vmatpush1.bf16.msra.mxu0 %v4730
  %6284 = vmatprep.subr.bf16.mxu0 0
  %6285 = vmatpush1.bf16.msra.mxu0 %v4731
  %6286 = vmatprep.subr.bf16.mxu0 0
  %6287 = vmatpush1.bf16.msra.mxu0 %v4732
  %6288 = vmatprep.subr.bf16.mxu0 0
  %6289 = vmatpush1.bf16.msra.mxu0 %v4733
  %6290 = vmatprep.subr.bf16.mxu0 0
  %6291 = vmatpush1.bf16.msra.mxu0 %v4734
  %6292 = vmatprep.subr.bf16.mxu0 0
  %6293 = vmatpush1.bf16.msra.mxu0 %v4735
  %6294 = vmatprep.subr.bf16.mxu0 0
  %6295 = vmatpush1.bf16.msra.mxu0 %v4736
  %6296 = vmatprep.subr.bf16.mxu0 0
  %6297 = vmatpush1.bf16.msra.mxu0 %v4737
  %6298 = vmatprep.subr.bf16.mxu0 0
  %6299 = vmatpush1.bf16.msra.mxu0 %v4738
  %6300 = vmatprep.subr.bf16.mxu0 0
  %6301 = vmatpush1.bf16.msra.mxu0 %v4739
  %6302 = vmatprep.mubr.bf16.mxu0 %v1925
  %6303 = vmatmul.mubr.bf16.gmra.mrb[0].mxu0 %v1924
  %v6304 = vpop.f32.mrb[0].mxu0
  %v6305 = vadd.f32 %v6256, %v6304
  %v6306 = vpop.f32.mrb[0].mxu0
  %v6307 = vpop.f32.mrb[0].mxu0
  %v6308 = vadd.f32 %v6259, %v6307
  %v6309 = vpop.f32.mrb[0].mxu0
  %6310 = vmatprep.mubr.bf16.mxu0 %v1999
  %6311 = vmatmul.mubr.bf16.gmra.mrb[0].mxu0 %v1998
  %v6312 = vpop.f32.mrb[0].mxu0
  %v6313 = vadd.f32 %v6264, %v6312
  %v6314 = vpop.f32.mrb[0].mxu0
  %v6315 = vpop.f32.mrb[0].mxu0
  %v6316 = vadd.f32 %v6267, %v6315
  %v6317 = vpop.f32.mrb[0].mxu0
  %6318 = vdwg.mxu0
  %6319 = vmatprep.subr.bf16.mxu0 0
  %6320 = vmatpush1.bf16.msra.mxu0 %v4740
  %6321 = vmatprep.subr.bf16.mxu0 0
  %6322 = vmatpush1.bf16.msra.mxu0 %v4741
  %6323 = vmatprep.subr.bf16.mxu0 0
  %6324 = vmatpush1.bf16.msra.mxu0 %v4742
  %6325 = vmatprep.subr.bf16.mxu0 0
  %6326 = vmatpush1.bf16.msra.mxu0 %v4743
  %6327 = vmatprep.subr.bf16.mxu0 0
  %6328 = vmatpush1.bf16.msra.mxu0 %v4744
  %6329 = vmatprep.subr.bf16.mxu0 0
  %6330 = vmatpush1.bf16.msra.mxu0 %v4745
  %6331 = vmatprep.subr.bf16.mxu0 0
  %6332 = vmatpush1.bf16.msra.mxu0 %v4746
  %6333 = vmatprep.subr.bf16.mxu0 0
  %6334 = vmatpush1.bf16.msra.mxu0 %v4747
  %6335 = vmatprep.subr.bf16.mxu0 0
  %6336 = vmatpush1.bf16.msra.mxu0 %v4748
  %6337 = vmatprep.subr.bf16.mxu0 0
  %6338 = vmatpush1.bf16.msra.mxu0 %v4749
  %6339 = vmatprep.subr.bf16.mxu0 0
  %6340 = vmatpush1.bf16.msra.mxu0 %v4750
  %6341 = vmatprep.subr.bf16.mxu0 0
  %6342 = vmatpush1.bf16.msra.mxu0 %v4751
  %6343 = vmatprep.subr.bf16.mxu0 0
  %6344 = vmatpush1.bf16.msra.mxu0 %v4752
  %6345 = vmatprep.subr.bf16.mxu0 0
  %6346 = vmatpush1.bf16.msra.mxu0 %v4753
  %6347 = vmatprep.subr.bf16.mxu0 0
  %6348 = vmatpush1.bf16.msra.mxu0 %v4754
  %6349 = vmatprep.subr.bf16.mxu0 0
  %6350 = vmatpush1.bf16.msra.mxu0 %v4755
  %6351 = vmatprep.mubr.bf16.mxu0 %v1927
  %6352 = vmatmul.mubr.bf16.gmra.mrb[0].mxu0 %v1926
  %v6353 = vpop.f32.mrb[0].mxu0
  %v6354 = vadd.f32 %v6305, %v6353
  %v6355 = vpop.f32.mrb[0].mxu0
  %v6356 = vpop.f32.mrb[0].mxu0
  %v6357 = vadd.f32 %v6308, %v6356
  %v6358 = vpop.f32.mrb[0].mxu0
  %6359 = vmatprep.mubr.bf16.mxu0 %v2001
  %6360 = vmatmul.mubr.bf16.gmra.mrb[0].mxu0 %v2000
  %v6361 = vpop.f32.mrb[0].mxu0
  %v6362 = vadd.f32 %v6313, %v6361
  %v6363 = vpop.f32.mrb[0].mxu0
  %v6364 = vpop.f32.mrb[0].mxu0
  %v6365 = vadd.f32 %v6316, %v6364
  %v6366 = vpop.f32.mrb[0].mxu0
  %6367 = vdwg.mxu0
  %6368 = vmatprep.subr.bf16.mxu0 0
  %6369 = vmatpush1.bf16.msra.mxu0 %v4756
  %6370 = vmatprep.subr.bf16.mxu0 0
  %6371 = vmatpush1.bf16.msra.mxu0 %v4757
  %6372 = vmatprep.subr.bf16.mxu0 0
  %6373 = vmatpush1.bf16.msra.mxu0 %v4758
  %6374 = vmatprep.subr.bf16.mxu0 0
  %6375 = vmatpush1.bf16.msra.mxu0 %v4759
  %6376 = vmatprep.subr.bf16.mxu0 0
  %6377 = vmatpush1.bf16.msra.mxu0 %v4760
  %6378 = vmatprep.subr.bf16.mxu0 0
  %6379 = vmatpush1.bf16.msra.mxu0 %v4761
  %6380 = vmatprep.subr.bf16.mxu0 0
  %6381 = vmatpush1.bf16.msra.mxu0 %v4762
  %6382 = vmatprep.subr.bf16.mxu0 0
  %6383 = vmatpush1.bf16.msra.mxu0 %v4763
  %6384 = vmatprep.subr.bf16.mxu0 0
  %6385 = vmatpush1.bf16.msra.mxu0 %v4764
  %6386 = vmatprep.subr.bf16.mxu0 0
  %6387 = vmatpush1.bf16.msra.mxu0 %v4765
  %6388 = vmatprep.subr.bf16.mxu0 0
  %6389 = vmatpush1.bf16.msra.mxu0 %v4766
  %6390 = vmatprep.subr.bf16.mxu0 0
  %6391 = vmatpush1.bf16.msra.mxu0 %v4767
  %6392 = vmatprep.subr.bf16.mxu0 0
  %6393 = vmatpush1.bf16.msra.mxu0 %v4768
  %6394 = vmatprep.subr.bf16.mxu0 0
  %6395 = vmatpush1.bf16.msra.mxu0 %v4769
  %6396 = vmatprep.subr.bf16.mxu0 0
  %6397 = vmatpush1.bf16.msra.mxu0 %v4770
  %6398 = vmatprep.subr.bf16.mxu0 0
  %6399 = vmatpush1.bf16.msra.mxu0 %v4771
  %6400 = vmatprep.mubr.bf16.mxu0 %v1929
  %6401 = vmatmul.mubr.bf16.gmra.mrb[0].mxu0 %v1928
  %v6402 = vpop.f32.mrb[0].mxu0
  %v6403 = vadd.f32 %v6354, %v6402
  %v6404 = vpop.f32.mrb[0].mxu0
  %v6405 = vpop.f32.mrb[0].mxu0
  %v6406 = vadd.f32 %v6357, %v6405
  %v6407 = vpop.f32.mrb[0].mxu0
  %6408 = vmatprep.mubr.bf16.mxu0 %v2003
  %6409 = vmatmul.mubr.bf16.gmra.mrb[0].mxu0 %v2002
  %v6410 = vpop.f32.mrb[0].mxu0
  %v6411 = vadd.f32 %v6362, %v6410
  %v6412 = vpop.f32.mrb[0].mxu0
  %v6413 = vpop.f32.mrb[0].mxu0
  %v6414 = vadd.f32 %v6365, %v6413
  %v6415 = vpop.f32.mrb[0].mxu0
  %6416 = vdwg.mxu0
  %6417 = vmatprep.subr.bf16.mxu0 0
  %6418 = vmatpush1.bf16.msra.mxu0 %v4772
  %6419 = vmatprep.subr.bf16.mxu0 0
  %6420 = vmatpush1.bf16.msra.mxu0 %v4773
  %6421 = vmatprep.subr.bf16.mxu0 0
  %6422 = vmatpush1.bf16.msra.mxu0 %v4774
  %6423 = vmatprep.subr.bf16.mxu0 0
  %6424 = vmatpush1.bf16.msra.mxu0 %v4775
  %6425 = vmatprep.subr.bf16.mxu0 0
  %6426 = vmatpush1.bf16.msra.mxu0 %v4776
  %6427 = vmatprep.subr.bf16.mxu0 0
  %6428 = vmatpush1.bf16.msra.mxu0 %v4777
  %6429 = vmatprep.subr.bf16.mxu0 0
  %6430 = vmatpush1.bf16.msra.mxu0 %v4778
  %6431 = vmatprep.subr.bf16.mxu0 0
  %6432 = vmatpush1.bf16.msra.mxu0 %v4779
  %6433 = vmatprep.subr.bf16.mxu0 0
  %6434 = vmatpush1.bf16.msra.mxu0 %v4780
  %6435 = vmatprep.subr.bf16.mxu0 0
  %6436 = vmatpush1.bf16.msra.mxu0 %v4781
  %6437 = vmatprep.subr.bf16.mxu0 0
  %6438 = vmatpush1.bf16.msra.mxu0 %v4782
  %6439 = vmatprep.subr.bf16.mxu0 0
  %6440 = vmatpush1.bf16.msra.mxu0 %v4783
  %6441 = vmatprep.subr.bf16.mxu0 0
  %6442 = vmatpush1.bf16.msra.mxu0 %v4784
  %6443 = vmatprep.subr.bf16.mxu0 0
  %6444 = vmatpush1.bf16.msra.mxu0 %v4785
  %6445 = vmatprep.subr.bf16.mxu0 0
  %6446 = vmatpush1.bf16.msra.mxu0 %v4786
  %6447 = vmatprep.subr.bf16.mxu0 0
  %6448 = vmatpush1.bf16.msra.mxu0 %v4787
  %6449 = vmatprep.mubr.bf16.mxu0 %v1931
  %6450 = vmatmul.mubr.bf16.gmra.mrb[0].mxu0 %v1930
  %v6451 = vpop.f32.mrb[0].mxu0
  %v6452 = vadd.f32 %v6403, %v6451
  %v6453 = vpop.f32.mrb[0].mxu0
  %v6454 = vpop.f32.mrb[0].mxu0
  %v6455 = vadd.f32 %v6406, %v6454
  %v6456 = vpop.f32.mrb[0].mxu0
  %6457 = vmatprep.mubr.bf16.mxu0 %v2005
  %6458 = vmatmul.mubr.bf16.gmra.mrb[0].mxu0 %v2004
  %v6459 = vpop.f32.mrb[0].mxu0
  %v6460 = vadd.f32 %v6411, %v6459
  %v6461 = vpop.f32.mrb[0].mxu0
  %v6462 = vpop.f32.mrb[0].mxu0
  %v6463 = vadd.f32 %v6414, %v6462
  %v6464 = vpop.f32.mrb[0].mxu0
  %6465 = vdwg.mxu0
  %6466 = vmatprep.subr.bf16.mxu0 0
  %6467 = vmatpush1.bf16.msra.mxu0 %v4788
  %6468 = vmatprep.subr.bf16.mxu0 0
  %6469 = vmatpush1.bf16.msra.mxu0 %v4789
  %6470 = vmatprep.subr.bf16.mxu0 0
  %6471 = vmatpush1.bf16.msra.mxu0 %v4790
  %6472 = vmatprep.subr.bf16.mxu0 0
  %6473 = vmatpush1.bf16.msra.mxu0 %v4791
  %6474 = vmatprep.subr.bf16.mxu0 0
  %6475 = vmatpush1.bf16.msra.mxu0 %v4792
  %6476 = vmatprep.subr.bf16.mxu0 0
  %6477 = vmatpush1.bf16.msra.mxu0 %v4793
  %6478 = vmatprep.subr.bf16.mxu0 0
  %6479 = vmatpush1.bf16.msra.mxu0 %v4794
  %6480 = vmatprep.subr.bf16.mxu0 0
  %6481 = vmatpush1.bf16.msra.mxu0 %v4795
  %6482 = vmatprep.subr.bf16.mxu0 0
  %6483 = vmatpush1.bf16.msra.mxu0 %v4796
  %6484 = vmatprep.subr.bf16.mxu0 0
  %6485 = vmatpush1.bf16.msra.mxu0 %v4797
  %6486 = vmatprep.subr.bf16.mxu0 0
  %6487 = vmatpush1.bf16.msra.mxu0 %v4798
  %6488 = vmatprep.subr.bf16.mxu0 0
  %6489 = vmatpush1.bf16.msra.mxu0 %v4799
  %6490 = vmatprep.subr.bf16.mxu0 0
  %6491 = vmatpush1.bf16.msra.mxu0 %v4800
  %6492 = vmatprep.subr.bf16.mxu0 0
  %6493 = vmatpush1.bf16.msra.mxu0 %v4801
  %6494 = vmatprep.subr.bf16.mxu0 0
  %6495 = vmatpush1.bf16.msra.mxu0 %v4802
  %6496 = vmatprep.subr.bf16.mxu0 0
  %6497 = vmatpush1.bf16.msra.mxu0 %v4803
  %6498 = vmatprep.mubr.bf16.mxu0 %v1933
  %6499 = vmatmul.mubr.bf16.gmra.mrb[0].mxu0 %v1932
  %v6500 = vpop.f32.mrb[0].mxu0
  %v6501 = vadd.f32 %v6452, %v6500
  %v6502 = vpop.f32.mrb[0].mxu0
  %v6503 = vpop.f32.mrb[0].mxu0
  %v6504 = vadd.f32 %v6455, %v6503
  %v6505 = vpop.f32.mrb[0].mxu0
  %6506 = vmatprep.mubr.bf16.mxu0 %v2007
  %6507 = vmatmul.mubr.bf16.gmra.mrb[0].mxu0 %v2006
  %v6508 = vpop.f32.mrb[0].mxu0
  %v6509 = vadd.f32 %v6460, %v6508
  %v6510 = vpop.f32.mrb[0].mxu0
  %v6511 = vpop.f32.mrb[0].mxu0
  %v6512 = vadd.f32 %v6463, %v6511
  %v6513 = vpop.f32.mrb[0].mxu0
  %6514 = vdwg.mxu0
  %6515 = vmatprep.subr.bf16.mxu0 0
  %6516 = vmatpush1.bf16.msra.mxu0 %v4804
  %6517 = vmatprep.subr.bf16.mxu0 0
  %6518 = vmatpush1.bf16.msra.mxu0 %v4805
  %6519 = vmatprep.subr.bf16.mxu0 0
  %6520 = vmatpush1.bf16.msra.mxu0 %v4806
  %6521 = vmatprep.subr.bf16.mxu0 0
  %6522 = vmatpush1.bf16.msra.mxu0 %v4807
  %6523 = vmatprep.subr.bf16.mxu0 0
  %6524 = vmatpush1.bf16.msra.mxu0 %v4808
  %6525 = vmatprep.subr.bf16.mxu0 0
  %6526 = vmatpush1.bf16.msra.mxu0 %v4809
  %6527 = vmatprep.subr.bf16.mxu0 0
  %6528 = vmatpush1.bf16.msra.mxu0 %v4810
  %6529 = vmatprep.subr.bf16.mxu0 0
  %6530 = vmatpush1.bf16.msra.mxu0 %v4811
  %6531 = vmatprep.subr.bf16.mxu0 0
  %6532 = vmatpush1.bf16.msra.mxu0 %v4812
  %6533 = vmatprep.subr.bf16.mxu0 0
  %6534 = vmatpush1.bf16.msra.mxu0 %v4813
  %6535 = vmatprep.subr.bf16.mxu0 0
  %6536 = vmatpush1.bf16.msra.mxu0 %v4814
  %6537 = vmatprep.subr.bf16.mxu0 0
  %6538 = vmatpush1.bf16.msra.mxu0 %v4815
  %6539 = vmatprep.subr.bf16.mxu0 0
  %6540 = vmatpush1.bf16.msra.mxu0 %v4816
  %6541 = vmatprep.subr.bf16.mxu0 0
  %6542 = vmatpush1.bf16.msra.mxu0 %v4817
  %6543 = vmatprep.subr.bf16.mxu0 0
  %6544 = vmatpush1.bf16.msra.mxu0 %v4818
  %6545 = vmatprep.subr.bf16.mxu0 0
  %6546 = vmatpush1.bf16.msra.mxu0 %v4819
  %6547 = vmatprep.mubr.bf16.mxu0 %v1935
  %6548 = vmatmul.mubr.bf16.gmra.mrb[0].mxu0 %v1934
  %v6549 = vpop.f32.mrb[0].mxu0
  %v6550 = vadd.f32 %v6501, %v6549
  %v6551 = vpop.f32.mrb[0].mxu0
  %v6552 = vpop.f32.mrb[0].mxu0
  %v6553 = vadd.f32 %v6504, %v6552
  %v6554 = vpop.f32.mrb[0].mxu0
  %6555 = vmatprep.mubr.bf16.mxu0 %v2009
  %6556 = vmatmul.mubr.bf16.gmra.mrb[0].mxu0 %v2008
  %v6557 = vpop.f32.mrb[0].mxu0
  %v6558 = vadd.f32 %v6509, %v6557
  %v6559 = vpop.f32.mrb[0].mxu0
  %v6560 = vpop.f32.mrb[0].mxu0
  %v6561 = vadd.f32 %v6512, %v6560
  %v6562 = vpop.f32.mrb[0].mxu0
  %6563 = vdwg.mxu0
  %6564 = vmatprep.subr.bf16.mxu0 0
  %6565 = vmatpush1.bf16.msra.mxu0 %v4820
  %6566 = vmatprep.subr.bf16.mxu0 0
  %6567 = vmatpush1.bf16.msra.mxu0 %v4821
  %6568 = vmatprep.subr.bf16.mxu0 0
  %6569 = vmatpush1.bf16.msra.mxu0 %v4822
  %6570 = vmatprep.subr.bf16.mxu0 0
  %6571 = vmatpush1.bf16.msra.mxu0 %v4823
  %6572 = vmatprep.subr.bf16.mxu0 0
  %6573 = vmatpush1.bf16.msra.mxu0 %v4824
  %6574 = vmatprep.subr.bf16.mxu0 0
  %6575 = vmatpush1.bf16.msra.mxu0 %v4825
  %6576 = vmatprep.subr.bf16.mxu0 0
  %6577 = vmatpush1.bf16.msra.mxu0 %v4826
  %6578 = vmatprep.subr.bf16.mxu0 0
  %6579 = vmatpush1.bf16.msra.mxu0 %v4827
  %6580 = vmatprep.subr.bf16.mxu0 0
  %6581 = vmatpush1.bf16.msra.mxu0 %v4828
  %6582 = vmatprep.subr.bf16.mxu0 0
  %6583 = vmatpush1.bf16.msra.mxu0 %v4829
  %6584 = vmatprep.subr.bf16.mxu0 0
  %6585 = vmatpush1.bf16.msra.mxu0 %v4830
  %6586 = vmatprep.subr.bf16.mxu0 0
  %6587 = vmatpush1.bf16.msra.mxu0 %v4831
  %6588 = vmatprep.subr.bf16.mxu0 0
  %6589 = vmatpush1.bf16.msra.mxu0 %v4832
  %6590 = vmatprep.subr.bf16.mxu0 0
  %6591 = vmatpush1.bf16.msra.mxu0 %v4833
  %6592 = vmatprep.subr.bf16.mxu0 0
  %6593 = vmatpush1.bf16.msra.mxu0 %v4834
  %6594 = vmatprep.subr.bf16.mxu0 0
  %6595 = vmatpush1.bf16.msra.mxu0 %v4835
  %6596 = vmatprep.mubr.bf16.mxu0 %v1937
  %6597 = vmatmul.mubr.bf16.gmra.mrb[0].mxu0 %v1936
  %v6598 = vpop.f32.mrb[0].mxu0
  %v6599 = vadd.f32 %v6550, %v6598
  %v6600 = vpop.f32.mrb[0].mxu0
  %v6601 = vpop.f32.mrb[0].mxu0
  %v6602 = vadd.f32 %v6553, %v6601
  %v6603 = vpop.f32.mrb[0].mxu0
  %6604 = vmatprep.mubr.bf16.mxu0 %v2011
  %6605 = vmatmul.mubr.bf16.gmra.mrb[0].mxu0 %v2010
  %v6606 = vpop.f32.mrb[0].mxu0
  %v6607 = vadd.f32 %v6558, %v6606
  %v6608 = vpop.f32.mrb[0].mxu0
  %v6609 = vpop.f32.mrb[0].mxu0
  %v6610 = vadd.f32 %v6561, %v6609
  %v6611 = vpop.f32.mrb[0].mxu0
  %6612 = vdwg.mxu0
  %6613 = vmatprep.subr.bf16.mxu0 0
  %6614 = vmatpush1.bf16.msra.mxu0 %v4836
  %6615 = vmatprep.subr.bf16.mxu0 0
  %6616 = vmatpush1.bf16.msra.mxu0 %v4837
  %6617 = vmatprep.subr.bf16.mxu0 0
  %6618 = vmatpush1.bf16.msra.mxu0 %v4838
  %6619 = vmatprep.subr.bf16.mxu0 0
  %6620 = vmatpush1.bf16.msra.mxu0 %v4839
  %6621 = vmatprep.subr.bf16.mxu0 0
  %6622 = vmatpush1.bf16.msra.mxu0 %v4840
  %6623 = vmatprep.subr.bf16.mxu0 0
  %6624 = vmatpush1.bf16.msra.mxu0 %v4841
  %6625 = vmatprep.subr.bf16.mxu0 0
  %6626 = vmatpush1.bf16.msra.mxu0 %v4842
  %6627 = vmatprep.subr.bf16.mxu0 0
  %6628 = vmatpush1.bf16.msra.mxu0 %v4843
  %6629 = vmatprep.subr.bf16.mxu0 0
  %6630 = vmatpush1.bf16.msra.mxu0 %v4844
  %6631 = vmatprep.subr.bf16.mxu0 0
  %6632 = vmatpush1.bf16.msra.mxu0 %v4845
  %6633 = vmatprep.subr.bf16.mxu0 0
  %6634 = vmatpush1.bf16.msra.mxu0 %v4846
  %6635 = vmatprep.subr.bf16.mxu0 0
  %6636 = vmatpush1.bf16.msra.mxu0 %v4847
  %6637 = vmatprep.subr.bf16.mxu0 0
  %6638 = vmatpush1.bf16.msra.mxu0 %v4848
  %6639 = vmatprep.subr.bf16.mxu0 0
  %6640 = vmatpush1.bf16.msra.mxu0 %v4849
  %6641 = vmatprep.subr.bf16.mxu0 0
  %6642 = vmatpush1.bf16.msra.mxu0 %v4850
  %6643 = vmatprep.subr.bf16.mxu0 0
  %6644 = vmatpush1.bf16.msra.mxu0 %v4851
  %6645 = vmatprep.mubr.bf16.mxu0 %v1939
  %6646 = vmatmul.mubr.bf16.gmra.mrb[0].mxu0 %v1938
  %v6647 = vpop.f32.mrb[0].mxu0
  %v6648 = vadd.f32 %v6599, %v6647
  %v6649 = vpop.f32.mrb[0].mxu0
  %v6650 = vpop.f32.mrb[0].mxu0
  %v6651 = vadd.f32 %v6602, %v6650
  %v6652 = vpop.f32.mrb[0].mxu0
  %6653 = vmatprep.mubr.bf16.mxu0 %v2013
  %6654 = vmatmul.mubr.bf16.gmra.mrb[0].mxu0 %v2012
  %v6655 = vpop.f32.mrb[0].mxu0
  %v6656 = vadd.f32 %v6607, %v6655
  %v6657 = vpop.f32.mrb[0].mxu0
  %v6658 = vpop.f32.mrb[0].mxu0
  %v6659 = vadd.f32 %v6610, %v6658
  %v6660 = vpop.f32.mrb[0].mxu0
  %6661 = vdwg.mxu0
  %6662 = vmatprep.subr.bf16.mxu0 0
  %6663 = vmatpush1.bf16.msra.mxu0 %v4852
  %6664 = vmatprep.subr.bf16.mxu0 0
  %6665 = vmatpush1.bf16.msra.mxu0 %v4853
  %6666 = vmatprep.subr.bf16.mxu0 0
  %6667 = vmatpush1.bf16.msra.mxu0 %v4854
  %6668 = vmatprep.subr.bf16.mxu0 0
  %6669 = vmatpush1.bf16.msra.mxu0 %v4855
  %6670 = vmatprep.subr.bf16.mxu0 0
  %6671 = vmatpush1.bf16.msra.mxu0 %v4856
  %6672 = vmatprep.subr.bf16.mxu0 0
  %6673 = vmatpush1.bf16.msra.mxu0 %v4857
  %6674 = vmatprep.subr.bf16.mxu0 0
  %6675 = vmatpush1.bf16.msra.mxu0 %v4858
  %6676 = vmatprep.subr.bf16.mxu0 0
  %6677 = vmatpush1.bf16.msra.mxu0 %v4859
  %6678 = vmatprep.subr.bf16.mxu0 0
  %6679 = vmatpush1.bf16.msra.mxu0 %v4860
  %6680 = vmatprep.subr.bf16.mxu0 0
  %6681 = vmatpush1.bf16.msra.mxu0 %v4861
  %6682 = vmatprep.subr.bf16.mxu0 0
  %6683 = vmatpush1.bf16.msra.mxu0 %v4862
  %6684 = vmatprep.subr.bf16.mxu0 0
  %6685 = vmatpush1.bf16.msra.mxu0 %v4863
  %6686 = vmatprep.subr.bf16.mxu0 0
  %6687 = vmatpush1.bf16.msra.mxu0 %v4864
  %6688 = vmatprep.subr.bf16.mxu0 0
  %6689 = vmatpush1.bf16.msra.mxu0 %v4865
  %6690 = vmatprep.subr.bf16.mxu0 0
  %6691 = vmatpush1.bf16.msra.mxu0 %v4866
  %6692 = vmatprep.subr.bf16.mxu0 0
  %6693 = vmatpush1.bf16.msra.mxu0 %v4867
  %6694 = vmatprep.mubr.bf16.mxu0 %v1941
  %6695 = vmatmul.mubr.bf16.gmra.mrb[0].mxu0 %v1940
  %v6696 = vpop.f32.mrb[0].mxu0
  %v6697 = vadd.f32 %v6648, %v6696
  %v6698 = vpop.f32.mrb[0].mxu0
  %v6699 = vpop.f32.mrb[0].mxu0
  %v6700 = vadd.f32 %v6651, %v6699
  %v6701 = vpop.f32.mrb[0].mxu0
  %6702 = vmatprep.mubr.bf16.mxu0 %v2015
  %6703 = vmatmul.mubr.bf16.gmra.mrb[0].mxu0 %v2014
  %v6704 = vpop.f32.mrb[0].mxu0
  %v6705 = vadd.f32 %v6656, %v6704
  %v6706 = vpop.f32.mrb[0].mxu0
  %v6707 = vpop.f32.mrb[0].mxu0
  %v6708 = vadd.f32 %v6659, %v6707
  %v6709 = vpop.f32.mrb[0].mxu0
  %6710 = vdwg.mxu0
  %6711 = vmatprep.subr.bf16.mxu0 0
  %6712 = vmatpush1.bf16.msra.mxu0 %v4868
  %6713 = vmatprep.subr.bf16.mxu0 0
  %6714 = vmatpush1.bf16.msra.mxu0 %v4869
  %6715 = vmatprep.subr.bf16.mxu0 0
  %6716 = vmatpush1.bf16.msra.mxu0 %v4870
  %6717 = vmatprep.subr.bf16.mxu0 0
  %6718 = vmatpush1.bf16.msra.mxu0 %v4871
  %6719 = vmatprep.subr.bf16.mxu0 0
  %6720 = vmatpush1.bf16.msra.mxu0 %v4872
  %6721 = vmatprep.subr.bf16.mxu0 0
  %6722 = vmatpush1.bf16.msra.mxu0 %v4873
  %6723 = vmatprep.subr.bf16.mxu0 0
  %6724 = vmatpush1.bf16.msra.mxu0 %v4874
  %6725 = vmatprep.subr.bf16.mxu0 0
  %6726 = vmatpush1.bf16.msra.mxu0 %v4875
  %6727 = vmatprep.subr.bf16.mxu0 0
  %6728 = vmatpush1.bf16.msra.mxu0 %v4876
  %6729 = vmatprep.subr.bf16.mxu0 0
  %6730 = vmatpush1.bf16.msra.mxu0 %v4877
  %6731 = vmatprep.subr.bf16.mxu0 0
  %6732 = vmatpush1.bf16.msra.mxu0 %v4878
  %6733 = vmatprep.subr.bf16.mxu0 0
  %6734 = vmatpush1.bf16.msra.mxu0 %v4879
  %6735 = vmatprep.subr.bf16.mxu0 0
  %6736 = vmatpush1.bf16.msra.mxu0 %v4880
  %6737 = vmatprep.subr.bf16.mxu0 0
  %6738 = vmatpush1.bf16.msra.mxu0 %v4881
  %6739 = vmatprep.subr.bf16.mxu0 0
  %6740 = vmatpush1.bf16.msra.mxu0 %v4882
  %6741 = vmatprep.subr.bf16.mxu0 0
  %6742 = vmatpush1.bf16.msra.mxu0 %v4883
  %6743 = vmatprep.mubr.bf16.mxu0 %v1943
  %6744 = vmatmul.mubr.bf16.gmra.mrb[0].mxu0 %v1942
  %v6745 = vpop.f32.mrb[0].mxu0
  %v6746 = vadd.f32 %v6697, %v6745
  %v6747 = vpop.f32.mrb[0].mxu0
  %v6748 = vpop.f32.mrb[0].mxu0
  %v6749 = vadd.f32 %v6700, %v6748
  %v6750 = vpop.f32.mrb[0].mxu0
  %6751 = vmatprep.mubr.bf16.mxu0 %v2017
  %6752 = vmatmul.mubr.bf16.gmra.mrb[0].mxu0 %v2016
  %v6753 = vpop.f32.mrb[0].mxu0
  %v6754 = vadd.f32 %v6705, %v6753
  %v6755 = vpop.f32.mrb[0].mxu0
  %v6756 = vpop.f32.mrb[0].mxu0
  %v6757 = vadd.f32 %v6708, %v6756
  %v6758 = vpop.f32.mrb[0].mxu0
  %6759 = vdwg.mxu0
  %6760 = vmatprep.subr.bf16.mxu0 0
  %6761 = vmatpush1.bf16.msra.mxu0 %v4884
  %6762 = vmatprep.subr.bf16.mxu0 0
  %6763 = vmatpush1.bf16.msra.mxu0 %v4885
  %6764 = vmatprep.subr.bf16.mxu0 0
  %6765 = vmatpush1.bf16.msra.mxu0 %v4886
  %6766 = vmatprep.subr.bf16.mxu0 0
  %6767 = vmatpush1.bf16.msra.mxu0 %v4887
  %6768 = vmatprep.subr.bf16.mxu0 0
  %6769 = vmatpush1.bf16.msra.mxu0 %v4888
  %6770 = vmatprep.subr.bf16.mxu0 0
  %6771 = vmatpush1.bf16.msra.mxu0 %v4889
  %6772 = vmatprep.subr.bf16.mxu0 0
  %6773 = vmatpush1.bf16.msra.mxu0 %v4890
  %6774 = vmatprep.subr.bf16.mxu0 0
  %6775 = vmatpush1.bf16.msra.mxu0 %v4891
  %6776 = vmatprep.subr.bf16.mxu0 0
  %6777 = vmatpush1.bf16.msra.mxu0 %v4892
  %6778 = vmatprep.subr.bf16.mxu0 0
  %6779 = vmatpush1.bf16.msra.mxu0 %v4893
  %6780 = vmatprep.subr.bf16.mxu0 0
  %6781 = vmatpush1.bf16.msra.mxu0 %v4894
  %6782 = vmatprep.subr.bf16.mxu0 0
  %6783 = vmatpush1.bf16.msra.mxu0 %v4895
  %6784 = vmatprep.subr.bf16.mxu0 0
  %6785 = vmatpush1.bf16.msra.mxu0 %v4896
  %6786 = vmatprep.subr.bf16.mxu0 0
  %6787 = vmatpush1.bf16.msra.mxu0 %v4897
  %6788 = vmatprep.subr.bf16.mxu0 0
  %6789 = vmatpush1.bf16.msra.mxu0 %v4898
  %6790 = vmatprep.subr.bf16.mxu0 0
  %6791 = vmatpush1.bf16.msra.mxu0 %v4899
  %6792 = vmatprep.mubr.bf16.mxu0 %v1945
  %6793 = vmatmul.mubr.bf16.gmra.mrb[0].mxu0 %v1944
  %v6794 = vpop.f32.mrb[0].mxu0
  %v6795 = vadd.f32 %v6746, %v6794
  %v6796 = vpop.f32.mrb[0].mxu0
  %v6797 = vpop.f32.mrb[0].mxu0
  %v6798 = vadd.f32 %v6749, %v6797
  %v6799 = vpop.f32.mrb[0].mxu0
  %6800 = vmatprep.mubr.bf16.mxu0 %v2019
  %6801 = vmatmul.mubr.bf16.gmra.mrb[0].mxu0 %v2018
  %v6802 = vpop.f32.mrb[0].mxu0
  %v6803 = vadd.f32 %v6754, %v6802
  %v6804 = vpop.f32.mrb[0].mxu0
  %v6805 = vpop.f32.mrb[0].mxu0
  %v6806 = vadd.f32 %v6757, %v6805
  %v6807 = vpop.f32.mrb[0].mxu0
  %6808 = vdwg.mxu0
  %6809 = vmatprep.subr.bf16.mxu0 0
  %6810 = vmatpush1.bf16.msra.mxu0 %v4900
  %6811 = vmatprep.subr.bf16.mxu0 0
  %6812 = vmatpush1.bf16.msra.mxu0 %v4901
  %6813 = vmatprep.subr.bf16.mxu0 0
  %6814 = vmatpush1.bf16.msra.mxu0 %v4902
  %6815 = vmatprep.subr.bf16.mxu0 0
  %6816 = vmatpush1.bf16.msra.mxu0 %v4903
  %6817 = vmatprep.subr.bf16.mxu0 0
  %6818 = vmatpush1.bf16.msra.mxu0 %v4904
  %6819 = vmatprep.subr.bf16.mxu0 0
  %6820 = vmatpush1.bf16.msra.mxu0 %v4905
  %6821 = vmatprep.subr.bf16.mxu0 0
  %6822 = vmatpush1.bf16.msra.mxu0 %v4906
  %6823 = vmatprep.subr.bf16.mxu0 0
  %6824 = vmatpush1.bf16.msra.mxu0 %v4907
  %6825 = vmatprep.subr.bf16.mxu0 0
  %6826 = vmatpush1.bf16.msra.mxu0 %v4908
  %6827 = vmatprep.subr.bf16.mxu0 0
  %6828 = vmatpush1.bf16.msra.mxu0 %v4909
  %6829 = vmatprep.subr.bf16.mxu0 0
  %6830 = vmatpush1.bf16.msra.mxu0 %v4910
  %6831 = vmatprep.subr.bf16.mxu0 0
  %6832 = vmatpush1.bf16.msra.mxu0 %v4911
  %6833 = vmatprep.subr.bf16.mxu0 0
  %6834 = vmatpush1.bf16.msra.mxu0 %v4912
  %6835 = vmatprep.subr.bf16.mxu0 0
  %6836 = vmatpush1.bf16.msra.mxu0 %v4913
  %6837 = vmatprep.subr.bf16.mxu0 0
  %6838 = vmatpush1.bf16.msra.mxu0 %v4914
  %6839 = vmatprep.subr.bf16.mxu0 0
  %6840 = vmatpush1.bf16.msra.mxu0 %v4915
  %6841 = vmatprep.mubr.bf16.mxu0 %v1947
  %6842 = vmatmul.mubr.bf16.gmra.mrb[0].mxu0 %v1946
  %v6843 = vpop.f32.mrb[0].mxu0
  %v6844 = vadd.f32 %v6795, %v6843
  %v6845 = vpop.f32.mrb[0].mxu0
  %v6846 = vpop.f32.mrb[0].mxu0
  %v6847 = vadd.f32 %v6798, %v6846
  %v6848 = vpop.f32.mrb[0].mxu0
  %6849 = vmatprep.mubr.bf16.mxu0 %v2021
  %6850 = vmatmul.mubr.bf16.gmra.mrb[0].mxu0 %v2020
  %v6851 = vpop.f32.mrb[0].mxu0
  %v6852 = vadd.f32 %v6803, %v6851
  %v6853 = vpop.f32.mrb[0].mxu0
  %v6854 = vpop.f32.mrb[0].mxu0
  %v6855 = vadd.f32 %v6806, %v6854
  %v6856 = vpop.f32.mrb[0].mxu0
  %6857 = vdwg.mxu0
  %6858 = vmatprep.subr.bf16.mxu0 0
  %6859 = vmatpush1.bf16.msra.mxu0 %v4916
  %6860 = vmatprep.subr.bf16.mxu0 0
  %6861 = vmatpush1.bf16.msra.mxu0 %v4917
  %6862 = vmatprep.subr.bf16.mxu0 0
  %6863 = vmatpush1.bf16.msra.mxu0 %v4918
  %6864 = vmatprep.subr.bf16.mxu0 0
  %6865 = vmatpush1.bf16.msra.mxu0 %v4919
  %6866 = vmatprep.subr.bf16.mxu0 0
  %6867 = vmatpush1.bf16.msra.mxu0 %v4920
  %6868 = vmatprep.subr.bf16.mxu0 0
  %6869 = vmatpush1.bf16.msra.mxu0 %v4921
  %6870 = vmatprep.subr.bf16.mxu0 0
  %6871 = vmatpush1.bf16.msra.mxu0 %v4922
  %6872 = vmatprep.subr.bf16.mxu0 0
  %6873 = vmatpush1.bf16.msra.mxu0 %v4923
  %6874 = vmatprep.subr.bf16.mxu0 0
  %6875 = vmatpush1.bf16.msra.mxu0 %v4924
  %6876 = vmatprep.subr.bf16.mxu0 0
  %6877 = vmatpush1.bf16.msra.mxu0 %v4925
  %6878 = vmatprep.subr.bf16.mxu0 0
  %6879 = vmatpush1.bf16.msra.mxu0 %v4926
  %6880 = vmatprep.subr.bf16.mxu0 0
  %6881 = vmatpush1.bf16.msra.mxu0 %v4927
  %6882 = vmatprep.subr.bf16.mxu0 0
  %6883 = vmatpush1.bf16.msra.mxu0 %v4928
  %6884 = vmatprep.subr.bf16.mxu0 0
  %6885 = vmatpush1.bf16.msra.mxu0 %v4929
  %6886 = vmatprep.subr.bf16.mxu0 0
  %6887 = vmatpush1.bf16.msra.mxu0 %v4930
  %6888 = vmatprep.subr.bf16.mxu0 0
  %6889 = vmatpush1.bf16.msra.mxu0 %v4931
  %6890 = vmatprep.mubr.bf16.mxu0 %v1949
  %6891 = vmatmul.mubr.bf16.gmra.mrb[0].mxu0 %v1948
  %v6892 = vpop.f32.mrb[0].mxu0
  %v6893 = vadd.f32 %v6844, %v6892
  %v6894 = vpop.f32.mrb[0].mxu0
  %v6895 = vpop.f32.mrb[0].mxu0
  %v6896 = vadd.f32 %v6847, %v6895
  %v6897 = vpop.f32.mrb[0].mxu0
  %6898 = vmatprep.mubr.bf16.mxu0 %v2023
  %6899 = vmatmul.mubr.bf16.gmra.mrb[0].mxu0 %v2022
  %v6900 = vpop.f32.mrb[0].mxu0
  %v6901 = vadd.f32 %v6852, %v6900
  %v6902 = vpop.f32.mrb[0].mxu0
  %v6903 = vpop.f32.mrb[0].mxu0
  %v6904 = vadd.f32 %v6855, %v6903
  %v6905 = vpop.f32.mrb[0].mxu0
  %6906 = vdwg.mxu0
  %6907 = vmatprep.subr.bf16.mxu0 0
  %6908 = vmatpush1.bf16.msra.mxu0 %v4932
  %6909 = vmatprep.subr.bf16.mxu0 0
  %6910 = vmatpush1.bf16.msra.mxu0 %v4933
  %6911 = vmatprep.subr.bf16.mxu0 0
  %6912 = vmatpush1.bf16.msra.mxu0 %v4934
  %6913 = vmatprep.subr.bf16.mxu0 0
  %6914 = vmatpush1.bf16.msra.mxu0 %v4935
  %6915 = vmatprep.subr.bf16.mxu0 0
  %6916 = vmatpush1.bf16.msra.mxu0 %v4936
  %6917 = vmatprep.subr.bf16.mxu0 0
  %6918 = vmatpush1.bf16.msra.mxu0 %v4937
  %6919 = vmatprep.subr.bf16.mxu0 0
  %6920 = vmatpush1.bf16.msra.mxu0 %v4938
  %6921 = vmatprep.subr.bf16.mxu0 0
  %6922 = vmatpush1.bf16.msra.mxu0 %v4939
  %6923 = vmatprep.subr.bf16.mxu0 0
  %6924 = vmatpush1.bf16.msra.mxu0 %v4940
  %6925 = vmatprep.subr.bf16.mxu0 0
  %6926 = vmatpush1.bf16.msra.mxu0 %v4941
  %6927 = vmatprep.subr.bf16.mxu0 0
  %6928 = vmatpush1.bf16.msra.mxu0 %v4942
  %6929 = vmatprep.subr.bf16.mxu0 0
  %6930 = vmatpush1.bf16.msra.mxu0 %v4943
  %6931 = vmatprep.subr.bf16.mxu0 0
  %6932 = vmatpush1.bf16.msra.mxu0 %v4944
  %6933 = vmatprep.subr.bf16.mxu0 0
  %6934 = vmatpush1.bf16.msra.mxu0 %v4945
  %6935 = vmatprep.subr.bf16.mxu0 0
  %6936 = vmatpush1.bf16.msra.mxu0 %v4946
  %6937 = vmatprep.subr.bf16.mxu0 0
  %6938 = vmatpush1.bf16.msra.mxu0 %v4947
  %6939 = vmatprep.mubr.bf16.mxu0 %v1951
  %6940 = vmatmul.mubr.bf16.gmra.mrb[0].mxu0 %v1950
  %v6941 = vpop.f32.mrb[0].mxu0
  %v6942 = vadd.f32 %v6893, %v6941
  %v6943 = vpop.f32.mrb[0].mxu0
  %v6944 = vpop.f32.mrb[0].mxu0
  %v6945 = vadd.f32 %v6896, %v6944
  %v6946 = vpop.f32.mrb[0].mxu0
  %6947 = vmatprep.mubr.bf16.mxu0 %v2025
  %6948 = vmatmul.mubr.bf16.gmra.mrb[0].mxu0 %v2024
  %v6949 = vpop.f32.mrb[0].mxu0
  %v6950 = vadd.f32 %v6901, %v6949
  %v6951 = vpop.f32.mrb[0].mxu0
  %v6952 = vpop.f32.mrb[0].mxu0
  %v6953 = vadd.f32 %v6904, %v6952
  %v6954 = vpop.f32.mrb[0].mxu0
  %6955 = vdwg.mxu0
  %6956 = vmatprep.subr.bf16.mxu0 0
  %6957 = vmatpush1.bf16.msra.mxu0 %v4948
  %6958 = vmatprep.subr.bf16.mxu0 0
  %6959 = vmatpush1.bf16.msra.mxu0 %v4949
  %6960 = vmatprep.subr.bf16.mxu0 0
  %6961 = vmatpush1.bf16.msra.mxu0 %v4950
  %6962 = vmatprep.subr.bf16.mxu0 0
  %6963 = vmatpush1.bf16.msra.mxu0 %v4951
  %6964 = vmatprep.subr.bf16.mxu0 0
  %6965 = vmatpush1.bf16.msra.mxu0 %v4952
  %6966 = vmatprep.subr.bf16.mxu0 0
  %6967 = vmatpush1.bf16.msra.mxu0 %v4953
  %6968 = vmatprep.subr.bf16.mxu0 0
  %6969 = vmatpush1.bf16.msra.mxu0 %v4954
  %6970 = vmatprep.subr.bf16.mxu0 0
  %6971 = vmatpush1.bf16.msra.mxu0 %v4955
  %6972 = vmatprep.subr.bf16.mxu0 0
  %6973 = vmatpush1.bf16.msra.mxu0 %v4956
  %6974 = vmatprep.subr.bf16.mxu0 0
  %6975 = vmatpush1.bf16.msra.mxu0 %v4957
  %6976 = vmatprep.subr.bf16.mxu0 0
  %6977 = vmatpush1.bf16.msra.mxu0 %v4958
  %6978 = vmatprep.subr.bf16.mxu0 0
  %6979 = vmatpush1.bf16.msra.mxu0 %v4959
  %6980 = vmatprep.subr.bf16.mxu0 0
  %6981 = vmatpush1.bf16.msra.mxu0 %v4960
  %6982 = vmatprep.subr.bf16.mxu0 0
  %6983 = vmatpush1.bf16.msra.mxu0 %v4961
  %6984 = vmatprep.subr.bf16.mxu0 0
  %6985 = vmatpush1.bf16.msra.mxu0 %v4962
  %6986 = vmatprep.subr.bf16.mxu0 0
  %6987 = vmatpush1.bf16.msra.mxu0 %v4963
  %6988 = vmatprep.mubr.bf16.mxu0 %v1953
  %6989 = vmatmul.mubr.bf16.gmra.mrb[0].mxu0 %v1952
  %v6990 = vpop.f32.mrb[0].mxu0
  %v6991 = vadd.f32 %v6942, %v6990
  %v6992 = vpop.f32.mrb[0].mxu0
  %v6993 = vpop.f32.mrb[0].mxu0
  %v6994 = vadd.f32 %v6945, %v6993
  %v6995 = vpop.f32.mrb[0].mxu0
  %6996 = vmatprep.mubr.bf16.mxu0 %v2027
  %6997 = vmatmul.mubr.bf16.gmra.mrb[0].mxu0 %v2026
  %v6998 = vpop.f32.mrb[0].mxu0
  %v6999 = vadd.f32 %v6950, %v6998
  %v7000 = vpop.f32.mrb[0].mxu0
  %v7001 = vpop.f32.mrb[0].mxu0
  %v7002 = vadd.f32 %v6953, %v7001
  %v7003 = vpop.f32.mrb[0].mxu0
  %7004 = vdwg.mxu0
  %7005 = vmatprep.subr.bf16.mxu0 0
  %7006 = vmatpush1.bf16.msra.mxu0 %v4964
  %7007 = vmatprep.subr.bf16.mxu0 0
  %7008 = vmatpush1.bf16.msra.mxu0 %v4965
  %7009 = vmatprep.subr.bf16.mxu0 0
  %7010 = vmatpush1.bf16.msra.mxu0 %v4966
  %7011 = vmatprep.subr.bf16.mxu0 0
  %7012 = vmatpush1.bf16.msra.mxu0 %v4967
  %7013 = vmatprep.subr.bf16.mxu0 0
  %7014 = vmatpush1.bf16.msra.mxu0 %v4968
  %7015 = vmatprep.subr.bf16.mxu0 0
  %7016 = vmatpush1.bf16.msra.mxu0 %v4969
  %7017 = vmatprep.subr.bf16.mxu0 0
  %7018 = vmatpush1.bf16.msra.mxu0 %v4970
  %7019 = vmatprep.subr.bf16.mxu0 0
  %7020 = vmatpush1.bf16.msra.mxu0 %v4971
  %7021 = vmatprep.subr.bf16.mxu0 0
  %7022 = vmatpush1.bf16.msra.mxu0 %v4972
  %7023 = vmatprep.subr.bf16.mxu0 0
  %7024 = vmatpush1.bf16.msra.mxu0 %v4973
  %7025 = vmatprep.subr.bf16.mxu0 0
  %7026 = vmatpush1.bf16.msra.mxu0 %v4974
  %7027 = vmatprep.subr.bf16.mxu0 0
  %7028 = vmatpush1.bf16.msra.mxu0 %v4975
  %7029 = vmatprep.subr.bf16.mxu0 0
  %7030 = vmatpush1.bf16.msra.mxu0 %v4976
  %7031 = vmatprep.subr.bf16.mxu0 0
  %7032 = vmatpush1.bf16.msra.mxu0 %v4977
  %7033 = vmatprep.subr.bf16.mxu0 0
  %7034 = vmatpush1.bf16.msra.mxu0 %v4978
  %7035 = vmatprep.subr.bf16.mxu0 0
  %7036 = vmatpush1.bf16.msra.mxu0 %v4979
  %7037 = vmatprep.mubr.bf16.mxu0 %v1955
  %7038 = vmatmul.mubr.bf16.gmra.mrb[0].mxu0 %v1954
  %v7039 = vpop.f32.mrb[0].mxu0
  %v7040 = vadd.f32 %v6991, %v7039
  %v7041 = vpop.f32.mrb[0].mxu0
  %v7042 = vpop.f32.mrb[0].mxu0
  %v7043 = vadd.f32 %v6994, %v7042
  %v7044 = vpop.f32.mrb[0].mxu0
  %7045 = vmatprep.mubr.bf16.mxu0 %v2029
  %7046 = vmatmul.mubr.bf16.gmra.mrb[0].mxu0 %v2028
  %v7047 = vpop.f32.mrb[0].mxu0
  %v7048 = vadd.f32 %v6999, %v7047
  %v7049 = vpop.f32.mrb[0].mxu0
  %v7050 = vpop.f32.mrb[0].mxu0
  %v7051 = vadd.f32 %v7002, %v7050
  %v7052 = vpop.f32.mrb[0].mxu0
  %7053 = vdwg.mxu0
  %7054 = vmatprep.subr.bf16.mxu0 0
  %7055 = vmatpush1.bf16.msra.mxu0 %v4980
  %7056 = vmatprep.subr.bf16.mxu0 0
  %7057 = vmatpush1.bf16.msra.mxu0 %v4981
  %7058 = vmatprep.subr.bf16.mxu0 0
  %7059 = vmatpush1.bf16.msra.mxu0 %v4982
  %7060 = vmatprep.subr.bf16.mxu0 0
  %7061 = vmatpush1.bf16.msra.mxu0 %v4983
  %7062 = vmatprep.subr.bf16.mxu0 0
  %7063 = vmatpush1.bf16.msra.mxu0 %v4984
  %7064 = vmatprep.subr.bf16.mxu0 0
  %7065 = vmatpush1.bf16.msra.mxu0 %v4985
  %7066 = vmatprep.subr.bf16.mxu0 0
  %7067 = vmatpush1.bf16.msra.mxu0 %v4986
  %7068 = vmatprep.subr.bf16.mxu0 0
  %7069 = vmatpush1.bf16.msra.mxu0 %v4987
  %7070 = vmatprep.subr.bf16.mxu0 0
  %7071 = vmatpush1.bf16.msra.mxu0 %v4988
  %7072 = vmatprep.subr.bf16.mxu0 0
  %7073 = vmatpush1.bf16.msra.mxu0 %v4989
  %7074 = vmatprep.subr.bf16.mxu0 0
  %7075 = vmatpush1.bf16.msra.mxu0 %v4990
  %7076 = vmatprep.subr.bf16.mxu0 0
  %7077 = vmatpush1.bf16.msra.mxu0 %v4991
  %7078 = vmatprep.subr.bf16.mxu0 0
  %7079 = vmatpush1.bf16.msra.mxu0 %v4992
  %7080 = vmatprep.subr.bf16.mxu0 0
  %7081 = vmatpush1.bf16.msra.mxu0 %v4993
  %7082 = vmatprep.subr.bf16.mxu0 0
  %7083 = vmatpush1.bf16.msra.mxu0 %v4994
  %7084 = vmatprep.subr.bf16.mxu0 0
  %7085 = vmatpush1.bf16.msra.mxu0 %v4995
  %7086 = vmatprep.mubr.bf16.mxu0 %v1957
  %7087 = vmatmul.mubr.bf16.gmra.mrb[0].mxu0 %v1956
  %v7088 = vpop.f32.mrb[0].mxu0
  %v7089 = vadd.f32 %v7040, %v7088
  %v7090 = vpop.f32.mrb[0].mxu0
  %v7091 = vpop.f32.mrb[0].mxu0
  %v7092 = vadd.f32 %v7043, %v7091
  %v7093 = vpop.f32.mrb[0].mxu0
  %7094 = vmatprep.mubr.bf16.mxu0 %v2031
  %7095 = vmatmul.mubr.bf16.gmra.mrb[0].mxu0 %v2030
  %v7096 = vpop.f32.mrb[0].mxu0
  %v7097 = vadd.f32 %v7048, %v7096
  %v7098 = vpop.f32.mrb[0].mxu0
  %v7099 = vpop.f32.mrb[0].mxu0
  %v7100 = vadd.f32 %v7051, %v7099
  %v7101 = vpop.f32.mrb[0].mxu0
  %7102 = vdwg.mxu0
  %7103 = vmatprep.subr.bf16.mxu0 0
  %7104 = vmatpush1.bf16.msra.mxu0 %v4996
  %7105 = vmatprep.subr.bf16.mxu0 0
  %7106 = vmatpush1.bf16.msra.mxu0 %v4997
  %7107 = vmatprep.subr.bf16.mxu0 0
  %7108 = vmatpush1.bf16.msra.mxu0 %v4998
  %7109 = vmatprep.subr.bf16.mxu0 0
  %7110 = vmatpush1.bf16.msra.mxu0 %v4999
  %7111 = vmatprep.subr.bf16.mxu0 0
  %7112 = vmatpush1.bf16.msra.mxu0 %v5000
  %7113 = vmatprep.subr.bf16.mxu0 0
  %7114 = vmatpush1.bf16.msra.mxu0 %v5001
  %7115 = vmatprep.subr.bf16.mxu0 0
  %7116 = vmatpush1.bf16.msra.mxu0 %v5002
  %7117 = vmatprep.subr.bf16.mxu0 0
  %7118 = vmatpush1.bf16.msra.mxu0 %v5003
  %7119 = vmatprep.subr.bf16.mxu0 0
  %7120 = vmatpush1.bf16.msra.mxu0 %v5004
  %7121 = vmatprep.subr.bf16.mxu0 0
  %7122 = vmatpush1.bf16.msra.mxu0 %v5005
  %7123 = vmatprep.subr.bf16.mxu0 0
  %7124 = vmatpush1.bf16.msra.mxu0 %v5006
  %7125 = vmatprep.subr.bf16.mxu0 0
  %7126 = vmatpush1.bf16.msra.mxu0 %v5007
  %7127 = vmatprep.subr.bf16.mxu0 0
  %7128 = vmatpush1.bf16.msra.mxu0 %v5008
  %7129 = vmatprep.subr.bf16.mxu0 0
  %7130 = vmatpush1.bf16.msra.mxu0 %v5009
  %7131 = vmatprep.subr.bf16.mxu0 0
  %7132 = vmatpush1.bf16.msra.mxu0 %v5010
  %7133 = vmatprep.subr.bf16.mxu0 0
  %7134 = vmatpush1.bf16.msra.mxu0 %v5011
  %7135 = vmatprep.mubr.bf16.mxu0 %v1959
  %7136 = vmatmul.mubr.bf16.gmra.mrb[0].mxu0 %v1958
  %v7137 = vpop.f32.mrb[0].mxu0
  %v7138 = vadd.f32 %v7089, %v7137
  %v7139 = vpop.f32.mrb[0].mxu0
  %v7140 = vpop.f32.mrb[0].mxu0
  %v7141 = vadd.f32 %v7092, %v7140
  %v7142 = vpop.f32.mrb[0].mxu0
  %7143 = vmatprep.mubr.bf16.mxu0 %v2033
  %7144 = vmatmul.mubr.bf16.gmra.mrb[0].mxu0 %v2032
  %v7145 = vpop.f32.mrb[0].mxu0
  %v7146 = vadd.f32 %v7097, %v7145
  %v7147 = vpop.f32.mrb[0].mxu0
  %v7148 = vpop.f32.mrb[0].mxu0
  %v7149 = vadd.f32 %v7100, %v7148
  %v7150 = vpop.f32.mrb[0].mxu0
  %7151 = vdwg.mxu0
  %7152 = vmatprep.subr.bf16.mxu0 0
  %7153 = vmatpush1.bf16.msra.mxu0 %v5012
  %7154 = vmatprep.subr.bf16.mxu0 0
  %7155 = vmatpush1.bf16.msra.mxu0 %v5013
  %7156 = vmatprep.subr.bf16.mxu0 0
  %7157 = vmatpush1.bf16.msra.mxu0 %v5014
  %7158 = vmatprep.subr.bf16.mxu0 0
  %7159 = vmatpush1.bf16.msra.mxu0 %v5015
  %7160 = vmatprep.subr.bf16.mxu0 0
  %7161 = vmatpush1.bf16.msra.mxu0 %v5016
  %7162 = vmatprep.subr.bf16.mxu0 0
  %7163 = vmatpush1.bf16.msra.mxu0 %v5017
  %7164 = vmatprep.subr.bf16.mxu0 0
  %7165 = vmatpush1.bf16.msra.mxu0 %v5018
  %7166 = vmatprep.subr.bf16.mxu0 0
  %7167 = vmatpush1.bf16.msra.mxu0 %v5019
  %7168 = vmatprep.subr.bf16.mxu0 0
  %7169 = vmatpush1.bf16.msra.mxu0 %v5020
  %7170 = vmatprep.subr.bf16.mxu0 0
  %7171 = vmatpush1.bf16.msra.mxu0 %v5021
  %7172 = vmatprep.subr.bf16.mxu0 0
  %7173 = vmatpush1.bf16.msra.mxu0 %v5022
  %7174 = vmatprep.subr.bf16.mxu0 0
  %7175 = vmatpush1.bf16.msra.mxu0 %v5023
  %7176 = vmatprep.subr.bf16.mxu0 0
  %7177 = vmatpush1.bf16.msra.mxu0 %v5024
  %7178 = vmatprep.subr.bf16.mxu0 0
  %7179 = vmatpush1.bf16.msra.mxu0 %v5025
  %7180 = vmatprep.subr.bf16.mxu0 0
  %7181 = vmatpush1.bf16.msra.mxu0 %v5026
  %7182 = vmatprep.subr.bf16.mxu0 0
  %7183 = vmatpush1.bf16.msra.mxu0 %v5027
  %7184 = vmatprep.mubr.bf16.mxu0 %v1961
  %7185 = vmatmul.mubr.bf16.gmra.mrb[0].mxu0 %v1960
  %v7186 = vpop.f32.mrb[0].mxu0
  %v7187 = vadd.f32 %v7138, %v7186
  %v7188 = vpop.f32.mrb[0].mxu0
  %v7189 = vpop.f32.mrb[0].mxu0
  %v7190 = vadd.f32 %v7141, %v7189
  %v7191 = vpop.f32.mrb[0].mxu0
  %7192 = vmatprep.mubr.bf16.mxu0 %v2035
  %7193 = vmatmul.mubr.bf16.gmra.mrb[0].mxu0 %v2034
  %v7194 = vpop.f32.mrb[0].mxu0
  %v7195 = vadd.f32 %v7146, %v7194
  %v7196 = vpop.f32.mrb[0].mxu0
  %v7197 = vpop.f32.mrb[0].mxu0
  %v7198 = vadd.f32 %v7149, %v7197
  %v7199 = vpop.f32.mrb[0].mxu0
  %7200 = vdwg.mxu0
  %7201 = vmatprep.subr.bf16.mxu0 0
  %7202 = vmatpush1.bf16.msra.mxu0 %v5028
  %7203 = vmatprep.subr.bf16.mxu0 0
  %7204 = vmatpush1.bf16.msra.mxu0 %v5029
  %7205 = vmatprep.subr.bf16.mxu0 0
  %7206 = vmatpush1.bf16.msra.mxu0 %v5030
  %7207 = vmatprep.subr.bf16.mxu0 0
  %7208 = vmatpush1.bf16.msra.mxu0 %v5031
  %7209 = vmatprep.subr.bf16.mxu0 0
  %7210 = vmatpush1.bf16.msra.mxu0 %v5032
  %7211 = vmatprep.subr.bf16.mxu0 0
  %7212 = vmatpush1.bf16.msra.mxu0 %v5033
  %7213 = vmatprep.subr.bf16.mxu0 0
  %7214 = vmatpush1.bf16.msra.mxu0 %v5034
  %7215 = vmatprep.subr.bf16.mxu0 0
  %7216 = vmatpush1.bf16.msra.mxu0 %v5035
  %7217 = vmatprep.subr.bf16.mxu0 0
  %7218 = vmatpush1.bf16.msra.mxu0 %v5036
  %7219 = vmatprep.subr.bf16.mxu0 0
  %7220 = vmatpush1.bf16.msra.mxu0 %v5037
  %7221 = vmatprep.subr.bf16.mxu0 0
  %7222 = vmatpush1.bf16.msra.mxu0 %v5038
  %7223 = vmatprep.subr.bf16.mxu0 0
  %7224 = vmatpush1.bf16.msra.mxu0 %v5039
  %7225 = vmatprep.subr.bf16.mxu0 0
  %7226 = vmatpush1.bf16.msra.mxu0 %v5040
  %7227 = vmatprep.subr.bf16.mxu0 0
  %7228 = vmatpush1.bf16.msra.mxu0 %v5041
  %7229 = vmatprep.subr.bf16.mxu0 0
  %7230 = vmatpush1.bf16.msra.mxu0 %v5042
  %7231 = vmatprep.subr.bf16.mxu0 0
  %7232 = vmatpush1.bf16.msra.mxu0 %v5043
  %7233 = vmatprep.mubr.bf16.mxu0 %v1963
  %7234 = vmatmul.mubr.bf16.gmra.mrb[0].mxu0 %v1962
  %v7235 = vpop.f32.mrb[0].mxu0
  %v7236 = vadd.f32 %v7187, %v7235
  %v7237 = vpop.f32.mrb[0].mxu0
  %v7238 = vpop.f32.mrb[0].mxu0
  %v7239 = vadd.f32 %v7190, %v7238
  %v7240 = vpop.f32.mrb[0].mxu0
  %7241 = vmatprep.mubr.bf16.mxu0 %v2037
  %7242 = vmatmul.mubr.bf16.gmra.mrb[0].mxu0 %v2036
  %v7243 = vpop.f32.mrb[0].mxu0
  %v7244 = vadd.f32 %v7195, %v7243
  %v7245 = vpop.f32.mrb[0].mxu0
  %v7246 = vpop.f32.mrb[0].mxu0
  %v7247 = vadd.f32 %v7198, %v7246
  %v7248 = vpop.f32.mrb[0].mxu0
  %7249 = vdwg.mxu0
  %7250 = vmatprep.subr.bf16.mxu0 0
  %7251 = vmatpush1.bf16.msra.mxu0 %v5044
  %7252 = vmatprep.subr.bf16.mxu0 0
  %7253 = vmatpush1.bf16.msra.mxu0 %v5045
  %7254 = vmatprep.subr.bf16.mxu0 0
  %7255 = vmatpush1.bf16.msra.mxu0 %v5046
  %7256 = vmatprep.subr.bf16.mxu0 0
  %7257 = vmatpush1.bf16.msra.mxu0 %v5047
  %7258 = vmatprep.subr.bf16.mxu0 0
  %7259 = vmatpush1.bf16.msra.mxu0 %v5048
  %7260 = vmatprep.subr.bf16.mxu0 0
  %7261 = vmatpush1.bf16.msra.mxu0 %v5049
  %7262 = vmatprep.subr.bf16.mxu0 0
  %7263 = vmatpush1.bf16.msra.mxu0 %v5050
  %7264 = vmatprep.subr.bf16.mxu0 0
  %7265 = vmatpush1.bf16.msra.mxu0 %v5051
  %7266 = vmatprep.subr.bf16.mxu0 0
  %7267 = vmatpush1.bf16.msra.mxu0 %v5052
  %7268 = vmatprep.subr.bf16.mxu0 0
  %7269 = vmatpush1.bf16.msra.mxu0 %v5053
  %7270 = vmatprep.subr.bf16.mxu0 0
  %7271 = vmatpush1.bf16.msra.mxu0 %v5054
  %7272 = vmatprep.subr.bf16.mxu0 0
  %7273 = vmatpush1.bf16.msra.mxu0 %v5055
  %7274 = vmatprep.subr.bf16.mxu0 0
  %7275 = vmatpush1.bf16.msra.mxu0 %v5056
  %7276 = vmatprep.subr.bf16.mxu0 0
  %7277 = vmatpush1.bf16.msra.mxu0 %v5057
  %7278 = vmatprep.subr.bf16.mxu0 0
  %7279 = vmatpush1.bf16.msra.mxu0 %v5058
  %7280 = vmatprep.subr.bf16.mxu0 0
  %7281 = vmatpush1.bf16.msra.mxu0 %v5059
  %7282 = vmatprep.mubr.bf16.mxu0 %v1965
  %7283 = vmatmul.mubr.bf16.gmra.mrb[0].mxu0 %v1964
  %v7284 = vpop.f32.mrb[0].mxu0
  %v7285 = vadd.f32 %v7236, %v7284
  %v7286 = vpop.f32.mrb[0].mxu0
  %v7287 = vpop.f32.mrb[0].mxu0
  %v7288 = vadd.f32 %v7239, %v7287
  %v7289 = vpop.f32.mrb[0].mxu0
  %7290 = vmatprep.mubr.bf16.mxu0 %v2039
  %7291 = vmatmul.mubr.bf16.gmra.mrb[0].mxu0 %v2038
  %v7292 = vpop.f32.mrb[0].mxu0
  %v7293 = vadd.f32 %v7244, %v7292
  %v7294 = vpop.f32.mrb[0].mxu0
  %v7295 = vpop.f32.mrb[0].mxu0
  %v7296 = vadd.f32 %v7247, %v7295
  %v7297 = vpop.f32.mrb[0].mxu0
  %7298 = vdwg.mxu0
  %7299 = vmatprep.subr.bf16.mxu0 0
  %7300 = vmatpush1.bf16.msra.mxu0 %v5060
  %7301 = vmatprep.subr.bf16.mxu0 0
  %7302 = vmatpush1.bf16.msra.mxu0 %v5061
  %7303 = vmatprep.subr.bf16.mxu0 0
  %7304 = vmatpush1.bf16.msra.mxu0 %v5062
  %7305 = vmatprep.subr.bf16.mxu0 0
  %7306 = vmatpush1.bf16.msra.mxu0 %v5063
  %7307 = vmatprep.subr.bf16.mxu0 0
  %7308 = vmatpush1.bf16.msra.mxu0 %v5064
  %7309 = vmatprep.subr.bf16.mxu0 0
  %7310 = vmatpush1.bf16.msra.mxu0 %v5065
  %7311 = vmatprep.subr.bf16.mxu0 0
  %7312 = vmatpush1.bf16.msra.mxu0 %v5066
  %7313 = vmatprep.subr.bf16.mxu0 0
  %7314 = vmatpush1.bf16.msra.mxu0 %v5067
  %7315 = vmatprep.subr.bf16.mxu0 0
  %7316 = vmatpush1.bf16.msra.mxu0 %v5068
  %7317 = vmatprep.subr.bf16.mxu0 0
  %7318 = vmatpush1.bf16.msra.mxu0 %v5069
  %7319 = vmatprep.subr.bf16.mxu0 0
  %7320 = vmatpush1.bf16.msra.mxu0 %v5070
  %7321 = vmatprep.subr.bf16.mxu0 0
  %7322 = vmatpush1.bf16.msra.mxu0 %v5071
  %7323 = vmatprep.subr.bf16.mxu0 0
  %7324 = vmatpush1.bf16.msra.mxu0 %v5072
  %7325 = vmatprep.subr.bf16.mxu0 0
  %7326 = vmatpush1.bf16.msra.mxu0 %v5073
  %7327 = vmatprep.subr.bf16.mxu0 0
  %7328 = vmatpush1.bf16.msra.mxu0 %v5074
  %7329 = vmatprep.subr.bf16.mxu0 0
  %7330 = vmatpush1.bf16.msra.mxu0 %v5075
  %7331 = vmatprep.mubr.bf16.mxu0 %v1967
  %7332 = vmatmul.mubr.bf16.gmra.mrb[0].mxu0 %v1966
  %v7333 = vpop.f32.mrb[0].mxu0
  %v7334 = vadd.f32 %v7285, %v7333
  %v7335 = vpop.f32.mrb[0].mxu0
  %v7336 = vpop.f32.mrb[0].mxu0
  %v7337 = vadd.f32 %v7288, %v7336
  %v7338 = vpop.f32.mrb[0].mxu0
  %7339 = vmatprep.mubr.bf16.mxu0 %v2041
  %7340 = vmatmul.mubr.bf16.gmra.mrb[0].mxu0 %v2040
  %v7341 = vpop.f32.mrb[0].mxu0
  %v7342 = vadd.f32 %v7293, %v7341
  %v7343 = vpop.f32.mrb[0].mxu0
  %v7344 = vpop.f32.mrb[0].mxu0
  %v7345 = vadd.f32 %v7296, %v7344
  %v7346 = vpop.f32.mrb[0].mxu0
  %7347 = vdwg.mxu0
  %7348 = vmatprep.subr.bf16.mxu0 0
  %7349 = vmatpush1.bf16.msra.mxu0 %v5076
  %7350 = vmatprep.subr.bf16.mxu0 0
  %7351 = vmatpush1.bf16.msra.mxu0 %v5077
  %7352 = vmatprep.subr.bf16.mxu0 0
  %7353 = vmatpush1.bf16.msra.mxu0 %v5078
  %7354 = vmatprep.subr.bf16.mxu0 0
  %7355 = vmatpush1.bf16.msra.mxu0 %v5079
  %7356 = vmatprep.subr.bf16.mxu0 0
  %7357 = vmatpush1.bf16.msra.mxu0 %v5080
  %7358 = vmatprep.subr.bf16.mxu0 0
  %7359 = vmatpush1.bf16.msra.mxu0 %v5081
  %7360 = vmatprep.subr.bf16.mxu0 0
  %7361 = vmatpush1.bf16.msra.mxu0 %v5082
  %7362 = vmatprep.subr.bf16.mxu0 0
  %7363 = vmatpush1.bf16.msra.mxu0 %v5083
  %7364 = vmatprep.subr.bf16.mxu0 0
  %7365 = vmatpush1.bf16.msra.mxu0 %v5084
  %7366 = vmatprep.subr.bf16.mxu0 0
  %7367 = vmatpush1.bf16.msra.mxu0 %v5085
  %7368 = vmatprep.subr.bf16.mxu0 0
  %7369 = vmatpush1.bf16.msra.mxu0 %v5086
  %7370 = vmatprep.subr.bf16.mxu0 0
  %7371 = vmatpush1.bf16.msra.mxu0 %v5087
  %7372 = vmatprep.subr.bf16.mxu0 0
  %7373 = vmatpush1.bf16.msra.mxu0 %v5088
  %7374 = vmatprep.subr.bf16.mxu0 0
  %7375 = vmatpush1.bf16.msra.mxu0 %v5089
  %7376 = vmatprep.subr.bf16.mxu0 0
  %7377 = vmatpush1.bf16.msra.mxu0 %v5090
  %7378 = vmatprep.subr.bf16.mxu0 0
  %7379 = vmatpush1.bf16.msra.mxu0 %v5091
  %7380 = vmatprep.mubr.bf16.mxu0 %v1969
  %7381 = vmatmul.mubr.bf16.gmra.mrb[0].mxu0 %v1968
  %v7382 = vpop.f32.mrb[0].mxu0
  %v7383 = vadd.f32 %v7334, %v7382
  %v7384 = vpop.f32.mrb[0].mxu0
  %v7385 = vpop.f32.mrb[0].mxu0
  %v7386 = vadd.f32 %v7337, %v7385
  %v7387 = vpop.f32.mrb[0].mxu0
  %7388 = vmatprep.mubr.bf16.mxu0 %v2043
  %7389 = vmatmul.mubr.bf16.gmra.mrb[0].mxu0 %v2042
  %v7390 = vpop.f32.mrb[0].mxu0
  %v7391 = vadd.f32 %v7342, %v7390
  %v7392 = vpop.f32.mrb[0].mxu0
  %v7393 = vpop.f32.mrb[0].mxu0
  %v7394 = vadd.f32 %v7345, %v7393
  %v7395 = vpop.f32.mrb[0].mxu0
  %7396 = vdwg.mxu0
  %7397 = vmatprep.subr.bf16.mxu0 0
  %7398 = vmatpush1.bf16.msra.mxu0 %v5092
  %7399 = vmatprep.subr.bf16.mxu0 0
  %7400 = vmatpush1.bf16.msra.mxu0 %v5093
  %7401 = vmatprep.subr.bf16.mxu0 0
  %7402 = vmatpush1.bf16.msra.mxu0 %v5094
  %7403 = vmatprep.subr.bf16.mxu0 0
  %7404 = vmatpush1.bf16.msra.mxu0 %v5095
  %7405 = vmatprep.subr.bf16.mxu0 0
  %7406 = vmatpush1.bf16.msra.mxu0 %v5096
  %7407 = vmatprep.subr.bf16.mxu0 0
  %7408 = vmatpush1.bf16.msra.mxu0 %v5097
  %7409 = vmatprep.subr.bf16.mxu0 0
  %7410 = vmatpush1.bf16.msra.mxu0 %v5098
  %7411 = vmatprep.subr.bf16.mxu0 0
  %7412 = vmatpush1.bf16.msra.mxu0 %v5099
  %7413 = vmatprep.subr.bf16.mxu0 0
  %7414 = vmatpush1.bf16.msra.mxu0 %v5100
  %7415 = vmatprep.subr.bf16.mxu0 0
  %7416 = vmatpush1.bf16.msra.mxu0 %v5101
  %7417 = vmatprep.subr.bf16.mxu0 0
  %7418 = vmatpush1.bf16.msra.mxu0 %v5102
  %7419 = vmatprep.subr.bf16.mxu0 0
  %7420 = vmatpush1.bf16.msra.mxu0 %v5103
  %7421 = vmatprep.subr.bf16.mxu0 0
  %7422 = vmatpush1.bf16.msra.mxu0 %v5104
  %7423 = vmatprep.subr.bf16.mxu0 0
  %7424 = vmatpush1.bf16.msra.mxu0 %v5105
  %7425 = vmatprep.subr.bf16.mxu0 0
  %7426 = vmatpush1.bf16.msra.mxu0 %v5106
  %7427 = vmatprep.subr.bf16.mxu0 0
  %7428 = vmatpush1.bf16.msra.mxu0 %v5107
  %7429 = vmatprep.mubr.bf16.mxu0 %v1971
  %7430 = vmatmul.mubr.bf16.gmra.mrb[0].mxu0 %v1970
  %v7431 = vpop.f32.mrb[0].mxu0
  %v7432 = vadd.f32 %v7383, %v7431
  %v7433 = vpop.f32.mrb[0].mxu0
  %v7434 = vpop.f32.mrb[0].mxu0
  %v7435 = vadd.f32 %v7386, %v7434
  %v7436 = vpop.f32.mrb[0].mxu0
  %7437 = vmatprep.mubr.bf16.mxu0 %v2045
  %7438 = vmatmul.mubr.bf16.gmra.mrb[0].mxu0 %v2044
  %v7439 = vpop.f32.mrb[0].mxu0
  %v7440 = vadd.f32 %v7391, %v7439
  %v7441 = vpop.f32.mrb[0].mxu0
  %v7442 = vpop.f32.mrb[0].mxu0
  %v7443 = vadd.f32 %v7394, %v7442
  %v7444 = vpop.f32.mrb[0].mxu0
  %7445 = vdwg.mxu0
  %7446 = vmatprep.subr.bf16.mxu0 0
  %7447 = vmatpush1.bf16.msra.mxu0 %v5108
  %7448 = vmatprep.subr.bf16.mxu0 0
  %7449 = vmatpush1.bf16.msra.mxu0 %v5109
  %7450 = vmatprep.subr.bf16.mxu0 0
  %7451 = vmatpush1.bf16.msra.mxu0 %v5110
  %7452 = vmatprep.subr.bf16.mxu0 0
  %7453 = vmatpush1.bf16.msra.mxu0 %v5111
  %7454 = vmatprep.subr.bf16.mxu0 0
  %7455 = vmatpush1.bf16.msra.mxu0 %v5112
  %7456 = vmatprep.subr.bf16.mxu0 0
  %7457 = vmatpush1.bf16.msra.mxu0 %v5113
  %7458 = vmatprep.subr.bf16.mxu0 0
  %7459 = vmatpush1.bf16.msra.mxu0 %v5114
  %7460 = vmatprep.subr.bf16.mxu0 0
  %7461 = vmatpush1.bf16.msra.mxu0 %v5115
  %7462 = vmatprep.subr.bf16.mxu0 0
  %7463 = vmatpush1.bf16.msra.mxu0 %v5116
  %7464 = vmatprep.subr.bf16.mxu0 0
  %7465 = vmatpush1.bf16.msra.mxu0 %v5117
  %7466 = vmatprep.subr.bf16.mxu0 0
  %7467 = vmatpush1.bf16.msra.mxu0 %v5118
  %7468 = vmatprep.subr.bf16.mxu0 0
  %7469 = vmatpush1.bf16.msra.mxu0 %v5119
  %7470 = vmatprep.subr.bf16.mxu0 0
  %7471 = vmatpush1.bf16.msra.mxu0 %v5120
  %7472 = vmatprep.subr.bf16.mxu0 0
  %7473 = vmatpush1.bf16.msra.mxu0 %v5121
  %7474 = vmatprep.subr.bf16.mxu0 0
  %7475 = vmatpush1.bf16.msra.mxu0 %v5122
  %7476 = vmatprep.subr.bf16.mxu0 0
  %7477 = vmatpush1.bf16.msra.mxu0 %v5123
  %7478 = vmatprep.mubr.bf16.mxu0 %v1973
  %7479 = vmatmul.mubr.bf16.gmra.mrb[0].mxu0 %v1972
  %v7480 = vpop.f32.mrb[0].mxu0
  %v7481 = vadd.f32 %v7432, %v7480
  %v7482 = vpop.f32.mrb[0].mxu0
  %v7483 = vpop.f32.mrb[0].mxu0
  %v7484 = vadd.f32 %v7435, %v7483
  %v7485 = vpop.f32.mrb[0].mxu0
  %7486 = vmatprep.mubr.bf16.mxu0 %v2047
  %7487 = vmatmul.mubr.bf16.gmra.mrb[0].mxu0 %v2046
  %v7488 = vpop.f32.mrb[0].mxu0
  %v7489 = vadd.f32 %v7440, %v7488
  %v7490 = vpop.f32.mrb[0].mxu0
  %v7491 = vpop.f32.mrb[0].mxu0
  %v7492 = vadd.f32 %v7443, %v7491
  %v7493 = vpop.f32.mrb[0].mxu0
  %7494 = vdwg.mxu0
  %7495 = vmatprep.subr.bf16.mxu0 0
  %7496 = vmatpush1.bf16.msra.mxu0 %v5124
  %7497 = vmatprep.subr.bf16.mxu0 0
  %7498 = vmatpush1.bf16.msra.mxu0 %v5125
  %7499 = vmatprep.subr.bf16.mxu0 0
  %7500 = vmatpush1.bf16.msra.mxu0 %v5126
  %7501 = vmatprep.subr.bf16.mxu0 0
  %7502 = vmatpush1.bf16.msra.mxu0 %v5127
  %7503 = vmatprep.subr.bf16.mxu0 0
  %7504 = vmatpush1.bf16.msra.mxu0 %v5128
  %7505 = vmatprep.subr.bf16.mxu0 0
  %7506 = vmatpush1.bf16.msra.mxu0 %v5129
  %7507 = vmatprep.subr.bf16.mxu0 0
  %7508 = vmatpush1.bf16.msra.mxu0 %v5130
  %7509 = vmatprep.subr.bf16.mxu0 0
  %7510 = vmatpush1.bf16.msra.mxu0 %v5131
  %7511 = vmatprep.subr.bf16.mxu0 0
  %7512 = vmatpush1.bf16.msra.mxu0 %v5132
  %7513 = vmatprep.subr.bf16.mxu0 0
  %7514 = vmatpush1.bf16.msra.mxu0 %v5133
  %7515 = vmatprep.subr.bf16.mxu0 0
  %7516 = vmatpush1.bf16.msra.mxu0 %v5134
  %7517 = vmatprep.subr.bf16.mxu0 0
  %7518 = vmatpush1.bf16.msra.mxu0 %v5135
  %7519 = vmatprep.subr.bf16.mxu0 0
  %7520 = vmatpush1.bf16.msra.mxu0 0
  %7521 = vmatprep.subr.bf16.mxu0 0
  %7522 = vmatpush1.bf16.msra.mxu0 0
  %7523 = vmatprep.subr.bf16.mxu0 0
  %7524 = vmatpush1.bf16.msra.mxu0 0
  %7525 = vmatprep.subr.bf16.mxu0 0
  %7526 = vmatpush1.bf16.msra.mxu0 0
  %7527 = vmatprep.mubr.bf16.mxu0 %v5726
  %7528 = vmatmul.mubr.bf16.gmra.mrb[0].mxu0 %v1974
  %v7529 = vpop.f32.mrb[0].mxu0
  %v7530 = vadd.f32 %v7481, %v7529
  %v7531 = vpop.f32.mrb[0].mxu0
  %v7532 = vpop.f32.mrb[0].mxu0
  %v7533 = vadd.f32 %v7484, %v7532
  %v7534 = vpop.f32.mrb[0].mxu0
  %7535 = vmatprep.mubr.bf16.mxu0 %v5729
  %7536 = vmatmul.mubr.bf16.gmra.mrb[0].mxu0 %v2048
  %v7537 = vpop.f32.mrb[0].mxu0
  %v7538 = vadd.f32 %v7489, %v7537
  %v7539 = vpop.f32.mrb[0].mxu0
  %v7540 = vpop.f32.mrb[0].mxu0
  %v7541 = vadd.f32 %v7492, %v7540
  %v7542 = vpop.f32.mrb[0].mxu0
  %7543 = vdwg.mxu0
  %v7544 = vld [vmem:[%s3] sm:$0xff]
  %v7545 = vld [vmem:[%s3 + $0x8] sm:$0xff]
  %v7546 = vadd.f32 %v7530, %v7544
  %v7547 = vadd.f32 %v7533, %v7545
  %v7548 = vadd.f32 %v7538, %v7544
  %v7549 = vadd.f32 %v7541, %v7545
  %v7550 = vld [vmem:[%s9] sm:$0x1]
  %v7551 = vld [vmem:[%s11] sm:$0x1]
  %7552 = vadd.xlane.f32.xlu0 %v7546
  %v7553 = vpop.xlane.xlu0 %7552
  %7554 = vadd.xlane.f32.xlu0 %v7547
  %v7555 = vpop.xlane.xlu0 %7554
  %7556 = vadd.xlane.f32.xlu0 %v7548
  %v7557 = vpop.xlane.xlu0 %7556
  %7558 = vadd.xlane.f32.xlu0 %v7549
  %v7559 = vpop.xlane.xlu0 %7558
  %v7560 = vrcp.pop 128.0
  %v7561 = vmul.f32 %v7553, %v7560
  %v7562 = vmul.f32 %v7555, %v7560
  %v7563 = vmul.f32 %v7557, %v7560
  %v7564 = vmul.f32 %v7559, %v7560
  %v7565 = vsub.f32 %v7546, %v7561
  %v7566 = vsub.f32 %v7547, %v7562
  %v7567 = vsub.f32 %v7548, %v7563
  %v7568 = vsub.f32 %v7549, %v7564
  %v7569 = vmul.f32 %v7565, %v7565
  %v7570 = vmul.f32 %v7566, %v7566
  %v7571 = vmul.f32 %v7567, %v7567
  %v7572 = vmul.f32 %v7568, %v7568
  %7573 = vadd.xlane.f32.xlu0 %v7569
  %v7574 = vpop.xlane.xlu0 %7573
  %7575 = vadd.xlane.f32.xlu0 %v7570
  %v7576 = vpop.xlane.xlu0 %7575
  %7577 = vadd.xlane.f32.xlu0 %v7571
  %v7578 = vpop.xlane.xlu0 %7577
  %7579 = vadd.xlane.f32.xlu0 %v7572
  %v7580 = vpop.xlane.xlu0 %7579
  %v7581 = vmul.f32 %v7574, %v7560
  %v7582 = vmul.f32 %v7576, %v7560
  %v7583 = vmul.f32 %v7578, %v7560
  %v7584 = vmul.f32 %v7580, %v7560
  %v7585 = vadd.f32 %v7581, 1e-06
  %v7586 = vadd.f32 %v7582, 1e-06
  %v7587 = vadd.f32 %v7583, 1e-06
  %v7588 = vadd.f32 %v7584, 1e-06
  %v7589 = vrsqrt.pop %v7585
  %v7590 = vrsqrt.pop %v7586
  %v7591 = vrsqrt.pop %v7587
  %v7592 = vrsqrt.pop %v7588
  %v7593 = vmul.f32 %v7565, %v7589
  %v7594 = vmul.f32 %v7566, %v7590
  %v7595 = vmul.f32 %v7567, %v7591
  %v7596 = vmul.f32 %v7568, %v7592
  %v7598 = vlaneseq
  %v7599 = vshrl.u32 %v7598, 7
  %v7600 = vsub.s32 0, %v7599
  %v7601 = vrot.slane %v7550, %v7600
  %v7603 = vmul.f32 %v7593, %v7601
  %v7604 = vmul.f32 %v7594, %v7601
  %v7605 = vmul.f32 %v7595, %v7601
  %v7606 = vmul.f32 %v7596, %v7601
  %v7608 = vlaneseq
  %v7609 = vshrl.u32 %v7608, 7
  %v7610 = vsub.s32 0, %v7609
  %v7611 = vrot.slane %v7551, %v7610
  %v7613 = vadd.f32 %v7603, %v7611
  %v7614 = vadd.f32 %v7604, %v7611
  %v7615 = vadd.f32 %v7605, %v7611
  %v7616 = vadd.f32 %v7606, %v7611
  %v7617 = vpack.c.bf16 %v7614, %v7613
  %v7618 = vpack.c.bf16 %v7616, %v7615
  %v7619 = vld [vmem:[%s13] sm:$0xff]
  %v7620 = vld [vmem:[%s13 + $0x8] sm:$0xf]
  %v7621 = vld [vmem:[%s13 + $0xc] sm:$0xff]
  %v7622 = vld [vmem:[%s13 + $0x14] sm:$0xf]
  %v7623 = vld [vmem:[%s13 + $0x18] sm:$0xff]
  %v7624 = vld [vmem:[%s13 + $0x20] sm:$0xf]
  %v7625 = vld [vmem:[%s13 + $0x24] sm:$0xff]
  %v7626 = vld [vmem:[%s13 + $0x2c] sm:$0xf]
  %v7627 = vld [vmem:[%s13 + $0x30] sm:$0xff]
  %v7628 = vld [vmem:[%s13 + $0x38] sm:$0xf]
  %v7629 = vld [vmem:[%s13 + $0x3c] sm:$0xff]
  %v7630 = vld [vmem:[%s13 + $0x44] sm:$0xf]
  %v7631 = vld [vmem:[%s13 + $0x48] sm:$0xff]
  %v7632 = vld [vmem:[%s13 + $0x50] sm:$0xf]
  %v7633 = vld [vmem:[%s13 + $0x54] sm:$0xff]
  %v7634 = vld [vmem:[%s13 + $0x5c] sm:$0xf]
  %v7635 = vld [vmem:[%s13 + $0x60] sm:$0xff]
  %v7636 = vld [vmem:[%s13 + $0x68] sm:$0xf]
  %v7637 = vld [vmem:[%s13 + $0x6c] sm:$0xff]
  %v7638 = vld [vmem:[%s13 + $0x74] sm:$0xf]
  %v7639 = vld [vmem:[%s13 + $0x78] sm:$0xff]
  %v7640 = vld [vmem:[%s13 + $0x80] sm:$0xf]
  %v7641 = vld [vmem:[%s13 + $0x84] sm:$0xff]
  %v7642 = vld [vmem:[%s13 + $0x8c] sm:$0xf]
  %v7643 = vld [vmem:[%s13 + $0x90] sm:$0xff]
  %v7644 = vld [vmem:[%s13 + $0x98] sm:$0xf]
  %v7645 = vld [vmem:[%s13 + $0x9c] sm:$0xff]
  %v7646 = vld [vmem:[%s13 + $0xa4] sm:$0xf]
  %v7647 = vld [vmem:[%s13 + $0xa8] sm:$0xff]
  %v7648 = vld [vmem:[%s13 + $0xb0] sm:$0xf]
  %v7649 = vld [vmem:[%s13 + $0xb4] sm:$0xff]
  %v7650 = vld [vmem:[%s13 + $0xbc] sm:$0xf]
  %v7651 = vld [vmem:[%s15] sm:$0x7]
  %v7653 = vlaneseq
  %v7654 = vshrl.u32 %v7653, 7
  %v7655 = vsub.s32 0, %v7654
  %v7656 = vrot.slane %v7651, %v7655
  %v7657 = vlaneseq
  %v7658 = vshrl.u32 %v7657, 7
  %v7659 = vsub.s32 1, %v7658
  %v7660 = vrot.slane %v7651, %v7659
  %v7661 = vlaneseq
  %v7662 = vshrl.u32 %v7661, 7
  %v7663 = vsub.s32 2, %v7662
  %v7664 = vrot.slane %v7651, %v7663
  %v7700 = vunpack.c.l.b16 %v7619
  %v7701 = vunpack.c.h.b16 %v7619
  %v7702 = vunpack.c.l.b16 %v7620
  %v7703 = vunpack.c.l.b16 %v7621
  %v7704 = vunpack.c.h.b16 %v7621
  %v7705 = vunpack.c.l.b16 %v7622
  %v7706 = vunpack.c.l.b16 %v7623
  %v7707 = vunpack.c.h.b16 %v7623
  %v7708 = vunpack.c.l.b16 %v7624
  %v7709 = vunpack.c.l.b16 %v7625
  %v7710 = vunpack.c.h.b16 %v7625
  %v7711 = vunpack.c.l.b16 %v7626
  %v7712 = vunpack.c.l.b16 %v7627
  %v7713 = vunpack.c.h.b16 %v7627
  %v7714 = vunpack.c.l.b16 %v7628
  %v7715 = vunpack.c.l.b16 %v7629
  %v7716 = vunpack.c.h.b16 %v7629
  %v7717 = vunpack.c.l.b16 %v7630
  %v7718 = vunpack.c.l.b16 %v7631
  %v7719 = vunpack.c.h.b16 %v7631
  %v7720 = vunpack.c.l.b16 %v7632
  %v7721 = vunpack.c.l.b16 %v7633
  %v7722 = vunpack.c.h.b16 %v7633
  %v7723 = vunpack.c.l.b16 %v7634
  %v7724 = vunpack.c.l.b16 %v7635
  %v7725 = vunpack.c.h.b16 %v7635
  %v7726 = vunpack.c.l.b16 %v7636
  %v7727 = vunpack.c.l.b16 %v7637
  %v7728 = vunpack.c.h.b16 %v7637
  %v7729 = vunpack.c.l.b16 %v7638
  %v7730 = vunpack.c.l.b16 %v7639
  %v7731 = vunpack.c.h.b16 %v7639
  %v7732 = vunpack.c.l.b16 %v7640
  %v7733 = vunpack.c.l.b16 %v7641
  %v7734 = vunpack.c.h.b16 %v7641
  %v7735 = vunpack.c.l.b16 %v7642
  %v7736 = vunpack.c.l.b16 %v7643
  %v7737 = vunpack.c.h.b16 %v7643
  %v7738 = vunpack.c.l.b16 %v7644
  %v7739 = vunpack.c.l.b16 %v7645
  %v7740 = vunpack.c.h.b16 %v7645
  %v7741 = vunpack.c.l.b16 %v7646
  %v7742 = vunpack.c.l.b16 %v7647
  %v7743 = vunpack.c.h.b16 %v7647
  %v7744 = vunpack.c.l.b16 %v7648
  %v7745 = vunpack.c.l.b16 %v7649
  %v7746 = vunpack.c.h.b16 %v7649
  %v7747 = vunpack.c.l.b16 %v7650
  %v7748 = vpack.c.b16 %v7703, %v7700
  %v7749 = vpack.c.b16 %v7704, %v7701
  %v7750 = vpack.c.b16 %v7705, %v7702
  %v7751 = vpack.c.b16 %v7709, %v7706
  %v7752 = vpack.c.b16 %v7710, %v7707
  %v7753 = vpack.c.b16 %v7711, %v7708
  %v7754 = vpack.c.b16 %v7715, %v7712
  %v7755 = vpack.c.b16 %v7716, %v7713
  %v7756 = vpack.c.b16 %v7717, %v7714
  %v7757 = vpack.c.b16 %v7721, %v7718
  %v7758 = vpack.c.b16 %v7722, %v7719
  %v7759 = vpack.c.b16 %v7723, %v7720
  %v7760 = vpack.c.b16 %v7727, %v7724
  %v7761 = vpack.c.b16 %v7728, %v7725
  %v7762 = vpack.c.b16 %v7729, %v7726
  %v7763 = vpack.c.b16 %v7733, %v7730
  %v7764 = vpack.c.b16 %v7734, %v7731
  %v7765 = vpack.c.b16 %v7735, %v7732
  %v7766 = vpack.c.b16 %v7739, %v7736
  %v7767 = vpack.c.b16 %v7740, %v7737
  %v7768 = vpack.c.b16 %v7741, %v7738
  %v7769 = vpack.c.b16 %v7745, %v7742
  %v7770 = vpack.c.b16 %v7746, %v7743
  %v7771 = vpack.c.b16 %v7747, %v7744
  %7796 = vmatprep.subr.bf16.mxu0 %v7749
  %7797 = vmatpush1.bf16.msra.mxu0 %v7748
  %7798 = vmatprep.subr.bf16.mxu0 %v7752
  %7799 = vmatpush1.bf16.msra.mxu0 %v7751
  %7800 = vmatprep.subr.bf16.mxu0 %v7755
  %7801 = vmatpush1.bf16.msra.mxu0 %v7754
  %7802 = vmatprep.subr.bf16.mxu0 %v7758
  %7803 = vmatpush1.bf16.msra.mxu0 %v7757
  %7804 = vmatprep.subr.bf16.mxu0 %v7761
  %7805 = vmatpush1.bf16.msra.mxu0 %v7760
  %7806 = vmatprep.subr.bf16.mxu0 %v7764
  %7807 = vmatpush1.bf16.msra.mxu0 %v7763
  %7808 = vmatprep.subr.bf16.mxu0 %v7767
  %7809 = vmatpush1.bf16.msra.mxu0 %v7766
  %7810 = vmatprep.subr.bf16.mxu0 %v7770
  %7811 = vmatpush1.bf16.msra.mxu0 %v7769
  %7812 = vmatprep.subr.bf16.mxu0 0
  %7813 = vmatpush1.bf16.msra.mxu0 0
  %7814 = vmatprep.subr.bf16.mxu0 0
  %7815 = vmatpush1.bf16.msra.mxu0 0
  %7816 = vmatprep.subr.bf16.mxu0 0
  %7817 = vmatpush1.bf16.msra.mxu0 0
  %7818 = vmatprep.subr.bf16.mxu0 0
  %7819 = vmatpush1.bf16.msra.mxu0 0
  %7820 = vmatprep.subr.bf16.mxu0 0
  %7821 = vmatpush1.bf16.msra.mxu0 0
  %7822 = vmatprep.subr.bf16.mxu0 0
  %7823 = vmatpush1.bf16.msra.mxu0 0
  %7824 = vmatprep.subr.bf16.mxu0 0
  %7825 = vmatpush1.bf16.msra.mxu0 0
  %7826 = vmatprep.subr.bf16.mxu0 0
  %7827 = vmatpush1.bf16.msra.mxu0 0
  %7828 = vmatprep.mubr.bf16.mxu0 0
  %7829 = vmatmul.mubr.bf16.gmra.mrb[0].mxu0 %v7617
  %v7830 = vpop.f32.mrb[0].mxu0
  %v7831 = vadd.f32 %v7656, %v7830
  %v7832 = vpop.f32.mrb[0].mxu0
  %v7833 = vadd.f32 %v7660, %v7832
  %v7834 = vpop.f32.mrb[0].mxu0
  %v7835 = vadd.f32 %v7656, %v7834
  %v7836 = vpop.f32.mrb[0].mxu0
  %v7837 = vadd.f32 %v7660, %v7836
  %7838 = vmatprep.mubr.bf16.mxu0 0
  %7839 = vmatmul.mubr.bf16.gmra.mrb[0].mxu0 %v7618
  %v7840 = vpop.f32.mrb[0].mxu0
  %v7841 = vadd.f32 %v7656, %v7840
  %v7842 = vpop.f32.mrb[0].mxu0
  %v7843 = vadd.f32 %v7660, %v7842
  %v7844 = vpop.f32.mrb[0].mxu0
  %v7845 = vadd.f32 %v7656, %v7844
  %v7846 = vpop.f32.mrb[0].mxu0
  %v7847 = vadd.f32 %v7660, %v7846
  %7848 = vdwg.mxu0
  %7849 = vmatprep.subr.bf16.mxu0 0
  %7850 = vmatpush1.bf16.msra.mxu0 %v7750
  %7851 = vmatprep.subr.bf16.mxu0 0
  %7852 = vmatpush1.bf16.msra.mxu0 %v7753
  %7853 = vmatprep.subr.bf16.mxu0 0
  %7854 = vmatpush1.bf16.msra.mxu0 %v7756
  %7855 = vmatprep.subr.bf16.mxu0 0
  %7856 = vmatpush1.bf16.msra.mxu0 %v7759
  %7857 = vmatprep.subr.bf16.mxu0 0
  %7858 = vmatpush1.bf16.msra.mxu0 %v7762
  %7859 = vmatprep.subr.bf16.mxu0 0
  %7860 = vmatpush1.bf16.msra.mxu0 %v7765
  %7861 = vmatprep.subr.bf16.mxu0 0
  %7862 = vmatpush1.bf16.msra.mxu0 %v7768
  %7863 = vmatprep.subr.bf16.mxu0 0
  %7864 = vmatpush1.bf16.msra.mxu0 %v7771
  %7865 = vmatprep.subr.bf16.mxu0 0
  %7866 = vmatpush1.bf16.msra.mxu0 0
  %7867 = vmatprep.subr.bf16.mxu0 0
  %7868 = vmatpush1.bf16.msra.mxu0 0
  %7869 = vmatprep.subr.bf16.mxu0 0
  %7870 = vmatpush1.bf16.msra.mxu0 0
  %7871 = vmatprep.subr.bf16.mxu0 0
  %7872 = vmatpush1.bf16.msra.mxu0 0
  %7873 = vmatprep.subr.bf16.mxu0 0
  %7874 = vmatpush1.bf16.msra.mxu0 0
  %7875 = vmatprep.subr.bf16.mxu0 0
  %7876 = vmatpush1.bf16.msra.mxu0 0
  %7877 = vmatprep.subr.bf16.mxu0 0
  %7878 = vmatpush1.bf16.msra.mxu0 0
  %7879 = vmatprep.subr.bf16.mxu0 0
  %7880 = vmatpush1.bf16.msra.mxu0 0
  %7881 = vmatprep.mubr.bf16.mxu0 0
  %7882 = vmatmul.mubr.bf16.gmra.mrb[0].mxu0 %v7617
  %v7883 = vpop.f32.mrb[0].mxu0
  %v7884 = vadd.f32 %v7664, %v7883
  %v7885 = vpop.f32.mrb[0].mxu0
  %v7886 = vpop.f32.mrb[0].mxu0
  %v7887 = vadd.f32 %v7664, %v7886
  %v7888 = vpop.f32.mrb[0].mxu0
  %7889 = vmatprep.mubr.bf16.mxu0 0
  %7890 = vmatmul.mubr.bf16.gmra.mrb[0].mxu0 %v7618
  %v7891 = vpop.f32.mrb[0].mxu0
  %v7892 = vadd.f32 %v7664, %v7891
  %v7893 = vpop.f32.mrb[0].mxu0
  %v7894 = vpop.f32.mrb[0].mxu0
  %v7895 = vadd.f32 %v7664, %v7894
  %v7896 = vpop.f32.mrb[0].mxu0
  %7897 = vdwg.mxu0
  %v7898 = vpack.c.bf16 %v7835, %v7831
  %v7899 = vpack.c.bf16 %v7845, %v7841
  %v7900 = vpack.c.bf16 %v7837, %v7833
  %v7901 = vpack.c.bf16 %v7847, %v7843
  %vm7902 = vcmask 261120
  %v7904 = vsel %vm7902, %v7898, 0
  %v7907 = vsel %vm7902, %v7900, 0
  %7909 = vmatprep.subr.bf16.mxu0 0
  %7910 = vmatpush1.bf16.xpose.msra.mxu0 %v7907
  %7911 = vmatprep.subr.bf16.mxu0 0
  %7912 = vmatpush1.bf16.xpose.msra.mxu0 0
  %7913 = vmatprep.subr.bf16.mxu0 0
  %7914 = vmatpush1.bf16.xpose.msra.mxu0 0
  %7915 = vmatprep.subr.bf16.mxu0 0
  %7916 = vmatpush1.bf16.xpose.msra.mxu0 0
  %7917 = vmatprep.subr.bf16.mxu0 0
  %7918 = vmatpush1.bf16.xpose.msra.mxu0 0
  %7919 = vmatprep.subr.bf16.mxu0 0
  %7920 = vmatpush1.bf16.xpose.msra.mxu0 0
  %7921 = vmatprep.subr.bf16.mxu0 0
  %7922 = vmatpush1.bf16.xpose.msra.mxu0 0
  %7923 = vmatprep.subr.bf16.mxu0 0
  %7924 = vmatpush1.bf16.xpose.msra.mxu0 0
  %7925 = vmatprep.subr.bf16.mxu0 0
  %7926 = vmatpush1.bf16.xpose.msra.mxu0 0
  %7927 = vmatprep.subr.bf16.mxu0 0
  %7928 = vmatpush1.bf16.xpose.msra.mxu0 0
  %7929 = vmatprep.subr.bf16.mxu0 0
  %7930 = vmatpush1.bf16.xpose.msra.mxu0 0
  %7931 = vmatprep.subr.bf16.mxu0 0
  %7932 = vmatpush1.bf16.xpose.msra.mxu0 0
  %7933 = vmatprep.subr.bf16.mxu0 0
  %7934 = vmatpush1.bf16.xpose.msra.mxu0 0
  %7935 = vmatprep.subr.bf16.mxu0 0
  %7936 = vmatpush1.bf16.xpose.msra.mxu0 0
  %7937 = vmatprep.subr.bf16.mxu0 0
  %7938 = vmatpush1.bf16.xpose.msra.mxu0 0
  %7939 = vmatprep.subr.bf16.mxu0 0
  %7940 = vmatpush1.bf16.xpose.msra.mxu0 0
  %7941 = vmatprep.mubr.bf16.mxu0 0
  %7942 = vmatmul.mubr.bf16.gmra.mrb[0].mxu0 %v7904
  %v7943 = vpop.f32.mrb[0].mxu0
  %v7944 = vadd.f32 0.0, %v7943
  %v7945 = vpop.f32.mrb[0].mxu0
  %v7946 = vpop.f32.mrb[0].mxu0
  %v7947 = vadd.f32 0.0, %v7946
  %v7948 = vpop.f32.mrb[0].mxu0
  %7949 = vdwg.mxu0
  %v7951 = vsel %vm7902, %v7899, 0
  %v7954 = vsel %vm7902, %v7901, 0
  %7956 = vmatprep.subr.bf16.mxu0 0
  %7957 = vmatpush1.bf16.xpose.msra.mxu0 %v7954
  %7958 = vmatprep.subr.bf16.mxu0 0
  %7959 = vmatpush1.bf16.xpose.msra.mxu0 0
  %7960 = vmatprep.subr.bf16.mxu0 0
  %7961 = vmatpush1.bf16.xpose.msra.mxu0 0
  %7962 = vmatprep.subr.bf16.mxu0 0
  %7963 = vmatpush1.bf16.xpose.msra.mxu0 0
  %7964 = vmatprep.subr.bf16.mxu0 0
  %7965 = vmatpush1.bf16.xpose.msra.mxu0 0
  %7966 = vmatprep.subr.bf16.mxu0 0
  %7967 = vmatpush1.bf16.xpose.msra.mxu0 0
  %7968 = vmatprep.subr.bf16.mxu0 0
  %7969 = vmatpush1.bf16.xpose.msra.mxu0 0
  %7970 = vmatprep.subr.bf16.mxu0 0
  %7971 = vmatpush1.bf16.xpose.msra.mxu0 0
  %7972 = vmatprep.subr.bf16.mxu0 0
  %7973 = vmatpush1.bf16.xpose.msra.mxu0 0
  %7974 = vmatprep.subr.bf16.mxu0 0
  %7975 = vmatpush1.bf16.xpose.msra.mxu0 0
  %7976 = vmatprep.subr.bf16.mxu0 0
  %7977 = vmatpush1.bf16.xpose.msra.mxu0 0
  %7978 = vmatprep.subr.bf16.mxu0 0
  %7979 = vmatpush1.bf16.xpose.msra.mxu0 0
  %7980 = vmatprep.subr.bf16.mxu0 0
  %7981 = vmatpush1.bf16.xpose.msra.mxu0 0
  %7982 = vmatprep.subr.bf16.mxu0 0
  %7983 = vmatpush1.bf16.xpose.msra.mxu0 0
  %7984 = vmatprep.subr.bf16.mxu0 0
  %7985 = vmatpush1.bf16.xpose.msra.mxu0 0
  %7986 = vmatprep.subr.bf16.mxu0 0
  %7987 = vmatpush1.bf16.xpose.msra.mxu0 0
  %7988 = vmatprep.mubr.bf16.mxu0 0
  %7989 = vmatmul.mubr.bf16.gmra.mrb[0].mxu0 %v7951
  %v7990 = vpop.f32.mrb[0].mxu0
  %v7991 = vadd.f32 0.0, %v7990
  %v7992 = vpop.f32.mrb[0].mxu0
  %v7993 = vpop.f32.mrb[0].mxu0
  %v7994 = vadd.f32 0.0, %v7993
  %v7995 = vpop.f32.mrb[0].mxu0
  %7996 = vdwg.mxu0
  %v7997 = vmul.f32 %v7944, 0.17677669
  %v7998 = vmul.f32 %v7947, 0.17677669
  %v7999 = vmul.f32 %v7991, 0.17677669
  %v8000 = vmul.f32 %v7994, 0.17677669
  %vm8001 = vcmask 130048
  %v8002 = vsel %vm8001, %v7997, -inf
  %8003 = vmax.xlane.f32.xlu0 %v8002
  %v8004 = vpop.xlane.xlu0 %8003
  %v8005 = vsel %vm8001, %v7998, -inf
  %8006 = vmax.xlane.f32.xlu0 %v8005
  %v8007 = vpop.xlane.xlu0 %8006
  %v8008 = vsel %vm8001, %v7999, -inf
  %8009 = vmax.xlane.f32.xlu0 %v8008
  %v8010 = vpop.xlane.xlu0 %8009
  %v8011 = vsel %vm8001, %v8000, -inf
  %8012 = vmax.xlane.f32.xlu0 %v8011
  %v8013 = vpop.xlane.xlu0 %8012
  %v8014 = vsub.f32 %v7997, %v8004
  %v8015 = vsub.f32 %v7998, %v8007
  %v8016 = vsub.f32 %v7999, %v8010
  %v8017 = vsub.f32 %v8000, %v8013
  %v8018 = vmul.f32 %v8014, 1.442695
  %v8019 = vpow.pop %v8018
  %v8020 = vmul.f32 %v8015, 1.442695
  %v8021 = vpow.pop %v8020
  %v8022 = vmul.f32 %v8016, 1.442695
  %v8023 = vpow.pop %v8022
  %v8024 = vmul.f32 %v8017, 1.442695
  %v8025 = vpow.pop %v8024
  %v8026 = vsel %vm8001, %v8019, 0.0
  %8027 = vadd.xlane.f32.xlu0 %v8026
  %v8028 = vpop.xlane.xlu0 %8027
  %v8029 = vsel %vm8001, %v8021, 0.0
  %8030 = vadd.xlane.f32.xlu0 %v8029
  %v8031 = vpop.xlane.xlu0 %8030
  %v8032 = vsel %vm8001, %v8023, 0.0
  %8033 = vadd.xlane.f32.xlu0 %v8032
  %v8034 = vpop.xlane.xlu0 %8033
  %v8035 = vsel %vm8001, %v8025, 0.0
  %8036 = vadd.xlane.f32.xlu0 %v8035
  %v8037 = vpop.xlane.xlu0 %8036
  %v8038 = vrcp.pop %v8028
  %v8039 = vmul.f32 %v8019, %v8038
  %v8040 = vrcp.pop %v8031
  %v8041 = vmul.f32 %v8021, %v8040
  %v8042 = vrcp.pop %v8034
  %v8043 = vmul.f32 %v8023, %v8042
  %v8044 = vrcp.pop %v8037
  %v8045 = vmul.f32 %v8025, %v8044
  %v8046 = vpack.c.bf16 %v8041, %v8039
  %v8047 = vpack.c.bf16 %v8045, %v8043
  %v8048 = vpack.c.bf16 %v7887, %v7884
  %v8049 = vpack.c.bf16 %v7895, %v7892
  %v8051 = vsel %vm8001, %v8046, 0
  %8053 = vmatprep.subr.bf16.mxu0 0
  %8054 = vmatpush1.bf16.msra.mxu0 %v8048
  %8055 = vmatprep.subr.bf16.mxu0 0
  %8056 = vmatpush1.bf16.msra.mxu0 0
  %8057 = vmatprep.subr.bf16.mxu0 0
  %8058 = vmatpush1.bf16.msra.mxu0 0
  %8059 = vmatprep.subr.bf16.mxu0 0
  %8060 = vmatpush1.bf16.msra.mxu0 0
  %8061 = vmatprep.subr.bf16.mxu0 0
  %8062 = vmatpush1.bf16.msra.mxu0 0
  %8063 = vmatprep.subr.bf16.mxu0 0
  %8064 = vmatpush1.bf16.msra.mxu0 0
  %8065 = vmatprep.subr.bf16.mxu0 0
  %8066 = vmatpush1.bf16.msra.mxu0 0
  %8067 = vmatprep.subr.bf16.mxu0 0
  %8068 = vmatpush1.bf16.msra.mxu0 0
  %8069 = vmatprep.subr.bf16.mxu0 0
  %8070 = vmatpush1.bf16.msra.mxu0 0
  %8071 = vmatprep.subr.bf16.mxu0 0
  %8072 = vmatpush1.bf16.msra.mxu0 0
  %8073 = vmatprep.subr.bf16.mxu0 0
  %8074 = vmatpush1.bf16.msra.mxu0 0
  %8075 = vmatprep.subr.bf16.mxu0 0
  %8076 = vmatpush1.bf16.msra.mxu0 0
  %8077 = vmatprep.subr.bf16.mxu0 0
  %8078 = vmatpush1.bf16.msra.mxu0 0
  %8079 = vmatprep.subr.bf16.mxu0 0
  %8080 = vmatpush1.bf16.msra.mxu0 0
  %8081 = vmatprep.subr.bf16.mxu0 0
  %8082 = vmatpush1.bf16.msra.mxu0 0
  %8083 = vmatprep.subr.bf16.mxu0 0
  %8084 = vmatpush1.bf16.msra.mxu0 0
  %8085 = vmatprep.mubr.bf16.mxu0 0
  %8086 = vmatmul.mubr.bf16.gmra.mrb[0].mxu0 %v8051
  %v8087 = vpop.f32.mrb[0].mxu0
  %v8088 = vadd.f32 0.0, %v8087
  %v8089 = vpop.f32.mrb[0].mxu0
  %v8090 = vpop.f32.mrb[0].mxu0
  %v8091 = vadd.f32 0.0, %v8090
  %v8092 = vpop.f32.mrb[0].mxu0
  %8093 = vdwg.mxu0
  %v8095 = vsel %vm8001, %v8047, 0
  %8097 = vmatprep.subr.bf16.mxu0 0
  %8098 = vmatpush1.bf16.msra.mxu0 %v8049
  %8099 = vmatprep.subr.bf16.mxu0 0
  %8100 = vmatpush1.bf16.msra.mxu0 0
  %8101 = vmatprep.subr.bf16.mxu0 0
  %8102 = vmatpush1.bf16.msra.mxu0 0
  %8103 = vmatprep.subr.bf16.mxu0 0
  %8104 = vmatpush1.bf16.msra.mxu0 0
  %8105 = vmatprep.subr.bf16.mxu0 0
  %8106 = vmatpush1.bf16.msra.mxu0 0
  %8107 = vmatprep.subr.bf16.mxu0 0
  %8108 = vmatpush1.bf16.msra.mxu0 0
  %8109 = vmatprep.subr.bf16.mxu0 0
  %8110 = vmatpush1.bf16.msra.mxu0 0
  %8111 = vmatprep.subr.bf16.mxu0 0
  %8112 = vmatpush1.bf16.msra.mxu0 0
  %8113 = vmatprep.subr.bf16.mxu0 0
  %8114 = vmatpush1.bf16.msra.mxu0 0
  %8115 = vmatprep.subr.bf16.mxu0 0
  %8116 = vmatpush1.bf16.msra.mxu0 0
  %8117 = vmatprep.subr.bf16.mxu0 0
  %8118 = vmatpush1.bf16.msra.mxu0 0
  %8119 = vmatprep.subr.bf16.mxu0 0
  %8120 = vmatpush1.bf16.msra.mxu0 0
  %8121 = vmatprep.subr.bf16.mxu0 0
  %8122 = vmatpush1.bf16.msra.mxu0 0
  %8123 = vmatprep.subr.bf16.mxu0 0
  %8124 = vmatpush1.bf16.msra.mxu0 0
  %8125 = vmatprep.subr.bf16.mxu0 0
  %8126 = vmatpush1.bf16.msra.mxu0 0
  %8127 = vmatprep.subr.bf16.mxu0 0
  %8128 = vmatpush1.bf16.msra.mxu0 0
  %8129 = vmatprep.mubr.bf16.mxu0 0
  %8130 = vmatmul.mubr.bf16.gmra.mrb[0].mxu0 %v8095
  %v8131 = vpop.f32.mrb[0].mxu0
  %v8132 = vadd.f32 0.0, %v8131
  %v8133 = vpop.f32.mrb[0].mxu0
  %v8134 = vpop.f32.mrb[0].mxu0
  %v8135 = vadd.f32 0.0, %v8134
  %v8136 = vpop.f32.mrb[0].mxu0
  %8137 = vdwg.mxu0
  %8139 = vrot.lane.b32.xlu0 %v7898, 96
  %v8140 = vpop.permute.xlu0 %8139
  %8142 = vrot.lane.b32.xlu0 %v7900, 96
  %v8143 = vpop.permute.xlu0 %8142
  %v8145 = vsel %vm7902, %v8140, 0
  %v8148 = vsel %vm7902, %v8143, 0
  %8150 = vmatprep.subr.bf16.mxu0 0
  %8151 = vmatpush1.bf16.xpose.msra.mxu0 %v8148
  %8152 = vmatprep.subr.bf16.mxu0 0
  %8153 = vmatpush1.bf16.xpose.msra.mxu0 0
  %8154 = vmatprep.subr.bf16.mxu0 0
  %8155 = vmatpush1.bf16.xpose.msra.mxu0 0
  %8156 = vmatprep.subr.bf16.mxu0 0
  %8157 = vmatpush1.bf16.xpose.msra.mxu0 0
  %8158 = vmatprep.subr.bf16.mxu0 0
  %8159 = vmatpush1.bf16.xpose.msra.mxu0 0
  %8160 = vmatprep.subr.bf16.mxu0 0
  %8161 = vmatpush1.bf16.xpose.msra.mxu0 0
  %8162 = vmatprep.subr.bf16.mxu0 0
  %8163 = vmatpush1.bf16.xpose.msra.mxu0 0
  %8164 = vmatprep.subr.bf16.mxu0 0
  %8165 = vmatpush1.bf16.xpose.msra.mxu0 0
  %8166 = vmatprep.subr.bf16.mxu0 0
  %8167 = vmatpush1.bf16.xpose.msra.mxu0 0
  %8168 = vmatprep.subr.bf16.mxu0 0
  %8169 = vmatpush1.bf16.xpose.msra.mxu0 0
  %8170 = vmatprep.subr.bf16.mxu0 0
  %8171 = vmatpush1.bf16.xpose.msra.mxu0 0
  %8172 = vmatprep.subr.bf16.mxu0 0
  %8173 = vmatpush1.bf16.xpose.msra.mxu0 0
  %8174 = vmatprep.subr.bf16.mxu0 0
  %8175 = vmatpush1.bf16.xpose.msra.mxu0 0
  %8176 = vmatprep.subr.bf16.mxu0 0
  %8177 = vmatpush1.bf16.xpose.msra.mxu0 0
  %8178 = vmatprep.subr.bf16.mxu0 0
  %8179 = vmatpush1.bf16.xpose.msra.mxu0 0
  %8180 = vmatprep.subr.bf16.mxu0 0
  %8181 = vmatpush1.bf16.xpose.msra.mxu0 0
  %8182 = vmatprep.mubr.bf16.mxu0 0
  %8183 = vmatmul.mubr.bf16.gmra.mrb[0].mxu0 %v8145
  %v8184 = vpop.f32.mrb[0].mxu0
  %v8185 = vadd.f32 0.0, %v8184
  %v8186 = vpop.f32.mrb[0].mxu0
  %v8187 = vpop.f32.mrb[0].mxu0
  %v8188 = vadd.f32 0.0, %v8187
  %v8189 = vpop.f32.mrb[0].mxu0
  %8190 = vdwg.mxu0
  %8192 = vrot.lane.b32.xlu0 %v7899, 96
  %v8193 = vpop.permute.xlu0 %8192
  %8195 = vrot.lane.b32.xlu0 %v7901, 96
  %v8196 = vpop.permute.xlu0 %8195
  %v8198 = vsel %vm7902, %v8193, 0
  %v8201 = vsel %vm7902, %v8196, 0
  %8203 = vmatprep.subr.bf16.mxu0 0
  %8204 = vmatpush1.bf16.xpose.msra.mxu0 %v8201
  %8205 = vmatprep.subr.bf16.mxu0 0
  %8206 = vmatpush1.bf16.xpose.msra.mxu0 0
  %8207 = vmatprep.subr.bf16.mxu0 0
  %8208 = vmatpush1.bf16.xpose.msra.mxu0 0
  %8209 = vmatprep.subr.bf16.mxu0 0
  %8210 = vmatpush1.bf16.xpose.msra.mxu0 0
  %8211 = vmatprep.subr.bf16.mxu0 0
  %8212 = vmatpush1.bf16.xpose.msra.mxu0 0
  %8213 = vmatprep.subr.bf16.mxu0 0
  %8214 = vmatpush1.bf16.xpose.msra.mxu0 0
  %8215 = vmatprep.subr.bf16.mxu0 0
  %8216 = vmatpush1.bf16.xpose.msra.mxu0 0
  %8217 = vmatprep.subr.bf16.mxu0 0
  %8218 = vmatpush1.bf16.xpose.msra.mxu0 0
  %8219 = vmatprep.subr.bf16.mxu0 0
  %8220 = vmatpush1.bf16.xpose.msra.mxu0 0
  %8221 = vmatprep.subr.bf16.mxu0 0
  %8222 = vmatpush1.bf16.xpose.msra.mxu0 0
  %8223 = vmatprep.subr.bf16.mxu0 0
  %8224 = vmatpush1.bf16.xpose.msra.mxu0 0
  %8225 = vmatprep.subr.bf16.mxu0 0
  %8226 = vmatpush1.bf16.xpose.msra.mxu0 0
  %8227 = vmatprep.subr.bf16.mxu0 0
  %8228 = vmatpush1.bf16.xpose.msra.mxu0 0
  %8229 = vmatprep.subr.bf16.mxu0 0
  %8230 = vmatpush1.bf16.xpose.msra.mxu0 0
  %8231 = vmatprep.subr.bf16.mxu0 0
  %8232 = vmatpush1.bf16.xpose.msra.mxu0 0
  %8233 = vmatprep.subr.bf16.mxu0 0
  %8234 = vmatpush1.bf16.xpose.msra.mxu0 0
  %8235 = vmatprep.mubr.bf16.mxu0 0
  %8236 = vmatmul.mubr.bf16.gmra.mrb[0].mxu0 %v8198
  %v8237 = vpop.f32.mrb[0].mxu0
  %v8238 = vadd.f32 0.0, %v8237
  %v8239 = vpop.f32.mrb[0].mxu0
  %v8240 = vpop.f32.mrb[0].mxu0
  %v8241 = vadd.f32 0.0, %v8240
  %v8242 = vpop.f32.mrb[0].mxu0
  %8243 = vdwg.mxu0
  %v8244 = vmul.f32 %v8185, 0.17677669
  %v8245 = vmul.f32 %v8188, 0.17677669
  %v8246 = vmul.f32 %v8238, 0.17677669
  %v8247 = vmul.f32 %v8241, 0.17677669
  %v8248 = vsel %vm8001, %v8244, -inf
  %8249 = vmax.xlane.f32.xlu0 %v8248
  %v8250 = vpop.xlane.xlu0 %8249
  %v8251 = vsel %vm8001, %v8245, -inf
  %8252 = vmax.xlane.f32.xlu0 %v8251
  %v8253 = vpop.xlane.xlu0 %8252
  %v8254 = vsel %vm8001, %v8246, -inf
  %8255 = vmax.xlane.f32.xlu0 %v8254
  %v8256 = vpop.xlane.xlu0 %8255
  %v8257 = vsel %vm8001, %v8247, -inf
  %8258 = vmax.xlane.f32.xlu0 %v8257
  %v8259 = vpop.xlane.xlu0 %8258
  %v8260 = vsub.f32 %v8244, %v8250
  %v8261 = vsub.f32 %v8245, %v8253
  %v8262 = vsub.f32 %v8246, %v8256
  %v8263 = vsub.f32 %v8247, %v8259
  %v8264 = vmul.f32 %v8260, 1.442695
  %v8265 = vpow.pop %v8264
  %v8266 = vmul.f32 %v8261, 1.442695
  %v8267 = vpow.pop %v8266
  %v8268 = vmul.f32 %v8262, 1.442695
  %v8269 = vpow.pop %v8268
  %v8270 = vmul.f32 %v8263, 1.442695
  %v8271 = vpow.pop %v8270
  %v8272 = vsel %vm8001, %v8265, 0.0
  %8273 = vadd.xlane.f32.xlu0 %v8272
  %v8274 = vpop.xlane.xlu0 %8273
  %v8275 = vsel %vm8001, %v8267, 0.0
  %8276 = vadd.xlane.f32.xlu0 %v8275
  %v8277 = vpop.xlane.xlu0 %8276
  %v8278 = vsel %vm8001, %v8269, 0.0
  %8279 = vadd.xlane.f32.xlu0 %v8278
  %v8280 = vpop.xlane.xlu0 %8279
  %v8281 = vsel %vm8001, %v8271, 0.0
  %8282 = vadd.xlane.f32.xlu0 %v8281
  %v8283 = vpop.xlane.xlu0 %8282
  %v8284 = vrcp.pop %v8274
  %v8285 = vmul.f32 %v8265, %v8284
  %v8286 = vrcp.pop %v8277
  %v8287 = vmul.f32 %v8267, %v8286
  %v8288 = vrcp.pop %v8280
  %v8289 = vmul.f32 %v8269, %v8288
  %v8290 = vrcp.pop %v8283
  %v8291 = vmul.f32 %v8271, %v8290
  %v8292 = vpack.c.bf16 %v8287, %v8285
  %v8293 = vpack.c.bf16 %v8291, %v8289
  %8295 = vrot.lane.b32.xlu0 %v8048, 96
  %v8296 = vpop.permute.xlu0 %8295
  %v8299 = vsel %vm8001, %v8292, 0
  %8301 = vmatprep.subr.bf16.mxu0 0
  %8302 = vmatpush1.bf16.msra.mxu0 %v8296
  %8303 = vmatprep.subr.bf16.mxu0 0
  %8304 = vmatpush1.bf16.msra.mxu0 0
  %8305 = vmatprep.subr.bf16.mxu0 0
  %8306 = vmatpush1.bf16.msra.mxu0 0
  %8307 = vmatprep.subr.bf16.mxu0 0
  %8308 = vmatpush1.bf16.msra.mxu0 0
  %8309 = vmatprep.subr.bf16.mxu0 0
  %8310 = vmatpush1.bf16.msra.mxu0 0
  %8311 = vmatprep.subr.bf16.mxu0 0
  %8312 = vmatpush1.bf16.msra.mxu0 0
  %8313 = vmatprep.subr.bf16.mxu0 0
  %8314 = vmatpush1.bf16.msra.mxu0 0
  %8315 = vmatprep.subr.bf16.mxu0 0
  %8316 = vmatpush1.bf16.msra.mxu0 0
  %8317 = vmatprep.subr.bf16.mxu0 0
  %8318 = vmatpush1.bf16.msra.mxu0 0
  %8319 = vmatprep.subr.bf16.mxu0 0
  %8320 = vmatpush1.bf16.msra.mxu0 0
  %8321 = vmatprep.subr.bf16.mxu0 0
  %8322 = vmatpush1.bf16.msra.mxu0 0
  %8323 = vmatprep.subr.bf16.mxu0 0
  %8324 = vmatpush1.bf16.msra.mxu0 0
  %8325 = vmatprep.subr.bf16.mxu0 0
  %8326 = vmatpush1.bf16.msra.mxu0 0
  %8327 = vmatprep.subr.bf16.mxu0 0
  %8328 = vmatpush1.bf16.msra.mxu0 0
  %8329 = vmatprep.subr.bf16.mxu0 0
  %8330 = vmatpush1.bf16.msra.mxu0 0
  %8331 = vmatprep.subr.bf16.mxu0 0
  %8332 = vmatpush1.bf16.msra.mxu0 0
  %8333 = vmatprep.mubr.bf16.mxu0 0
  %8334 = vmatmul.mubr.bf16.gmra.mrb[0].mxu0 %v8299
  %v8335 = vpop.f32.mrb[0].mxu0
  %v8336 = vadd.f32 0.0, %v8335
  %v8337 = vpop.f32.mrb[0].mxu0
  %v8338 = vpop.f32.mrb[0].mxu0
  %v8339 = vadd.f32 0.0, %v8338
  %v8340 = vpop.f32.mrb[0].mxu0
  %8341 = vdwg.mxu0
  %8343 = vrot.lane.b32.xlu0 %v8049, 96
  %v8344 = vpop.permute.xlu0 %8343
  %v8347 = vsel %vm8001, %v8293, 0
  %8349 = vmatprep.subr.bf16.mxu0 0
  %8350 = vmatpush1.bf16.msra.mxu0 %v8344
  %8351 = vmatprep.subr.bf16.mxu0 0
  %8352 = vmatpush1.bf16.msra.mxu0 0
  %8353 = vmatprep.subr.bf16.mxu0 0
  %8354 = vmatpush1.bf16.msra.mxu0 0
  %8355 = vmatprep.subr.bf16.mxu0 0
  %8356 = vmatpush1.bf16.msra.mxu0 0
  %8357 = vmatprep.subr.bf16.mxu0 0
  %8358 = vmatpush1.bf16.msra.mxu0 0
  %8359 = vmatprep.subr.bf16.mxu0 0
  %8360 = vmatpush1.bf16.msra.mxu0 0
  %8361 = vmatprep.subr.bf16.mxu0 0
  %8362 = vmatpush1.bf16.msra.mxu0 0
  %8363 = vmatprep.subr.bf16.mxu0 0
  %8364 = vmatpush1.bf16.msra.mxu0 0
  %8365 = vmatprep.subr.bf16.mxu0 0
  %8366 = vmatpush1.bf16.msra.mxu0 0
  %8367 = vmatprep.subr.bf16.mxu0 0
  %8368 = vmatpush1.bf16.msra.mxu0 0
  %8369 = vmatprep.subr.bf16.mxu0 0
  %8370 = vmatpush1.bf16.msra.mxu0 0
  %8371 = vmatprep.subr.bf16.mxu0 0
  %8372 = vmatpush1.bf16.msra.mxu0 0
  %8373 = vmatprep.subr.bf16.mxu0 0
  %8374 = vmatpush1.bf16.msra.mxu0 0
  %8375 = vmatprep.subr.bf16.mxu0 0
  %8376 = vmatpush1.bf16.msra.mxu0 0
  %8377 = vmatprep.subr.bf16.mxu0 0
  %8378 = vmatpush1.bf16.msra.mxu0 0
  %8379 = vmatprep.subr.bf16.mxu0 0
  %8380 = vmatpush1.bf16.msra.mxu0 0
  %8381 = vmatprep.mubr.bf16.mxu0 0
  %8382 = vmatmul.mubr.bf16.gmra.mrb[0].mxu0 %v8347
  %v8383 = vpop.f32.mrb[0].mxu0
  %v8384 = vadd.f32 0.0, %v8383
  %v8385 = vpop.f32.mrb[0].mxu0
  %v8386 = vpop.f32.mrb[0].mxu0
  %v8387 = vadd.f32 0.0, %v8386
  %v8388 = vpop.f32.mrb[0].mxu0
  %8389 = vdwg.mxu0
  %8390 = vrot.lane.b32.xlu0 %v7898, 64
  %v8391 = vpop.permute.xlu0 %8390
  %8392 = vrot.lane.b32.xlu0 %v7900, 64
  %v8393 = vpop.permute.xlu0 %8392
  %v8395 = vsel %vm7902, %v8391, 0
  %v8398 = vsel %vm7902, %v8393, 0
  %8400 = vmatprep.subr.bf16.mxu0 0
  %8401 = vmatpush1.bf16.xpose.msra.mxu0 %v8398
  %8402 = vmatprep.subr.bf16.mxu0 0
  %8403 = vmatpush1.bf16.xpose.msra.mxu0 0
  %8404 = vmatprep.subr.bf16.mxu0 0
  %8405 = vmatpush1.bf16.xpose.msra.mxu0 0
  %8406 = vmatprep.subr.bf16.mxu0 0
  %8407 = vmatpush1.bf16.xpose.msra.mxu0 0
  %8408 = vmatprep.subr.bf16.mxu0 0
  %8409 = vmatpush1.bf16.xpose.msra.mxu0 0
  %8410 = vmatprep.subr.bf16.mxu0 0
  %8411 = vmatpush1.bf16.xpose.msra.mxu0 0
  %8412 = vmatprep.subr.bf16.mxu0 0
  %8413 = vmatpush1.bf16.xpose.msra.mxu0 0
  %8414 = vmatprep.subr.bf16.mxu0 0
  %8415 = vmatpush1.bf16.xpose.msra.mxu0 0
  %8416 = vmatprep.subr.bf16.mxu0 0
  %8417 = vmatpush1.bf16.xpose.msra.mxu0 0
  %8418 = vmatprep.subr.bf16.mxu0 0
  %8419 = vmatpush1.bf16.xpose.msra.mxu0 0
  %8420 = vmatprep.subr.bf16.mxu0 0
  %8421 = vmatpush1.bf16.xpose.msra.mxu0 0
  %8422 = vmatprep.subr.bf16.mxu0 0
  %8423 = vmatpush1.bf16.xpose.msra.mxu0 0
  %8424 = vmatprep.subr.bf16.mxu0 0
  %8425 = vmatpush1.bf16.xpose.msra.mxu0 0
  %8426 = vmatprep.subr.bf16.mxu0 0
  %8427 = vmatpush1.bf16.xpose.msra.mxu0 0
  %8428 = vmatprep.subr.bf16.mxu0 0
  %8429 = vmatpush1.bf16.xpose.msra.mxu0 0
  %8430 = vmatprep.subr.bf16.mxu0 0
  %8431 = vmatpush1.bf16.xpose.msra.mxu0 0
  %8432 = vmatprep.mubr.bf16.mxu0 0
  %8433 = vmatmul.mubr.bf16.gmra.mrb[0].mxu0 %v8395
  %v8434 = vpop.f32.mrb[0].mxu0
  %v8435 = vadd.f32 0.0, %v8434
  %v8436 = vpop.f32.mrb[0].mxu0
  %v8437 = vpop.f32.mrb[0].mxu0
  %v8438 = vadd.f32 0.0, %v8437
  %v8439 = vpop.f32.mrb[0].mxu0
  %8440 = vdwg.mxu0
  %8441 = vrot.lane.b32.xlu0 %v7899, 64
  %v8442 = vpop.permute.xlu0 %8441
  %8443 = vrot.lane.b32.xlu0 %v7901, 64
  %v8444 = vpop.permute.xlu0 %8443
  %v8446 = vsel %vm7902, %v8442, 0
  %v8449 = vsel %vm7902, %v8444, 0
  %8451 = vmatprep.subr.bf16.mxu0 0
  %8452 = vmatpush1.bf16.xpose.msra.mxu0 %v8449
  %8453 = vmatprep.subr.bf16.mxu0 0
  %8454 = vmatpush1.bf16.xpose.msra.mxu0 0
  %8455 = vmatprep.subr.bf16.mxu0 0
  %8456 = vmatpush1.bf16.xpose.msra.mxu0 0
  %8457 = vmatprep.subr.bf16.mxu0 0
  %8458 = vmatpush1.bf16.xpose.msra.mxu0 0
  %8459 = vmatprep.subr.bf16.mxu0 0
  %8460 = vmatpush1.bf16.xpose.msra.mxu0 0
  %8461 = vmatprep.subr.bf16.mxu0 0
  %8462 = vmatpush1.bf16.xpose.msra.mxu0 0
  %8463 = vmatprep.subr.bf16.mxu0 0
  %8464 = vmatpush1.bf16.xpose.msra.mxu0 0
  %8465 = vmatprep.subr.bf16.mxu0 0
  %8466 = vmatpush1.bf16.xpose.msra.mxu0 0
  %8467 = vmatprep.subr.bf16.mxu0 0
  %8468 = vmatpush1.bf16.xpose.msra.mxu0 0
  %8469 = vmatprep.subr.bf16.mxu0 0
  %8470 = vmatpush1.bf16.xpose.msra.mxu0 0
  %8471 = vmatprep.subr.bf16.mxu0 0
  %8472 = vmatpush1.bf16.xpose.msra.mxu0 0
  %8473 = vmatprep.subr.bf16.mxu0 0
  %8474 = vmatpush1.bf16.xpose.msra.mxu0 0
  %8475 = vmatprep.subr.bf16.mxu0 0
  %8476 = vmatpush1.bf16.xpose.msra.mxu0 0
  %8477 = vmatprep.subr.bf16.mxu0 0
  %8478 = vmatpush1.bf16.xpose.msra.mxu0 0
  %8479 = vmatprep.subr.bf16.mxu0 0
  %8480 = vmatpush1.bf16.xpose.msra.mxu0 0
  %8481 = vmatprep.subr.bf16.mxu0 0
  %8482 = vmatpush1.bf16.xpose.msra.mxu0 0
  %8483 = vmatprep.mubr.bf16.mxu0 0
  %8484 = vmatmul.mubr.bf16.gmra.mrb[0].mxu0 %v8446
  %v8485 = vpop.f32.mrb[0].mxu0
  %v8486 = vadd.f32 0.0, %v8485
  %v8487 = vpop.f32.mrb[0].mxu0
  %v8488 = vpop.f32.mrb[0].mxu0
  %v8489 = vadd.f32 0.0, %v8488
  %v8490 = vpop.f32.mrb[0].mxu0
  %8491 = vdwg.mxu0
  %v8492 = vmul.f32 %v8435, 0.17677669
  %v8493 = vmul.f32 %v8438, 0.17677669
  %v8494 = vmul.f32 %v8486, 0.17677669
  %v8495 = vmul.f32 %v8489, 0.17677669
  %v8496 = vsel %vm8001, %v8492, -inf
  %8497 = vmax.xlane.f32.xlu0 %v8496
  %v8498 = vpop.xlane.xlu0 %8497
  %v8499 = vsel %vm8001, %v8493, -inf
  %8500 = vmax.xlane.f32.xlu0 %v8499
  %v8501 = vpop.xlane.xlu0 %8500
  %v8502 = vsel %vm8001, %v8494, -inf
  %8503 = vmax.xlane.f32.xlu0 %v8502
  %v8504 = vpop.xlane.xlu0 %8503
  %v8505 = vsel %vm8001, %v8495, -inf
  %8506 = vmax.xlane.f32.xlu0 %v8505
  %v8507 = vpop.xlane.xlu0 %8506
  %v8508 = vsub.f32 %v8492, %v8498
  %v8509 = vsub.f32 %v8493, %v8501
  %v8510 = vsub.f32 %v8494, %v8504
  %v8511 = vsub.f32 %v8495, %v8507
  %v8512 = vmul.f32 %v8508, 1.442695
  %v8513 = vpow.pop %v8512
  %v8514 = vmul.f32 %v8509, 1.442695
  %v8515 = vpow.pop %v8514
  %v8516 = vmul.f32 %v8510, 1.442695
  %v8517 = vpow.pop %v8516
  %v8518 = vmul.f32 %v8511, 1.442695
  %v8519 = vpow.pop %v8518
  %v8520 = vsel %vm8001, %v8513, 0.0
  %8521 = vadd.xlane.f32.xlu0 %v8520
  %v8522 = vpop.xlane.xlu0 %8521
  %v8523 = vsel %vm8001, %v8515, 0.0
  %8524 = vadd.xlane.f32.xlu0 %v8523
  %v8525 = vpop.xlane.xlu0 %8524
  %v8526 = vsel %vm8001, %v8517, 0.0
  %8527 = vadd.xlane.f32.xlu0 %v8526
  %v8528 = vpop.xlane.xlu0 %8527
  %v8529 = vsel %vm8001, %v8519, 0.0
  %8530 = vadd.xlane.f32.xlu0 %v8529
  %v8531 = vpop.xlane.xlu0 %8530
  %v8532 = vrcp.pop %v8522
  %v8533 = vmul.f32 %v8513, %v8532
  %v8534 = vrcp.pop %v8525
  %v8535 = vmul.f32 %v8515, %v8534
  %v8536 = vrcp.pop %v8528
  %v8537 = vmul.f32 %v8517, %v8536
  %v8538 = vrcp.pop %v8531
  %v8539 = vmul.f32 %v8519, %v8538
  %v8540 = vpack.c.bf16 %v8535, %v8533
  %v8541 = vpack.c.bf16 %v8539, %v8537
  %8542 = vrot.lane.b32.xlu0 %v8048, 64
  %v8543 = vpop.permute.xlu0 %8542
  %v8546 = vsel %vm8001, %v8540, 0
  %8548 = vmatprep.subr.bf16.mxu0 0
  %8549 = vmatpush1.bf16.msra.mxu0 %v8543
  %8550 = vmatprep.subr.bf16.mxu0 0
  %8551 = vmatpush1.bf16.msra.mxu0 0
  %8552 = vmatprep.subr.bf16.mxu0 0
  %8553 = vmatpush1.bf16.msra.mxu0 0
  %8554 = vmatprep.subr.bf16.mxu0 0
  %8555 = vmatpush1.bf16.msra.mxu0 0
  %8556 = vmatprep.subr.bf16.mxu0 0
  %8557 = vmatpush1.bf16.msra.mxu0 0
  %8558 = vmatprep.subr.bf16.mxu0 0
  %8559 = vmatpush1.bf16.msra.mxu0 0
  %8560 = vmatprep.subr.bf16.mxu0 0
  %8561 = vmatpush1.bf16.msra.mxu0 0
  %8562 = vmatprep.subr.bf16.mxu0 0
  %8563 = vmatpush1.bf16.msra.mxu0 0
  %8564 = vmatprep.subr.bf16.mxu0 0
  %8565 = vmatpush1.bf16.msra.mxu0 0
  %8566 = vmatprep.subr.bf16.mxu0 0
  %8567 = vmatpush1.bf16.msra.mxu0 0
  %8568 = vmatprep.subr.bf16.mxu0 0
  %8569 = vmatpush1.bf16.msra.mxu0 0
  %8570 = vmatprep.subr.bf16.mxu0 0
  %8571 = vmatpush1.bf16.msra.mxu0 0
  %8572 = vmatprep.subr.bf16.mxu0 0
  %8573 = vmatpush1.bf16.msra.mxu0 0
  %8574 = vmatprep.subr.bf16.mxu0 0
  %8575 = vmatpush1.bf16.msra.mxu0 0
  %8576 = vmatprep.subr.bf16.mxu0 0
  %8577 = vmatpush1.bf16.msra.mxu0 0
  %8578 = vmatprep.subr.bf16.mxu0 0
  %8579 = vmatpush1.bf16.msra.mxu0 0
  %8580 = vmatprep.mubr.bf16.mxu0 0
  %8581 = vmatmul.mubr.bf16.gmra.mrb[0].mxu0 %v8546
  %v8582 = vpop.f32.mrb[0].mxu0
  %v8583 = vadd.f32 0.0, %v8582
  %v8584 = vpop.f32.mrb[0].mxu0
  %v8585 = vpop.f32.mrb[0].mxu0
  %v8586 = vadd.f32 0.0, %v8585
  %v8587 = vpop.f32.mrb[0].mxu0
  %8588 = vdwg.mxu0
  %8589 = vrot.lane.b32.xlu0 %v8049, 64
  %v8590 = vpop.permute.xlu0 %8589
  %v8593 = vsel %vm8001, %v8541, 0
  %8595 = vmatprep.subr.bf16.mxu0 0
  %8596 = vmatpush1.bf16.msra.mxu0 %v8590
  %8597 = vmatprep.subr.bf16.mxu0 0
  %8598 = vmatpush1.bf16.msra.mxu0 0
  %8599 = vmatprep.subr.bf16.mxu0 0
  %8600 = vmatpush1.bf16.msra.mxu0 0
  %8601 = vmatprep.subr.bf16.mxu0 0
  %8602 = vmatpush1.bf16.msra.mxu0 0
  %8603 = vmatprep.subr.bf16.mxu0 0
  %8604 = vmatpush1.bf16.msra.mxu0 0
  %8605 = vmatprep.subr.bf16.mxu0 0
  %8606 = vmatpush1.bf16.msra.mxu0 0
  %8607 = vmatprep.subr.bf16.mxu0 0
  %8608 = vmatpush1.bf16.msra.mxu0 0
  %8609 = vmatprep.subr.bf16.mxu0 0
  %8610 = vmatpush1.bf16.msra.mxu0 0
  %8611 = vmatprep.subr.bf16.mxu0 0
  %8612 = vmatpush1.bf16.msra.mxu0 0
  %8613 = vmatprep.subr.bf16.mxu0 0
  %8614 = vmatpush1.bf16.msra.mxu0 0
  %8615 = vmatprep.subr.bf16.mxu0 0
  %8616 = vmatpush1.bf16.msra.mxu0 0
  %8617 = vmatprep.subr.bf16.mxu0 0
  %8618 = vmatpush1.bf16.msra.mxu0 0
  %8619 = vmatprep.subr.bf16.mxu0 0
  %8620 = vmatpush1.bf16.msra.mxu0 0
  %8621 = vmatprep.subr.bf16.mxu0 0
  %8622 = vmatpush1.bf16.msra.mxu0 0
  %8623 = vmatprep.subr.bf16.mxu0 0
  %8624 = vmatpush1.bf16.msra.mxu0 0
  %8625 = vmatprep.subr.bf16.mxu0 0
  %8626 = vmatpush1.bf16.msra.mxu0 0
  %8627 = vmatprep.mubr.bf16.mxu0 0
  %8628 = vmatmul.mubr.bf16.gmra.mrb[0].mxu0 %v8593
  %v8629 = vpop.f32.mrb[0].mxu0
  %v8630 = vadd.f32 0.0, %v8629
  %v8631 = vpop.f32.mrb[0].mxu0
  %v8632 = vpop.f32.mrb[0].mxu0
  %v8633 = vadd.f32 0.0, %v8632
  %v8634 = vpop.f32.mrb[0].mxu0
  %8635 = vdwg.mxu0
  %8636 = vrot.lane.b32.xlu0 %v7898, 32
  %v8637 = vpop.permute.xlu0 %8636
  %8638 = vrot.lane.b32.xlu0 %v7900, 32
  %v8639 = vpop.permute.xlu0 %8638
  %v8641 = vsel %vm7902, %v8637, 0
  %v8644 = vsel %vm7902, %v8639, 0
  %8646 = vmatprep.subr.bf16.mxu0 0
  %8647 = vmatpush1.bf16.xpose.msra.mxu0 %v8644
  %8648 = vmatprep.subr.bf16.mxu0 0
  %8649 = vmatpush1.bf16.xpose.msra.mxu0 0
  %8650 = vmatprep.subr.bf16.mxu0 0
  %8651 = vmatpush1.bf16.xpose.msra.mxu0 0
  %8652 = vmatprep.subr.bf16.mxu0 0
  %8653 = vmatpush1.bf16.xpose.msra.mxu0 0
  %8654 = vmatprep.subr.bf16.mxu0 0
  %8655 = vmatpush1.bf16.xpose.msra.mxu0 0
  %8656 = vmatprep.subr.bf16.mxu0 0
  %8657 = vmatpush1.bf16.xpose.msra.mxu0 0
  %8658 = vmatprep.subr.bf16.mxu0 0
  %8659 = vmatpush1.bf16.xpose.msra.mxu0 0
  %8660 = vmatprep.subr.bf16.mxu0 0
  %8661 = vmatpush1.bf16.xpose.msra.mxu0 0
  %8662 = vmatprep.subr.bf16.mxu0 0
  %8663 = vmatpush1.bf16.xpose.msra.mxu0 0
  %8664 = vmatprep.subr.bf16.mxu0 0
  %8665 = vmatpush1.bf16.xpose.msra.mxu0 0
  %8666 = vmatprep.subr.bf16.mxu0 0
  %8667 = vmatpush1.bf16.xpose.msra.mxu0 0
  %8668 = vmatprep.subr.bf16.mxu0 0
  %8669 = vmatpush1.bf16.xpose.msra.mxu0 0
  %8670 = vmatprep.subr.bf16.mxu0 0
  %8671 = vmatpush1.bf16.xpose.msra.mxu0 0
  %8672 = vmatprep.subr.bf16.mxu0 0
  %8673 = vmatpush1.bf16.xpose.msra.mxu0 0
  %8674 = vmatprep.subr.bf16.mxu0 0
  %8675 = vmatpush1.bf16.xpose.msra.mxu0 0
  %8676 = vmatprep.subr.bf16.mxu0 0
  %8677 = vmatpush1.bf16.xpose.msra.mxu0 0
  %8678 = vmatprep.mubr.bf16.mxu0 0
  %8679 = vmatmul.mubr.bf16.gmra.mrb[0].mxu0 %v8641
  %v8680 = vpop.f32.mrb[0].mxu0
  %v8681 = vadd.f32 0.0, %v8680
  %v8682 = vpop.f32.mrb[0].mxu0
  %v8683 = vpop.f32.mrb[0].mxu0
  %v8684 = vadd.f32 0.0, %v8683
  %v8685 = vpop.f32.mrb[0].mxu0
  %8686 = vdwg.mxu0
  %8687 = vrot.lane.b32.xlu0 %v7899, 32
  %v8688 = vpop.permute.xlu0 %8687
  %8689 = vrot.lane.b32.xlu0 %v7901, 32
  %v8690 = vpop.permute.xlu0 %8689
  %v8692 = vsel %vm7902, %v8688, 0
  %v8695 = vsel %vm7902, %v8690, 0
  %8697 = vmatprep.subr.bf16.mxu0 0
  %8698 = vmatpush1.bf16.xpose.msra.mxu0 %v8695
  %8699 = vmatprep.subr.bf16.mxu0 0
  %8700 = vmatpush1.bf16.xpose.msra.mxu0 0
  %8701 = vmatprep.subr.bf16.mxu0 0
  %8702 = vmatpush1.bf16.xpose.msra.mxu0 0
  %8703 = vmatprep.subr.bf16.mxu0 0
  %8704 = vmatpush1.bf16.xpose.msra.mxu0 0
  %8705 = vmatprep.subr.bf16.mxu0 0
  %8706 = vmatpush1.bf16.xpose.msra.mxu0 0
  %8707 = vmatprep.subr.bf16.mxu0 0
  %8708 = vmatpush1.bf16.xpose.msra.mxu0 0
  %8709 = vmatprep.subr.bf16.mxu0 0
  %8710 = vmatpush1.bf16.xpose.msra.mxu0 0
  %8711 = vmatprep.subr.bf16.mxu0 0
  %8712 = vmatpush1.bf16.xpose.msra.mxu0 0
  %8713 = vmatprep.subr.bf16.mxu0 0
  %8714 = vmatpush1.bf16.xpose.msra.mxu0 0
  %8715 = vmatprep.subr.bf16.mxu0 0
  %8716 = vmatpush1.bf16.xpose.msra.mxu0 0
  %8717 = vmatprep.subr.bf16.mxu0 0
  %8718 = vmatpush1.bf16.xpose.msra.mxu0 0
  %8719 = vmatprep.subr.bf16.mxu0 0
  %8720 = vmatpush1.bf16.xpose.msra.mxu0 0
  %8721 = vmatprep.subr.bf16.mxu0 0
  %8722 = vmatpush1.bf16.xpose.msra.mxu0 0
  %8723 = vmatprep.subr.bf16.mxu0 0
  %8724 = vmatpush1.bf16.xpose.msra.mxu0 0
  %8725 = vmatprep.subr.bf16.mxu0 0
  %8726 = vmatpush1.bf16.xpose.msra.mxu0 0
  %8727 = vmatprep.subr.bf16.mxu0 0
  %8728 = vmatpush1.bf16.xpose.msra.mxu0 0
  %8729 = vmatprep.mubr.bf16.mxu0 0
  %8730 = vmatmul.mubr.bf16.gmra.mrb[0].mxu0 %v8692
  %v8731 = vpop.f32.mrb[0].mxu0
  %v8732 = vadd.f32 0.0, %v8731
  %v8733 = vpop.f32.mrb[0].mxu0
  %v8734 = vpop.f32.mrb[0].mxu0
  %v8735 = vadd.f32 0.0, %v8734
  %v8736 = vpop.f32.mrb[0].mxu0
  %8737 = vdwg.mxu0
  %v8738 = vmul.f32 %v8681, 0.17677669
  %v8739 = vmul.f32 %v8684, 0.17677669
  %v8740 = vmul.f32 %v8732, 0.17677669
  %v8741 = vmul.f32 %v8735, 0.17677669
  %v8742 = vsel %vm8001, %v8738, -inf
  %8743 = vmax.xlane.f32.xlu0 %v8742
  %v8744 = vpop.xlane.xlu0 %8743
  %v8745 = vsel %vm8001, %v8739, -inf
  %8746 = vmax.xlane.f32.xlu0 %v8745
  %v8747 = vpop.xlane.xlu0 %8746
  %v8748 = vsel %vm8001, %v8740, -inf
  %8749 = vmax.xlane.f32.xlu0 %v8748
  %v8750 = vpop.xlane.xlu0 %8749
  %v8751 = vsel %vm8001, %v8741, -inf
  %8752 = vmax.xlane.f32.xlu0 %v8751
  %v8753 = vpop.xlane.xlu0 %8752
  %v8754 = vsub.f32 %v8738, %v8744
  %v8755 = vsub.f32 %v8739, %v8747
  %v8756 = vsub.f32 %v8740, %v8750
  %v8757 = vsub.f32 %v8741, %v8753
  %v8758 = vmul.f32 %v8754, 1.442695
  %v8759 = vpow.pop %v8758
  %v8760 = vmul.f32 %v8755, 1.442695
  %v8761 = vpow.pop %v8760
  %v8762 = vmul.f32 %v8756, 1.442695
  %v8763 = vpow.pop %v8762
  %v8764 = vmul.f32 %v8757, 1.442695
  %v8765 = vpow.pop %v8764
  %v8766 = vsel %vm8001, %v8759, 0.0
  %8767 = vadd.xlane.f32.xlu0 %v8766
  %v8768 = vpop.xlane.xlu0 %8767
  %v8769 = vsel %vm8001, %v8761, 0.0
  %8770 = vadd.xlane.f32.xlu0 %v8769
  %v8771 = vpop.xlane.xlu0 %8770
  %v8772 = vsel %vm8001, %v8763, 0.0
  %8773 = vadd.xlane.f32.xlu0 %v8772
  %v8774 = vpop.xlane.xlu0 %8773
  %v8775 = vsel %vm8001, %v8765, 0.0
  %8776 = vadd.xlane.f32.xlu0 %v8775
  %v8777 = vpop.xlane.xlu0 %8776
  %v8778 = vrcp.pop %v8768
  %v8779 = vmul.f32 %v8759, %v8778
  %v8780 = vrcp.pop %v8771
  %v8781 = vmul.f32 %v8761, %v8780
  %v8782 = vrcp.pop %v8774
  %v8783 = vmul.f32 %v8763, %v8782
  %v8784 = vrcp.pop %v8777
  %v8785 = vmul.f32 %v8765, %v8784
  %v8786 = vpack.c.bf16 %v8781, %v8779
  %v8787 = vpack.c.bf16 %v8785, %v8783
  %8788 = vrot.lane.b32.xlu0 %v8048, 32
  %v8789 = vpop.permute.xlu0 %8788
  %v8792 = vsel %vm8001, %v8786, 0
  %8794 = vmatprep.subr.bf16.mxu0 0
  %8795 = vmatpush1.bf16.msra.mxu0 %v8789
  %8796 = vmatprep.subr.bf16.mxu0 0
  %8797 = vmatpush1.bf16.msra.mxu0 0
  %8798 = vmatprep.subr.bf16.mxu0 0
  %8799 = vmatpush1.bf16.msra.mxu0 0
  %8800 = vmatprep.subr.bf16.mxu0 0
  %8801 = vmatpush1.bf16.msra.mxu0 0
  %8802 = vmatprep.subr.bf16.mxu0 0
  %8803 = vmatpush1.bf16.msra.mxu0 0
  %8804 = vmatprep.subr.bf16.mxu0 0
  %8805 = vmatpush1.bf16.msra.mxu0 0
  %8806 = vmatprep.subr.bf16.mxu0 0
  %8807 = vmatpush1.bf16.msra.mxu0 0
  %8808 = vmatprep.subr.bf16.mxu0 0
  %8809 = vmatpush1.bf16.msra.mxu0 0
  %8810 = vmatprep.subr.bf16.mxu0 0
  %8811 = vmatpush1.bf16.msra.mxu0 0
  %8812 = vmatprep.subr.bf16.mxu0 0
  %8813 = vmatpush1.bf16.msra.mxu0 0
  %8814 = vmatprep.subr.bf16.mxu0 0
  %8815 = vmatpush1.bf16.msra.mxu0 0
  %8816 = vmatprep.subr.bf16.mxu0 0
  %8817 = vmatpush1.bf16.msra.mxu0 0
  %8818 = vmatprep.subr.bf16.mxu0 0
  %8819 = vmatpush1.bf16.msra.mxu0 0
  %8820 = vmatprep.subr.bf16.mxu0 0
  %8821 = vmatpush1.bf16.msra.mxu0 0
  %8822 = vmatprep.subr.bf16.mxu0 0
  %8823 = vmatpush1.bf16.msra.mxu0 0
  %8824 = vmatprep.subr.bf16.mxu0 0
  %8825 = vmatpush1.bf16.msra.mxu0 0
  %8826 = vmatprep.mubr.bf16.mxu0 0
  %8827 = vmatmul.mubr.bf16.gmra.mrb[0].mxu0 %v8792
  %v8828 = vpop.f32.mrb[0].mxu0
  %v8829 = vadd.f32 0.0, %v8828
  %v8830 = vpop.f32.mrb[0].mxu0
  %v8831 = vpop.f32.mrb[0].mxu0
  %v8832 = vadd.f32 0.0, %v8831
  %v8833 = vpop.f32.mrb[0].mxu0
  %8834 = vdwg.mxu0
  %8835 = vrot.lane.b32.xlu0 %v8049, 32
  %v8836 = vpop.permute.xlu0 %8835
  %v8839 = vsel %vm8001, %v8787, 0
  %8841 = vmatprep.subr.bf16.mxu0 0
  %8842 = vmatpush1.bf16.msra.mxu0 %v8836
  %8843 = vmatprep.subr.bf16.mxu0 0
  %8844 = vmatpush1.bf16.msra.mxu0 0
  %8845 = vmatprep.subr.bf16.mxu0 0
  %8846 = vmatpush1.bf16.msra.mxu0 0
  %8847 = vmatprep.subr.bf16.mxu0 0
  %8848 = vmatpush1.bf16.msra.mxu0 0
  %8849 = vmatprep.subr.bf16.mxu0 0
  %8850 = vmatpush1.bf16.msra.mxu0 0
  %8851 = vmatprep.subr.bf16.mxu0 0
  %8852 = vmatpush1.bf16.msra.mxu0 0
  %8853 = vmatprep.subr.bf16.mxu0 0
  %8854 = vmatpush1.bf16.msra.mxu0 0
  %8855 = vmatprep.subr.bf16.mxu0 0
  %8856 = vmatpush1.bf16.msra.mxu0 0
  %8857 = vmatprep.subr.bf16.mxu0 0
  %8858 = vmatpush1.bf16.msra.mxu0 0
  %8859 = vmatprep.subr.bf16.mxu0 0
  %8860 = vmatpush1.bf16.msra.mxu0 0
  %8861 = vmatprep.subr.bf16.mxu0 0
  %8862 = vmatpush1.bf16.msra.mxu0 0
  %8863 = vmatprep.subr.bf16.mxu0 0
  %8864 = vmatpush1.bf16.msra.mxu0 0
  %8865 = vmatprep.subr.bf16.mxu0 0
  %8866 = vmatpush1.bf16.msra.mxu0 0
  %8867 = vmatprep.subr.bf16.mxu0 0
  %8868 = vmatpush1.bf16.msra.mxu0 0
  %8869 = vmatprep.subr.bf16.mxu0 0
  %8870 = vmatpush1.bf16.msra.mxu0 0
  %8871 = vmatprep.subr.bf16.mxu0 0
  %8872 = vmatpush1.bf16.msra.mxu0 0
  %8873 = vmatprep.mubr.bf16.mxu0 0
  %8874 = vmatmul.mubr.bf16.gmra.mrb[0].mxu0 %v8839
  %v8875 = vpop.f32.mrb[0].mxu0
  %v8876 = vadd.f32 0.0, %v8875
  %v8877 = vpop.f32.mrb[0].mxu0
  %v8878 = vpop.f32.mrb[0].mxu0
  %v8879 = vadd.f32 0.0, %v8878
  %v8880 = vpop.f32.mrb[0].mxu0
  %8881 = vdwg.mxu0
  %8886 = vrot.lane.b32.xlu0 %v8336, 32
  %v8887 = vpop.permute.xlu0 %8886
  %8888 = vrot.lane.b32.xlu0 %v8339, 32
  %v8889 = vpop.permute.xlu0 %8888
  %8890 = vrot.lane.b32.xlu0 %v8384, 32
  %v8891 = vpop.permute.xlu0 %8890
  %8892 = vrot.lane.b32.xlu0 %v8387, 32
  %v8893 = vpop.permute.xlu0 %8892
  %8902 = vrot.lane.b32.xlu0 %v8583, 64
  %v8903 = vpop.permute.xlu0 %8902
  %8904 = vrot.lane.b32.xlu0 %v8586, 64
  %v8905 = vpop.permute.xlu0 %8904
  %8906 = vrot.lane.b32.xlu0 %v8630, 64
  %v8907 = vpop.permute.xlu0 %8906
  %8908 = vrot.lane.b32.xlu0 %v8633, 64
  %v8909 = vpop.permute.xlu0 %8908
  %8918 = vrot.lane.b32.xlu0 %v8829, 96
  %v8919 = vpop.permute.xlu0 %8918
  %8920 = vrot.lane.b32.xlu0 %v8832, 96
  %v8921 = vpop.permute.xlu0 %8920
  %8922 = vrot.lane.b32.xlu0 %v8876, 96
  %v8923 = vpop.permute.xlu0 %8922
  %8924 = vrot.lane.b32.xlu0 %v8879, 96
  %v8925 = vpop.permute.xlu0 %8924
  %v8930 = vsel %vm7902, %v8088, %v8887
  %v8931 = vsel %vm7902, %v8091, %v8889
  %v8932 = vsel %vm7902, %v8132, %v8891
  %v8933 = vsel %vm7902, %v8135, %v8893
  %v8934 = vsel %vm5724, %v8930, %v8903
  %v8935 = vsel %vm5724, %v8931, %v8905
  %v8936 = vsel %vm5724, %v8932, %v8907
  %v8937 = vsel %vm5724, %v8933, %v8909
  %vm8938 = vcmask 785408
  %v8939 = vsel %vm8938, %v8934, %v8919
  %v8940 = vsel %vm8938, %v8935, %v8921
  %v8941 = vsel %vm8938, %v8936, %v8923
  %v8942 = vsel %vm8938, %v8937, %v8925
  %v8943 = vpack.c.bf16 %v8940, %v8939
  %v8944 = vpack.c.bf16 %v8942, %v8941
  %v8945 = vld [vmem:[%s17] sm:$0xf]
  %v8946 = vld [vmem:[%s17 + $0x4] sm:$0xf]
  %v8947 = vld [vmem:[%s17 + $0x8] sm:$0xf]
  %v8948 = vld [vmem:[%s17 + $0xc] sm:$0xf]
  %v8949 = vld [vmem:[%s17 + $0x10] sm:$0xf]
  %v8950 = vld [vmem:[%s17 + $0x14] sm:$0xf]
  %v8951 = vld [vmem:[%s17 + $0x18] sm:$0xf]
  %v8952 = vld [vmem:[%s17 + $0x1c] sm:$0xf]
  %v8953 = vld [vmem:[%s17 + $0x20] sm:$0xf]
  %v8954 = vld [vmem:[%s17 + $0x24] sm:$0xf]
  %v8955 = vld [vmem:[%s17 + $0x28] sm:$0xf]
  %v8956 = vld [vmem:[%s17 + $0x2c] sm:$0xf]
  %v8957 = vld [vmem:[%s17 + $0x30] sm:$0xf]
  %v8958 = vld [vmem:[%s17 + $0x34] sm:$0xf]
  %v8959 = vld [vmem:[%s17 + $0x38] sm:$0xf]
  %v8960 = vld [vmem:[%s17 + $0x3c] sm:$0xf]
  %v8977 = vunpack.c.l.b16 %v8945
  %v8978 = vunpack.c.l.b16 %v8946
  %v8979 = vunpack.c.l.b16 %v8947
  %v8980 = vunpack.c.l.b16 %v8948
  %v8981 = vunpack.c.l.b16 %v8949
  %v8982 = vunpack.c.l.b16 %v8950
  %v8983 = vunpack.c.l.b16 %v8951
  %v8984 = vunpack.c.l.b16 %v8952
  %v8985 = vunpack.c.l.b16 %v8953
  %v8986 = vunpack.c.l.b16 %v8954
  %v8987 = vunpack.c.l.b16 %v8955
  %v8988 = vunpack.c.l.b16 %v8956
  %v8989 = vunpack.c.l.b16 %v8957
  %v8990 = vunpack.c.l.b16 %v8958
  %v8991 = vunpack.c.l.b16 %v8959
  %v8992 = vunpack.c.l.b16 %v8960
  %v8993 = vpack.c.b16 %v8978, %v8977
  %v8994 = vpack.c.b16 %v8980, %v8979
  %v8995 = vpack.c.b16 %v8982, %v8981
  %v8996 = vpack.c.b16 %v8984, %v8983
  %v8997 = vpack.c.b16 %v8986, %v8985
  %v8998 = vpack.c.b16 %v8988, %v8987
  %v8999 = vpack.c.b16 %v8990, %v8989
  %v9000 = vpack.c.b16 %v8992, %v8991
  %9009 = vmatprep.subr.bf16.mxu0 0
  %9010 = vmatpush1.bf16.msra.mxu0 %v8993
  %9011 = vmatprep.subr.bf16.mxu0 0
  %9012 = vmatpush1.bf16.msra.mxu0 %v8994
  %9013 = vmatprep.subr.bf16.mxu0 0
  %9014 = vmatpush1.bf16.msra.mxu0 %v8995
  %9015 = vmatprep.subr.bf16.mxu0 0
  %9016 = vmatpush1.bf16.msra.mxu0 %v8996
  %9017 = vmatprep.subr.bf16.mxu0 0
  %9018 = vmatpush1.bf16.msra.mxu0 %v8997
  %9019 = vmatprep.subr.bf16.mxu0 0
  %9020 = vmatpush1.bf16.msra.mxu0 %v8998
  %9021 = vmatprep.subr.bf16.mxu0 0
  %9022 = vmatpush1.bf16.msra.mxu0 %v8999
  %9023 = vmatprep.subr.bf16.mxu0 0
  %9024 = vmatpush1.bf16.msra.mxu0 %v9000
  %9025 = vmatprep.subr.bf16.mxu0 0
  %9026 = vmatpush1.bf16.msra.mxu0 0
  %9027 = vmatprep.subr.bf16.mxu0 0
  %9028 = vmatpush1.bf16.msra.mxu0 0
  %9029 = vmatprep.subr.bf16.mxu0 0
  %9030 = vmatpush1.bf16.msra.mxu0 0
  %9031 = vmatprep.subr.bf16.mxu0 0
  %9032 = vmatpush1.bf16.msra.mxu0 0
  %9033 = vmatprep.subr.bf16.mxu0 0
  %9034 = vmatpush1.bf16.msra.mxu0 0
  %9035 = vmatprep.subr.bf16.mxu0 0
  %9036 = vmatpush1.bf16.msra.mxu0 0
  %9037 = vmatprep.subr.bf16.mxu0 0
  %9038 = vmatpush1.bf16.msra.mxu0 0
  %9039 = vmatprep.subr.bf16.mxu0 0
  %9040 = vmatpush1.bf16.msra.mxu0 0
  %9041 = vmatprep.mubr.bf16.mxu0 0
  %9042 = vmatmul.mubr.bf16.gmra.mrb[0].mxu0 %v8943
  %v9043 = vpop.f32.mrb[0].mxu0
  %v9044 = vadd.f32 0.0, %v9043
  %v9045 = vpop.f32.mrb[0].mxu0
  %v9046 = vpop.f32.mrb[0].mxu0
  %v9047 = vadd.f32 0.0, %v9046
  %v9048 = vpop.f32.mrb[0].mxu0
  %9049 = vmatprep.mubr.bf16.mxu0 0
  %9050 = vmatmul.mubr.bf16.gmra.mrb[0].mxu0 %v8944
  %v9051 = vpop.f32.mrb[0].mxu0
  %v9052 = vadd.f32 0.0, %v9051
  %v9053 = vpop.f32.mrb[0].mxu0
  %v9054 = vpop.f32.mrb[0].mxu0
  %v9055 = vadd.f32 0.0, %v9054
  %v9056 = vpop.f32.mrb[0].mxu0
  %9057 = vdwg.mxu0
  %v9058 = vadd.f32 %v7546, %v9044
  %v9059 = vadd.f32 %v7547, %v9047
  %v9060 = vadd.f32 %v7548, %v9052
  %v9061 = vadd.f32 %v7549, %v9055
  %v9062 = vld [vmem:[%s19] sm:$0x1]
  %v9064 = vlaneseq
  %v9065 = vshrl.u32 %v9064, 7
  %v9066 = vsub.s32 0, %v9065
  %v9067 = vrot.slane %v9062, %v9066
  %v9069 = vadd.f32 %v9058, %v9067
  %v9070 = vadd.f32 %v9059, %v9067
  %v9071 = vadd.f32 %v9060, %v9067
  %v9072 = vadd.f32 %v9061, %v9067
  %v9073 = vld [vmem:[%s21] sm:$0x1]
  %v9074 = vld [vmem:[%s23] sm:$0x1]
  %9075 = vadd.xlane.f32.xlu0 %v9069
  %v9076 = vpop.xlane.xlu0 %9075
  %9077 = vadd.xlane.f32.xlu0 %v9070
  %v9078 = vpop.xlane.xlu0 %9077
  %9079 = vadd.xlane.f32.xlu0 %v9071
  %v9080 = vpop.xlane.xlu0 %9079
  %9081 = vadd.xlane.f32.xlu0 %v9072
  %v9082 = vpop.xlane.xlu0 %9081
  %v9083 = vmul.f32 %v9076, %v7560
  %v9084 = vmul.f32 %v9078, %v7560
  %v9085 = vmul.f32 %v9080, %v7560
  %v9086 = vmul.f32 %v9082, %v7560
  %v9087 = vsub.f32 %v9069, %v9083
  %v9088 = vsub.f32 %v9070, %v9084
  %v9089 = vsub.f32 %v9071, %v9085
  %v9090 = vsub.f32 %v9072, %v9086
  %v9091 = vmul.f32 %v9087, %v9087
  %v9092 = vmul.f32 %v9088, %v9088
  %v9093 = vmul.f32 %v9089, %v9089
  %v9094 = vmul.f32 %v9090, %v9090
  %9095 = vadd.xlane.f32.xlu0 %v9091
  %v9096 = vpop.xlane.xlu0 %9095
  %9097 = vadd.xlane.f32.xlu0 %v9092
  %v9098 = vpop.xlane.xlu0 %9097
  %9099 = vadd.xlane.f32.xlu0 %v9093
  %v9100 = vpop.xlane.xlu0 %9099
  %9101 = vadd.xlane.f32.xlu0 %v9094
  %v9102 = vpop.xlane.xlu0 %9101
  %v9103 = vmul.f32 %v9096, %v7560
  %v9104 = vmul.f32 %v9098, %v7560
  %v9105 = vmul.f32 %v9100, %v7560
  %v9106 = vmul.f32 %v9102, %v7560
  %v9107 = vadd.f32 %v9103, 1e-06
  %v9108 = vadd.f32 %v9104, 1e-06
  %v9109 = vadd.f32 %v9105, 1e-06
  %v9110 = vadd.f32 %v9106, 1e-06
  %v9111 = vrsqrt.pop %v9107
  %v9112 = vrsqrt.pop %v9108
  %v9113 = vrsqrt.pop %v9109
  %v9114 = vrsqrt.pop %v9110
  %v9115 = vmul.f32 %v9087, %v9111
  %v9116 = vmul.f32 %v9088, %v9112
  %v9117 = vmul.f32 %v9089, %v9113
  %v9118 = vmul.f32 %v9090, %v9114
  %v9120 = vlaneseq
  %v9121 = vshrl.u32 %v9120, 7
  %v9122 = vsub.s32 0, %v9121
  %v9123 = vrot.slane %v9073, %v9122
  %v9125 = vmul.f32 %v9115, %v9123
  %v9126 = vmul.f32 %v9116, %v9123
  %v9127 = vmul.f32 %v9117, %v9123
  %v9128 = vmul.f32 %v9118, %v9123
  %v9130 = vlaneseq
  %v9131 = vshrl.u32 %v9130, 7
  %v9132 = vsub.s32 0, %v9131
  %v9133 = vrot.slane %v9074, %v9132
  %v9135 = vadd.f32 %v9125, %v9133
  %v9136 = vadd.f32 %v9126, %v9133
  %v9137 = vadd.f32 %v9127, %v9133
  %v9138 = vadd.f32 %v9128, %v9133
  %v9139 = vpack.c.bf16 %v9136, %v9135
  %v9140 = vpack.c.bf16 %v9138, %v9137
  %v9141 = vld [vmem:[%s25] sm:$0xf]
  %v9142 = vld [vmem:[%s25 + $0x4] sm:$0xf]
  %v9143 = vld [vmem:[%s25 + $0x8] sm:$0xf]
  %v9144 = vld [vmem:[%s25 + $0xc] sm:$0xf]
  %v9145 = vld [vmem:[%s25 + $0x10] sm:$0xf]
  %v9146 = vld [vmem:[%s25 + $0x14] sm:$0xf]
  %v9147 = vld [vmem:[%s25 + $0x18] sm:$0xf]
  %v9148 = vld [vmem:[%s25 + $0x1c] sm:$0xf]
  %v9149 = vld [vmem:[%s25 + $0x20] sm:$0xf]
  %v9150 = vld [vmem:[%s25 + $0x24] sm:$0xf]
  %v9151 = vld [vmem:[%s25 + $0x28] sm:$0xf]
  %v9152 = vld [vmem:[%s25 + $0x2c] sm:$0xf]
  %v9153 = vld [vmem:[%s25 + $0x30] sm:$0xf]
  %v9154 = vld [vmem:[%s25 + $0x34] sm:$0xf]
  %v9155 = vld [vmem:[%s25 + $0x38] sm:$0xf]
  %v9156 = vld [vmem:[%s25 + $0x3c] sm:$0xf]
  %v9157 = vld [vmem:[%s27] sm:$0x1]
  %v9159 = vlaneseq
  %v9160 = vshrl.u32 %v9159, 7
  %v9161 = vsub.s32 0, %v9160
  %v9162 = vrot.slane %v9157, %v9161
  %v9180 = vunpack.c.l.b16 %v9141
  %v9181 = vunpack.c.l.b16 %v9142
  %v9182 = vunpack.c.l.b16 %v9143
  %v9183 = vunpack.c.l.b16 %v9144
  %v9184 = vunpack.c.l.b16 %v9145
  %v9185 = vunpack.c.l.b16 %v9146
  %v9186 = vunpack.c.l.b16 %v9147
  %v9187 = vunpack.c.l.b16 %v9148
  %v9188 = vunpack.c.l.b16 %v9149
  %v9189 = vunpack.c.l.b16 %v9150
  %v9190 = vunpack.c.l.b16 %v9151
  %v9191 = vunpack.c.l.b16 %v9152
  %v9192 = vunpack.c.l.b16 %v9153
  %v9193 = vunpack.c.l.b16 %v9154
  %v9194 = vunpack.c.l.b16 %v9155
  %v9195 = vunpack.c.l.b16 %v9156
  %v9196 = vpack.c.b16 %v9181, %v9180
  %v9197 = vpack.c.b16 %v9183, %v9182
  %v9198 = vpack.c.b16 %v9185, %v9184
  %v9199 = vpack.c.b16 %v9187, %v9186
  %v9200 = vpack.c.b16 %v9189, %v9188
  %v9201 = vpack.c.b16 %v9191, %v9190
  %v9202 = vpack.c.b16 %v9193, %v9192
  %v9203 = vpack.c.b16 %v9195, %v9194
  %9212 = vmatprep.subr.bf16.mxu0 0
  %9213 = vmatpush1.bf16.msra.mxu0 %v9196
  %9214 = vmatprep.subr.bf16.mxu0 0
  %9215 = vmatpush1.bf16.msra.mxu0 %v9197
  %9216 = vmatprep.subr.bf16.mxu0 0
  %9217 = vmatpush1.bf16.msra.mxu0 %v9198
  %9218 = vmatprep.subr.bf16.mxu0 0
  %9219 = vmatpush1.bf16.msra.mxu0 %v9199
  %9220 = vmatprep.subr.bf16.mxu0 0
  %9221 = vmatpush1.bf16.msra.mxu0 %v9200
  %9222 = vmatprep.subr.bf16.mxu0 0
  %9223 = vmatpush1.bf16.msra.mxu0 %v9201
  %9224 = vmatprep.subr.bf16.mxu0 0
  %9225 = vmatpush1.bf16.msra.mxu0 %v9202
  %9226 = vmatprep.subr.bf16.mxu0 0
  %9227 = vmatpush1.bf16.msra.mxu0 %v9203
  %9228 = vmatprep.subr.bf16.mxu0 0
  %9229 = vmatpush1.bf16.msra.mxu0 0
  %9230 = vmatprep.subr.bf16.mxu0 0
  %9231 = vmatpush1.bf16.msra.mxu0 0
  %9232 = vmatprep.subr.bf16.mxu0 0
  %9233 = vmatpush1.bf16.msra.mxu0 0
  %9234 = vmatprep.subr.bf16.mxu0 0
  %9235 = vmatpush1.bf16.msra.mxu0 0
  %9236 = vmatprep.subr.bf16.mxu0 0
  %9237 = vmatpush1.bf16.msra.mxu0 0
  %9238 = vmatprep.subr.bf16.mxu0 0
  %9239 = vmatpush1.bf16.msra.mxu0 0
  %9240 = vmatprep.subr.bf16.mxu0 0
  %9241 = vmatpush1.bf16.msra.mxu0 0
  %9242 = vmatprep.subr.bf16.mxu0 0
  %9243 = vmatpush1.bf16.msra.mxu0 0
  %9244 = vmatprep.mubr.bf16.mxu0 0
  %9245 = vmatmul.mubr.bf16.gmra.mrb[0].mxu0 %v9139
  %v9246 = vpop.f32.mrb[0].mxu0
  %v9247 = vadd.f32 %v9162, %v9246
  %v9248 = vpop.f32.mrb[0].mxu0
  %v9249 = vpop.f32.mrb[0].mxu0
  %v9250 = vadd.f32 %v9162, %v9249
  %v9251 = vpop.f32.mrb[0].mxu0
  %9252 = vmatprep.mubr.bf16.mxu0 0
  %9253 = vmatmul.mubr.bf16.gmra.mrb[0].mxu0 %v9140
  %v9254 = vpop.f32.mrb[0].mxu0
  %v9255 = vadd.f32 %v9162, %v9254
  %v9256 = vpop.f32.mrb[0].mxu0
  %v9257 = vpop.f32.mrb[0].mxu0
  %v9258 = vadd.f32 %v9162, %v9257
  %v9259 = vpop.f32.mrb[0].mxu0
  %9260 = vdwg.mxu0
  %v9261 = vmul.f32 %v9247, 0.5
  %v9262 = vmul.f32 %v9250, 0.5
  %v9263 = vmul.f32 %v9255, 0.5
  %v9264 = vmul.f32 %v9258, 0.5
  %v9265 = vmul.f32 %v9247, 0.70710677
  %v9266 = vmul.f32 %v9250, 0.70710677
  %v9267 = vmul.f32 %v9255, 0.70710677
  %v9268 = vmul.f32 %v9258, 0.70710677
  %vm9269 = vcmp.ge.f32.partialorder %v9265, 0.0
  %vm9270 = vcmp.ge.f32.partialorder %v9266, 0.0
  %vm9271 = vcmp.ge.f32.partialorder %v9267, 0.0
  %vm9272 = vcmp.ge.f32.partialorder %v9268, 0.0
  %v9273 = vsel %vm9269, 1.0, -1.0
  %v9274 = vsel %vm9270, 1.0, -1.0
  %v9275 = vsel %vm9271, 1.0, -1.0
  %v9276 = vsel %vm9272, 1.0, -1.0
  %v9277 = vand.u32 2147483647, %v9265
  %v9278 = vand.u32 2147483647, %v9266
  %v9279 = vand.u32 2147483647, %v9267
  %v9280 = vand.u32 2147483647, %v9268
  %v9281 = vmul.f32 %v9277, 0.3275911
  %v9282 = vmul.f32 %v9278, 0.3275911
  %v9283 = vmul.f32 %v9279, 0.3275911
  %v9284 = vmul.f32 %v9280, 0.3275911
  %v9285 = vadd.f32 %v9281, 1.0
  %v9286 = vadd.f32 %v9282, 1.0
  %v9287 = vadd.f32 %v9283, 1.0
  %v9288 = vadd.f32 %v9284, 1.0
  %v9289 = vrcp.pop %v9285
  %v9290 = vmul.f32 1.0, %v9289
  %v9291 = vrcp.pop %v9286
  %v9292 = vmul.f32 1.0, %v9291
  %v9293 = vrcp.pop %v9287
  %v9294 = vmul.f32 1.0, %v9293
  %v9295 = vrcp.pop %v9288
  %v9296 = vmul.f32 1.0, %v9295
  %v9297 = vmul.f32 %v9290, 1.0614054
  %v9298 = vmul.f32 %v9292, 1.0614054
  %v9299 = vmul.f32 %v9294, 1.0614054
  %v9300 = vmul.f32 %v9296, 1.0614054
  %v9301 = vadd.f32 %v9297, -1.4531521
  %v9302 = vadd.f32 %v9298, -1.4531521
  %v9303 = vadd.f32 %v9299, -1.4531521
  %v9304 = vadd.f32 %v9300, -1.4531521
  %v9305 = vmul.f32 %v9301, %v9290
  %v9306 = vmul.f32 %v9302, %v9292
  %v9307 = vmul.f32 %v9303, %v9294
  %v9308 = vmul.f32 %v9304, %v9296
  %v9309 = vadd.f32 %v9305, 1.4214138
  %v9310 = vadd.f32 %v9306, 1.4214138
  %v9311 = vadd.f32 %v9307, 1.4214138
  %v9312 = vadd.f32 %v9308, 1.4214138
  %v9313 = vmul.f32 %v9309, %v9290
  %v9314 = vmul.f32 %v9310, %v9292
  %v9315 = vmul.f32 %v9311, %v9294
  %v9316 = vmul.f32 %v9312, %v9296
  %v9317 = vadd.f32 %v9313, -0.28449672
  %v9318 = vadd.f32 %v9314, -0.28449672
  %v9319 = vadd.f32 %v9315, -0.28449672
  %v9320 = vadd.f32 %v9316, -0.28449672
  %v9321 = vmul.f32 %v9317, %v9290
  %v9322 = vmul.f32 %v9318, %v9292
  %v9323 = vmul.f32 %v9319, %v9294
  %v9324 = vmul.f32 %v9320, %v9296
  %v9325 = vadd.f32 %v9321, 0.2548296
  %v9326 = vadd.f32 %v9322, 0.2548296
  %v9327 = vadd.f32 %v9323, 0.2548296
  %v9328 = vadd.f32 %v9324, 0.2548296
  %v9329 = vmul.f32 %v9325, %v9290
  %v9330 = vmul.f32 %v9326, %v9292
  %v9331 = vmul.f32 %v9327, %v9294
  %v9332 = vmul.f32 %v9328, %v9296
  %v9333 = vsub.f32 0.0, %v9277
  %v9334 = vsub.f32 0.0, %v9278
  %v9335 = vsub.f32 0.0, %v9279
  %v9336 = vsub.f32 0.0, %v9280
  %v9337 = vmul.f32 %v9333, %v9277
  %v9338 = vmul.f32 %v9334, %v9278
  %v9339 = vmul.f32 %v9335, %v9279
  %v9340 = vmul.f32 %v9336, %v9280
  %v9341 = vmul.f32 %v9337, 1.442695
  %v9342 = vpow.pop %v9341
  %v9343 = vmul.f32 %v9338, 1.442695
  %v9344 = vpow.pop %v9343
  %v9345 = vmul.f32 %v9339, 1.442695
  %v9346 = vpow.pop %v9345
  %v9347 = vmul.f32 %v9340, 1.442695
  %v9348 = vpow.pop %v9347
  %v9349 = vmul.f32 %v9329, %v9342
  %v9350 = vmul.f32 %v9330, %v9344
  %v9351 = vmul.f32 %v9331, %v9346
  %v9352 = vmul.f32 %v9332, %v9348
  %v9353 = vsub.f32 1.0, %v9349
  %v9354 = vsub.f32 1.0, %v9350
  %v9355 = vsub.f32 1.0, %v9351
  %v9356 = vsub.f32 1.0, %v9352
  %v9357 = vmul.f32 %v9273, %v9353
  %v9358 = vmul.f32 %v9274, %v9354
  %v9359 = vmul.f32 %v9275, %v9355
  %v9360 = vmul.f32 %v9276, %v9356
  %v9361 = vadd.f32 %v9357, 1.0
  %v9362 = vadd.f32 %v9358, 1.0
  %v9363 = vadd.f32 %v9359, 1.0
  %v9364 = vadd.f32 %v9360, 1.0
  %v9365 = vmul.f32 %v9261, %v9361
  %v9366 = vmul.f32 %v9262, %v9362
  %v9367 = vmul.f32 %v9263, %v9363
  %v9368 = vmul.f32 %v9264, %v9364
  %v9369 = vpack.c.bf16 %v9366, %v9365
  %v9370 = vpack.c.bf16 %v9368, %v9367
  %v9371 = vld [vmem:[%s29] sm:$0xf]
  %v9372 = vld [vmem:[%s29 + $0x4] sm:$0xf]
  %v9373 = vld [vmem:[%s29 + $0x8] sm:$0xf]
  %v9374 = vld [vmem:[%s29 + $0xc] sm:$0xf]
  %v9375 = vld [vmem:[%s29 + $0x10] sm:$0xf]
  %v9376 = vld [vmem:[%s29 + $0x14] sm:$0xf]
  %v9377 = vld [vmem:[%s29 + $0x18] sm:$0xf]
  %v9378 = vld [vmem:[%s29 + $0x1c] sm:$0xf]
  %v9387 = vunpack.c.l.b16 %v9371
  %v9388 = vunpack.c.l.b16 %v9372
  %v9389 = vunpack.c.l.b16 %v9373
  %v9390 = vunpack.c.l.b16 %v9374
  %v9391 = vunpack.c.l.b16 %v9375
  %v9392 = vunpack.c.l.b16 %v9376
  %v9393 = vunpack.c.l.b16 %v9377
  %v9394 = vunpack.c.l.b16 %v9378
  %v9395 = vpack.c.b16 %v9388, %v9387
  %v9396 = vpack.c.b16 %v9390, %v9389
  %v9397 = vpack.c.b16 %v9392, %v9391
  %v9398 = vpack.c.b16 %v9394, %v9393
  %v9404 = vsel %vm5724, %v9369, 0
  %v9407 = vsel %vm5724, %v9370, 0
  %9409 = vmatprep.subr.bf16.mxu0 0
  %9410 = vmatpush1.bf16.msra.mxu0 %v9395
  %9411 = vmatprep.subr.bf16.mxu0 0
  %9412 = vmatpush1.bf16.msra.mxu0 %v9396
  %9413 = vmatprep.subr.bf16.mxu0 0
  %9414 = vmatpush1.bf16.msra.mxu0 %v9397
  %9415 = vmatprep.subr.bf16.mxu0 0
  %9416 = vmatpush1.bf16.msra.mxu0 %v9398
  %9417 = vmatprep.subr.bf16.mxu0 0
  %9418 = vmatpush1.bf16.msra.mxu0 0
  %9419 = vmatprep.subr.bf16.mxu0 0
  %9420 = vmatpush1.bf16.msra.mxu0 0
  %9421 = vmatprep.subr.bf16.mxu0 0
  %9422 = vmatpush1.bf16.msra.mxu0 0
  %9423 = vmatprep.subr.bf16.mxu0 0
  %9424 = vmatpush1.bf16.msra.mxu0 0
  %9425 = vmatprep.subr.bf16.mxu0 0
  %9426 = vmatpush1.bf16.msra.mxu0 0
  %9427 = vmatprep.subr.bf16.mxu0 0
  %9428 = vmatpush1.bf16.msra.mxu0 0
  %9429 = vmatprep.subr.bf16.mxu0 0
  %9430 = vmatpush1.bf16.msra.mxu0 0
  %9431 = vmatprep.subr.bf16.mxu0 0
  %9432 = vmatpush1.bf16.msra.mxu0 0
  %9433 = vmatprep.subr.bf16.mxu0 0
  %9434 = vmatpush1.bf16.msra.mxu0 0
  %9435 = vmatprep.subr.bf16.mxu0 0
  %9436 = vmatpush1.bf16.msra.mxu0 0
  %9437 = vmatprep.subr.bf16.mxu0 0
  %9438 = vmatpush1.bf16.msra.mxu0 0
  %9439 = vmatprep.subr.bf16.mxu0 0
  %9440 = vmatpush1.bf16.msra.mxu0 0
  %9441 = vmatprep.mubr.bf16.mxu0 0
  %9442 = vmatmul.mubr.bf16.gmra.mrb[0].mxu0 %v9404
  %v9443 = vpop.f32.mrb[0].mxu0
  %v9444 = vadd.f32 0.0, %v9443
  %v9445 = vpop.f32.mrb[0].mxu0
  %v9446 = vpop.f32.mrb[0].mxu0
  %v9447 = vadd.f32 0.0, %v9446
  %v9448 = vpop.f32.mrb[0].mxu0
  %9449 = vmatprep.mubr.bf16.mxu0 0
  %9450 = vmatmul.mubr.bf16.gmra.mrb[0].mxu0 %v9407
  %v9451 = vpop.f32.mrb[0].mxu0
  %v9452 = vadd.f32 0.0, %v9451
  %v9453 = vpop.f32.mrb[0].mxu0
  %v9454 = vpop.f32.mrb[0].mxu0
  %v9455 = vadd.f32 0.0, %v9454
  %v9456 = vpop.f32.mrb[0].mxu0
  %9457 = vdwg.mxu0
  %v9458 = vadd.f32 %v9069, %v9444
  %v9459 = vadd.f32 %v9070, %v9447
  %v9460 = vadd.f32 %v9071, %v9452
  %v9461 = vadd.f32 %v9072, %v9455
  %v9462 = vld [vmem:[%s31] sm:$0x1]
  %v9464 = vlaneseq
  %v9465 = vshrl.u32 %v9464, 7
  %v9466 = vsub.s32 0, %v9465
  %v9467 = vrot.slane %v9462, %v9466
  %v9469 = vadd.f32 %v9458, %v9467
  %v9470 = vadd.f32 %v9459, %v9467
  %v9471 = vadd.f32 %v9460, %v9467
  %v9472 = vadd.f32 %v9461, %v9467
  %v9473 = vld [vmem:[%s33] sm:$0x1]
  %v9474 = vld [vmem:[%s35] sm:$0x1]
  %9475 = vadd.xlane.f32.xlu0 %v9469
  %v9476 = vpop.xlane.xlu0 %9475
  %9477 = vadd.xlane.f32.xlu0 %v9470
  %v9478 = vpop.xlane.xlu0 %9477
  %9479 = vadd.xlane.f32.xlu0 %v9471
  %v9480 = vpop.xlane.xlu0 %9479
  %9481 = vadd.xlane.f32.xlu0 %v9472
  %v9482 = vpop.xlane.xlu0 %9481
  %v9483 = vmul.f32 %v9476, %v7560
  %v9484 = vmul.f32 %v9478, %v7560
  %v9485 = vmul.f32 %v9480, %v7560
  %v9486 = vmul.f32 %v9482, %v7560
  %v9487 = vsub.f32 %v9469, %v9483
  %v9488 = vsub.f32 %v9470, %v9484
  %v9489 = vsub.f32 %v9471, %v9485
  %v9490 = vsub.f32 %v9472, %v9486
  %v9491 = vmul.f32 %v9487, %v9487
  %v9492 = vmul.f32 %v9488, %v9488
  %v9493 = vmul.f32 %v9489, %v9489
  %v9494 = vmul.f32 %v9490, %v9490
  %9495 = vadd.xlane.f32.xlu0 %v9491
  %v9496 = vpop.xlane.xlu0 %9495
  %9497 = vadd.xlane.f32.xlu0 %v9492
  %v9498 = vpop.xlane.xlu0 %9497
  %9499 = vadd.xlane.f32.xlu0 %v9493
  %v9500 = vpop.xlane.xlu0 %9499
  %9501 = vadd.xlane.f32.xlu0 %v9494
  %v9502 = vpop.xlane.xlu0 %9501
  %v9503 = vmul.f32 %v9496, %v7560
  %v9504 = vmul.f32 %v9498, %v7560
  %v9505 = vmul.f32 %v9500, %v7560
  %v9506 = vmul.f32 %v9502, %v7560
  %v9507 = vadd.f32 %v9503, 1e-06
  %v9508 = vadd.f32 %v9504, 1e-06
  %v9509 = vadd.f32 %v9505, 1e-06
  %v9510 = vadd.f32 %v9506, 1e-06
  %v9511 = vrsqrt.pop %v9507
  %v9512 = vrsqrt.pop %v9508
  %v9513 = vrsqrt.pop %v9509
  %v9514 = vrsqrt.pop %v9510
  %v9515 = vmul.f32 %v9487, %v9511
  %v9516 = vmul.f32 %v9488, %v9512
  %v9517 = vmul.f32 %v9489, %v9513
  %v9518 = vmul.f32 %v9490, %v9514
  %v9520 = vlaneseq
  %v9521 = vshrl.u32 %v9520, 7
  %v9522 = vsub.s32 0, %v9521
  %v9523 = vrot.slane %v9473, %v9522
  %v9525 = vmul.f32 %v9515, %v9523
  %v9526 = vmul.f32 %v9516, %v9523
  %v9527 = vmul.f32 %v9517, %v9523
  %v9528 = vmul.f32 %v9518, %v9523
  %v9530 = vlaneseq
  %v9531 = vshrl.u32 %v9530, 7
  %v9532 = vsub.s32 0, %v9531
  %v9533 = vrot.slane %v9474, %v9532
  %v9535 = vadd.f32 %v9525, %v9533
  %v9536 = vadd.f32 %v9526, %v9533
  %v9537 = vadd.f32 %v9527, %v9533
  %v9538 = vadd.f32 %v9528, %v9533
  %v9539 = vpack.c.bf16 %v9536, %v9535
  %v9540 = vpack.c.bf16 %v9538, %v9537
  %v9541 = vld [vmem:[%s37] sm:$0xff]
  %v9542 = vld [vmem:[%s37 + $0x8] sm:$0xf]
  %v9543 = vld [vmem:[%s37 + $0xc] sm:$0xff]
  %v9544 = vld [vmem:[%s37 + $0x14] sm:$0xf]
  %v9545 = vld [vmem:[%s37 + $0x18] sm:$0xff]
  %v9546 = vld [vmem:[%s37 + $0x20] sm:$0xf]
  %v9547 = vld [vmem:[%s37 + $0x24] sm:$0xff]
  %v9548 = vld [vmem:[%s37 + $0x2c] sm:$0xf]
  %v9549 = vld [vmem:[%s37 + $0x30] sm:$0xff]
  %v9550 = vld [vmem:[%s37 + $0x38] sm:$0xf]
  %v9551 = vld [vmem:[%s37 + $0x3c] sm:$0xff]
  %v9552 = vld [vmem:[%s37 + $0x44] sm:$0xf]
  %v9553 = vld [vmem:[%s37 + $0x48] sm:$0xff]
  %v9554 = vld [vmem:[%s37 + $0x50] sm:$0xf]
  %v9555 = vld [vmem:[%s37 + $0x54] sm:$0xff]
  %v9556 = vld [vmem:[%s37 + $0x5c] sm:$0xf]
  %v9557 = vld [vmem:[%s37 + $0x60] sm:$0xff]
  %v9558 = vld [vmem:[%s37 + $0x68] sm:$0xf]
  %v9559 = vld [vmem:[%s37 + $0x6c] sm:$0xff]
  %v9560 = vld [vmem:[%s37 + $0x74] sm:$0xf]
  %v9561 = vld [vmem:[%s37 + $0x78] sm:$0xff]
  %v9562 = vld [vmem:[%s37 + $0x80] sm:$0xf]
  %v9563 = vld [vmem:[%s37 + $0x84] sm:$0xff]
  %v9564 = vld [vmem:[%s37 + $0x8c] sm:$0xf]
  %v9565 = vld [vmem:[%s37 + $0x90] sm:$0xff]
  %v9566 = vld [vmem:[%s37 + $0x98] sm:$0xf]
  %v9567 = vld [vmem:[%s37 + $0x9c] sm:$0xff]
  %v9568 = vld [vmem:[%s37 + $0xa4] sm:$0xf]
  %v9569 = vld [vmem:[%s37 + $0xa8] sm:$0xff]
  %v9570 = vld [vmem:[%s37 + $0xb0] sm:$0xf]
  %v9571 = vld [vmem:[%s37 + $0xb4] sm:$0xff]
  %v9572 = vld [vmem:[%s37 + $0xbc] sm:$0xf]
  %v9573 = vld [vmem:[%s39] sm:$0x7]
  %v9575 = vlaneseq
  %v9576 = vshrl.u32 %v9575, 7
  %v9577 = vsub.s32 0, %v9576
  %v9578 = vrot.slane %v9573, %v9577
  %v9579 = vlaneseq
  %v9580 = vshrl.u32 %v9579, 7
  %v9581 = vsub.s32 1, %v9580
  %v9582 = vrot.slane %v9573, %v9581
  %v9583 = vlaneseq
  %v9584 = vshrl.u32 %v9583, 7
  %v9585 = vsub.s32 2, %v9584
  %v9586 = vrot.slane %v9573, %v9585
  %v9622 = vunpack.c.l.b16 %v9541
  %v9623 = vunpack.c.h.b16 %v9541
  %v9624 = vunpack.c.l.b16 %v9542
  %v9625 = vunpack.c.l.b16 %v9543
  %v9626 = vunpack.c.h.b16 %v9543
  %v9627 = vunpack.c.l.b16 %v9544
  %v9628 = vunpack.c.l.b16 %v9545
  %v9629 = vunpack.c.h.b16 %v9545
  %v9630 = vunpack.c.l.b16 %v9546
  %v9631 = vunpack.c.l.b16 %v9547
  %v9632 = vunpack.c.h.b16 %v9547
  %v9633 = vunpack.c.l.b16 %v9548
  %v9634 = vunpack.c.l.b16 %v9549
  %v9635 = vunpack.c.h.b16 %v9549
  %v9636 = vunpack.c.l.b16 %v9550
  %v9637 = vunpack.c.l.b16 %v9551
  %v9638 = vunpack.c.h.b16 %v9551
  %v9639 = vunpack.c.l.b16 %v9552
  %v9640 = vunpack.c.l.b16 %v9553
  %v9641 = vunpack.c.h.b16 %v9553
  %v9642 = vunpack.c.l.b16 %v9554
  %v9643 = vunpack.c.l.b16 %v9555
  %v9644 = vunpack.c.h.b16 %v9555
  %v9645 = vunpack.c.l.b16 %v9556
  %v9646 = vunpack.c.l.b16 %v9557
  %v9647 = vunpack.c.h.b16 %v9557
  %v9648 = vunpack.c.l.b16 %v9558
  %v9649 = vunpack.c.l.b16 %v9559
  %v9650 = vunpack.c.h.b16 %v9559
  %v9651 = vunpack.c.l.b16 %v9560
  %v9652 = vunpack.c.l.b16 %v9561
  %v9653 = vunpack.c.h.b16 %v9561
  %v9654 = vunpack.c.l.b16 %v9562
  %v9655 = vunpack.c.l.b16 %v9563
  %v9656 = vunpack.c.h.b16 %v9563
  %v9657 = vunpack.c.l.b16 %v9564
  %v9658 = vunpack.c.l.b16 %v9565
  %v9659 = vunpack.c.h.b16 %v9565
  %v9660 = vunpack.c.l.b16 %v9566
  %v9661 = vunpack.c.l.b16 %v9567
  %v9662 = vunpack.c.h.b16 %v9567
  %v9663 = vunpack.c.l.b16 %v9568
  %v9664 = vunpack.c.l.b16 %v9569
  %v9665 = vunpack.c.h.b16 %v9569
  %v9666 = vunpack.c.l.b16 %v9570
  %v9667 = vunpack.c.l.b16 %v9571
  %v9668 = vunpack.c.h.b16 %v9571
  %v9669 = vunpack.c.l.b16 %v9572
  %v9670 = vpack.c.b16 %v9625, %v9622
  %v9671 = vpack.c.b16 %v9626, %v9623
  %v9672 = vpack.c.b16 %v9627, %v9624
  %v9673 = vpack.c.b16 %v9631, %v9628
  %v9674 = vpack.c.b16 %v9632, %v9629
  %v9675 = vpack.c.b16 %v9633, %v9630
  %v9676 = vpack.c.b16 %v9637, %v9634
  %v9677 = vpack.c.b16 %v9638, %v9635
  %v9678 = vpack.c.b16 %v9639, %v9636
  %v9679 = vpack.c.b16 %v9643, %v9640
  %v9680 = vpack.c.b16 %v9644, %v9641
  %v9681 = vpack.c.b16 %v9645, %v9642
  %v9682 = vpack.c.b16 %v9649, %v9646
  %v9683 = vpack.c.b16 %v9650, %v9647
  %v9684 = vpack.c.b16 %v9651, %v9648
  %v9685 = vpack.c.b16 %v9655, %v9652
  %v9686 = vpack.c.b16 %v9656, %v9653
  %v9687 = vpack.c.b16 %v9657, %v9654
  %v9688 = vpack.c.b16 %v9661, %v9658
  %v9689 = vpack.c.b16 %v9662, %v9659
  %v9690 = vpack.c.b16 %v9663, %v9660
  %v9691 = vpack.c.b16 %v9667, %v9664
  %v9692 = vpack.c.b16 %v9668, %v9665
  %v9693 = vpack.c.b16 %v9669, %v9666
  %9718 = vmatprep.subr.bf16.mxu0 %v9671
  %9719 = vmatpush1.bf16.msra.mxu0 %v9670
  %9720 = vmatprep.subr.bf16.mxu0 %v9674
  %9721 = vmatpush1.bf16.msra.mxu0 %v9673
  %9722 = vmatprep.subr.bf16.mxu0 %v9677
  %9723 = vmatpush1.bf16.msra.mxu0 %v9676
  %9724 = vmatprep.subr.bf16.mxu0 %v9680
  %9725 = vmatpush1.bf16.msra.mxu0 %v9679
  %9726 = vmatprep.subr.bf16.mxu0 %v9683
  %9727 = vmatpush1.bf16.msra.mxu0 %v9682
  %9728 = vmatprep.subr.bf16.mxu0 %v9686
  %9729 = vmatpush1.bf16.msra.mxu0 %v9685
  %9730 = vmatprep.subr.bf16.mxu0 %v9689
  %9731 = vmatpush1.bf16.msra.mxu0 %v9688
  %9732 = vmatprep.subr.bf16.mxu0 %v9692
  %9733 = vmatpush1.bf16.msra.mxu0 %v9691
  %9734 = vmatprep.subr.bf16.mxu0 0
  %9735 = vmatpush1.bf16.msra.mxu0 0
  %9736 = vmatprep.subr.bf16.mxu0 0
  %9737 = vmatpush1.bf16.msra.mxu0 0
  %9738 = vmatprep.subr.bf16.mxu0 0
  %9739 = vmatpush1.bf16.msra.mxu0 0
  %9740 = vmatprep.subr.bf16.mxu0 0
  %9741 = vmatpush1.bf16.msra.mxu0 0
  %9742 = vmatprep.subr.bf16.mxu0 0
  %9743 = vmatpush1.bf16.msra.mxu0 0
  %9744 = vmatprep.subr.bf16.mxu0 0
  %9745 = vmatpush1.bf16.msra.mxu0 0
  %9746 = vmatprep.subr.bf16.mxu0 0
  %9747 = vmatpush1.bf16.msra.mxu0 0
  %9748 = vmatprep.subr.bf16.mxu0 0
  %9749 = vmatpush1.bf16.msra.mxu0 0
  %9750 = vmatprep.mubr.bf16.mxu0 0
  %9751 = vmatmul.mubr.bf16.gmra.mrb[0].mxu0 %v9539
  %v9752 = vpop.f32.mrb[0].mxu0
  %v9753 = vadd.f32 %v9578, %v9752
  %v9754 = vpop.f32.mrb[0].mxu0
  %v9755 = vadd.f32 %v9582, %v9754
  %v9756 = vpop.f32.mrb[0].mxu0
  %v9757 = vadd.f32 %v9578, %v9756
  %v9758 = vpop.f32.mrb[0].mxu0
  %v9759 = vadd.f32 %v9582, %v9758
  %9760 = vmatprep.mubr.bf16.mxu0 0
  %9761 = vmatmul.mubr.bf16.gmra.mrb[0].mxu0 %v9540
  %v9762 = vpop.f32.mrb[0].mxu0
  %v9763 = vadd.f32 %v9578, %v9762
  %v9764 = vpop.f32.mrb[0].mxu0
  %v9765 = vadd.f32 %v9582, %v9764
  %v9766 = vpop.f32.mrb[0].mxu0
  %v9767 = vadd.f32 %v9578, %v9766
  %v9768 = vpop.f32.mrb[0].mxu0
  %v9769 = vadd.f32 %v9582, %v9768
  %9770 = vdwg.mxu0
  %9771 = vmatprep.subr.bf16.mxu0 0
  %9772 = vmatpush1.bf16.msra.mxu0 %v9672
  %9773 = vmatprep.subr.bf16.mxu0 0
  %9774 = vmatpush1.bf16.msra.mxu0 %v9675
  %9775 = vmatprep.subr.bf16.mxu0 0
  %9776 = vmatpush1.bf16.msra.mxu0 %v9678
  %9777 = vmatprep.subr.bf16.mxu0 0
  %9778 = vmatpush1.bf16.msra.mxu0 %v9681
  %9779 = vmatprep.subr.bf16.mxu0 0
  %9780 = vmatpush1.bf16.msra.mxu0 %v9684
  %9781 = vmatprep.subr.bf16.mxu0 0
  %9782 = vmatpush1.bf16.msra.mxu0 %v9687
  %9783 = vmatprep.subr.bf16.mxu0 0
  %9784 = vmatpush1.bf16.msra.mxu0 %v9690
  %9785 = vmatprep.subr.bf16.mxu0 0
  %9786 = vmatpush1.bf16.msra.mxu0 %v9693
  %9787 = vmatprep.subr.bf16.mxu0 0
  %9788 = vmatpush1.bf16.msra.mxu0 0
  %9789 = vmatprep.subr.bf16.mxu0 0
  %9790 = vmatpush1.bf16.msra.mxu0 0
  %9791 = vmatprep.subr.bf16.mxu0 0
  %9792 = vmatpush1.bf16.msra.mxu0 0
  %9793 = vmatprep.subr.bf16.mxu0 0
  %9794 = vmatpush1.bf16.msra.mxu0 0
  %9795 = vmatprep.subr.bf16.mxu0 0
  %9796 = vmatpush1.bf16.msra.mxu0 0
  %9797 = vmatprep.subr.bf16.mxu0 0
  %9798 = vmatpush1.bf16.msra.mxu0 0
  %9799 = vmatprep.subr.bf16.mxu0 0
  %9800 = vmatpush1.bf16.msra.mxu0 0
  %9801 = vmatprep.subr.bf16.mxu0 0
  %9802 = vmatpush1.bf16.msra.mxu0 0
  %9803 = vmatprep.mubr.bf16.mxu0 0
  %9804 = vmatmul.mubr.bf16.gmra.mrb[0].mxu0 %v9539
  %v9805 = vpop.f32.mrb[0].mxu0
  %v9806 = vadd.f32 %v9586, %v9805
  %v9807 = vpop.f32.mrb[0].mxu0
  %v9808 = vpop.f32.mrb[0].mxu0
  %v9809 = vadd.f32 %v9586, %v9808
  %v9810 = vpop.f32.mrb[0].mxu0
  %9811 = vmatprep.mubr.bf16.mxu0 0
  %9812 = vmatmul.mubr.bf16.gmra.mrb[0].mxu0 %v9540
  %v9813 = vpop.f32.mrb[0].mxu0
  %v9814 = vadd.f32 %v9586, %v9813
  %v9815 = vpop.f32.mrb[0].mxu0
  %v9816 = vpop.f32.mrb[0].mxu0
  %v9817 = vadd.f32 %v9586, %v9816
  %v9818 = vpop.f32.mrb[0].mxu0
  %9819 = vdwg.mxu0
  %v9820 = vpack.c.bf16 %v9757, %v9753
  %v9821 = vpack.c.bf16 %v9767, %v9763
  %v9822 = vpack.c.bf16 %v9759, %v9755
  %v9823 = vpack.c.bf16 %v9769, %v9765
  %v9825 = vsel %vm7902, %v9820, 0
  %v9828 = vsel %vm7902, %v9822, 0
  %9830 = vmatprep.subr.bf16.mxu0 0
  %9831 = vmatpush1.bf16.xpose.msra.mxu0 %v9828
  %9832 = vmatprep.subr.bf16.mxu0 0
  %9833 = vmatpush1.bf16.xpose.msra.mxu0 0
  %9834 = vmatprep.subr.bf16.mxu0 0
  %9835 = vmatpush1.bf16.xpose.msra.mxu0 0
  %9836 = vmatprep.subr.bf16.mxu0 0
  %9837 = vmatpush1.bf16.xpose.msra.mxu0 0
  %9838 = vmatprep.subr.bf16.mxu0 0
  %9839 = vmatpush1.bf16.xpose.msra.mxu0 0
  %9840 = vmatprep.subr.bf16.mxu0 0
  %9841 = vmatpush1.bf16.xpose.msra.mxu0 0
  %9842 = vmatprep.subr.bf16.mxu0 0
  %9843 = vmatpush1.bf16.xpose.msra.mxu0 0
  %9844 = vmatprep.subr.bf16.mxu0 0
  %9845 = vmatpush1.bf16.xpose.msra.mxu0 0
  %9846 = vmatprep.subr.bf16.mxu0 0
  %9847 = vmatpush1.bf16.xpose.msra.mxu0 0
  %9848 = vmatprep.subr.bf16.mxu0 0
  %9849 = vmatpush1.bf16.xpose.msra.mxu0 0
  %9850 = vmatprep.subr.bf16.mxu0 0
  %9851 = vmatpush1.bf16.xpose.msra.mxu0 0
  %9852 = vmatprep.subr.bf16.mxu0 0
  %9853 = vmatpush1.bf16.xpose.msra.mxu0 0
  %9854 = vmatprep.subr.bf16.mxu0 0
  %9855 = vmatpush1.bf16.xpose.msra.mxu0 0
  %9856 = vmatprep.subr.bf16.mxu0 0
  %9857 = vmatpush1.bf16.xpose.msra.mxu0 0
  %9858 = vmatprep.subr.bf16.mxu0 0
  %9859 = vmatpush1.bf16.xpose.msra.mxu0 0
  %9860 = vmatprep.subr.bf16.mxu0 0
  %9861 = vmatpush1.bf16.xpose.msra.mxu0 0
  %9862 = vmatprep.mubr.bf16.mxu0 0
  %9863 = vmatmul.mubr.bf16.gmra.mrb[0].mxu0 %v9825
  %v9864 = vpop.f32.mrb[0].mxu0
  %v9865 = vadd.f32 0.0, %v9864
  %v9866 = vpop.f32.mrb[0].mxu0
  %v9867 = vpop.f32.mrb[0].mxu0
  %v9868 = vadd.f32 0.0, %v9867
  %v9869 = vpop.f32.mrb[0].mxu0
  %9870 = vdwg.mxu0
  %v9872 = vsel %vm7902, %v9821, 0
  %v9875 = vsel %vm7902, %v9823, 0
  %9877 = vmatprep.subr.bf16.mxu0 0
  %9878 = vmatpush1.bf16.xpose.msra.mxu0 %v9875
  %9879 = vmatprep.subr.bf16.mxu0 0
  %9880 = vmatpush1.bf16.xpose.msra.mxu0 0
  %9881 = vmatprep.subr.bf16.mxu0 0
  %9882 = vmatpush1.bf16.xpose.msra.mxu0 0
  %9883 = vmatprep.subr.bf16.mxu0 0
  %9884 = vmatpush1.bf16.xpose.msra.mxu0 0
  %9885 = vmatprep.subr.bf16.mxu0 0
  %9886 = vmatpush1.bf16.xpose.msra.mxu0 0
  %9887 = vmatprep.subr.bf16.mxu0 0
  %9888 = vmatpush1.bf16.xpose.msra.mxu0 0
  %9889 = vmatprep.subr.bf16.mxu0 0
  %9890 = vmatpush1.bf16.xpose.msra.mxu0 0
  %9891 = vmatprep.subr.bf16.mxu0 0
  %9892 = vmatpush1.bf16.xpose.msra.mxu0 0
  %9893 = vmatprep.subr.bf16.mxu0 0
  %9894 = vmatpush1.bf16.xpose.msra.mxu0 0
  %9895 = vmatprep.subr.bf16.mxu0 0
  %9896 = vmatpush1.bf16.xpose.msra.mxu0 0
  %9897 = vmatprep.subr.bf16.mxu0 0
  %9898 = vmatpush1.bf16.xpose.msra.mxu0 0
  %9899 = vmatprep.subr.bf16.mxu0 0
  %9900 = vmatpush1.bf16.xpose.msra.mxu0 0
  %9901 = vmatprep.subr.bf16.mxu0 0
  %9902 = vmatpush1.bf16.xpose.msra.mxu0 0
  %9903 = vmatprep.subr.bf16.mxu0 0
  %9904 = vmatpush1.bf16.xpose.msra.mxu0 0
  %9905 = vmatprep.subr.bf16.mxu0 0
  %9906 = vmatpush1.bf16.xpose.msra.mxu0 0
  %9907 = vmatprep.subr.bf16.mxu0 0
  %9908 = vmatpush1.bf16.xpose.msra.mxu0 0
  %9909 = vmatprep.mubr.bf16.mxu0 0
  %9910 = vmatmul.mubr.bf16.gmra.mrb[0].mxu0 %v9872
  %v9911 = vpop.f32.mrb[0].mxu0
  %v9912 = vadd.f32 0.0, %v9911
  %v9913 = vpop.f32.mrb[0].mxu0
  %v9914 = vpop.f32.mrb[0].mxu0
  %v9915 = vadd.f32 0.0, %v9914
  %v9916 = vpop.f32.mrb[0].mxu0
  %9917 = vdwg.mxu0
  %v9918 = vmul.f32 %v9865, 0.17677669
  %v9919 = vmul.f32 %v9868, 0.17677669
  %v9920 = vmul.f32 %v9912, 0.17677669
  %v9921 = vmul.f32 %v9915, 0.17677669
  %v9922 = vsel %vm8001, %v9918, -inf
  %9923 = vmax.xlane.f32.xlu0 %v9922
  %v9924 = vpop.xlane.xlu0 %9923
  %v9925 = vsel %vm8001, %v9919, -inf
  %9926 = vmax.xlane.f32.xlu0 %v9925
  %v9927 = vpop.xlane.xlu0 %9926
  %v9928 = vsel %vm8001, %v9920, -inf
  %9929 = vmax.xlane.f32.xlu0 %v9928
  %v9930 = vpop.xlane.xlu0 %9929
  %v9931 = vsel %vm8001, %v9921, -inf
  %9932 = vmax.xlane.f32.xlu0 %v9931
  %v9933 = vpop.xlane.xlu0 %9932
  %v9934 = vsub.f32 %v9918, %v9924
  %v9935 = vsub.f32 %v9919, %v9927
  %v9936 = vsub.f32 %v9920, %v9930
  %v9937 = vsub.f32 %v9921, %v9933
  %v9938 = vmul.f32 %v9934, 1.442695
  %v9939 = vpow.pop %v9938
  %v9940 = vmul.f32 %v9935, 1.442695
  %v9941 = vpow.pop %v9940
  %v9942 = vmul.f32 %v9936, 1.442695
  %v9943 = vpow.pop %v9942
  %v9944 = vmul.f32 %v9937, 1.442695
  %v9945 = vpow.pop %v9944
  %v9946 = vsel %vm8001, %v9939, 0.0
  %9947 = vadd.xlane.f32.xlu0 %v9946
  %v9948 = vpop.xlane.xlu0 %9947
  %v9949 = vsel %vm8001, %v9941, 0.0
  %9950 = vadd.xlane.f32.xlu0 %v9949
  %v9951 = vpop.xlane.xlu0 %9950
  %v9952 = vsel %vm8001, %v9943, 0.0
  %9953 = vadd.xlane.f32.xlu0 %v9952
  %v9954 = vpop.xlane.xlu0 %9953
  %v9955 = vsel %vm8001, %v9945, 0.0
  %9956 = vadd.xlane.f32.xlu0 %v9955
  %v9957 = vpop.xlane.xlu0 %9956
  %v9958 = vrcp.pop %v9948
  %v9959 = vmul.f32 %v9939, %v9958
  %v9960 = vrcp.pop %v9951
  %v9961 = vmul.f32 %v9941, %v9960
  %v9962 = vrcp.pop %v9954
  %v9963 = vmul.f32 %v9943, %v9962
  %v9964 = vrcp.pop %v9957
  %v9965 = vmul.f32 %v9945, %v9964
  %v9966 = vpack.c.bf16 %v9961, %v9959
  %v9967 = vpack.c.bf16 %v9965, %v9963
  %v9968 = vpack.c.bf16 %v9809, %v9806
  %v9969 = vpack.c.bf16 %v9817, %v9814
  %v9971 = vsel %vm8001, %v9966, 0
  %9973 = vmatprep.subr.bf16.mxu0 0
  %9974 = vmatpush1.bf16.msra.mxu0 %v9968
  %9975 = vmatprep.subr.bf16.mxu0 0
  %9976 = vmatpush1.bf16.msra.mxu0 0
  %9977 = vmatprep.subr.bf16.mxu0 0
  %9978 = vmatpush1.bf16.msra.mxu0 0
  %9979 = vmatprep.subr.bf16.mxu0 0
  %9980 = vmatpush1.bf16.msra.mxu0 0
  %9981 = vmatprep.subr.bf16.mxu0 0
  %9982 = vmatpush1.bf16.msra.mxu0 0
  %9983 = vmatprep.subr.bf16.mxu0 0
  %9984 = vmatpush1.bf16.msra.mxu0 0
  %9985 = vmatprep.subr.bf16.mxu0 0
  %9986 = vmatpush1.bf16.msra.mxu0 0
  %9987 = vmatprep.subr.bf16.mxu0 0
  %9988 = vmatpush1.bf16.msra.mxu0 0
  %9989 = vmatprep.subr.bf16.mxu0 0
  %9990 = vmatpush1.bf16.msra.mxu0 0
  %9991 = vmatprep.subr.bf16.mxu0 0
  %9992 = vmatpush1.bf16.msra.mxu0 0
  %9993 = vmatprep.subr.bf16.mxu0 0
  %9994 = vmatpush1.bf16.msra.mxu0 0
  %9995 = vmatprep.subr.bf16.mxu0 0
  %9996 = vmatpush1.bf16.msra.mxu0 0
  %9997 = vmatprep.subr.bf16.mxu0 0
  %9998 = vmatpush1.bf16.msra.mxu0 0
  %9999 = vmatprep.subr.bf16.mxu0 0
  %10000 = vmatpush1.bf16.msra.mxu0 0
  %10001 = vmatprep.subr.bf16.mxu0 0
  %10002 = vmatpush1.bf16.msra.mxu0 0
  %10003 = vmatprep.subr.bf16.mxu0 0
  %10004 = vmatpush1.bf16.msra.mxu0 0
  %10005 = vmatprep.mubr.bf16.mxu0 0
  %10006 = vmatmul.mubr.bf16.gmra.mrb[0].mxu0 %v9971
  %v10007 = vpop.f32.mrb[0].mxu0
  %v10008 = vadd.f32 0.0, %v10007
  %v10009 = vpop.f32.mrb[0].mxu0
  %v10010 = vpop.f32.mrb[0].mxu0
  %v10011 = vadd.f32 0.0, %v10010
  %v10012 = vpop.f32.mrb[0].mxu0
  %10013 = vdwg.mxu0
  %v10015 = vsel %vm8001, %v9967, 0
  %10017 = vmatprep.subr.bf16.mxu0 0
  %10018 = vmatpush1.bf16.msra.mxu0 %v9969
  %10019 = vmatprep.subr.bf16.mxu0 0
  %10020 = vmatpush1.bf16.msra.mxu0 0
  %10021 = vmatprep.subr.bf16.mxu0 0
  %10022 = vmatpush1.bf16.msra.mxu0 0
  %10023 = vmatprep.subr.bf16.mxu0 0
  %10024 = vmatpush1.bf16.msra.mxu0 0
  %10025 = vmatprep.subr.bf16.mxu0 0
  %10026 = vmatpush1.bf16.msra.mxu0 0
  %10027 = vmatprep.subr.bf16.mxu0 0
  %10028 = vmatpush1.bf16.msra.mxu0 0
  %10029 = vmatprep.subr.bf16.mxu0 0
  %10030 = vmatpush1.bf16.msra.mxu0 0
  %10031 = vmatprep.subr.bf16.mxu0 0
  %10032 = vmatpush1.bf16.msra.mxu0 0
  %10033 = vmatprep.subr.bf16.mxu0 0
  %10034 = vmatpush1.bf16.msra.mxu0 0
  %10035 = vmatprep.subr.bf16.mxu0 0
  %10036 = vmatpush1.bf16.msra.mxu0 0
  %10037 = vmatprep.subr.bf16.mxu0 0
  %10038 = vmatpush1.bf16.msra.mxu0 0
  %10039 = vmatprep.subr.bf16.mxu0 0
  %10040 = vmatpush1.bf16.msra.mxu0 0
  %10041 = vmatprep.subr.bf16.mxu0 0
  %10042 = vmatpush1.bf16.msra.mxu0 0
  %10043 = vmatprep.subr.bf16.mxu0 0
  %10044 = vmatpush1.bf16.msra.mxu0 0
  %10045 = vmatprep.subr.bf16.mxu0 0
  %10046 = vmatpush1.bf16.msra.mxu0 0
  %10047 = vmatprep.subr.bf16.mxu0 0
  %10048 = vmatpush1.bf16.msra.mxu0 0
  %10049 = vmatprep.mubr.bf16.mxu0 0
  %10050 = vmatmul.mubr.bf16.gmra.mrb[0].mxu0 %v10015
  %v10051 = vpop.f32.mrb[0].mxu0
  %v10052 = vadd.f32 0.0, %v10051
  %v10053 = vpop.f32.mrb[0].mxu0
  %v10054 = vpop.f32.mrb[0].mxu0
  %v10055 = vadd.f32 0.0, %v10054
  %v10056 = vpop.f32.mrb[0].mxu0
  %10057 = vdwg.mxu0
  %10059 = vrot.lane.b32.xlu0 %v9820, 96
  %v10060 = vpop.permute.xlu0 %10059
  %10062 = vrot.lane.b32.xlu0 %v9822, 96
  %v10063 = vpop.permute.xlu0 %10062
  %v10065 = vsel %vm7902, %v10060, 0
  %v10068 = vsel %vm7902, %v10063, 0
  %10070 = vmatprep.subr.bf16.mxu0 0
  %10071 = vmatpush1.bf16.xpose.msra.mxu0 %v10068
  %10072 = vmatprep.subr.bf16.mxu0 0
  %10073 = vmatpush1.bf16.xpose.msra.mxu0 0
  %10074 = vmatprep.subr.bf16.mxu0 0
  %10075 = vmatpush1.bf16.xpose.msra.mxu0 0
  %10076 = vmatprep.subr.bf16.mxu0 0
  %10077 = vmatpush1.bf16.xpose.msra.mxu0 0
  %10078 = vmatprep.subr.bf16.mxu0 0
  %10079 = vmatpush1.bf16.xpose.msra.mxu0 0
  %10080 = vmatprep.subr.bf16.mxu0 0
  %10081 = vmatpush1.bf16.xpose.msra.mxu0 0
  %10082 = vmatprep.subr.bf16.mxu0 0
  %10083 = vmatpush1.bf16.xpose.msra.mxu0 0
  %10084 = vmatprep.subr.bf16.mxu0 0
  %10085 = vmatpush1.bf16.xpose.msra.mxu0 0
  %10086 = vmatprep.subr.bf16.mxu0 0
  %10087 = vmatpush1.bf16.xpose.msra.mxu0 0
  %10088 = vmatprep.subr.bf16.mxu0 0
  %10089 = vmatpush1.bf16.xpose.msra.mxu0 0
  %10090 = vmatprep.subr.bf16.mxu0 0
  %10091 = vmatpush1.bf16.xpose.msra.mxu0 0
  %10092 = vmatprep.subr.bf16.mxu0 0
  %10093 = vmatpush1.bf16.xpose.msra.mxu0 0
  %10094 = vmatprep.subr.bf16.mxu0 0
  %10095 = vmatpush1.bf16.xpose.msra.mxu0 0
  %10096 = vmatprep.subr.bf16.mxu0 0
  %10097 = vmatpush1.bf16.xpose.msra.mxu0 0
  %10098 = vmatprep.subr.bf16.mxu0 0
  %10099 = vmatpush1.bf16.xpose.msra.mxu0 0
  %10100 = vmatprep.subr.bf16.mxu0 0
  %10101 = vmatpush1.bf16.xpose.msra.mxu0 0
  %10102 = vmatprep.mubr.bf16.mxu0 0
  %10103 = vmatmul.mubr.bf16.gmra.mrb[0].mxu0 %v10065
  %v10104 = vpop.f32.mrb[0].mxu0
  %v10105 = vadd.f32 0.0, %v10104
  %v10106 = vpop.f32.mrb[0].mxu0
  %v10107 = vpop.f32.mrb[0].mxu0
  %v10108 = vadd.f32 0.0, %v10107
  %v10109 = vpop.f32.mrb[0].mxu0
  %10110 = vdwg.mxu0
  %10112 = vrot.lane.b32.xlu0 %v9821, 96
  %v10113 = vpop.permute.xlu0 %10112
  %10115 = vrot.lane.b32.xlu0 %v9823, 96
  %v10116 = vpop.permute.xlu0 %10115
  %v10118 = vsel %vm7902, %v10113, 0
  %v10121 = vsel %vm7902, %v10116, 0
  %10123 = vmatprep.subr.bf16.mxu0 0
  %10124 = vmatpush1.bf16.xpose.msra.mxu0 %v10121
  %10125 = vmatprep.subr.bf16.mxu0 0
  %10126 = vmatpush1.bf16.xpose.msra.mxu0 0
  %10127 = vmatprep.subr.bf16.mxu0 0
  %10128 = vmatpush1.bf16.xpose.msra.mxu0 0
  %10129 = vmatprep.subr.bf16.mxu0 0
  %10130 = vmatpush1.bf16.xpose.msra.mxu0 0
  %10131 = vmatprep.subr.bf16.mxu0 0
  %10132 = vmatpush1.bf16.xpose.msra.mxu0 0
  %10133 = vmatprep.subr.bf16.mxu0 0
  %10134 = vmatpush1.bf16.xpose.msra.mxu0 0
  %10135 = vmatprep.subr.bf16.mxu0 0
  %10136 = vmatpush1.bf16.xpose.msra.mxu0 0
  %10137 = vmatprep.subr.bf16.mxu0 0
  %10138 = vmatpush1.bf16.xpose.msra.mxu0 0
  %10139 = vmatprep.subr.bf16.mxu0 0
  %10140 = vmatpush1.bf16.xpose.msra.mxu0 0
  %10141 = vmatprep.subr.bf16.mxu0 0
  %10142 = vmatpush1.bf16.xpose.msra.mxu0 0
  %10143 = vmatprep.subr.bf16.mxu0 0
  %10144 = vmatpush1.bf16.xpose.msra.mxu0 0
  %10145 = vmatprep.subr.bf16.mxu0 0
  %10146 = vmatpush1.bf16.xpose.msra.mxu0 0
  %10147 = vmatprep.subr.bf16.mxu0 0
  %10148 = vmatpush1.bf16.xpose.msra.mxu0 0
  %10149 = vmatprep.subr.bf16.mxu0 0
  %10150 = vmatpush1.bf16.xpose.msra.mxu0 0
  %10151 = vmatprep.subr.bf16.mxu0 0
  %10152 = vmatpush1.bf16.xpose.msra.mxu0 0
  %10153 = vmatprep.subr.bf16.mxu0 0
  %10154 = vmatpush1.bf16.xpose.msra.mxu0 0
  %10155 = vmatprep.mubr.bf16.mxu0 0
  %10156 = vmatmul.mubr.bf16.gmra.mrb[0].mxu0 %v10118
  %v10157 = vpop.f32.mrb[0].mxu0
  %v10158 = vadd.f32 0.0, %v10157
  %v10159 = vpop.f32.mrb[0].mxu0
  %v10160 = vpop.f32.mrb[0].mxu0
  %v10161 = vadd.f32 0.0, %v10160
  %v10162 = vpop.f32.mrb[0].mxu0
  %10163 = vdwg.mxu0
  %v10164 = vmul.f32 %v10105, 0.17677669
  %v10165 = vmul.f32 %v10108, 0.17677669
  %v10166 = vmul.f32 %v10158, 0.17677669
  %v10167 = vmul.f32 %v10161, 0.17677669
  %v10168 = vsel %vm8001, %v10164, -inf
  %10169 = vmax.xlane.f32.xlu0 %v10168
  %v10170 = vpop.xlane.xlu0 %10169
  %v10171 = vsel %vm8001, %v10165, -inf
  %10172 = vmax.xlane.f32.xlu0 %v10171
  %v10173 = vpop.xlane.xlu0 %10172
  %v10174 = vsel %vm8001, %v10166, -inf
  %10175 = vmax.xlane.f32.xlu0 %v10174
  %v10176 = vpop.xlane.xlu0 %10175
  %v10177 = vsel %vm8001, %v10167, -inf
  %10178 = vmax.xlane.f32.xlu0 %v10177
  %v10179 = vpop.xlane.xlu0 %10178
  %v10180 = vsub.f32 %v10164, %v10170
  %v10181 = vsub.f32 %v10165, %v10173
  %v10182 = vsub.f32 %v10166, %v10176
  %v10183 = vsub.f32 %v10167, %v10179
  %v10184 = vmul.f32 %v10180, 1.442695
  %v10185 = vpow.pop %v10184
  %v10186 = vmul.f32 %v10181, 1.442695
  %v10187 = vpow.pop %v10186
  %v10188 = vmul.f32 %v10182, 1.442695
  %v10189 = vpow.pop %v10188
  %v10190 = vmul.f32 %v10183, 1.442695
  %v10191 = vpow.pop %v10190
  %v10192 = vsel %vm8001, %v10185, 0.0
  %10193 = vadd.xlane.f32.xlu0 %v10192
  %v10194 = vpop.xlane.xlu0 %10193
  %v10195 = vsel %vm8001, %v10187, 0.0
  %10196 = vadd.xlane.f32.xlu0 %v10195
  %v10197 = vpop.xlane.xlu0 %10196
  %v10198 = vsel %vm8001, %v10189, 0.0
  %10199 = vadd.xlane.f32.xlu0 %v10198
  %v10200 = vpop.xlane.xlu0 %10199
  %v10201 = vsel %vm8001, %v10191, 0.0
  %10202 = vadd.xlane.f32.xlu0 %v10201
  %v10203 = vpop.xlane.xlu0 %10202
  %v10204 = vrcp.pop %v10194
  %v10205 = vmul.f32 %v10185, %v10204
  %v10206 = vrcp.pop %v10197
  %v10207 = vmul.f32 %v10187, %v10206
  %v10208 = vrcp.pop %v10200
  %v10209 = vmul.f32 %v10189, %v10208
  %v10210 = vrcp.pop %v10203
  %v10211 = vmul.f32 %v10191, %v10210
  %v10212 = vpack.c.bf16 %v10207, %v10205
  %v10213 = vpack.c.bf16 %v10211, %v10209
  %10215 = vrot.lane.b32.xlu0 %v9968, 96
  %v10216 = vpop.permute.xlu0 %10215
  %v10219 = vsel %vm8001, %v10212, 0
  %10221 = vmatprep.subr.bf16.mxu0 0
  %10222 = vmatpush1.bf16.msra.mxu0 %v10216
  %10223 = vmatprep.subr.bf16.mxu0 0
  %10224 = vmatpush1.bf16.msra.mxu0 0
  %10225 = vmatprep.subr.bf16.mxu0 0
  %10226 = vmatpush1.bf16.msra.mxu0 0
  %10227 = vmatprep.subr.bf16.mxu0 0
  %10228 = vmatpush1.bf16.msra.mxu0 0
  %10229 = vmatprep.subr.bf16.mxu0 0
  %10230 = vmatpush1.bf16.msra.mxu0 0
  %10231 = vmatprep.subr.bf16.mxu0 0
  %10232 = vmatpush1.bf16.msra.mxu0 0
  %10233 = vmatprep.subr.bf16.mxu0 0
  %10234 = vmatpush1.bf16.msra.mxu0 0
  %10235 = vmatprep.subr.bf16.mxu0 0
  %10236 = vmatpush1.bf16.msra.mxu0 0
  %10237 = vmatprep.subr.bf16.mxu0 0
  %10238 = vmatpush1.bf16.msra.mxu0 0
  %10239 = vmatprep.subr.bf16.mxu0 0
  %10240 = vmatpush1.bf16.msra.mxu0 0
  %10241 = vmatprep.subr.bf16.mxu0 0
  %10242 = vmatpush1.bf16.msra.mxu0 0
  %10243 = vmatprep.subr.bf16.mxu0 0
  %10244 = vmatpush1.bf16.msra.mxu0 0
  %10245 = vmatprep.subr.bf16.mxu0 0
  %10246 = vmatpush1.bf16.msra.mxu0 0
  %10247 = vmatprep.subr.bf16.mxu0 0
  %10248 = vmatpush1.bf16.msra.mxu0 0
  %10249 = vmatprep.subr.bf16.mxu0 0
  %10250 = vmatpush1.bf16.msra.mxu0 0
  %10251 = vmatprep.subr.bf16.mxu0 0
  %10252 = vmatpush1.bf16.msra.mxu0 0
  %10253 = vmatprep.mubr.bf16.mxu0 0
  %10254 = vmatmul.mubr.bf16.gmra.mrb[0].mxu0 %v10219
  %v10255 = vpop.f32.mrb[0].mxu0
  %v10256 = vadd.f32 0.0, %v10255
  %v10257 = vpop.f32.mrb[0].mxu0
  %v10258 = vpop.f32.mrb[0].mxu0
  %v10259 = vadd.f32 0.0, %v10258
  %v10260 = vpop.f32.mrb[0].mxu0
  %10261 = vdwg.mxu0
  %10263 = vrot.lane.b32.xlu0 %v9969, 96
  %v10264 = vpop.permute.xlu0 %10263
  %v10267 = vsel %vm8001, %v10213, 0
  %10269 = vmatprep.subr.bf16.mxu0 0
  %10270 = vmatpush1.bf16.msra.mxu0 %v10264
  %10271 = vmatprep.subr.bf16.mxu0 0
  %10272 = vmatpush1.bf16.msra.mxu0 0
  %10273 = vmatprep.subr.bf16.mxu0 0
  %10274 = vmatpush1.bf16.msra.mxu0 0
  %10275 = vmatprep.subr.bf16.mxu0 0
  %10276 = vmatpush1.bf16.msra.mxu0 0
  %10277 = vmatprep.subr.bf16.mxu0 0
  %10278 = vmatpush1.bf16.msra.mxu0 0
  %10279 = vmatprep.subr.bf16.mxu0 0
  %10280 = vmatpush1.bf16.msra.mxu0 0
  %10281 = vmatprep.subr.bf16.mxu0 0
  %10282 = vmatpush1.bf16.msra.mxu0 0
  %10283 = vmatprep.subr.bf16.mxu0 0
  %10284 = vmatpush1.bf16.msra.mxu0 0
  %10285 = vmatprep.subr.bf16.mxu0 0
  %10286 = vmatpush1.bf16.msra.mxu0 0
  %10287 = vmatprep.subr.bf16.mxu0 0
  %10288 = vmatpush1.bf16.msra.mxu0 0
  %10289 = vmatprep.subr.bf16.mxu0 0
  %10290 = vmatpush1.bf16.msra.mxu0 0
  %10291 = vmatprep.subr.bf16.mxu0 0
  %10292 = vmatpush1.bf16.msra.mxu0 0
  %10293 = vmatprep.subr.bf16.mxu0 0
  %10294 = vmatpush1.bf16.msra.mxu0 0
  %10295 = vmatprep.subr.bf16.mxu0 0
  %10296 = vmatpush1.bf16.msra.mxu0 0
  %10297 = vmatprep.subr.bf16.mxu0 0
  %10298 = vmatpush1.bf16.msra.mxu0 0
  %10299 = vmatprep.subr.bf16.mxu0 0
  %10300 = vmatpush1.bf16.msra.mxu0 0
  %10301 = vmatprep.mubr.bf16.mxu0 0
  %10302 = vmatmul.mubr.bf16.gmra.mrb[0].mxu0 %v10267
  %v10303 = vpop.f32.mrb[0].mxu0
  %v10304 = vadd.f32 0.0, %v10303
  %v10305 = vpop.f32.mrb[0].mxu0
  %v10306 = vpop.f32.mrb[0].mxu0
  %v10307 = vadd.f32 0.0, %v10306
  %v10308 = vpop.f32.mrb[0].mxu0
  %10309 = vdwg.mxu0
  %10310 = vrot.lane.b32.xlu0 %v9820, 64
  %v10311 = vpop.permute.xlu0 %10310
  %10312 = vrot.lane.b32.xlu0 %v9822, 64
  %v10313 = vpop.permute.xlu0 %10312
  %v10315 = vsel %vm7902, %v10311, 0
  %v10318 = vsel %vm7902, %v10313, 0
  %10320 = vmatprep.subr.bf16.mxu0 0
  %10321 = vmatpush1.bf16.xpose.msra.mxu0 %v10318
  %10322 = vmatprep.subr.bf16.mxu0 0
  %10323 = vmatpush1.bf16.xpose.msra.mxu0 0
  %10324 = vmatprep.subr.bf16.mxu0 0
  %10325 = vmatpush1.bf16.xpose.msra.mxu0 0
  %10326 = vmatprep.subr.bf16.mxu0 0
  %10327 = vmatpush1.bf16.xpose.msra.mxu0 0
  %10328 = vmatprep.subr.bf16.mxu0 0
  %10329 = vmatpush1.bf16.xpose.msra.mxu0 0
  %10330 = vmatprep.subr.bf16.mxu0 0
  %10331 = vmatpush1.bf16.xpose.msra.mxu0 0
  %10332 = vmatprep.subr.bf16.mxu0 0
  %10333 = vmatpush1.bf16.xpose.msra.mxu0 0
  %10334 = vmatprep.subr.bf16.mxu0 0
  %10335 = vmatpush1.bf16.xpose.msra.mxu0 0
  %10336 = vmatprep.subr.bf16.mxu0 0
  %10337 = vmatpush1.bf16.xpose.msra.mxu0 0
  %10338 = vmatprep.subr.bf16.mxu0 0
  %10339 = vmatpush1.bf16.xpose.msra.mxu0 0
  %10340 = vmatprep.subr.bf16.mxu0 0
  %10341 = vmatpush1.bf16.xpose.msra.mxu0 0
  %10342 = vmatprep.subr.bf16.mxu0 0
  %10343 = vmatpush1.bf16.xpose.msra.mxu0 0
  %10344 = vmatprep.subr.bf16.mxu0 0
  %10345 = vmatpush1.bf16.xpose.msra.mxu0 0
  %10346 = vmatprep.subr.bf16.mxu0 0
  %10347 = vmatpush1.bf16.xpose.msra.mxu0 0
  %10348 = vmatprep.subr.bf16.mxu0 0
  %10349 = vmatpush1.bf16.xpose.msra.mxu0 0
  %10350 = vmatprep.subr.bf16.mxu0 0
  %10351 = vmatpush1.bf16.xpose.msra.mxu0 0
  %10352 = vmatprep.mubr.bf16.mxu0 0
  %10353 = vmatmul.mubr.bf16.gmra.mrb[0].mxu0 %v10315
  %v10354 = vpop.f32.mrb[0].mxu0
  %v10355 = vadd.f32 0.0, %v10354
  %v10356 = vpop.f32.mrb[0].mxu0
  %v10357 = vpop.f32.mrb[0].mxu0
  %v10358 = vadd.f32 0.0, %v10357
  %v10359 = vpop.f32.mrb[0].mxu0
  %10360 = vdwg.mxu0
  %10361 = vrot.lane.b32.xlu0 %v9821, 64
  %v10362 = vpop.permute.xlu0 %10361
  %10363 = vrot.lane.b32.xlu0 %v9823, 64
  %v10364 = vpop.permute.xlu0 %10363
  %v10366 = vsel %vm7902, %v10362, 0
  %v10369 = vsel %vm7902, %v10364, 0
  %10371 = vmatprep.subr.bf16.mxu0 0
  %10372 = vmatpush1.bf16.xpose.msra.mxu0 %v10369
  %10373 = vmatprep.subr.bf16.mxu0 0
  %10374 = vmatpush1.bf16.xpose.msra.mxu0 0
  %10375 = vmatprep.subr.bf16.mxu0 0
  %10376 = vmatpush1.bf16.xpose.msra.mxu0 0
  %10377 = vmatprep.subr.bf16.mxu0 0
  %10378 = vmatpush1.bf16.xpose.msra.mxu0 0
  %10379 = vmatprep.subr.bf16.mxu0 0
  %10380 = vmatpush1.bf16.xpose.msra.mxu0 0
  %10381 = vmatprep.subr.bf16.mxu0 0
  %10382 = vmatpush1.bf16.xpose.msra.mxu0 0
  %10383 = vmatprep.subr.bf16.mxu0 0
  %10384 = vmatpush1.bf16.xpose.msra.mxu0 0
  %10385 = vmatprep.subr.bf16.mxu0 0
  %10386 = vmatpush1.bf16.xpose.msra.mxu0 0
  %10387 = vmatprep.subr.bf16.mxu0 0
  %10388 = vmatpush1.bf16.xpose.msra.mxu0 0
  %10389 = vmatprep.subr.bf16.mxu0 0
  %10390 = vmatpush1.bf16.xpose.msra.mxu0 0
  %10391 = vmatprep.subr.bf16.mxu0 0
  %10392 = vmatpush1.bf16.xpose.msra.mxu0 0
  %10393 = vmatprep.subr.bf16.mxu0 0
  %10394 = vmatpush1.bf16.xpose.msra.mxu0 0
  %10395 = vmatprep.subr.bf16.mxu0 0
  %10396 = vmatpush1.bf16.xpose.msra.mxu0 0
  %10397 = vmatprep.subr.bf16.mxu0 0
  %10398 = vmatpush1.bf16.xpose.msra.mxu0 0
  %10399 = vmatprep.subr.bf16.mxu0 0
  %10400 = vmatpush1.bf16.xpose.msra.mxu0 0
  %10401 = vmatprep.subr.bf16.mxu0 0
  %10402 = vmatpush1.bf16.xpose.msra.mxu0 0
  %10403 = vmatprep.mubr.bf16.mxu0 0
  %10404 = vmatmul.mubr.bf16.gmra.mrb[0].mxu0 %v10366
  %v10405 = vpop.f32.mrb[0].mxu0
  %v10406 = vadd.f32 0.0, %v10405
  %v10407 = vpop.f32.mrb[0].mxu0
  %v10408 = vpop.f32.mrb[0].mxu0
  %v10409 = vadd.f32 0.0, %v10408
  %v10410 = vpop.f32.mrb[0].mxu0
  %10411 = vdwg.mxu0
  %v10412 = vmul.f32 %v10355, 0.17677669
  %v10413 = vmul.f32 %v10358, 0.17677669
  %v10414 = vmul.f32 %v10406, 0.17677669
  %v10415 = vmul.f32 %v10409, 0.17677669
  %v10416 = vsel %vm8001, %v10412, -inf
  %10417 = vmax.xlane.f32.xlu0 %v10416
  %v10418 = vpop.xlane.xlu0 %10417
  %v10419 = vsel %vm8001, %v10413, -inf
  %10420 = vmax.xlane.f32.xlu0 %v10419
  %v10421 = vpop.xlane.xlu0 %10420
  %v10422 = vsel %vm8001, %v10414, -inf
  %10423 = vmax.xlane.f32.xlu0 %v10422
  %v10424 = vpop.xlane.xlu0 %10423
  %v10425 = vsel %vm8001, %v10415, -inf
  %10426 = vmax.xlane.f32.xlu0 %v10425
  %v10427 = vpop.xlane.xlu0 %10426
  %v10428 = vsub.f32 %v10412, %v10418
  %v10429 = vsub.f32 %v10413, %v10421
  %v10430 = vsub.f32 %v10414, %v10424
  %v10431 = vsub.f32 %v10415, %v10427
  %v10432 = vmul.f32 %v10428, 1.442695
  %v10433 = vpow.pop %v10432
  %v10434 = vmul.f32 %v10429, 1.442695
  %v10435 = vpow.pop %v10434
  %v10436 = vmul.f32 %v10430, 1.442695
  %v10437 = vpow.pop %v10436
  %v10438 = vmul.f32 %v10431, 1.442695
  %v10439 = vpow.pop %v10438
  %v10440 = vsel %vm8001, %v10433, 0.0
  %10441 = vadd.xlane.f32.xlu0 %v10440
  %v10442 = vpop.xlane.xlu0 %10441
  %v10443 = vsel %vm8001, %v10435, 0.0
  %10444 = vadd.xlane.f32.xlu0 %v10443
  %v10445 = vpop.xlane.xlu0 %10444
  %v10446 = vsel %vm8001, %v10437, 0.0
  %10447 = vadd.xlane.f32.xlu0 %v10446
  %v10448 = vpop.xlane.xlu0 %10447
  %v10449 = vsel %vm8001, %v10439, 0.0
  %10450 = vadd.xlane.f32.xlu0 %v10449
  %v10451 = vpop.xlane.xlu0 %10450
  %v10452 = vrcp.pop %v10442
  %v10453 = vmul.f32 %v10433, %v10452
  %v10454 = vrcp.pop %v10445
  %v10455 = vmul.f32 %v10435, %v10454
  %v10456 = vrcp.pop %v10448
  %v10457 = vmul.f32 %v10437, %v10456
  %v10458 = vrcp.pop %v10451
  %v10459 = vmul.f32 %v10439, %v10458
  %v10460 = vpack.c.bf16 %v10455, %v10453
  %v10461 = vpack.c.bf16 %v10459, %v10457
  %10462 = vrot.lane.b32.xlu0 %v9968, 64
  %v10463 = vpop.permute.xlu0 %10462
  %v10466 = vsel %vm8001, %v10460, 0
  %10468 = vmatprep.subr.bf16.mxu0 0
  %10469 = vmatpush1.bf16.msra.mxu0 %v10463
  %10470 = vmatprep.subr.bf16.mxu0 0
  %10471 = vmatpush1.bf16.msra.mxu0 0
  %10472 = vmatprep.subr.bf16.mxu0 0
  %10473 = vmatpush1.bf16.msra.mxu0 0
  %10474 = vmatprep.subr.bf16.mxu0 0
  %10475 = vmatpush1.bf16.msra.mxu0 0
  %10476 = vmatprep.subr.bf16.mxu0 0
  %10477 = vmatpush1.bf16.msra.mxu0 0
  %10478 = vmatprep.subr.bf16.mxu0 0
  %10479 = vmatpush1.bf16.msra.mxu0 0
  %10480 = vmatprep.subr.bf16.mxu0 0
  %10481 = vmatpush1.bf16.msra.mxu0 0
  %10482 = vmatprep.subr.bf16.mxu0 0
  %10483 = vmatpush1.bf16.msra.mxu0 0
  %10484 = vmatprep.subr.bf16.mxu0 0
  %10485 = vmatpush1.bf16.msra.mxu0 0
  %10486 = vmatprep.subr.bf16.mxu0 0
  %10487 = vmatpush1.bf16.msra.mxu0 0
  %10488 = vmatprep.subr.bf16.mxu0 0
  %10489 = vmatpush1.bf16.msra.mxu0 0
  %10490 = vmatprep.subr.bf16.mxu0 0
  %10491 = vmatpush1.bf16.msra.mxu0 0
  %10492 = vmatprep.subr.bf16.mxu0 0
  %10493 = vmatpush1.bf16.msra.mxu0 0
  %10494 = vmatprep.subr.bf16.mxu0 0
  %10495 = vmatpush1.bf16.msra.mxu0 0
  %10496 = vmatprep.subr.bf16.mxu0 0
  %10497 = vmatpush1.bf16.msra.mxu0 0
  %10498 = vmatprep.subr.bf16.mxu0 0
  %10499 = vmatpush1.bf16.msra.mxu0 0
  %10500 = vmatprep.mubr.bf16.mxu0 0
  %10501 = vmatmul.mubr.bf16.gmra.mrb[0].mxu0 %v10466
  %v10502 = vpop.f32.mrb[0].mxu0
  %v10503 = vadd.f32 0.0, %v10502
  %v10504 = vpop.f32.mrb[0].mxu0
  %v10505 = vpop.f32.mrb[0].mxu0
  %v10506 = vadd.f32 0.0, %v10505
  %v10507 = vpop.f32.mrb[0].mxu0
  %10508 = vdwg.mxu0
  %10509 = vrot.lane.b32.xlu0 %v9969, 64
  %v10510 = vpop.permute.xlu0 %10509
  %v10513 = vsel %vm8001, %v10461, 0
  %10515 = vmatprep.subr.bf16.mxu0 0
  %10516 = vmatpush1.bf16.msra.mxu0 %v10510
  %10517 = vmatprep.subr.bf16.mxu0 0
  %10518 = vmatpush1.bf16.msra.mxu0 0
  %10519 = vmatprep.subr.bf16.mxu0 0
  %10520 = vmatpush1.bf16.msra.mxu0 0
  %10521 = vmatprep.subr.bf16.mxu0 0
  %10522 = vmatpush1.bf16.msra.mxu0 0
  %10523 = vmatprep.subr.bf16.mxu0 0
  %10524 = vmatpush1.bf16.msra.mxu0 0
  %10525 = vmatprep.subr.bf16.mxu0 0
  %10526 = vmatpush1.bf16.msra.mxu0 0
  %10527 = vmatprep.subr.bf16.mxu0 0
  %10528 = vmatpush1.bf16.msra.mxu0 0
  %10529 = vmatprep.subr.bf16.mxu0 0
  %10530 = vmatpush1.bf16.msra.mxu0 0
  %10531 = vmatprep.subr.bf16.mxu0 0
  %10532 = vmatpush1.bf16.msra.mxu0 0
  %10533 = vmatprep.subr.bf16.mxu0 0
  %10534 = vmatpush1.bf16.msra.mxu0 0
  %10535 = vmatprep.subr.bf16.mxu0 0
  %10536 = vmatpush1.bf16.msra.mxu0 0
  %10537 = vmatprep.subr.bf16.mxu0 0
  %10538 = vmatpush1.bf16.msra.mxu0 0
  %10539 = vmatprep.subr.bf16.mxu0 0
  %10540 = vmatpush1.bf16.msra.mxu0 0
  %10541 = vmatprep.subr.bf16.mxu0 0
  %10542 = vmatpush1.bf16.msra.mxu0 0
  %10543 = vmatprep.subr.bf16.mxu0 0
  %10544 = vmatpush1.bf16.msra.mxu0 0
  %10545 = vmatprep.subr.bf16.mxu0 0
  %10546 = vmatpush1.bf16.msra.mxu0 0
  %10547 = vmatprep.mubr.bf16.mxu0 0
  %10548 = vmatmul.mubr.bf16.gmra.mrb[0].mxu0 %v10513
  %v10549 = vpop.f32.mrb[0].mxu0
  %v10550 = vadd.f32 0.0, %v10549
  %v10551 = vpop.f32.mrb[0].mxu0
  %v10552 = vpop.f32.mrb[0].mxu0
  %v10553 = vadd.f32 0.0, %v10552
  %v10554 = vpop.f32.mrb[0].mxu0
  %10555 = vdwg.mxu0
  %10556 = vrot.lane.b32.xlu0 %v9820, 32
  %v10557 = vpop.permute.xlu0 %10556
  %10558 = vrot.lane.b32.xlu0 %v9822, 32
  %v10559 = vpop.permute.xlu0 %10558
  %v10561 = vsel %vm7902, %v10557, 0
  %v10564 = vsel %vm7902, %v10559, 0
  %10566 = vmatprep.subr.bf16.mxu0 0
  %10567 = vmatpush1.bf16.xpose.msra.mxu0 %v10564
  %10568 = vmatprep.subr.bf16.mxu0 0
  %10569 = vmatpush1.bf16.xpose.msra.mxu0 0
  %10570 = vmatprep.subr.bf16.mxu0 0
  %10571 = vmatpush1.bf16.xpose.msra.mxu0 0
  %10572 = vmatprep.subr.bf16.mxu0 0
  %10573 = vmatpush1.bf16.xpose.msra.mxu0 0
  %10574 = vmatprep.subr.bf16.mxu0 0
  %10575 = vmatpush1.bf16.xpose.msra.mxu0 0
  %10576 = vmatprep.subr.bf16.mxu0 0
  %10577 = vmatpush1.bf16.xpose.msra.mxu0 0
  %10578 = vmatprep.subr.bf16.mxu0 0
  %10579 = vmatpush1.bf16.xpose.msra.mxu0 0
  %10580 = vmatprep.subr.bf16.mxu0 0
  %10581 = vmatpush1.bf16.xpose.msra.mxu0 0
  %10582 = vmatprep.subr.bf16.mxu0 0
  %10583 = vmatpush1.bf16.xpose.msra.mxu0 0
  %10584 = vmatprep.subr.bf16.mxu0 0
  %10585 = vmatpush1.bf16.xpose.msra.mxu0 0
  %10586 = vmatprep.subr.bf16.mxu0 0
  %10587 = vmatpush1.bf16.xpose.msra.mxu0 0
  %10588 = vmatprep.subr.bf16.mxu0 0
  %10589 = vmatpush1.bf16.xpose.msra.mxu0 0
  %10590 = vmatprep.subr.bf16.mxu0 0
  %10591 = vmatpush1.bf16.xpose.msra.mxu0 0
  %10592 = vmatprep.subr.bf16.mxu0 0
  %10593 = vmatpush1.bf16.xpose.msra.mxu0 0
  %10594 = vmatprep.subr.bf16.mxu0 0
  %10595 = vmatpush1.bf16.xpose.msra.mxu0 0
  %10596 = vmatprep.subr.bf16.mxu0 0
  %10597 = vmatpush1.bf16.xpose.msra.mxu0 0
  %10598 = vmatprep.mubr.bf16.mxu0 0
  %10599 = vmatmul.mubr.bf16.gmra.mrb[0].mxu0 %v10561
  %v10600 = vpop.f32.mrb[0].mxu0
  %v10601 = vadd.f32 0.0, %v10600
  %v10602 = vpop.f32.mrb[0].mxu0
  %v10603 = vpop.f32.mrb[0].mxu0
  %v10604 = vadd.f32 0.0, %v10603
  %v10605 = vpop.f32.mrb[0].mxu0
  %10606 = vdwg.mxu0
  %10607 = vrot.lane.b32.xlu0 %v9821, 32
  %v10608 = vpop.permute.xlu0 %10607
  %10609 = vrot.lane.b32.xlu0 %v9823, 32
  %v10610 = vpop.permute.xlu0 %10609
  %v10612 = vsel %vm7902, %v10608, 0
  %v10615 = vsel %vm7902, %v10610, 0
  %10617 = vmatprep.subr.bf16.mxu0 0
  %10618 = vmatpush1.bf16.xpose.msra.mxu0 %v10615
  %10619 = vmatprep.subr.bf16.mxu0 0
  %10620 = vmatpush1.bf16.xpose.msra.mxu0 0
  %10621 = vmatprep.subr.bf16.mxu0 0
  %10622 = vmatpush1.bf16.xpose.msra.mxu0 0
  %10623 = vmatprep.subr.bf16.mxu0 0
  %10624 = vmatpush1.bf16.xpose.msra.mxu0 0
  %10625 = vmatprep.subr.bf16.mxu0 0
  %10626 = vmatpush1.bf16.xpose.msra.mxu0 0
  %10627 = vmatprep.subr.bf16.mxu0 0
  %10628 = vmatpush1.bf16.xpose.msra.mxu0 0
  %10629 = vmatprep.subr.bf16.mxu0 0
  %10630 = vmatpush1.bf16.xpose.msra.mxu0 0
  %10631 = vmatprep.subr.bf16.mxu0 0
  %10632 = vmatpush1.bf16.xpose.msra.mxu0 0
  %10633 = vmatprep.subr.bf16.mxu0 0
  %10634 = vmatpush1.bf16.xpose.msra.mxu0 0
  %10635 = vmatprep.subr.bf16.mxu0 0
  %10636 = vmatpush1.bf16.xpose.msra.mxu0 0
  %10637 = vmatprep.subr.bf16.mxu0 0
  %10638 = vmatpush1.bf16.xpose.msra.mxu0 0
  %10639 = vmatprep.subr.bf16.mxu0 0
  %10640 = vmatpush1.bf16.xpose.msra.mxu0 0
  %10641 = vmatprep.subr.bf16.mxu0 0
  %10642 = vmatpush1.bf16.xpose.msra.mxu0 0
  %10643 = vmatprep.subr.bf16.mxu0 0
  %10644 = vmatpush1.bf16.xpose.msra.mxu0 0
  %10645 = vmatprep.subr.bf16.mxu0 0
  %10646 = vmatpush1.bf16.xpose.msra.mxu0 0
  %10647 = vmatprep.subr.bf16.mxu0 0
  %10648 = vmatpush1.bf16.xpose.msra.mxu0 0
  %10649 = vmatprep.mubr.bf16.mxu0 0
  %10650 = vmatmul.mubr.bf16.gmra.mrb[0].mxu0 %v10612
  %v10651 = vpop.f32.mrb[0].mxu0
  %v10652 = vadd.f32 0.0, %v10651
  %v10653 = vpop.f32.mrb[0].mxu0
  %v10654 = vpop.f32.mrb[0].mxu0
  %v10655 = vadd.f32 0.0, %v10654
  %v10656 = vpop.f32.mrb[0].mxu0
  %10657 = vdwg.mxu0
  %v10658 = vmul.f32 %v10601, 0.17677669
  %v10659 = vmul.f32 %v10604, 0.17677669
  %v10660 = vmul.f32 %v10652, 0.17677669
  %v10661 = vmul.f32 %v10655, 0.17677669
  %v10662 = vsel %vm8001, %v10658, -inf
  %10663 = vmax.xlane.f32.xlu0 %v10662
  %v10664 = vpop.xlane.xlu0 %10663
  %v10665 = vsel %vm8001, %v10659, -inf
  %10666 = vmax.xlane.f32.xlu0 %v10665
  %v10667 = vpop.xlane.xlu0 %10666
  %v10668 = vsel %vm8001, %v10660, -inf
  %10669 = vmax.xlane.f32.xlu0 %v10668
  %v10670 = vpop.xlane.xlu0 %10669
  %v10671 = vsel %vm8001, %v10661, -inf
  %10672 = vmax.xlane.f32.xlu0 %v10671
  %v10673 = vpop.xlane.xlu0 %10672
  %v10674 = vsub.f32 %v10658, %v10664
  %v10675 = vsub.f32 %v10659, %v10667
  %v10676 = vsub.f32 %v10660, %v10670
  %v10677 = vsub.f32 %v10661, %v10673
  %v10678 = vmul.f32 %v10674, 1.442695
  %v10679 = vpow.pop %v10678
  %v10680 = vmul.f32 %v10675, 1.442695
  %v10681 = vpow.pop %v10680
  %v10682 = vmul.f32 %v10676, 1.442695
  %v10683 = vpow.pop %v10682
  %v10684 = vmul.f32 %v10677, 1.442695
  %v10685 = vpow.pop %v10684
  %v10686 = vsel %vm8001, %v10679, 0.0
  %10687 = vadd.xlane.f32.xlu0 %v10686
  %v10688 = vpop.xlane.xlu0 %10687
  %v10689 = vsel %vm8001, %v10681, 0.0
  %10690 = vadd.xlane.f32.xlu0 %v10689
  %v10691 = vpop.xlane.xlu0 %10690
  %v10692 = vsel %vm8001, %v10683, 0.0
  %10693 = vadd.xlane.f32.xlu0 %v10692
  %v10694 = vpop.xlane.xlu0 %10693
  %v10695 = vsel %vm8001, %v10685, 0.0
  %10696 = vadd.xlane.f32.xlu0 %v10695
  %v10697 = vpop.xlane.xlu0 %10696
  %v10698 = vrcp.pop %v10688
  %v10699 = vmul.f32 %v10679, %v10698
  %v10700 = vrcp.pop %v10691
  %v10701 = vmul.f32 %v10681, %v10700
  %v10702 = vrcp.pop %v10694
  %v10703 = vmul.f32 %v10683, %v10702
  %v10704 = vrcp.pop %v10697
  %v10705 = vmul.f32 %v10685, %v10704
  %v10706 = vpack.c.bf16 %v10701, %v10699
  %v10707 = vpack.c.bf16 %v10705, %v10703
  %10708 = vrot.lane.b32.xlu0 %v9968, 32
  %v10709 = vpop.permute.xlu0 %10708
  %v10712 = vsel %vm8001, %v10706, 0
  %10714 = vmatprep.subr.bf16.mxu0 0
  %10715 = vmatpush1.bf16.msra.mxu0 %v10709
  %10716 = vmatprep.subr.bf16.mxu0 0
  %10717 = vmatpush1.bf16.msra.mxu0 0
  %10718 = vmatprep.subr.bf16.mxu0 0
  %10719 = vmatpush1.bf16.msra.mxu0 0
  %10720 = vmatprep.subr.bf16.mxu0 0
  %10721 = vmatpush1.bf16.msra.mxu0 0
  %10722 = vmatprep.subr.bf16.mxu0 0
  %10723 = vmatpush1.bf16.msra.mxu0 0
  %10724 = vmatprep.subr.bf16.mxu0 0
  %10725 = vmatpush1.bf16.msra.mxu0 0
  %10726 = vmatprep.subr.bf16.mxu0 0
  %10727 = vmatpush1.bf16.msra.mxu0 0
  %10728 = vmatprep.subr.bf16.mxu0 0
  %10729 = vmatpush1.bf16.msra.mxu0 0
  %10730 = vmatprep.subr.bf16.mxu0 0
  %10731 = vmatpush1.bf16.msra.mxu0 0
  %10732 = vmatprep.subr.bf16.mxu0 0
  %10733 = vmatpush1.bf16.msra.mxu0 0
  %10734 = vmatprep.subr.bf16.mxu0 0
  %10735 = vmatpush1.bf16.msra.mxu0 0
  %10736 = vmatprep.subr.bf16.mxu0 0
  %10737 = vmatpush1.bf16.msra.mxu0 0
  %10738 = vmatprep.subr.bf16.mxu0 0
  %10739 = vmatpush1.bf16.msra.mxu0 0
  %10740 = vmatprep.subr.bf16.mxu0 0
  %10741 = vmatpush1.bf16.msra.mxu0 0
  %10742 = vmatprep.subr.bf16.mxu0 0
  %10743 = vmatpush1.bf16.msra.mxu0 0
  %10744 = vmatprep.subr.bf16.mxu0 0
  %10745 = vmatpush1.bf16.msra.mxu0 0
  %10746 = vmatprep.mubr.bf16.mxu0 0
  %10747 = vmatmul.mubr.bf16.gmra.mrb[0].mxu0 %v10712
  %v10748 = vpop.f32.mrb[0].mxu0
  %v10749 = vadd.f32 0.0, %v10748
  %v10750 = vpop.f32.mrb[0].mxu0
  %v10751 = vpop.f32.mrb[0].mxu0
  %v10752 = vadd.f32 0.0, %v10751
  %v10753 = vpop.f32.mrb[0].mxu0
  %10754 = vdwg.mxu0
  %10755 = vrot.lane.b32.xlu0 %v9969, 32
  %v10756 = vpop.permute.xlu0 %10755
  %v10759 = vsel %vm8001, %v10707, 0
  %10761 = vmatprep.subr.bf16.mxu0 0
  %10762 = vmatpush1.bf16.msra.mxu0 %v10756
  %10763 = vmatprep.subr.bf16.mxu0 0
  %10764 = vmatpush1.bf16.msra.mxu0 0
  %10765 = vmatprep.subr.bf16.mxu0 0
  %10766 = vmatpush1.bf16.msra.mxu0 0
  %10767 = vmatprep.subr.bf16.mxu0 0
  %10768 = vmatpush1.bf16.msra.mxu0 0
  %10769 = vmatprep.subr.bf16.mxu0 0
  %10770 = vmatpush1.bf16.msra.mxu0 0
  %10771 = vmatprep.subr.bf16.mxu0 0
  %10772 = vmatpush1.bf16.msra.mxu0 0
  %10773 = vmatprep.subr.bf16.mxu0 0
  %10774 = vmatpush1.bf16.msra.mxu0 0
  %10775 = vmatprep.subr.bf16.mxu0 0
  %10776 = vmatpush1.bf16.msra.mxu0 0
  %10777 = vmatprep.subr.bf16.mxu0 0
  %10778 = vmatpush1.bf16.msra.mxu0 0
  %10779 = vmatprep.subr.bf16.mxu0 0
  %10780 = vmatpush1.bf16.msra.mxu0 0
  %10781 = vmatprep.subr.bf16.mxu0 0
  %10782 = vmatpush1.bf16.msra.mxu0 0
  %10783 = vmatprep.subr.bf16.mxu0 0
  %10784 = vmatpush1.bf16.msra.mxu0 0
  %10785 = vmatprep.subr.bf16.mxu0 0
  %10786 = vmatpush1.bf16.msra.mxu0 0
  %10787 = vmatprep.subr.bf16.mxu0 0
  %10788 = vmatpush1.bf16.msra.mxu0 0
  %10789 = vmatprep.subr.bf16.mxu0 0
  %10790 = vmatpush1.bf16.msra.mxu0 0
  %10791 = vmatprep.subr.bf16.mxu0 0
  %10792 = vmatpush1.bf16.msra.mxu0 0
  %10793 = vmatprep.mubr.bf16.mxu0 0
  %10794 = vmatmul.mubr.bf16.gmra.mrb[0].mxu0 %v10759
  %v10795 = vpop.f32.mrb[0].mxu0
  %v10796 = vadd.f32 0.0, %v10795
  %v10797 = vpop.f32.mrb[0].mxu0
  %v10798 = vpop.f32.mrb[0].mxu0
  %v10799 = vadd.f32 0.0, %v10798
  %v10800 = vpop.f32.mrb[0].mxu0
  %10801 = vdwg.mxu0
  %10806 = vrot.lane.b32.xlu0 %v10256, 32
  %v10807 = vpop.permute.xlu0 %10806
  %10808 = vrot.lane.b32.xlu0 %v10259, 32
  %v10809 = vpop.permute.xlu0 %10808
  %10810 = vrot.lane.b32.xlu0 %v10304, 32
  %v10811 = vpop.permute.xlu0 %10810
  %10812 = vrot.lane.b32.xlu0 %v10307, 32
  %v10813 = vpop.permute.xlu0 %10812
  %10822 = vrot.lane.b32.xlu0 %v10503, 64
  %v10823 = vpop.permute.xlu0 %10822
  %10824 = vrot.lane.b32.xlu0 %v10506, 64
  %v10825 = vpop.permute.xlu0 %10824
  %10826 = vrot.lane.b32.xlu0 %v10550, 64
  %v10827 = vpop.permute.xlu0 %10826
  %10828 = vrot.lane.b32.xlu0 %v10553, 64
  %v10829 = vpop.permute.xlu0 %10828
  %10838 = vrot.lane.b32.xlu0 %v10749, 96
  %v10839 = vpop.permute.xlu0 %10838
  %10840 = vrot.lane.b32.xlu0 %v10752, 96
  %v10841 = vpop.permute.xlu0 %10840
  %10842 = vrot.lane.b32.xlu0 %v10796, 96
  %v10843 = vpop.permute.xlu0 %10842
  %10844 = vrot.lane.b32.xlu0 %v10799, 96
  %v10845 = vpop.permute.xlu0 %10844
  %v10850 = vsel %vm7902, %v10008, %v10807
  %v10851 = vsel %vm7902, %v10011, %v10809
  %v10852 = vsel %vm7902, %v10052, %v10811
  %v10853 = vsel %vm7902, %v10055, %v10813
  %v10854 = vsel %vm5724, %v10850, %v10823
  %v10855 = vsel %vm5724, %v10851, %v10825
  %v10856 = vsel %vm5724, %v10852, %v10827
  %v10857 = vsel %vm5724, %v10853, %v10829
  %v10858 = vsel %vm8938, %v10854, %v10839
  %v10859 = vsel %vm8938, %v10855, %v10841
  %v10860 = vsel %vm8938, %v10856, %v10843
  %v10861 = vsel %vm8938, %v10857, %v10845
  %v10862 = vpack.c.bf16 %v10859, %v10858
  %v10863 = vpack.c.bf16 %v10861, %v10860
  %v10864 = vld [vmem:[%s41] sm:$0xf]
  %v10865 = vld [vmem:[%s41 + $0x4] sm:$0xf]
  %v10866 = vld [vmem:[%s41 + $0x8] sm:$0xf]
  %v10867 = vld [vmem:[%s41 + $0xc] sm:$0xf]
  %v10868 = vld [vmem:[%s41 + $0x10] sm:$0xf]
  %v10869 = vld [vmem:[%s41 + $0x14] sm:$0xf]
  %v10870 = vld [vmem:[%s41 + $0x18] sm:$0xf]
  %v10871 = vld [vmem:[%s41 + $0x1c] sm:$0xf]
  %v10872 = vld [vmem:[%s41 + $0x20] sm:$0xf]
  %v10873 = vld [vmem:[%s41 + $0x24] sm:$0xf]
  %v10874 = vld [vmem:[%s41 + $0x28] sm:$0xf]
  %v10875 = vld [vmem:[%s41 + $0x2c] sm:$0xf]
  %v10876 = vld [vmem:[%s41 + $0x30] sm:$0xf]
  %v10877 = vld [vmem:[%s41 + $0x34] sm:$0xf]
  %v10878 = vld [vmem:[%s41 + $0x38] sm:$0xf]
  %v10879 = vld [vmem:[%s41 + $0x3c] sm:$0xf]
  %v10896 = vunpack.c.l.b16 %v10864
  %v10897 = vunpack.c.l.b16 %v10865
  %v10898 = vunpack.c.l.b16 %v10866
  %v10899 = vunpack.c.l.b16 %v10867
  %v10900 = vunpack.c.l.b16 %v10868
  %v10901 = vunpack.c.l.b16 %v10869
  %v10902 = vunpack.c.l.b16 %v10870
  %v10903 = vunpack.c.l.b16 %v10871
  %v10904 = vunpack.c.l.b16 %v10872
  %v10905 = vunpack.c.l.b16 %v10873
  %v10906 = vunpack.c.l.b16 %v10874
  %v10907 = vunpack.c.l.b16 %v10875
  %v10908 = vunpack.c.l.b16 %v10876
  %v10909 = vunpack.c.l.b16 %v10877
  %v10910 = vunpack.c.l.b16 %v10878
  %v10911 = vunpack.c.l.b16 %v10879
  %v10912 = vpack.c.b16 %v10897, %v10896
  %v10913 = vpack.c.b16 %v10899, %v10898
  %v10914 = vpack.c.b16 %v10901, %v10900
  %v10915 = vpack.c.b16 %v10903, %v10902
  %v10916 = vpack.c.b16 %v10905, %v10904
  %v10917 = vpack.c.b16 %v10907, %v10906
  %v10918 = vpack.c.b16 %v10909, %v10908
  %v10919 = vpack.c.b16 %v10911, %v10910
  %10928 = vmatprep.subr.bf16.mxu0 0
  %10929 = vmatpush1.bf16.msra.mxu0 %v10912
  %10930 = vmatprep.subr.bf16.mxu0 0
  %10931 = vmatpush1.bf16.msra.mxu0 %v10913
  %10932 = vmatprep.subr.bf16.mxu0 0
  %10933 = vmatpush1.bf16.msra.mxu0 %v10914
  %10934 = vmatprep.subr.bf16.mxu0 0
  %10935 = vmatpush1.bf16.msra.mxu0 %v10915
  %10936 = vmatprep.subr.bf16.mxu0 0
  %10937 = vmatpush1.bf16.msra.mxu0 %v10916
  %10938 = vmatprep.subr.bf16.mxu0 0
  %10939 = vmatpush1.bf16.msra.mxu0 %v10917
  %10940 = vmatprep.subr.bf16.mxu0 0
  %10941 = vmatpush1.bf16.msra.mxu0 %v10918
  %10942 = vmatprep.subr.bf16.mxu0 0
  %10943 = vmatpush1.bf16.msra.mxu0 %v10919
  %10944 = vmatprep.subr.bf16.mxu0 0
  %10945 = vmatpush1.bf16.msra.mxu0 0
  %10946 = vmatprep.subr.bf16.mxu0 0
  %10947 = vmatpush1.bf16.msra.mxu0 0
  %10948 = vmatprep.subr.bf16.mxu0 0
  %10949 = vmatpush1.bf16.msra.mxu0 0
  %10950 = vmatprep.subr.bf16.mxu0 0
  %10951 = vmatpush1.bf16.msra.mxu0 0
  %10952 = vmatprep.subr.bf16.mxu0 0
  %10953 = vmatpush1.bf16.msra.mxu0 0
  %10954 = vmatprep.subr.bf16.mxu0 0
  %10955 = vmatpush1.bf16.msra.mxu0 0
  %10956 = vmatprep.subr.bf16.mxu0 0
  %10957 = vmatpush1.bf16.msra.mxu0 0
  %10958 = vmatprep.subr.bf16.mxu0 0
  %10959 = vmatpush1.bf16.msra.mxu0 0
  %10960 = vmatprep.mubr.bf16.mxu0 0
  %10961 = vmatmul.mubr.bf16.gmra.mrb[0].mxu0 %v10862
  %v10962 = vpop.f32.mrb[0].mxu0
  %v10963 = vadd.f32 0.0, %v10962
  %v10964 = vpop.f32.mrb[0].mxu0
  %v10965 = vpop.f32.mrb[0].mxu0
  %v10966 = vadd.f32 0.0, %v10965
  %v10967 = vpop.f32.mrb[0].mxu0
  %10968 = vmatprep.mubr.bf16.mxu0 0
  %10969 = vmatmul.mubr.bf16.gmra.mrb[0].mxu0 %v10863
  %v10970 = vpop.f32.mrb[0].mxu0
  %v10971 = vadd.f32 0.0, %v10970
  %v10972 = vpop.f32.mrb[0].mxu0
  %v10973 = vpop.f32.mrb[0].mxu0
  %v10974 = vadd.f32 0.0, %v10973
  %v10975 = vpop.f32.mrb[0].mxu0
  %10976 = vdwg.mxu0
  %v10977 = vadd.f32 %v9469, %v10963
  %v10978 = vadd.f32 %v9470, %v10966
  %v10979 = vadd.f32 %v9471, %v10971
  %v10980 = vadd.f32 %v9472, %v10974
  %v10981 = vld [vmem:[%s43] sm:$0x1]
  %v10983 = vlaneseq
  %v10984 = vshrl.u32 %v10983, 7
  %v10985 = vsub.s32 0, %v10984
  %v10986 = vrot.slane %v10981, %v10985
  %v10988 = vadd.f32 %v10977, %v10986
  %v10989 = vadd.f32 %v10978, %v10986
  %v10990 = vadd.f32 %v10979, %v10986
  %v10991 = vadd.f32 %v10980, %v10986
  %v10992 = vld [vmem:[%s45] sm:$0x1]
  %v10993 = vld [vmem:[%s47] sm:$0x1]
  %10994 = vadd.xlane.f32.xlu0 %v10988
  %v10995 = vpop.xlane.xlu0 %10994
  %10996 = vadd.xlane.f32.xlu0 %v10989
  %v10997 = vpop.xlane.xlu0 %10996
  %10998 = vadd.xlane.f32.xlu0 %v10990
  %v10999 = vpop.xlane.xlu0 %10998
  %11000 = vadd.xlane.f32.xlu0 %v10991
  %v11001 = vpop.xlane.xlu0 %11000
  %v11002 = vmul.f32 %v10995, %v7560
  %v11003 = vmul.f32 %v10997, %v7560
  %v11004 = vmul.f32 %v10999, %v7560
  %v11005 = vmul.f32 %v11001, %v7560
  %v11006 = vsub.f32 %v10988, %v11002
  %v11007 = vsub.f32 %v10989, %v11003
  %v11008 = vsub.f32 %v10990, %v11004
  %v11009 = vsub.f32 %v10991, %v11005
  %v11010 = vmul.f32 %v11006, %v11006
  %v11011 = vmul.f32 %v11007, %v11007
  %v11012 = vmul.f32 %v11008, %v11008
  %v11013 = vmul.f32 %v11009, %v11009
  %11014 = vadd.xlane.f32.xlu0 %v11010
  %v11015 = vpop.xlane.xlu0 %11014
  %11016 = vadd.xlane.f32.xlu0 %v11011
  %v11017 = vpop.xlane.xlu0 %11016
  %11018 = vadd.xlane.f32.xlu0 %v11012
  %v11019 = vpop.xlane.xlu0 %11018
  %11020 = vadd.xlane.f32.xlu0 %v11013
  %v11021 = vpop.xlane.xlu0 %11020
  %v11022 = vmul.f32 %v11015, %v7560
  %v11023 = vmul.f32 %v11017, %v7560
  %v11024 = vmul.f32 %v11019, %v7560
  %v11025 = vmul.f32 %v11021, %v7560
  %v11026 = vadd.f32 %v11022, 1e-06
  %v11027 = vadd.f32 %v11023, 1e-06
  %v11028 = vadd.f32 %v11024, 1e-06
  %v11029 = vadd.f32 %v11025, 1e-06
  %v11030 = vrsqrt.pop %v11026
  %v11031 = vrsqrt.pop %v11027
  %v11032 = vrsqrt.pop %v11028
  %v11033 = vrsqrt.pop %v11029
  %v11034 = vmul.f32 %v11006, %v11030
  %v11035 = vmul.f32 %v11007, %v11031
  %v11036 = vmul.f32 %v11008, %v11032
  %v11037 = vmul.f32 %v11009, %v11033
  %v11039 = vlaneseq
  %v11040 = vshrl.u32 %v11039, 7
  %v11041 = vsub.s32 0, %v11040
  %v11042 = vrot.slane %v10992, %v11041
  %v11044 = vmul.f32 %v11034, %v11042
  %v11045 = vmul.f32 %v11035, %v11042
  %v11046 = vmul.f32 %v11036, %v11042
  %v11047 = vmul.f32 %v11037, %v11042
  %v11049 = vlaneseq
  %v11050 = vshrl.u32 %v11049, 7
  %v11051 = vsub.s32 0, %v11050
  %v11052 = vrot.slane %v10993, %v11051
  %v11054 = vadd.f32 %v11044, %v11052
  %v11055 = vadd.f32 %v11045, %v11052
  %v11056 = vadd.f32 %v11046, %v11052
  %v11057 = vadd.f32 %v11047, %v11052
  %v11058 = vpack.c.bf16 %v11055, %v11054
  %v11059 = vpack.c.bf16 %v11057, %v11056
  %v11060 = vld [vmem:[%s49] sm:$0xf]
  %v11061 = vld [vmem:[%s49 + $0x4] sm:$0xf]
  %v11062 = vld [vmem:[%s49 + $0x8] sm:$0xf]
  %v11063 = vld [vmem:[%s49 + $0xc] sm:$0xf]
  %v11064 = vld [vmem:[%s49 + $0x10] sm:$0xf]
  %v11065 = vld [vmem:[%s49 + $0x14] sm:$0xf]
  %v11066 = vld [vmem:[%s49 + $0x18] sm:$0xf]
  %v11067 = vld [vmem:[%s49 + $0x1c] sm:$0xf]
  %v11068 = vld [vmem:[%s49 + $0x20] sm:$0xf]
  %v11069 = vld [vmem:[%s49 + $0x24] sm:$0xf]
  %v11070 = vld [vmem:[%s49 + $0x28] sm:$0xf]
  %v11071 = vld [vmem:[%s49 + $0x2c] sm:$0xf]
  %v11072 = vld [vmem:[%s49 + $0x30] sm:$0xf]
  %v11073 = vld [vmem:[%s49 + $0x34] sm:$0xf]
  %v11074 = vld [vmem:[%s49 + $0x38] sm:$0xf]
  %v11075 = vld [vmem:[%s49 + $0x3c] sm:$0xf]
  %v11076 = vld [vmem:[%s51] sm:$0x1]
  %v11078 = vlaneseq
  %v11079 = vshrl.u32 %v11078, 7
  %v11080 = vsub.s32 0, %v11079
  %v11081 = vrot.slane %v11076, %v11080
  %v11099 = vunpack.c.l.b16 %v11060
  %v11100 = vunpack.c.l.b16 %v11061
  %v11101 = vunpack.c.l.b16 %v11062
  %v11102 = vunpack.c.l.b16 %v11063
  %v11103 = vunpack.c.l.b16 %v11064
  %v11104 = vunpack.c.l.b16 %v11065
  %v11105 = vunpack.c.l.b16 %v11066
  %v11106 = vunpack.c.l.b16 %v11067
  %v11107 = vunpack.c.l.b16 %v11068
  %v11108 = vunpack.c.l.b16 %v11069
  %v11109 = vunpack.c.l.b16 %v11070
  %v11110 = vunpack.c.l.b16 %v11071
  %v11111 = vunpack.c.l.b16 %v11072
  %v11112 = vunpack.c.l.b16 %v11073
  %v11113 = vunpack.c.l.b16 %v11074
  %v11114 = vunpack.c.l.b16 %v11075
  %v11115 = vpack.c.b16 %v11100, %v11099
  %v11116 = vpack.c.b16 %v11102, %v11101
  %v11117 = vpack.c.b16 %v11104, %v11103
  %v11118 = vpack.c.b16 %v11106, %v11105
  %v11119 = vpack.c.b16 %v11108, %v11107
  %v11120 = vpack.c.b16 %v11110, %v11109
  %v11121 = vpack.c.b16 %v11112, %v11111
  %v11122 = vpack.c.b16 %v11114, %v11113
  %11131 = vmatprep.subr.bf16.mxu0 0
  %11132 = vmatpush1.bf16.msra.mxu0 %v11115
  %11133 = vmatprep.subr.bf16.mxu0 0
  %11134 = vmatpush1.bf16.msra.mxu0 %v11116
  %11135 = vmatprep.subr.bf16.mxu0 0
  %11136 = vmatpush1.bf16.msra.mxu0 %v11117
  %11137 = vmatprep.subr.bf16.mxu0 0
  %11138 = vmatpush1.bf16.msra.mxu0 %v11118
  %11139 = vmatprep.subr.bf16.mxu0 0
  %11140 = vmatpush1.bf16.msra.mxu0 %v11119
  %11141 = vmatprep.subr.bf16.mxu0 0
  %11142 = vmatpush1.bf16.msra.mxu0 %v11120
  %11143 = vmatprep.subr.bf16.mxu0 0
  %11144 = vmatpush1.bf16.msra.mxu0 %v11121
  %11145 = vmatprep.subr.bf16.mxu0 0
  %11146 = vmatpush1.bf16.msra.mxu0 %v11122
  %11147 = vmatprep.subr.bf16.mxu0 0
  %11148 = vmatpush1.bf16.msra.mxu0 0
  %11149 = vmatprep.subr.bf16.mxu0 0
  %11150 = vmatpush1.bf16.msra.mxu0 0
  %11151 = vmatprep.subr.bf16.mxu0 0
  %11152 = vmatpush1.bf16.msra.mxu0 0
  %11153 = vmatprep.subr.bf16.mxu0 0
  %11154 = vmatpush1.bf16.msra.mxu0 0
  %11155 = vmatprep.subr.bf16.mxu0 0
  %11156 = vmatpush1.bf16.msra.mxu0 0
  %11157 = vmatprep.subr.bf16.mxu0 0
  %11158 = vmatpush1.bf16.msra.mxu0 0
  %11159 = vmatprep.subr.bf16.mxu0 0
  %11160 = vmatpush1.bf16.msra.mxu0 0
  %11161 = vmatprep.subr.bf16.mxu0 0
  %11162 = vmatpush1.bf16.msra.mxu0 0
  %11163 = vmatprep.mubr.bf16.mxu0 0
  %11164 = vmatmul.mubr.bf16.gmra.mrb[0].mxu0 %v11058
  %v11165 = vpop.f32.mrb[0].mxu0
  %v11166 = vadd.f32 %v11081, %v11165
  %v11167 = vpop.f32.mrb[0].mxu0
  %v11168 = vpop.f32.mrb[0].mxu0
  %v11169 = vadd.f32 %v11081, %v11168
  %v11170 = vpop.f32.mrb[0].mxu0
  %11171 = vmatprep.mubr.bf16.mxu0 0
  %11172 = vmatmul.mubr.bf16.gmra.mrb[0].mxu0 %v11059
  %v11173 = vpop.f32.mrb[0].mxu0
  %v11174 = vadd.f32 %v11081, %v11173
  %v11175 = vpop.f32.mrb[0].mxu0
  %v11176 = vpop.f32.mrb[0].mxu0
  %v11177 = vadd.f32 %v11081, %v11176
  %v11178 = vpop.f32.mrb[0].mxu0
  %11179 = vdwg.mxu0
  %v11180 = vmul.f32 %v11166, 0.5
  %v11181 = vmul.f32 %v11169, 0.5
  %v11182 = vmul.f32 %v11174, 0.5
  %v11183 = vmul.f32 %v11177, 0.5
  %v11184 = vmul.f32 %v11166, 0.70710677
  %v11185 = vmul.f32 %v11169, 0.70710677
  %v11186 = vmul.f32 %v11174, 0.70710677
  %v11187 = vmul.f32 %v11177, 0.70710677
  %vm11188 = vcmp.ge.f32.partialorder %v11184, 0.0
  %vm11189 = vcmp.ge.f32.partialorder %v11185, 0.0
  %vm11190 = vcmp.ge.f32.partialorder %v11186, 0.0
  %vm11191 = vcmp.ge.f32.partialorder %v11187, 0.0
  %v11192 = vsel %vm11188, 1.0, -1.0
  %v11193 = vsel %vm11189, 1.0, -1.0
  %v11194 = vsel %vm11190, 1.0, -1.0
  %v11195 = vsel %vm11191, 1.0, -1.0
  %v11196 = vand.u32 2147483647, %v11184
  %v11197 = vand.u32 2147483647, %v11185
  %v11198 = vand.u32 2147483647, %v11186
  %v11199 = vand.u32 2147483647, %v11187
  %v11200 = vmul.f32 %v11196, 0.3275911
  %v11201 = vmul.f32 %v11197, 0.3275911
  %v11202 = vmul.f32 %v11198, 0.3275911
  %v11203 = vmul.f32 %v11199, 0.3275911
  %v11204 = vadd.f32 %v11200, 1.0
  %v11205 = vadd.f32 %v11201, 1.0
  %v11206 = vadd.f32 %v11202, 1.0
  %v11207 = vadd.f32 %v11203, 1.0
  %v11208 = vrcp.pop %v11204
  %v11209 = vmul.f32 1.0, %v11208
  %v11210 = vrcp.pop %v11205
  %v11211 = vmul.f32 1.0, %v11210
  %v11212 = vrcp.pop %v11206
  %v11213 = vmul.f32 1.0, %v11212
  %v11214 = vrcp.pop %v11207
  %v11215 = vmul.f32 1.0, %v11214
  %v11216 = vmul.f32 %v11209, 1.0614054
  %v11217 = vmul.f32 %v11211, 1.0614054
  %v11218 = vmul.f32 %v11213, 1.0614054
  %v11219 = vmul.f32 %v11215, 1.0614054
  %v11220 = vadd.f32 %v11216, -1.4531521
  %v11221 = vadd.f32 %v11217, -1.4531521
  %v11222 = vadd.f32 %v11218, -1.4531521
  %v11223 = vadd.f32 %v11219, -1.4531521
  %v11224 = vmul.f32 %v11220, %v11209
  %v11225 = vmul.f32 %v11221, %v11211
  %v11226 = vmul.f32 %v11222, %v11213
  %v11227 = vmul.f32 %v11223, %v11215
  %v11228 = vadd.f32 %v11224, 1.4214138
  %v11229 = vadd.f32 %v11225, 1.4214138
  %v11230 = vadd.f32 %v11226, 1.4214138
  %v11231 = vadd.f32 %v11227, 1.4214138
  %v11232 = vmul.f32 %v11228, %v11209
  %v11233 = vmul.f32 %v11229, %v11211
  %v11234 = vmul.f32 %v11230, %v11213
  %v11235 = vmul.f32 %v11231, %v11215
  %v11236 = vadd.f32 %v11232, -0.28449672
  %v11237 = vadd.f32 %v11233, -0.28449672
  %v11238 = vadd.f32 %v11234, -0.28449672
  %v11239 = vadd.f32 %v11235, -0.28449672
  %v11240 = vmul.f32 %v11236, %v11209
  %v11241 = vmul.f32 %v11237, %v11211
  %v11242 = vmul.f32 %v11238, %v11213
  %v11243 = vmul.f32 %v11239, %v11215
  %v11244 = vadd.f32 %v11240, 0.2548296
  %v11245 = vadd.f32 %v11241, 0.2548296
  %v11246 = vadd.f32 %v11242, 0.2548296
  %v11247 = vadd.f32 %v11243, 0.2548296
  %v11248 = vmul.f32 %v11244, %v11209
  %v11249 = vmul.f32 %v11245, %v11211
  %v11250 = vmul.f32 %v11246, %v11213
  %v11251 = vmul.f32 %v11247, %v11215
  %v11252 = vsub.f32 0.0, %v11196
  %v11253 = vsub.f32 0.0, %v11197
  %v11254 = vsub.f32 0.0, %v11198
  %v11255 = vsub.f32 0.0, %v11199
  %v11256 = vmul.f32 %v11252, %v11196
  %v11257 = vmul.f32 %v11253, %v11197
  %v11258 = vmul.f32 %v11254, %v11198
  %v11259 = vmul.f32 %v11255, %v11199
  %v11260 = vmul.f32 %v11256, 1.442695
  %v11261 = vpow.pop %v11260
  %v11262 = vmul.f32 %v11257, 1.442695
  %v11263 = vpow.pop %v11262
  %v11264 = vmul.f32 %v11258, 1.442695
  %v11265 = vpow.pop %v11264
  %v11266 = vmul.f32 %v11259, 1.442695
  %v11267 = vpow.pop %v11266
  %v11268 = vmul.f32 %v11248, %v11261
  %v11269 = vmul.f32 %v11249, %v11263
  %v11270 = vmul.f32 %v11250, %v11265
  %v11271 = vmul.f32 %v11251, %v11267
  %v11272 = vsub.f32 1.0, %v11268
  %v11273 = vsub.f32 1.0, %v11269
  %v11274 = vsub.f32 1.0, %v11270
  %v11275 = vsub.f32 1.0, %v11271
  %v11276 = vmul.f32 %v11192, %v11272
  %v11277 = vmul.f32 %v11193, %v11273
  %v11278 = vmul.f32 %v11194, %v11274
  %v11279 = vmul.f32 %v11195, %v11275
  %v11280 = vadd.f32 %v11276, 1.0
  %v11281 = vadd.f32 %v11277, 1.0
  %v11282 = vadd.f32 %v11278, 1.0
  %v11283 = vadd.f32 %v11279, 1.0
  %v11284 = vmul.f32 %v11180, %v11280
  %v11285 = vmul.f32 %v11181, %v11281
  %v11286 = vmul.f32 %v11182, %v11282
  %v11287 = vmul.f32 %v11183, %v11283
  %v11288 = vpack.c.bf16 %v11285, %v11284
  %v11289 = vpack.c.bf16 %v11287, %v11286
  %v11290 = vld [vmem:[%s53] sm:$0xf]
  %v11291 = vld [vmem:[%s53 + $0x4] sm:$0xf]
  %v11292 = vld [vmem:[%s53 + $0x8] sm:$0xf]
  %v11293 = vld [vmem:[%s53 + $0xc] sm:$0xf]
  %v11294 = vld [vmem:[%s53 + $0x10] sm:$0xf]
  %v11295 = vld [vmem:[%s53 + $0x14] sm:$0xf]
  %v11296 = vld [vmem:[%s53 + $0x18] sm:$0xf]
  %v11297 = vld [vmem:[%s53 + $0x1c] sm:$0xf]
  %v11306 = vunpack.c.l.b16 %v11290
  %v11307 = vunpack.c.l.b16 %v11291
  %v11308 = vunpack.c.l.b16 %v11292
  %v11309 = vunpack.c.l.b16 %v11293
  %v11310 = vunpack.c.l.b16 %v11294
  %v11311 = vunpack.c.l.b16 %v11295
  %v11312 = vunpack.c.l.b16 %v11296
  %v11313 = vunpack.c.l.b16 %v11297
  %v11314 = vpack.c.b16 %v11307, %v11306
  %v11315 = vpack.c.b16 %v11309, %v11308
  %v11316 = vpack.c.b16 %v11311, %v11310
  %v11317 = vpack.c.b16 %v11313, %v11312
  %v11323 = vsel %vm5724, %v11288, 0
  %v11326 = vsel %vm5724, %v11289, 0
  %11328 = vmatprep.subr.bf16.mxu0 0
  %11329 = vmatpush1.bf16.msra.mxu0 %v11314
  %11330 = vmatprep.subr.bf16.mxu0 0
  %11331 = vmatpush1.bf16.msra.mxu0 %v11315
  %11332 = vmatprep.subr.bf16.mxu0 0
  %11333 = vmatpush1.bf16.msra.mxu0 %v11316
  %11334 = vmatprep.subr.bf16.mxu0 0
  %11335 = vmatpush1.bf16.msra.mxu0 %v11317
  %11336 = vmatprep.subr.bf16.mxu0 0
  %11337 = vmatpush1.bf16.msra.mxu0 0
  %11338 = vmatprep.subr.bf16.mxu0 0
  %11339 = vmatpush1.bf16.msra.mxu0 0
  %11340 = vmatprep.subr.bf16.mxu0 0
  %11341 = vmatpush1.bf16.msra.mxu0 0
  %11342 = vmatprep.subr.bf16.mxu0 0
  %11343 = vmatpush1.bf16.msra.mxu0 0
  %11344 = vmatprep.subr.bf16.mxu0 0
  %11345 = vmatpush1.bf16.msra.mxu0 0
  %11346 = vmatprep.subr.bf16.mxu0 0
  %11347 = vmatpush1.bf16.msra.mxu0 0
  %11348 = vmatprep.subr.bf16.mxu0 0
  %11349 = vmatpush1.bf16.msra.mxu0 0
  %11350 = vmatprep.subr.bf16.mxu0 0
  %11351 = vmatpush1.bf16.msra.mxu0 0
  %11352 = vmatprep.subr.bf16.mxu0 0
  %11353 = vmatpush1.bf16.msra.mxu0 0
  %11354 = vmatprep.subr.bf16.mxu0 0
  %11355 = vmatpush1.bf16.msra.mxu0 0
  %11356 = vmatprep.subr.bf16.mxu0 0
  %11357 = vmatpush1.bf16.msra.mxu0 0
  %11358 = vmatprep.subr.bf16.mxu0 0
  %11359 = vmatpush1.bf16.msra.mxu0 0
  %11360 = vmatprep.mubr.bf16.mxu0 0
  %11361 = vmatmul.mubr.bf16.gmra.mrb[0].mxu0 %v11323
  %v11362 = vpop.f32.mrb[0].mxu0
  %v11363 = vadd.f32 0.0, %v11362
  %v11364 = vpop.f32.mrb[0].mxu0
  %v11365 = vpop.f32.mrb[0].mxu0
  %v11366 = vadd.f32 0.0, %v11365
  %v11367 = vpop.f32.mrb[0].mxu0
  %11368 = vmatprep.mubr.bf16.mxu0 0
  %11369 = vmatmul.mubr.bf16.gmra.mrb[0].mxu0 %v11326
  %v11370 = vpop.f32.mrb[0].mxu0
  %v11371 = vadd.f32 0.0, %v11370
  %v11372 = vpop.f32.mrb[0].mxu0
  %v11373 = vpop.f32.mrb[0].mxu0
  %v11374 = vadd.f32 0.0, %v11373
  %v11375 = vpop.f32.mrb[0].mxu0
  %11376 = vdwg.mxu0
  %v11377 = vadd.f32 %v10988, %v11363
  %v11378 = vadd.f32 %v10989, %v11366
  %v11379 = vadd.f32 %v10990, %v11371
  %v11380 = vadd.f32 %v10991, %v11374
  %v11381 = vld [vmem:[%s55] sm:$0x1]
  %v11383 = vlaneseq
  %v11384 = vshrl.u32 %v11383, 7
  %v11385 = vsub.s32 0, %v11384
  %v11386 = vrot.slane %v11381, %v11385
  %v11388 = vadd.f32 %v11377, %v11386
  %v11389 = vadd.f32 %v11378, %v11386
  %v11390 = vadd.f32 %v11379, %v11386
  %v11391 = vadd.f32 %v11380, %v11386
  %v11392 = vpack.c.bf16 %v11389, %v11388
  %v11393 = vpack.c.bf16 %v11391, %v11390
  %v11394 = vld [vmem:[%s57] sm:$0xf]
  %v11395 = vld [vmem:[%s57 + $0x4] sm:$0xf]
  %v11396 = vld [vmem:[%s57 + $0x8] sm:$0xf]
  %v11397 = vld [vmem:[%s57 + $0xc] sm:$0xf]
  %v11398 = vld [vmem:[%s57 + $0x10] sm:$0xf]
  %v11399 = vld [vmem:[%s57 + $0x14] sm:$0xf]
  %v11400 = vld [vmem:[%s57 + $0x18] sm:$0xf]
  %v11401 = vld [vmem:[%s57 + $0x1c] sm:$0xf]
  %v11402 = vld [vmem:[%s57 + $0x20] sm:$0xf]
  %v11403 = vld [vmem:[%s57 + $0x24] sm:$0xf]
  %v11404 = vld [vmem:[%s57 + $0x28] sm:$0xf]
  %v11405 = vld [vmem:[%s57 + $0x2c] sm:$0xf]
  %v11406 = vld [vmem:[%s57 + $0x30] sm:$0xf]
  %v11407 = vld [vmem:[%s57 + $0x34] sm:$0xf]
  %v11408 = vld [vmem:[%s57 + $0x38] sm:$0xf]
  %v11409 = vld [vmem:[%s57 + $0x3c] sm:$0xf]
  %v11410 = vld [vmem:[%s59] sm:$0x1]
  %v11412 = vlaneseq
  %v11413 = vshrl.u32 %v11412, 7
  %v11414 = vsub.s32 0, %v11413
  %v11415 = vrot.slane %v11410, %v11414
  %v11433 = vunpack.c.l.b16 %v11394
  %v11434 = vunpack.c.l.b16 %v11395
  %v11435 = vunpack.c.l.b16 %v11396
  %v11436 = vunpack.c.l.b16 %v11397
  %v11437 = vunpack.c.l.b16 %v11398
  %v11438 = vunpack.c.l.b16 %v11399
  %v11439 = vunpack.c.l.b16 %v11400
  %v11440 = vunpack.c.l.b16 %v11401
  %v11441 = vunpack.c.l.b16 %v11402
  %v11442 = vunpack.c.l.b16 %v11403
  %v11443 = vunpack.c.l.b16 %v11404
  %v11444 = vunpack.c.l.b16 %v11405
  %v11445 = vunpack.c.l.b16 %v11406
  %v11446 = vunpack.c.l.b16 %v11407
  %v11447 = vunpack.c.l.b16 %v11408
  %v11448 = vunpack.c.l.b16 %v11409
  %v11449 = vpack.c.b16 %v11434, %v11433
  %v11450 = vpack.c.b16 %v11436, %v11435
  %v11451 = vpack.c.b16 %v11438, %v11437
  %v11452 = vpack.c.b16 %v11440, %v11439
  %v11453 = vpack.c.b16 %v11442, %v11441
  %v11454 = vpack.c.b16 %v11444, %v11443
  %v11455 = vpack.c.b16 %v11446, %v11445
  %v11456 = vpack.c.b16 %v11448, %v11447
  %11465 = vmatprep.subr.bf16.mxu0 0
  %11466 = vmatpush1.bf16.msra.mxu0 %v11449
  %11467 = vmatprep.subr.bf16.mxu0 0
  %11468 = vmatpush1.bf16.msra.mxu0 %v11450
  %11469 = vmatprep.subr.bf16.mxu0 0
  %11470 = vmatpush1.bf16.msra.mxu0 %v11451
  %11471 = vmatprep.subr.bf16.mxu0 0
  %11472 = vmatpush1.bf16.msra.mxu0 %v11452
  %11473 = vmatprep.subr.bf16.mxu0 0
  %11474 = vmatpush1.bf16.msra.mxu0 %v11453
  %11475 = vmatprep.subr.bf16.mxu0 0
  %11476 = vmatpush1.bf16.msra.mxu0 %v11454
  %11477 = vmatprep.subr.bf16.mxu0 0
  %11478 = vmatpush1.bf16.msra.mxu0 %v11455
  %11479 = vmatprep.subr.bf16.mxu0 0
  %11480 = vmatpush1.bf16.msra.mxu0 %v11456
  %11481 = vmatprep.subr.bf16.mxu0 0
  %11482 = vmatpush1.bf16.msra.mxu0 0
  %11483 = vmatprep.subr.bf16.mxu0 0
  %11484 = vmatpush1.bf16.msra.mxu0 0
  %11485 = vmatprep.subr.bf16.mxu0 0
  %11486 = vmatpush1.bf16.msra.mxu0 0
  %11487 = vmatprep.subr.bf16.mxu0 0
  %11488 = vmatpush1.bf16.msra.mxu0 0
  %11489 = vmatprep.subr.bf16.mxu0 0
  %11490 = vmatpush1.bf16.msra.mxu0 0
  %11491 = vmatprep.subr.bf16.mxu0 0
  %11492 = vmatpush1.bf16.msra.mxu0 0
  %11493 = vmatprep.subr.bf16.mxu0 0
  %11494 = vmatpush1.bf16.msra.mxu0 0
  %11495 = vmatprep.subr.bf16.mxu0 0
  %11496 = vmatpush1.bf16.msra.mxu0 0
  %11497 = vmatprep.mubr.bf16.mxu0 0
  %11498 = vmatmul.mubr.bf16.gmra.mrb[0].mxu0 %v11392
  %v11499 = vpop.f32.mrb[0].mxu0
  %v11500 = vadd.f32 %v11415, %v11499
  %v11501 = vpop.f32.mrb[0].mxu0
  %v11502 = vpop.f32.mrb[0].mxu0
  %v11503 = vadd.f32 %v11415, %v11502
  %v11504 = vpop.f32.mrb[0].mxu0
  %11505 = vmatprep.mubr.bf16.mxu0 0
  %11506 = vmatmul.mubr.bf16.gmra.mrb[0].mxu0 %v11393
  %v11507 = vpop.f32.mrb[0].mxu0
  %v11508 = vadd.f32 %v11415, %v11507
  %v11509 = vpop.f32.mrb[0].mxu0
  %v11510 = vpop.f32.mrb[0].mxu0
  %v11511 = vadd.f32 %v11415, %v11510
  %v11512 = vpop.f32.mrb[0].mxu0
  %11513 = vdwg.mxu0
  %11514 = vst [vmem:[%s61] sm:$0xff] %v11500
  %11515 = vst [vmem:[%s61 + $0x8] sm:$0xff] %v11503
  %11516 = vst [vmem:[%s61 + $0x10] sm:$0xff] %v11508
  %11517 = vst [vmem:[%s61 + $0x18] sm:$0xff] %v11511
  // Predicated region
  $region122: #{transfor_birds_forward.1} parent=0 // pred_check
    _
  $region123: #{transfor_birds_forward.1} parent=0 // pred_check_branch
    %11519 = sbr.rel (0) target = $region125
  $region124: #{transfor_birds_forward.1} parent=0 // pred_region
    _
  $region125: #{transfor_birds_forward.1} parent=0 // pred_fallthru
    _
  // Predicated region
  $region126: #{transfor_birds_forward.1} parent=0 // pred_check
    _
  $region127: #{transfor_birds_forward.1} parent=0 // pred_check_branch
    %11521 = sbr.rel (0) target = $region129
  $region128: #{transfor_birds_forward.1} parent=0 // pred_region
    _
  $region129: #{transfor_birds_forward.1} parent=0 // pred_fallthru
    _

</llo_original>
